<compile_context>
chip_gen: v6e
topology: v6e:2x2x1
jax: 0.10.0
libtpu: 0.0.40
codegen_flags: <defaults>
</compile_context>

<pallas_src>
import functools

import jax
import jax.numpy as jnp
from jax.experimental import pallas as pl
from jax.experimental.pallas import tpu as pltpu

DROPOUT_P = 0.2  # PyTorch module uses nn.Dropout(p=0.2); identity under .eval()


def _ffn_kernel(x_ref, w1_ref, b1_ref, w2_ref, b2_ref, o_ref, *, h_chunk):
    """One row-tile of: relu(x @ W1^T + b1) @ W2^T + b2  (dropout = eval identity)."""
    x = x_ref[...]                                   # (tm, C) bf16
    tm = x.shape[0]
    C = o_ref.shape[1]
    H = w1_ref.shape[1]
    n_chunks = H // h_chunk

    acc = jnp.zeros((tm, C), dtype=jnp.float32)
    # Fuse the two matmuls over hidden-dim chunks: keeps the (tm, H) f32
    # intermediate bounded to (tm, h_chunk) and keeps the MXU fed back-to-back.
    for c in range(n_chunks):
        lo = c * h_chunk
        hi = lo + h_chunk
        h = jnp.dot(x, w1_ref[:, lo:hi], preferred_element_type=jnp.float32)
        h = jnp.maximum(h + b1_ref[:, lo:hi], 0.0)   # bias + ReLU in f32
        acc = acc + jnp.dot(h.astype(jnp.bfloat16), w2_ref[lo:hi, :],
                            preferred_element_type=jnp.float32)

    # Dropout: module is evaluated in inference mode -> identity.
    # TODO(synk): training-mode dropout (pltpu.prng_random_bits mask + 1/(1-p)
    # rescale) not wired up; eval-mode semantics implemented.
    o_ref[...] = (acc + b2_ref[...]).astype(o_ref.dtype)


@functools.partial(jax.jit, static_argnames=("row_tile",))
def feed_forward(x, w1, b1, w2, b2, *, row_tile=256):
    """x: (B, T, C) f32.  w1: (4C, C), b1: (4C,), w2: (C, 4C), b2: (C,) (PyTorch layout)."""
    B, T, C = x.shape
    H = w1.shape[0]                       # 4 * C
    M = B * T

    # Ragged rows: pad M up to a multiple of the row tile (cheap, done once).
    M_pad = pl.cdiv(M, row_tile) * row_tile
    x2d = x.reshape(M, C)
    if M_pad != M:
        x2d = jnp.pad(x2d, ((0, M_pad - M), (0, 0)))

    # bf16 MXU operands; accumulation stays f32 via preferred_element_type.
    x2d = x2d.astype(jnp.bfloat16)
    w1_t = w1.T.astype(jnp.bfloat16)      # (C, H)
    w2_t = w2.T.astype(jnp.bfloat16)      # (H, C)
    b1_2d = b1.reshape(1, H).astype(jnp.float32)
    b2_2d = b2.reshape(1, C).astype(jnp.float32)

    # Hidden-dim chunk for the fused matmul loop.
    h_chunk = 512 if (H > 512 and H % 512 == 0) else H

    grid = (M_pad // row_tile,)

    flops = 4 * M_pad * C * H             # two (M, C, H) matmuls
    bytes_accessed = (x2d.size * 2 + w1_t.size * 2 + w2_t.size * 2
                      + b1_2d.size * 4 + b2_2d.size * 4 + M_pad * C * 4)

    # Weights / biases are grid-invariant -> single-buffer them; only the x
    # tile and the output tile need double buffering.
    resident = dict(pipeline_mode=pl.Buffered(1))

    out2d = pl.pallas_call(
        functools.partial(_ffn_kernel, h_chunk=h_chunk),
        out_shape=jax.ShapeDtypeStruct((M_pad, C), x.dtype),
        grid_spec=pltpu.PrefetchScalarGridSpec(
            num_scalar_prefetch=0,
            grid=grid,
            in_specs=[
                pl.BlockSpec((row_tile, C), lambda i: (i, 0)),        # x row tile
                pl.BlockSpec((C, H), lambda i: (0, 0), **resident),   # W1^T (resident)
                pl.BlockSpec((1, H), lambda i: (0, 0), **resident),   # b1
                pl.BlockSpec((H, C), lambda i: (0, 0), **resident),   # W2^T (resident)
                pl.BlockSpec((1, C), lambda i: (0, 0), **resident),   # b2
            ],
            out_specs=pl.BlockSpec((row_tile, C), lambda i: (i, 0)),
        ),
        compiler_params=pltpu.CompilerParams(
            dimension_semantics=("parallel",),
            vmem_limit_bytes=64 * 1024 * 1024,
        ),
        cost_estimate=pl.CostEstimate(
            flops=flops, transcendentals=0, bytes_accessed=bytes_accessed),
    )(x2d, w1_t, b1_2d, w2_t, b2_2d)

    return out2d[:M].reshape(B, T, C)


def _reference(x, w1, b1, w2, b2):
    h = jnp.maximum(x @ w1.T + b1, 0.0)
    return h @ w2.T + b2  # dropout is identity in eval mode


if __name__ == "__main__":
    # Small shapes consistent with the module: FeedForward(n_embd=384) on (B, T, C).
    B, T, C = 2, 8, 384
    H = 4 * C

    key = jax.random.PRNGKey(0)
    kx, k1, kb1, k2, kb2 = jax.random.split(key, 5)

    x = jax.random.normal(kx, (B, T, C), dtype=jnp.float32)
    # Deterministic synthetic parameters (PyTorch Linear shapes: (out, in)).
    w1 = jax.random.normal(k1, (H, C), dtype=jnp.float32) * (1.0 / C) ** 0.5
    b1 = jax.random.normal(kb1, (H,), dtype=jnp.float32) * 0.01
    w2 = jax.random.normal(k2, (C, H), dtype=jnp.float32) * (1.0 / H) ** 0.5
    b2 = jax.random.normal(kb2, (C,), dtype=jnp.float32) * 0.01

    out = jax.block_until_ready(feed_forward(x, w1, b1, w2, b2))

    ref = _reference(x, w1, b1, w2, b2)
    assert out.shape == (B, T, C), out.shape
    # bf16 MXU operands (f32 accumulation) -> looser tolerance vs the f32 reference.
    err = float(jnp.max(jnp.abs(out - ref)))
    assert jnp.allclose(out, ref, atol=5e-2, rtol=5e-2), f"mismatch vs reference, max abs err={err}"

    print("KERNEL_OK")
</pallas_src>

<mosaic_0001>
module attributes {stable_mosaic.version = 11 : i64} {
  func.func @_ffn_kernel(%arg0: i32, %arg1: memref<256x384xbf16, #tpu.memory_space<vmem>>, %arg2: memref<384x1536xbf16, #tpu.memory_space<vmem>>, %arg3: memref<1x1536xf32, #tpu.memory_space<vmem>>, %arg4: memref<1536x384xbf16, #tpu.memory_space<vmem>>, %arg5: memref<1x384xf32, #tpu.memory_space<vmem>>, %arg6: memref<256x384xf32, #tpu.memory_space<vmem>>) attributes {dimension_semantics = [#tpu.dimension_semantics<parallel>], iteration_bounds = array<i64: 1>, scalar_prefetch = 0 : i64, scratch_operands = 0 : i64, tpu.core_type = #tpu.core_type<tc>, window_params = [{transform_indices = @transform_0, window_bounds = array<i64: 256, 384>}, {pipeline_mode = #tpu.pipeline_mode<synchronous>, transform_indices = @transform_1, window_bounds = array<i64: 384, 1536>}, {pipeline_mode = #tpu.pipeline_mode<synchronous>, transform_indices = @transform_2, window_bounds = array<i64: 1, 1536>}, {pipeline_mode = #tpu.pipeline_mode<synchronous>, transform_indices = @transform_3, window_bounds = array<i64: 1536, 384>}, {pipeline_mode = #tpu.pipeline_mode<synchronous>, transform_indices = @transform_4, window_bounds = array<i64: 1, 384>}, {transform_indices = @transform_5, window_bounds = array<i64: 256, 384>}]} {
    %c0 = arith.constant 0 : index
    %c0_0 = arith.constant 0 : index
    %0 = vector.load %arg1[%c0, %c0_0] : memref<256x384xbf16, #tpu.memory_space<vmem>>, vector<256x384xbf16>
    %cst = arith.constant 0.000000e+00 : f32
    %1 = vector.broadcast %cst : f32 to vector<256x384xf32>
    %c0_1 = arith.constant 0 : index
    %c0_2 = arith.constant 0 : index
    %2 = vector.load %arg2[%c0_1, %c0_2] : memref<384x1536xbf16, #tpu.memory_space<vmem>>, vector<384x512xbf16>
    %cst_3 = arith.constant dense<0.000000e+00> : vector<256x512xf32>
    %3 = tpu.matmul %0, %2, %cst_3 {dimension_numbers = #tpu.dot_dimension_numbers<[1], [0], [0], [1], [0, 0, 1, 1], [], []>} : vector<256x384xbf16>, vector<384x512xbf16>, vector<256x512xf32> -> vector<256x512xf32>
    %c0_4 = arith.constant 0 : index
    %c0_5 = arith.constant 0 : index
    %4 = vector.load %arg3[%c0_4, %c0_5] : memref<1x1536xf32, #tpu.memory_space<vmem>>, vector<1x512xf32>
    %5 = vector.broadcast %4 : vector<1x512xf32> to vector<256x512xf32>
    %6 = arith.addf %3, %5 : vector<256x512xf32>
    %cst_6 = arith.constant 0.000000e+00 : f32
    %7 = vector.broadcast %cst_6 : f32 to vector<256x512xf32>
    %8 = arith.maximumf %6, %7 : vector<256x512xf32>
    %9 = arith.truncf %8 : vector<256x512xf32> to vector<256x512xbf16>
    %c0_7 = arith.constant 0 : index
    %c0_8 = arith.constant 0 : index
    %10 = vector.load %arg4[%c0_7, %c0_8] : memref<1536x384xbf16, #tpu.memory_space<vmem>>, vector<512x384xbf16>
    %cst_9 = arith.constant dense<0.000000e+00> : vector<256x384xf32>
    %11 = tpu.matmul %9, %10, %cst_9 {dimension_numbers = #tpu.dot_dimension_numbers<[1], [0], [0], [1], [0, 0, 1, 1], [], []>} : vector<256x512xbf16>, vector<512x384xbf16>, vector<256x384xf32> -> vector<256x384xf32>
    %12 = arith.addf %1, %11 : vector<256x384xf32>
    %c0_10 = arith.constant 0 : index
    %c512 = arith.constant 512 : index
    %13 = vector.load %arg2[%c0_10, %c512] : memref<384x1536xbf16, #tpu.memory_space<vmem>>, vector<384x512xbf16>
    %cst_11 = arith.constant dense<0.000000e+00> : vector<256x512xf32>
    %14 = tpu.matmul %0, %13, %cst_11 {dimension_numbers = #tpu.dot_dimension_numbers<[1], [0], [0], [1], [0, 0, 1, 1], [], []>} : vector<256x384xbf16>, vector<384x512xbf16>, vector<256x512xf32> -> vector<256x512xf32>
    %c0_12 = arith.constant 0 : index
    %c512_13 = arith.constant 512 : index
    %15 = vector.load %arg3[%c0_12, %c512_13] : memref<1x1536xf32, #tpu.memory_space<vmem>>, vector<1x512xf32>
    %16 = vector.broadcast %15 : vector<1x512xf32> to vector<256x512xf32>
    %17 = arith.addf %14, %16 : vector<256x512xf32>
    %cst_14 = arith.constant 0.000000e+00 : f32
    %18 = vector.broadcast %cst_14 : f32 to vector<256x512xf32>
    %19 = arith.maximumf %17, %18 : vector<256x512xf32>
    %20 = arith.truncf %19 : vector<256x512xf32> to vector<256x512xbf16>
    %c512_15 = arith.constant 512 : index
    %c0_16 = arith.constant 0 : index
    %21 = vector.load %arg4[%c512_15, %c0_16] : memref<1536x384xbf16, #tpu.memory_space<vmem>>, vector<512x384xbf16>
    %cst_17 = arith.constant dense<0.000000e+00> : vector<256x384xf32>
    %22 = tpu.matmul %20, %21, %cst_17 {dimension_numbers = #tpu.dot_dimension_numbers<[1], [0], [0], [1], [0, 0, 1, 1], [], []>} : vector<256x512xbf16>, vector<512x384xbf16>, vector<256x384xf32> -> vector<256x384xf32>
    %23 = arith.addf %12, %22 : vector<256x384xf32>
    %c0_18 = arith.constant 0 : index
    %c1024 = arith.constant 1024 : index
    %24 = vector.load %arg2[%c0_18, %c1024] : memref<384x1536xbf16, #tpu.memory_space<vmem>>, vector<384x512xbf16>
    %cst_19 = arith.constant dense<0.000000e+00> : vector<256x512xf32>
    %25 = tpu.matmul %0, %24, %cst_19 {dimension_numbers = #tpu.dot_dimension_numbers<[1], [0], [0], [1], [0, 0, 1, 1], [], []>} : vector<256x384xbf16>, vector<384x512xbf16>, vector<256x512xf32> -> vector<256x512xf32>
    %c0_20 = arith.constant 0 : index
    %c1024_21 = arith.constant 1024 : index
    %26 = vector.load %arg3[%c0_20, %c1024_21] : memref<1x1536xf32, #tpu.memory_space<vmem>>, vector<1x512xf32>
    %27 = vector.broadcast %26 : vector<1x512xf32> to vector<256x512xf32>
    %28 = arith.addf %25, %27 : vector<256x512xf32>
    %cst_22 = arith.constant 0.000000e+00 : f32
    %29 = vector.broadcast %cst_22 : f32 to vector<256x512xf32>
    %30 = arith.maximumf %28, %29 : vector<256x512xf32>
    %31 = arith.truncf %30 : vector<256x512xf32> to vector<256x512xbf16>
    %c1024_23 = arith.constant 1024 : index
    %c0_24 = arith.constant 0 : index
    %32 = vector.load %arg4[%c1024_23, %c0_24] : memref<1536x384xbf16, #tpu.memory_space<vmem>>, vector<512x384xbf16>
    %cst_25 = arith.constant dense<0.000000e+00> : vector<256x384xf32>
    %33 = tpu.matmul %31, %32, %cst_25 {dimension_numbers = #tpu.dot_dimension_numbers<[1], [0], [0], [1], [0, 0, 1, 1], [], []>} : vector<256x512xbf16>, vector<512x384xbf16>, vector<256x384xf32> -> vector<256x384xf32>
    %34 = arith.addf %23, %33 : vector<256x384xf32>
    %c0_26 = arith.constant 0 : index
    %c0_27 = arith.constant 0 : index
    %35 = vector.load %arg5[%c0_26, %c0_27] : memref<1x384xf32, #tpu.memory_space<vmem>>, vector<1x384xf32>
    %36 = vector.broadcast %35 : vector<1x384xf32> to vector<256x384xf32>
    %37 = arith.addf %34, %36 : vector<256x384xf32>
    %c0_28 = arith.constant 0 : index
    %c0_29 = arith.constant 0 : index
    %38 = vector.load %arg6[%c0_28, %c0_29] : memref<256x384xf32, #tpu.memory_space<vmem>>, vector<256x384xf32>
    tpu.vector_store %arg6[%c0_28, %c0_29], %37 {strides = array<i32>} : memref<256x384xf32, #tpu.memory_space<vmem>>, vector<256x384xf32>,
    return
  }
  func.func @transform_0(%arg0: i32) -> (i32, i32) {
    %c0_i32 = arith.constant 0 : i32
    %c0_i32_0 = arith.constant 0 : i32
    return %arg0, %c0_i32 : i32, i32
  }
  func.func @transform_1(%arg0: i32) -> (i32, i32) {
    %c0_i32 = arith.constant 0 : i32
    %c0_i32_0 = arith.constant 0 : i32
    %c0_i32_1 = arith.constant 0 : i32
    return %c0_i32, %c0_i32_0 : i32, i32
  }
  func.func @transform_2(%arg0: i32) -> (i32, i32) {
    %c0_i32 = arith.constant 0 : i32
    %c0_i32_0 = arith.constant 0 : i32
    %c0_i32_1 = arith.constant 0 : i32
    return %c0_i32, %c0_i32_0 : i32, i32
  }
  func.func @transform_3(%arg0: i32) -> (i32, i32) {
    %c0_i32 = arith.constant 0 : i32
    %c0_i32_0 = arith.constant 0 : i32
    %c0_i32_1 = arith.constant 0 : i32
    return %c0_i32, %c0_i32_0 : i32, i32
  }
  func.func @transform_4(%arg0: i32) -> (i32, i32) {
    %c0_i32 = arith.constant 0 : i32
    %c0_i32_0 = arith.constant 0 : i32
    %c0_i32_1 = arith.constant 0 : i32
    return %c0_i32, %c0_i32_0 : i32, i32
  }
  func.func @transform_5(%arg0: i32) -> (i32, i32) {
    %c0_i32 = arith.constant 0 : i32
    %c0_i32_0 = arith.constant 0 : i32
    return %arg0, %c0_i32 : i32, i32
  }
}

</mosaic_0001>

<llo_original>
// kernel: feed_forward.1
$region0: #{feed_forward.1}
  #allocation0 [shape = 'u32[]', space=smem, size = 0x4, offset = 0x4, fixed_abs, tag = 'smem constant byte address 0x4 - core index']
  #allocation1 [shape = 'u32[144,128]{1,0:T(1,128)}', space=vmem, size = 0x12000, scoped, tag = 'internal scratch']
  %s0 = inlined_call_operand.vmem [shape: bf16[256,384], index: 0, kind: input, shape index: {}]
  %s1 = inlined_call_operand.vmem [shape: bf16[384,1536], index: 1, kind: input, shape index: {}]
  %s2 = inlined_call_operand.vmem [shape: f32[1,1536], index: 2, kind: input, shape index: {}]
  %s3 = inlined_call_operand.vmem [shape: bf16[1536,384], index: 3, kind: input, shape index: {}]
  %s4 = inlined_call_operand.vmem [shape: f32[1,384], index: 4, kind: input, shape index: {}]
  %s5 = inlined_call_operand.vmem [shape: f32[256,384], index: 5, kind: output, shape index: {}]
  %s6 = sld [smem:[#allocation0]]
  $region30: #{feed_forward.1} parent=0
    _
  %s8 = ssub.s32 1, %s6
  %s9 = scalar_select 0, %s8, %s6
  // Predicated region
  $region2: #{feed_forward.1} parent=0 // pred_check
    _
  $region3: #{feed_forward.1} parent=0 // pred_check_branch
    %11 = sbr.rel (0) target = $region5
  $region4: #{feed_forward.1} parent=0 // pred_region
    _
  $region5: #{feed_forward.1} parent=0 // pred_fallthru
    _
  // Predicated region
  $region6: #{feed_forward.1} parent=0 // pred_check
    _
  $region7: #{feed_forward.1} parent=0 // pred_check_branch
    %13 = sbr.rel (0) target = $region9
  $region8: #{feed_forward.1} parent=0 // pred_region
    _
  $region9: #{feed_forward.1} parent=0 // pred_fallthru
    _
  // Predicated region
  $region10: #{feed_forward.1} parent=0 // pred_check
    _
  $region11: #{feed_forward.1} parent=0 // pred_check_branch
    %15 = sbr.rel (0) target = $region13
  $region12: #{feed_forward.1} parent=0 // pred_region
    _
  $region13: #{feed_forward.1} parent=0 // pred_fallthru
    _
  // Predicated region
  $region14: #{feed_forward.1} parent=0 // pred_check
    _
  $region15: #{feed_forward.1} parent=0 // pred_check_branch
    %17 = sbr.rel (0) target = $region17
  $region16: #{feed_forward.1} parent=0 // pred_region
    _
  $region17: #{feed_forward.1} parent=0 // pred_fallthru
    _
  // Predicated region
  $region18: #{feed_forward.1} parent=0 // pred_check
    _
  $region19: #{feed_forward.1} parent=0 // pred_check_branch
    %19 = sbr.rel (0) target = $region21
  $region20: #{feed_forward.1} parent=0 // pred_region
    _
  $region21: #{feed_forward.1} parent=0 // pred_fallthru
    _
  %v21 = vld [vmem:[%s0] sm:$0xff]
  %v22 = vld [vmem:[%s0 + $0x8] sm:$0xf]
  %v23 = vld [vmem:[%s0 + $0xc] sm:$0xff]
  %v24 = vld [vmem:[%s0 + $0x14] sm:$0xf]
  %v25 = vld [vmem:[%s0 + $0x18] sm:$0xff]
  %v26 = vld [vmem:[%s0 + $0x20] sm:$0xf]
  %v27 = vld [vmem:[%s0 + $0x24] sm:$0xff]
  %v28 = vld [vmem:[%s0 + $0x2c] sm:$0xf]
  %v29 = vld [vmem:[%s0 + $0x30] sm:$0xff]
  %v30 = vld [vmem:[%s0 + $0x38] sm:$0xf]
  %v31 = vld [vmem:[%s0 + $0x3c] sm:$0xff]
  %v32 = vld [vmem:[%s0 + $0x44] sm:$0xf]
  %v33 = vld [vmem:[%s0 + $0x48] sm:$0xff]
  %v34 = vld [vmem:[%s0 + $0x50] sm:$0xf]
  %v35 = vld [vmem:[%s0 + $0x54] sm:$0xff]
  %v36 = vld [vmem:[%s0 + $0x5c] sm:$0xf]
  %v37 = vld [vmem:[%s0 + $0x60] sm:$0xff]
  %v38 = vld [vmem:[%s0 + $0x68] sm:$0xf]
  %v39 = vld [vmem:[%s0 + $0x6c] sm:$0xff]
  %v40 = vld [vmem:[%s0 + $0x74] sm:$0xf]
  %v41 = vld [vmem:[%s0 + $0x78] sm:$0xff]
  %v42 = vld [vmem:[%s0 + $0x80] sm:$0xf]
  %v43 = vld [vmem:[%s0 + $0x84] sm:$0xff]
  %v44 = vld [vmem:[%s0 + $0x8c] sm:$0xf]
  %v45 = vld [vmem:[%s0 + $0x90] sm:$0xff]
  %v46 = vld [vmem:[%s0 + $0x98] sm:$0xf]
  %v47 = vld [vmem:[%s0 + $0x9c] sm:$0xff]
  %v48 = vld [vmem:[%s0 + $0xa4] sm:$0xf]
  %v49 = vld [vmem:[%s0 + $0xa8] sm:$0xff]
  %v50 = vld [vmem:[%s0 + $0xb0] sm:$0xf]
  %v51 = vld [vmem:[%s0 + $0xb4] sm:$0xff]
  %v52 = vld [vmem:[%s0 + $0xbc] sm:$0xf]
  %v53 = vld [vmem:[%s0 + $0xc0] sm:$0xff]
  %v54 = vld [vmem:[%s0 + $0xc8] sm:$0xf]
  %v55 = vld [vmem:[%s0 + $0xcc] sm:$0xff]
  %v56 = vld [vmem:[%s0 + $0xd4] sm:$0xf]
  %v57 = vld [vmem:[%s0 + $0xd8] sm:$0xff]
  %v58 = vld [vmem:[%s0 + $0xe0] sm:$0xf]
  %v59 = vld [vmem:[%s0 + $0xe4] sm:$0xff]
  %v60 = vld [vmem:[%s0 + $0xec] sm:$0xf]
  %v61 = vld [vmem:[%s0 + $0xf0] sm:$0xff]
  %v62 = vld [vmem:[%s0 + $0xf8] sm:$0xf]
  %v63 = vld [vmem:[%s0 + $0xfc] sm:$0xff]
  %v64 = vld [vmem:[%s0 + $0x104] sm:$0xf]
  %v65 = vld [vmem:[%s0 + $0x108] sm:$0xff]
  %v66 = vld [vmem:[%s0 + $0x110] sm:$0xf]
  %v67 = vld [vmem:[%s0 + $0x114] sm:$0xff]
  %v68 = vld [vmem:[%s0 + $0x11c] sm:$0xf]
  %v69 = vld [vmem:[%s0 + $0x120] sm:$0xff]
  %v70 = vld [vmem:[%s0 + $0x128] sm:$0xf]
  %v71 = vld [vmem:[%s0 + $0x12c] sm:$0xff]
  %v72 = vld [vmem:[%s0 + $0x134] sm:$0xf]
  %v73 = vld [vmem:[%s0 + $0x138] sm:$0xff]
  %v74 = vld [vmem:[%s0 + $0x140] sm:$0xf]
  %v75 = vld [vmem:[%s0 + $0x144] sm:$0xff]
  %v76 = vld [vmem:[%s0 + $0x14c] sm:$0xf]
  %v77 = vld [vmem:[%s0 + $0x150] sm:$0xff]
  %v78 = vld [vmem:[%s0 + $0x158] sm:$0xf]
  %v79 = vld [vmem:[%s0 + $0x15c] sm:$0xff]
  %v80 = vld [vmem:[%s0 + $0x164] sm:$0xf]
  %v81 = vld [vmem:[%s0 + $0x168] sm:$0xff]
  %v82 = vld [vmem:[%s0 + $0x170] sm:$0xf]
  %v83 = vld [vmem:[%s0 + $0x174] sm:$0xff]
  %v84 = vld [vmem:[%s0 + $0x17c] sm:$0xf]
  %v85 = vld [vmem:[%s1] sm:$0xff]
  %v86 = vld [vmem:[%s1 + $0x8] sm:$0xff]
  %v87 = vld [vmem:[%s1 + $0x30] sm:$0xff]
  %v88 = vld [vmem:[%s1 + $0x38] sm:$0xff]
  %v89 = vld [vmem:[%s1 + $0x60] sm:$0xff]
  %v90 = vld [vmem:[%s1 + $0x68] sm:$0xff]
  %v91 = vld [vmem:[%s1 + $0x90] sm:$0xff]
  %v92 = vld [vmem:[%s1 + $0x98] sm:$0xff]
  %v93 = vld [vmem:[%s1 + $0xc0] sm:$0xff]
  %v94 = vld [vmem:[%s1 + $0xc8] sm:$0xff]
  %v95 = vld [vmem:[%s1 + $0xf0] sm:$0xff]
  %v96 = vld [vmem:[%s1 + $0xf8] sm:$0xff]
  %v97 = vld [vmem:[%s1 + $0x120] sm:$0xff]
  %v98 = vld [vmem:[%s1 + $0x128] sm:$0xff]
  %v99 = vld [vmem:[%s1 + $0x150] sm:$0xff]
  %v100 = vld [vmem:[%s1 + $0x158] sm:$0xff]
  %v101 = vld [vmem:[%s1 + $0x180] sm:$0xff]
  %v102 = vld [vmem:[%s1 + $0x188] sm:$0xff]
  %v103 = vld [vmem:[%s1 + $0x1b0] sm:$0xff]
  %v104 = vld [vmem:[%s1 + $0x1b8] sm:$0xff]
  %v105 = vld [vmem:[%s1 + $0x1e0] sm:$0xff]
  %v106 = vld [vmem:[%s1 + $0x1e8] sm:$0xff]
  %v107 = vld [vmem:[%s1 + $0x210] sm:$0xff]
  %v108 = vld [vmem:[%s1 + $0x218] sm:$0xff]
  %v109 = vld [vmem:[%s1 + $0x240] sm:$0xff]
  %v110 = vld [vmem:[%s1 + $0x248] sm:$0xff]
  %v111 = vld [vmem:[%s1 + $0x270] sm:$0xff]
  %v112 = vld [vmem:[%s1 + $0x278] sm:$0xff]
  %v113 = vld [vmem:[%s1 + $0x2a0] sm:$0xff]
  %v114 = vld [vmem:[%s1 + $0x2a8] sm:$0xff]
  %v115 = vld [vmem:[%s1 + $0x2d0] sm:$0xff]
  %v116 = vld [vmem:[%s1 + $0x2d8] sm:$0xff]
  %v117 = vld [vmem:[%s1 + $0x300] sm:$0xff]
  %v118 = vld [vmem:[%s1 + $0x308] sm:$0xff]
  %v119 = vld [vmem:[%s1 + $0x330] sm:$0xff]
  %v120 = vld [vmem:[%s1 + $0x338] sm:$0xff]
  %v121 = vld [vmem:[%s1 + $0x360] sm:$0xff]
  %v122 = vld [vmem:[%s1 + $0x368] sm:$0xff]
  %v123 = vld [vmem:[%s1 + $0x390] sm:$0xff]
  %v124 = vld [vmem:[%s1 + $0x398] sm:$0xff]
  %v125 = vld [vmem:[%s1 + $0x3c0] sm:$0xff]
  %v126 = vld [vmem:[%s1 + $0x3c8] sm:$0xff]
  %v127 = vld [vmem:[%s1 + $0x3f0] sm:$0xff]
  %v128 = vld [vmem:[%s1 + $0x3f8] sm:$0xff]
  %v129 = vld [vmem:[%s1 + $0x420] sm:$0xff]
  %v130 = vld [vmem:[%s1 + $0x428] sm:$0xff]
  %v131 = vld [vmem:[%s1 + $0x450] sm:$0xff]
  %v132 = vld [vmem:[%s1 + $0x458] sm:$0xff]
  %v133 = vld [vmem:[%s1 + $0x480] sm:$0xff]
  %v134 = vld [vmem:[%s1 + $0x488] sm:$0xff]
  %v135 = vld [vmem:[%s1 + $0x4b0] sm:$0xff]
  %v136 = vld [vmem:[%s1 + $0x4b8] sm:$0xff]
  %v137 = vld [vmem:[%s1 + $0x4e0] sm:$0xff]
  %v138 = vld [vmem:[%s1 + $0x4e8] sm:$0xff]
  %v139 = vld [vmem:[%s1 + $0x510] sm:$0xff]
  %v140 = vld [vmem:[%s1 + $0x518] sm:$0xff]
  %v141 = vld [vmem:[%s1 + $0x540] sm:$0xff]
  %v142 = vld [vmem:[%s1 + $0x548] sm:$0xff]
  %v143 = vld [vmem:[%s1 + $0x570] sm:$0xff]
  %v144 = vld [vmem:[%s1 + $0x578] sm:$0xff]
  %v145 = vld [vmem:[%s1 + $0x5a0] sm:$0xff]
  %v146 = vld [vmem:[%s1 + $0x5a8] sm:$0xff]
  %v147 = vld [vmem:[%s1 + $0x5d0] sm:$0xff]
  %v148 = vld [vmem:[%s1 + $0x5d8] sm:$0xff]
  %v149 = vld [vmem:[%s1 + $0x600] sm:$0xff]
  %v150 = vld [vmem:[%s1 + $0x608] sm:$0xff]
  %v151 = vld [vmem:[%s1 + $0x630] sm:$0xff]
  %v152 = vld [vmem:[%s1 + $0x638] sm:$0xff]
  %v153 = vld [vmem:[%s1 + $0x660] sm:$0xff]
  %v154 = vld [vmem:[%s1 + $0x668] sm:$0xff]
  %v155 = vld [vmem:[%s1 + $0x690] sm:$0xff]
  %v156 = vld [vmem:[%s1 + $0x698] sm:$0xff]
  %v157 = vld [vmem:[%s1 + $0x6c0] sm:$0xff]
  %v158 = vld [vmem:[%s1 + $0x6c8] sm:$0xff]
  %v159 = vld [vmem:[%s1 + $0x6f0] sm:$0xff]
  %v160 = vld [vmem:[%s1 + $0x6f8] sm:$0xff]
  %v161 = vld [vmem:[%s1 + $0x720] sm:$0xff]
  %v162 = vld [vmem:[%s1 + $0x728] sm:$0xff]
  %v163 = vld [vmem:[%s1 + $0x750] sm:$0xff]
  %v164 = vld [vmem:[%s1 + $0x758] sm:$0xff]
  %v165 = vld [vmem:[%s1 + $0x780] sm:$0xff]
  %v166 = vld [vmem:[%s1 + $0x788] sm:$0xff]
  %v167 = vld [vmem:[%s1 + $0x7b0] sm:$0xff]
  %v168 = vld [vmem:[%s1 + $0x7b8] sm:$0xff]
  %v169 = vld [vmem:[%s1 + $0x7e0] sm:$0xff]
  %v170 = vld [vmem:[%s1 + $0x7e8] sm:$0xff]
  %v171 = vld [vmem:[%s1 + $0x810] sm:$0xff]
  %v172 = vld [vmem:[%s1 + $0x818] sm:$0xff]
  %v173 = vld [vmem:[%s1 + $0x840] sm:$0xff]
  %v174 = vld [vmem:[%s1 + $0x848] sm:$0xff]
  %v175 = vld [vmem:[%s1 + $0x870] sm:$0xff]
  %v176 = vld [vmem:[%s1 + $0x878] sm:$0xff]
  %v177 = vld [vmem:[%s1 + $0x8a0] sm:$0xff]
  %v178 = vld [vmem:[%s1 + $0x8a8] sm:$0xff]
  %v179 = vld [vmem:[%s1 + $0x8d0] sm:$0xff]
  %v180 = vld [vmem:[%s1 + $0x8d8] sm:$0xff]
  %v181 = vld [vmem:[%s2] sm:$0xf]
  %v183 = vlaneseq
  %v184 = vshrl.u32 %v183, 7
  %v185 = vsub.s32 0, %v184
  %v186 = vrot.slane %v181, %v185
  %v187 = vlaneseq
  %v188 = vshrl.u32 %v187, 7
  %v189 = vsub.s32 1, %v188
  %v190 = vrot.slane %v181, %v189
  %v191 = vlaneseq
  %v192 = vshrl.u32 %v191, 7
  %v193 = vsub.s32 2, %v192
  %v194 = vrot.slane %v181, %v193
  %v195 = vlaneseq
  %v196 = vshrl.u32 %v195, 7
  %v197 = vsub.s32 3, %v196
  %v198 = vrot.slane %v181, %v197
  %v267 = vunpack.c.l.b16 %v21
  %v268 = vunpack.c.h.b16 %v21
  %v269 = vunpack.c.l.b16 %v22
  %v270 = vunpack.c.l.b16 %v23
  %v271 = vunpack.c.h.b16 %v23
  %v272 = vunpack.c.l.b16 %v24
  %v273 = vunpack.c.l.b16 %v25
  %v274 = vunpack.c.h.b16 %v25
  %v275 = vunpack.c.l.b16 %v26
  %v276 = vunpack.c.l.b16 %v27
  %v277 = vunpack.c.h.b16 %v27
  %v278 = vunpack.c.l.b16 %v28
  %v279 = vunpack.c.l.b16 %v29
  %v280 = vunpack.c.h.b16 %v29
  %v281 = vunpack.c.l.b16 %v30
  %v282 = vunpack.c.l.b16 %v31
  %v283 = vunpack.c.h.b16 %v31
  %v284 = vunpack.c.l.b16 %v32
  %v285 = vunpack.c.l.b16 %v33
  %v286 = vunpack.c.h.b16 %v33
  %v287 = vunpack.c.l.b16 %v34
  %v288 = vunpack.c.l.b16 %v35
  %v289 = vunpack.c.h.b16 %v35
  %v290 = vunpack.c.l.b16 %v36
  %v291 = vunpack.c.l.b16 %v37
  %v292 = vunpack.c.h.b16 %v37
  %v293 = vunpack.c.l.b16 %v38
  %v294 = vunpack.c.l.b16 %v39
  %v295 = vunpack.c.h.b16 %v39
  %v296 = vunpack.c.l.b16 %v40
  %v297 = vunpack.c.l.b16 %v41
  %v298 = vunpack.c.h.b16 %v41
  %v299 = vunpack.c.l.b16 %v42
  %v300 = vunpack.c.l.b16 %v43
  %v301 = vunpack.c.h.b16 %v43
  %v302 = vunpack.c.l.b16 %v44
  %v303 = vunpack.c.l.b16 %v45
  %v304 = vunpack.c.h.b16 %v45
  %v305 = vunpack.c.l.b16 %v46
  %v306 = vunpack.c.l.b16 %v47
  %v307 = vunpack.c.h.b16 %v47
  %v308 = vunpack.c.l.b16 %v48
  %v309 = vunpack.c.l.b16 %v49
  %v310 = vunpack.c.h.b16 %v49
  %v311 = vunpack.c.l.b16 %v50
  %v312 = vunpack.c.l.b16 %v51
  %v313 = vunpack.c.h.b16 %v51
  %v314 = vunpack.c.l.b16 %v52
  %v315 = vunpack.c.l.b16 %v53
  %v316 = vunpack.c.h.b16 %v53
  %v317 = vunpack.c.l.b16 %v54
  %v318 = vunpack.c.l.b16 %v55
  %v319 = vunpack.c.h.b16 %v55
  %v320 = vunpack.c.l.b16 %v56
  %v321 = vunpack.c.l.b16 %v57
  %v322 = vunpack.c.h.b16 %v57
  %v323 = vunpack.c.l.b16 %v58
  %v324 = vunpack.c.l.b16 %v59
  %v325 = vunpack.c.h.b16 %v59
  %v326 = vunpack.c.l.b16 %v60
  %v327 = vunpack.c.l.b16 %v61
  %v328 = vunpack.c.h.b16 %v61
  %v329 = vunpack.c.l.b16 %v62
  %v330 = vunpack.c.l.b16 %v63
  %v331 = vunpack.c.h.b16 %v63
  %v332 = vunpack.c.l.b16 %v64
  %v333 = vunpack.c.l.b16 %v65
  %v334 = vunpack.c.h.b16 %v65
  %v335 = vunpack.c.l.b16 %v66
  %v336 = vunpack.c.l.b16 %v67
  %v337 = vunpack.c.h.b16 %v67
  %v338 = vunpack.c.l.b16 %v68
  %v339 = vunpack.c.l.b16 %v69
  %v340 = vunpack.c.h.b16 %v69
  %v341 = vunpack.c.l.b16 %v70
  %v342 = vunpack.c.l.b16 %v71
  %v343 = vunpack.c.h.b16 %v71
  %v344 = vunpack.c.l.b16 %v72
  %v345 = vunpack.c.l.b16 %v73
  %v346 = vunpack.c.h.b16 %v73
  %v347 = vunpack.c.l.b16 %v74
  %v348 = vunpack.c.l.b16 %v75
  %v349 = vunpack.c.h.b16 %v75
  %v350 = vunpack.c.l.b16 %v76
  %v351 = vunpack.c.l.b16 %v77
  %v352 = vunpack.c.h.b16 %v77
  %v353 = vunpack.c.l.b16 %v78
  %v354 = vunpack.c.l.b16 %v79
  %v355 = vunpack.c.h.b16 %v79
  %v356 = vunpack.c.l.b16 %v80
  %v357 = vunpack.c.l.b16 %v81
  %v358 = vunpack.c.h.b16 %v81
  %v359 = vunpack.c.l.b16 %v82
  %v360 = vunpack.c.l.b16 %v83
  %v361 = vunpack.c.h.b16 %v83
  %v362 = vunpack.c.l.b16 %v84
  %v363 = vpack.c.b16 %v270, %v267
  %v364 = vpack.c.b16 %v271, %v268
  %v365 = vpack.c.b16 %v272, %v269
  %v366 = vpack.c.b16 %v276, %v273
  %v367 = vpack.c.b16 %v277, %v274
  %v368 = vpack.c.b16 %v278, %v275
  %v369 = vpack.c.b16 %v282, %v279
  %v370 = vpack.c.b16 %v283, %v280
  %v371 = vpack.c.b16 %v284, %v281
  %v372 = vpack.c.b16 %v288, %v285
  %v373 = vpack.c.b16 %v289, %v286
  %v374 = vpack.c.b16 %v290, %v287
  %v375 = vpack.c.b16 %v294, %v291
  %v376 = vpack.c.b16 %v295, %v292
  %v377 = vpack.c.b16 %v296, %v293
  %v378 = vpack.c.b16 %v300, %v297
  %v379 = vpack.c.b16 %v301, %v298
  %v380 = vpack.c.b16 %v302, %v299
  %v381 = vpack.c.b16 %v306, %v303
  %v382 = vpack.c.b16 %v307, %v304
  %v383 = vpack.c.b16 %v308, %v305
  %v384 = vpack.c.b16 %v312, %v309
  %v385 = vpack.c.b16 %v313, %v310
  %v386 = vpack.c.b16 %v314, %v311
  %v387 = vpack.c.b16 %v318, %v315
  %v388 = vpack.c.b16 %v319, %v316
  %v389 = vpack.c.b16 %v320, %v317
  %v390 = vpack.c.b16 %v324, %v321
  %v391 = vpack.c.b16 %v325, %v322
  %v392 = vpack.c.b16 %v326, %v323
  %v393 = vpack.c.b16 %v330, %v327
  %v394 = vpack.c.b16 %v331, %v328
  %v395 = vpack.c.b16 %v332, %v329
  %v396 = vpack.c.b16 %v336, %v333
  %v397 = vpack.c.b16 %v337, %v334
  %v398 = vpack.c.b16 %v338, %v335
  %v399 = vpack.c.b16 %v342, %v339
  %v400 = vpack.c.b16 %v343, %v340
  %v401 = vpack.c.b16 %v344, %v341
  %v402 = vpack.c.b16 %v348, %v345
  %v403 = vpack.c.b16 %v349, %v346
  %v404 = vpack.c.b16 %v350, %v347
  %v405 = vpack.c.b16 %v354, %v351
  %v406 = vpack.c.b16 %v355, %v352
  %v407 = vpack.c.b16 %v356, %v353
  %v408 = vpack.c.b16 %v360, %v357
  %v409 = vpack.c.b16 %v361, %v358
  %v410 = vpack.c.b16 %v362, %v359
  %v555 = vunpack.c.l.b16 %v85
  %v556 = vunpack.c.h.b16 %v85
  %v557 = vunpack.c.l.b16 %v86
  %v558 = vunpack.c.h.b16 %v86
  %v559 = vunpack.c.l.b16 %v87
  %v560 = vunpack.c.h.b16 %v87
  %v561 = vunpack.c.l.b16 %v88
  %v562 = vunpack.c.h.b16 %v88
  %v563 = vunpack.c.l.b16 %v89
  %v564 = vunpack.c.h.b16 %v89
  %v565 = vunpack.c.l.b16 %v90
  %v566 = vunpack.c.h.b16 %v90
  %v567 = vunpack.c.l.b16 %v91
  %v568 = vunpack.c.h.b16 %v91
  %v569 = vunpack.c.l.b16 %v92
  %v570 = vunpack.c.h.b16 %v92
  %v571 = vunpack.c.l.b16 %v93
  %v572 = vunpack.c.h.b16 %v93
  %v573 = vunpack.c.l.b16 %v94
  %v574 = vunpack.c.h.b16 %v94
  %v575 = vunpack.c.l.b16 %v95
  %v576 = vunpack.c.h.b16 %v95
  %v577 = vunpack.c.l.b16 %v96
  %v578 = vunpack.c.h.b16 %v96
  %v579 = vunpack.c.l.b16 %v97
  %v580 = vunpack.c.h.b16 %v97
  %v581 = vunpack.c.l.b16 %v98
  %v582 = vunpack.c.h.b16 %v98
  %v583 = vunpack.c.l.b16 %v99
  %v584 = vunpack.c.h.b16 %v99
  %v585 = vunpack.c.l.b16 %v100
  %v586 = vunpack.c.h.b16 %v100
  %v587 = vunpack.c.l.b16 %v101
  %v588 = vunpack.c.h.b16 %v101
  %v589 = vunpack.c.l.b16 %v102
  %v590 = vunpack.c.h.b16 %v102
  %v591 = vunpack.c.l.b16 %v103
  %v592 = vunpack.c.h.b16 %v103
  %v593 = vunpack.c.l.b16 %v104
  %v594 = vunpack.c.h.b16 %v104
  %v595 = vunpack.c.l.b16 %v105
  %v596 = vunpack.c.h.b16 %v105
  %v597 = vunpack.c.l.b16 %v106
  %v598 = vunpack.c.h.b16 %v106
  %v599 = vunpack.c.l.b16 %v107
  %v600 = vunpack.c.h.b16 %v107
  %v601 = vunpack.c.l.b16 %v108
  %v602 = vunpack.c.h.b16 %v108
  %v603 = vunpack.c.l.b16 %v109
  %v604 = vunpack.c.h.b16 %v109
  %v605 = vunpack.c.l.b16 %v110
  %v606 = vunpack.c.h.b16 %v110
  %v607 = vunpack.c.l.b16 %v111
  %v608 = vunpack.c.h.b16 %v111
  %v609 = vunpack.c.l.b16 %v112
  %v610 = vunpack.c.h.b16 %v112
  %v611 = vunpack.c.l.b16 %v113
  %v612 = vunpack.c.h.b16 %v113
  %v613 = vunpack.c.l.b16 %v114
  %v614 = vunpack.c.h.b16 %v114
  %v615 = vunpack.c.l.b16 %v115
  %v616 = vunpack.c.h.b16 %v115
  %v617 = vunpack.c.l.b16 %v116
  %v618 = vunpack.c.h.b16 %v116
  %v619 = vunpack.c.l.b16 %v117
  %v620 = vunpack.c.h.b16 %v117
  %v621 = vunpack.c.l.b16 %v118
  %v622 = vunpack.c.h.b16 %v118
  %v623 = vunpack.c.l.b16 %v119
  %v624 = vunpack.c.h.b16 %v119
  %v625 = vunpack.c.l.b16 %v120
  %v626 = vunpack.c.h.b16 %v120
  %v627 = vunpack.c.l.b16 %v121
  %v628 = vunpack.c.h.b16 %v121
  %v629 = vunpack.c.l.b16 %v122
  %v630 = vunpack.c.h.b16 %v122
  %v631 = vunpack.c.l.b16 %v123
  %v632 = vunpack.c.h.b16 %v123
  %v633 = vunpack.c.l.b16 %v124
  %v634 = vunpack.c.h.b16 %v124
  %v635 = vunpack.c.l.b16 %v125
  %v636 = vunpack.c.h.b16 %v125
  %v637 = vunpack.c.l.b16 %v126
  %v638 = vunpack.c.h.b16 %v126
  %v639 = vunpack.c.l.b16 %v127
  %v640 = vunpack.c.h.b16 %v127
  %v641 = vunpack.c.l.b16 %v128
  %v642 = vunpack.c.h.b16 %v128
  %v643 = vunpack.c.l.b16 %v129
  %v644 = vunpack.c.h.b16 %v129
  %v645 = vunpack.c.l.b16 %v130
  %v646 = vunpack.c.h.b16 %v130
  %v647 = vunpack.c.l.b16 %v131
  %v648 = vunpack.c.h.b16 %v131
  %v649 = vunpack.c.l.b16 %v132
  %v650 = vunpack.c.h.b16 %v132
  %v651 = vunpack.c.l.b16 %v133
  %v652 = vunpack.c.h.b16 %v133
  %v653 = vunpack.c.l.b16 %v134
  %v654 = vunpack.c.h.b16 %v134
  %v655 = vunpack.c.l.b16 %v135
  %v656 = vunpack.c.h.b16 %v135
  %v657 = vunpack.c.l.b16 %v136
  %v658 = vunpack.c.h.b16 %v136
  %v659 = vunpack.c.l.b16 %v137
  %v660 = vunpack.c.h.b16 %v137
  %v661 = vunpack.c.l.b16 %v138
  %v662 = vunpack.c.h.b16 %v138
  %v663 = vunpack.c.l.b16 %v139
  %v664 = vunpack.c.h.b16 %v139
  %v665 = vunpack.c.l.b16 %v140
  %v666 = vunpack.c.h.b16 %v140
  %v667 = vunpack.c.l.b16 %v141
  %v668 = vunpack.c.h.b16 %v141
  %v669 = vunpack.c.l.b16 %v142
  %v670 = vunpack.c.h.b16 %v142
  %v671 = vunpack.c.l.b16 %v143
  %v672 = vunpack.c.h.b16 %v143
  %v673 = vunpack.c.l.b16 %v144
  %v674 = vunpack.c.h.b16 %v144
  %v675 = vunpack.c.l.b16 %v145
  %v676 = vunpack.c.h.b16 %v145
  %v677 = vunpack.c.l.b16 %v146
  %v678 = vunpack.c.h.b16 %v146
  %v679 = vunpack.c.l.b16 %v147
  %v680 = vunpack.c.h.b16 %v147
  %v681 = vunpack.c.l.b16 %v148
  %v682 = vunpack.c.h.b16 %v148
  %v683 = vunpack.c.l.b16 %v149
  %v684 = vunpack.c.h.b16 %v149
  %v685 = vunpack.c.l.b16 %v150
  %v686 = vunpack.c.h.b16 %v150
  %v687 = vunpack.c.l.b16 %v151
  %v688 = vunpack.c.h.b16 %v151
  %v689 = vunpack.c.l.b16 %v152
  %v690 = vunpack.c.h.b16 %v152
  %v691 = vunpack.c.l.b16 %v153
  %v692 = vunpack.c.h.b16 %v153
  %v693 = vunpack.c.l.b16 %v154
  %v694 = vunpack.c.h.b16 %v154
  %v695 = vunpack.c.l.b16 %v155
  %v696 = vunpack.c.h.b16 %v155
  %v697 = vunpack.c.l.b16 %v156
  %v698 = vunpack.c.h.b16 %v156
  %v699 = vunpack.c.l.b16 %v157
  %v700 = vunpack.c.h.b16 %v157
  %v701 = vunpack.c.l.b16 %v158
  %v702 = vunpack.c.h.b16 %v158
  %v703 = vunpack.c.l.b16 %v159
  %v704 = vunpack.c.h.b16 %v159
  %v705 = vunpack.c.l.b16 %v160
  %v706 = vunpack.c.h.b16 %v160
  %v707 = vunpack.c.l.b16 %v161
  %v708 = vunpack.c.h.b16 %v161
  %v709 = vunpack.c.l.b16 %v162
  %v710 = vunpack.c.h.b16 %v162
  %v711 = vunpack.c.l.b16 %v163
  %v712 = vunpack.c.h.b16 %v163
  %v713 = vunpack.c.l.b16 %v164
  %v714 = vunpack.c.h.b16 %v164
  %v715 = vunpack.c.l.b16 %v165
  %v716 = vunpack.c.h.b16 %v165
  %v717 = vunpack.c.l.b16 %v166
  %v718 = vunpack.c.h.b16 %v166
  %v719 = vunpack.c.l.b16 %v167
  %v720 = vunpack.c.h.b16 %v167
  %v721 = vunpack.c.l.b16 %v168
  %v722 = vunpack.c.h.b16 %v168
  %v723 = vunpack.c.l.b16 %v169
  %v724 = vunpack.c.h.b16 %v169
  %v725 = vunpack.c.l.b16 %v170
  %v726 = vunpack.c.h.b16 %v170
  %v727 = vunpack.c.l.b16 %v171
  %v728 = vunpack.c.h.b16 %v171
  %v729 = vunpack.c.l.b16 %v172
  %v730 = vunpack.c.h.b16 %v172
  %v731 = vunpack.c.l.b16 %v173
  %v732 = vunpack.c.h.b16 %v173
  %v733 = vunpack.c.l.b16 %v174
  %v734 = vunpack.c.h.b16 %v174
  %v735 = vunpack.c.l.b16 %v175
  %v736 = vunpack.c.h.b16 %v175
  %v737 = vunpack.c.l.b16 %v176
  %v738 = vunpack.c.h.b16 %v176
  %v739 = vunpack.c.l.b16 %v177
  %v740 = vunpack.c.h.b16 %v177
  %v741 = vunpack.c.l.b16 %v178
  %v742 = vunpack.c.h.b16 %v178
  %v743 = vunpack.c.l.b16 %v179
  %v744 = vunpack.c.h.b16 %v179
  %v745 = vunpack.c.l.b16 %v180
  %v746 = vunpack.c.h.b16 %v180
  %v747 = vpack.c.b16 %v559, %v555
  %v748 = vpack.c.b16 %v560, %v556
  %v749 = vpack.c.b16 %v561, %v557
  %v750 = vpack.c.b16 %v562, %v558
  %v751 = vpack.c.b16 %v567, %v563
  %v752 = vpack.c.b16 %v568, %v564
  %v753 = vpack.c.b16 %v569, %v565
  %v754 = vpack.c.b16 %v570, %v566
  %v755 = vpack.c.b16 %v575, %v571
  %v756 = vpack.c.b16 %v576, %v572
  %v757 = vpack.c.b16 %v577, %v573
  %v758 = vpack.c.b16 %v578, %v574
  %v759 = vpack.c.b16 %v583, %v579
  %v760 = vpack.c.b16 %v584, %v580
  %v761 = vpack.c.b16 %v585, %v581
  %v762 = vpack.c.b16 %v586, %v582
  %v763 = vpack.c.b16 %v591, %v587
  %v764 = vpack.c.b16 %v592, %v588
  %v765 = vpack.c.b16 %v593, %v589
  %v766 = vpack.c.b16 %v594, %v590
  %v767 = vpack.c.b16 %v599, %v595
  %v768 = vpack.c.b16 %v600, %v596
  %v769 = vpack.c.b16 %v601, %v597
  %v770 = vpack.c.b16 %v602, %v598
  %v771 = vpack.c.b16 %v607, %v603
  %v772 = vpack.c.b16 %v608, %v604
  %v773 = vpack.c.b16 %v609, %v605
  %v774 = vpack.c.b16 %v610, %v606
  %v775 = vpack.c.b16 %v615, %v611
  %v776 = vpack.c.b16 %v616, %v612
  %v777 = vpack.c.b16 %v617, %v613
  %v778 = vpack.c.b16 %v618, %v614
  %v779 = vpack.c.b16 %v623, %v619
  %v780 = vpack.c.b16 %v624, %v620
  %v781 = vpack.c.b16 %v625, %v621
  %v782 = vpack.c.b16 %v626, %v622
  %v783 = vpack.c.b16 %v631, %v627
  %v784 = vpack.c.b16 %v632, %v628
  %v785 = vpack.c.b16 %v633, %v629
  %v786 = vpack.c.b16 %v634, %v630
  %v787 = vpack.c.b16 %v639, %v635
  %v788 = vpack.c.b16 %v640, %v636
  %v789 = vpack.c.b16 %v641, %v637
  %v790 = vpack.c.b16 %v642, %v638
  %v791 = vpack.c.b16 %v647, %v643
  %v792 = vpack.c.b16 %v648, %v644
  %v793 = vpack.c.b16 %v649, %v645
  %v794 = vpack.c.b16 %v650, %v646
  %v795 = vpack.c.b16 %v655, %v651
  %v796 = vpack.c.b16 %v656, %v652
  %v797 = vpack.c.b16 %v657, %v653
  %v798 = vpack.c.b16 %v658, %v654
  %v799 = vpack.c.b16 %v663, %v659
  %v800 = vpack.c.b16 %v664, %v660
  %v801 = vpack.c.b16 %v665, %v661
  %v802 = vpack.c.b16 %v666, %v662
  %v803 = vpack.c.b16 %v671, %v667
  %v804 = vpack.c.b16 %v672, %v668
  %v805 = vpack.c.b16 %v673, %v669
  %v806 = vpack.c.b16 %v674, %v670
  %v807 = vpack.c.b16 %v679, %v675
  %v808 = vpack.c.b16 %v680, %v676
  %v809 = vpack.c.b16 %v681, %v677
  %v810 = vpack.c.b16 %v682, %v678
  %v811 = vpack.c.b16 %v687, %v683
  %v812 = vpack.c.b16 %v688, %v684
  %v813 = vpack.c.b16 %v689, %v685
  %v814 = vpack.c.b16 %v690, %v686
  %v815 = vpack.c.b16 %v695, %v691
  %v816 = vpack.c.b16 %v696, %v692
  %v817 = vpack.c.b16 %v697, %v693
  %v818 = vpack.c.b16 %v698, %v694
  %v819 = vpack.c.b16 %v703, %v699
  %v820 = vpack.c.b16 %v704, %v700
  %v821 = vpack.c.b16 %v705, %v701
  %v822 = vpack.c.b16 %v706, %v702
  %v823 = vpack.c.b16 %v711, %v707
  %v824 = vpack.c.b16 %v712, %v708
  %v825 = vpack.c.b16 %v713, %v709
  %v826 = vpack.c.b16 %v714, %v710
  %v827 = vpack.c.b16 %v719, %v715
  %v828 = vpack.c.b16 %v720, %v716
  %v829 = vpack.c.b16 %v721, %v717
  %v830 = vpack.c.b16 %v722, %v718
  %v831 = vpack.c.b16 %v727, %v723
  %v832 = vpack.c.b16 %v728, %v724
  %v833 = vpack.c.b16 %v729, %v725
  %v834 = vpack.c.b16 %v730, %v726
  %v835 = vpack.c.b16 %v735, %v731
  %v836 = vpack.c.b16 %v736, %v732
  %v837 = vpack.c.b16 %v737, %v733
  %v838 = vpack.c.b16 %v738, %v734
  %v839 = vpack.c.b16 %v743, %v739
  %v840 = vpack.c.b16 %v744, %v740
  %v841 = vpack.c.b16 %v745, %v741
  %v842 = vpack.c.b16 %v746, %v742
  %939 = vmatprep.subr.bf16.mxu0 %v776
  %940 = vmatpush1.bf16.msra.mxu0 %v775
  %941 = vmatprep.subr.bf16.mxu0 %v772
  %942 = vmatpush1.bf16.msra.mxu0 %v771
  %943 = vmatprep.subr.bf16.mxu0 %v768
  %944 = vmatpush1.bf16.msra.mxu0 %v767
  %945 = vmatprep.subr.bf16.mxu0 %v764
  %946 = vmatpush1.bf16.msra.mxu0 %v763
  %947 = vmatprep.subr.bf16.mxu0 %v760
  %948 = vmatpush1.bf16.msra.mxu0 %v759
  %949 = vmatprep.subr.bf16.mxu0 %v756
  %950 = vmatpush1.bf16.msra.mxu0 %v755
  %951 = vmatprep.subr.bf16.mxu0 %v752
  %952 = vmatpush1.bf16.msra.mxu0 %v751
  %953 = vmatprep.subr.bf16.mxu0 %v748
  %954 = vmatpush1.bf16.msra.mxu0 %v747
  %955 = vmatprep.subr.bf16.mxu0 %v808
  %956 = vmatpush2.bf16.msra.mxu0 %v807
  %957 = vmatprep.subr.bf16.mxu0 %v804
  %958 = vmatpush2.bf16.msra.mxu0 %v803
  %959 = vmatprep.subr.bf16.mxu0 %v800
  %960 = vmatpush2.bf16.msra.mxu0 %v799
  %961 = vmatprep.subr.bf16.mxu0 %v796
  %962 = vmatpush2.bf16.msra.mxu0 %v795
  %963 = vmatprep.subr.bf16.mxu0 %v792
  %964 = vmatpush2.bf16.msra.mxu0 %v791
  %965 = vmatprep.subr.bf16.mxu0 %v788
  %966 = vmatpush2.bf16.msra.mxu0 %v787
  %967 = vmatprep.subr.bf16.mxu0 %v784
  %968 = vmatpush2.bf16.msra.mxu0 %v783
  %969 = vmatprep.subr.bf16.mxu0 %v780
  %970 = vmatpush2.bf16.msra.mxu0 %v779
  %971 = vmatprep.mubr.bf16.mxu0 %v364
  %972 = vmatmul.mubr.bf16.gmra.mxu0 %v363
  %v973 = vpop.f32.mrf.mxu0
  %v974 = vadd.f32 %v186, %v973
  %v975 = vpop.f32.mrf.mxu0
  %v976 = vadd.f32 %v190, %v975
  %v977 = vpop.f32.mrf.mxu0
  %v978 = vadd.f32 %v186, %v977
  %v979 = vpop.f32.mrf.mxu0
  %v980 = vadd.f32 %v190, %v979
  %981 = vmatprep.mubr.bf16.mxu0 %v367
  %982 = vmatmul.mubr.bf16.gmra.mxu0 %v366
  %v983 = vpop.f32.mrf.mxu0
  %v984 = vadd.f32 %v186, %v983
  %v985 = vpop.f32.mrf.mxu0
  %v986 = vadd.f32 %v190, %v985
  %v987 = vpop.f32.mrf.mxu0
  %v988 = vadd.f32 %v186, %v987
  %v989 = vpop.f32.mrf.mxu0
  %v990 = vadd.f32 %v190, %v989
  %991 = vmatprep.mubr.bf16.mxu0 %v370
  %992 = vmatmul.mubr.bf16.gmra.mxu0 %v369
  %v993 = vpop.f32.mrf.mxu0
  %v994 = vadd.f32 %v186, %v993
  %v995 = vpop.f32.mrf.mxu0
  %v996 = vadd.f32 %v190, %v995
  %v997 = vpop.f32.mrf.mxu0
  %v998 = vadd.f32 %v186, %v997
  %v999 = vpop.f32.mrf.mxu0
  %v1000 = vadd.f32 %v190, %v999
  %1001 = vmatprep.mubr.bf16.mxu0 %v373
  %1002 = vmatmul.mubr.bf16.gmra.mxu0 %v372
  %v1003 = vpop.f32.mrf.mxu0
  %v1004 = vadd.f32 %v186, %v1003
  %v1005 = vpop.f32.mrf.mxu0
  %v1006 = vadd.f32 %v190, %v1005
  %v1007 = vpop.f32.mrf.mxu0
  %v1008 = vadd.f32 %v186, %v1007
  %v1009 = vpop.f32.mrf.mxu0
  %v1010 = vadd.f32 %v190, %v1009
  %1011 = vmatprep.mubr.bf16.mxu0 %v376
  %1012 = vmatmul.mubr.bf16.gmra.mxu0 %v375
  %v1013 = vpop.f32.mrf.mxu0
  %v1014 = vadd.f32 %v186, %v1013
  %v1015 = vpop.f32.mrf.mxu0
  %v1016 = vadd.f32 %v190, %v1015
  %v1017 = vpop.f32.mrf.mxu0
  %v1018 = vadd.f32 %v186, %v1017
  %v1019 = vpop.f32.mrf.mxu0
  %v1020 = vadd.f32 %v190, %v1019
  %1021 = vmatprep.mubr.bf16.mxu0 %v379
  %1022 = vmatmul.mubr.bf16.gmra.mxu0 %v378
  %v1023 = vpop.f32.mrf.mxu0
  %v1024 = vadd.f32 %v186, %v1023
  %v1025 = vpop.f32.mrf.mxu0
  %v1026 = vadd.f32 %v190, %v1025
  %v1027 = vpop.f32.mrf.mxu0
  %v1028 = vadd.f32 %v186, %v1027
  %v1029 = vpop.f32.mrf.mxu0
  %v1030 = vadd.f32 %v190, %v1029
  %1031 = vmatprep.mubr.bf16.mxu0 %v382
  %1032 = vmatmul.mubr.bf16.gmra.mxu0 %v381
  %v1033 = vpop.f32.mrf.mxu0
  %v1034 = vadd.f32 %v186, %v1033
  %v1035 = vpop.f32.mrf.mxu0
  %v1036 = vadd.f32 %v190, %v1035
  %v1037 = vpop.f32.mrf.mxu0
  %v1038 = vadd.f32 %v186, %v1037
  %v1039 = vpop.f32.mrf.mxu0
  %v1040 = vadd.f32 %v190, %v1039
  %1041 = vmatprep.mubr.bf16.mxu0 %v385
  %1042 = vmatmul.mubr.bf16.gmra.mxu0 %v384
  %v1043 = vpop.f32.mrf.mxu0
  %v1044 = vadd.f32 %v186, %v1043
  %v1045 = vpop.f32.mrf.mxu0
  %v1046 = vadd.f32 %v190, %v1045
  %v1047 = vpop.f32.mrf.mxu0
  %v1048 = vadd.f32 %v186, %v1047
  %v1049 = vpop.f32.mrf.mxu0
  %v1050 = vadd.f32 %v190, %v1049
  %1051 = vmatprep.mubr.bf16.mxu0 %v388
  %1052 = vmatmul.mubr.bf16.gmra.mxu0 %v387
  %v1053 = vpop.f32.mrf.mxu0
  %v1054 = vadd.f32 %v186, %v1053
  %v1055 = vpop.f32.mrf.mxu0
  %v1056 = vadd.f32 %v190, %v1055
  %v1057 = vpop.f32.mrf.mxu0
  %v1058 = vadd.f32 %v186, %v1057
  %v1059 = vpop.f32.mrf.mxu0
  %v1060 = vadd.f32 %v190, %v1059
  %1061 = vmatprep.mubr.bf16.mxu0 %v391
  %1062 = vmatmul.mubr.bf16.gmra.mxu0 %v390
  %v1063 = vpop.f32.mrf.mxu0
  %v1064 = vadd.f32 %v186, %v1063
  %v1065 = vpop.f32.mrf.mxu0
  %v1066 = vadd.f32 %v190, %v1065
  %v1067 = vpop.f32.mrf.mxu0
  %v1068 = vadd.f32 %v186, %v1067
  %v1069 = vpop.f32.mrf.mxu0
  %v1070 = vadd.f32 %v190, %v1069
  %1071 = vmatprep.mubr.bf16.mxu0 %v394
  %1072 = vmatmul.mubr.bf16.gmra.mxu0 %v393
  %v1073 = vpop.f32.mrf.mxu0
  %v1074 = vadd.f32 %v186, %v1073
  %v1075 = vpop.f32.mrf.mxu0
  %v1076 = vadd.f32 %v190, %v1075
  %v1077 = vpop.f32.mrf.mxu0
  %v1078 = vadd.f32 %v186, %v1077
  %v1079 = vpop.f32.mrf.mxu0
  %v1080 = vadd.f32 %v190, %v1079
  %1081 = vmatprep.mubr.bf16.mxu0 %v397
  %1082 = vmatmul.mubr.bf16.gmra.mxu0 %v396
  %v1083 = vpop.f32.mrf.mxu0
  %v1084 = vadd.f32 %v186, %v1083
  %v1085 = vpop.f32.mrf.mxu0
  %v1086 = vadd.f32 %v190, %v1085
  %v1087 = vpop.f32.mrf.mxu0
  %v1088 = vadd.f32 %v186, %v1087
  %v1089 = vpop.f32.mrf.mxu0
  %v1090 = vadd.f32 %v190, %v1089
  %1091 = vmatprep.mubr.bf16.mxu0 %v400
  %1092 = vmatmul.mubr.bf16.gmra.mxu0 %v399
  %v1093 = vpop.f32.mrf.mxu0
  %v1094 = vadd.f32 %v186, %v1093
  %v1095 = vpop.f32.mrf.mxu0
  %v1096 = vadd.f32 %v190, %v1095
  %v1097 = vpop.f32.mrf.mxu0
  %v1098 = vadd.f32 %v186, %v1097
  %v1099 = vpop.f32.mrf.mxu0
  %v1100 = vadd.f32 %v190, %v1099
  %1101 = vmatprep.mubr.bf16.mxu0 %v403
  %1102 = vmatmul.mubr.bf16.gmra.mxu0 %v402
  %v1103 = vpop.f32.mrf.mxu0
  %v1104 = vadd.f32 %v186, %v1103
  %v1105 = vpop.f32.mrf.mxu0
  %v1106 = vadd.f32 %v190, %v1105
  %v1107 = vpop.f32.mrf.mxu0
  %v1108 = vadd.f32 %v186, %v1107
  %v1109 = vpop.f32.mrf.mxu0
  %v1110 = vadd.f32 %v190, %v1109
  %1111 = vmatprep.mubr.bf16.mxu0 %v406
  %1112 = vmatmul.mubr.bf16.gmra.mxu0 %v405
  %v1113 = vpop.f32.mrf.mxu0
  %v1114 = vadd.f32 %v186, %v1113
  %v1115 = vpop.f32.mrf.mxu0
  %v1116 = vadd.f32 %v190, %v1115
  %v1117 = vpop.f32.mrf.mxu0
  %v1118 = vadd.f32 %v186, %v1117
  %v1119 = vpop.f32.mrf.mxu0
  %v1120 = vadd.f32 %v190, %v1119
  %1121 = vmatprep.mubr.bf16.mxu0 %v409
  %1122 = vmatmul.mubr.bf16.gmra.mxu0 %v408
  %v1123 = vpop.f32.mrf.mxu0
  %v1124 = vadd.f32 %v186, %v1123
  %v1125 = vpop.f32.mrf.mxu0
  %v1126 = vadd.f32 %v190, %v1125
  %v1127 = vpop.f32.mrf.mxu0
  %v1128 = vadd.f32 %v186, %v1127
  %v1129 = vpop.f32.mrf.mxu0
  %v1130 = vadd.f32 %v190, %v1129
  %1131 = vdwg.mxu0
  %1132 = vmatprep.subr.bf16.mxu0 %v840
  %1133 = vmatpush1.bf16.msra.mxu0 %v839
  %1134 = vmatprep.subr.bf16.mxu0 %v836
  %1135 = vmatpush1.bf16.msra.mxu0 %v835
  %1136 = vmatprep.subr.bf16.mxu0 %v832
  %1137 = vmatpush1.bf16.msra.mxu0 %v831
  %1138 = vmatprep.subr.bf16.mxu0 %v828
  %1139 = vmatpush1.bf16.msra.mxu0 %v827
  %1140 = vmatprep.subr.bf16.mxu0 %v824
  %1141 = vmatpush1.bf16.msra.mxu0 %v823
  %1142 = vmatprep.subr.bf16.mxu0 %v820
  %1143 = vmatpush1.bf16.msra.mxu0 %v819
  %1144 = vmatprep.subr.bf16.mxu0 %v816
  %1145 = vmatpush1.bf16.msra.mxu0 %v815
  %1146 = vmatprep.subr.bf16.mxu0 %v812
  %1147 = vmatpush1.bf16.msra.mxu0 %v811
  %1148 = vmatprep.subr.bf16.mxu0 0
  %1149 = vmatpush2.bf16.msra.mxu0 0
  %1150 = vmatprep.subr.bf16.mxu0 0
  %1151 = vmatpush2.bf16.msra.mxu0 0
  %1152 = vmatprep.subr.bf16.mxu0 0
  %1153 = vmatpush2.bf16.msra.mxu0 0
  %1154 = vmatprep.subr.bf16.mxu0 0
  %1155 = vmatpush2.bf16.msra.mxu0 0
  %1156 = vmatprep.subr.bf16.mxu0 0
  %1157 = vmatpush2.bf16.msra.mxu0 0
  %1158 = vmatprep.subr.bf16.mxu0 0
  %1159 = vmatpush2.bf16.msra.mxu0 0
  %1160 = vmatprep.subr.bf16.mxu0 0
  %1161 = vmatpush2.bf16.msra.mxu0 0
  %1162 = vmatprep.subr.bf16.mxu0 0
  %1163 = vmatpush2.bf16.msra.mxu0 0
  %1164 = vmatprep.mubr.bf16.mxu0 0
  %1165 = vmatmul.mubr.bf16.gmra.mxu0 %v365
  %v1166 = vpop.f32.mrf.mxu0
  %v1167 = vadd.f32 %v974, %v1166
  %v1168 = vpop.f32.mrf.mxu0
  %v1169 = vadd.f32 %v976, %v1168
  %v1170 = vpop.f32.mrf.mxu0
  %v1171 = vadd.f32 %v978, %v1170
  %v1172 = vpop.f32.mrf.mxu0
  %v1173 = vadd.f32 %v980, %v1172
  %1174 = vmatprep.mubr.bf16.mxu0 0
  %1175 = vmatmul.mubr.bf16.gmra.mxu0 %v368
  %v1176 = vpop.f32.mrf.mxu0
  %v1177 = vadd.f32 %v984, %v1176
  %v1178 = vpop.f32.mrf.mxu0
  %v1179 = vadd.f32 %v986, %v1178
  %v1180 = vpop.f32.mrf.mxu0
  %v1181 = vadd.f32 %v988, %v1180
  %v1182 = vpop.f32.mrf.mxu0
  %v1183 = vadd.f32 %v990, %v1182
  %1184 = vmatprep.mubr.bf16.mxu0 0
  %1185 = vmatmul.mubr.bf16.gmra.mxu0 %v371
  %v1186 = vpop.f32.mrf.mxu0
  %v1187 = vadd.f32 %v994, %v1186
  %v1188 = vpop.f32.mrf.mxu0
  %v1189 = vadd.f32 %v996, %v1188
  %v1190 = vpop.f32.mrf.mxu0
  %v1191 = vadd.f32 %v998, %v1190
  %v1192 = vpop.f32.mrf.mxu0
  %v1193 = vadd.f32 %v1000, %v1192
  %1194 = vmatprep.mubr.bf16.mxu0 0
  %1195 = vmatmul.mubr.bf16.gmra.mxu0 %v374
  %v1196 = vpop.f32.mrf.mxu0
  %v1197 = vadd.f32 %v1004, %v1196
  %v1198 = vpop.f32.mrf.mxu0
  %v1199 = vadd.f32 %v1006, %v1198
  %v1200 = vpop.f32.mrf.mxu0
  %v1201 = vadd.f32 %v1008, %v1200
  %v1202 = vpop.f32.mrf.mxu0
  %v1203 = vadd.f32 %v1010, %v1202
  %1204 = vmatprep.mubr.bf16.mxu0 0
  %1205 = vmatmul.mubr.bf16.gmra.mxu0 %v377
  %v1206 = vpop.f32.mrf.mxu0
  %v1207 = vadd.f32 %v1014, %v1206
  %v1208 = vpop.f32.mrf.mxu0
  %v1209 = vadd.f32 %v1016, %v1208
  %v1210 = vpop.f32.mrf.mxu0
  %v1211 = vadd.f32 %v1018, %v1210
  %v1212 = vpop.f32.mrf.mxu0
  %v1213 = vadd.f32 %v1020, %v1212
  %1214 = vmatprep.mubr.bf16.mxu0 0
  %1215 = vmatmul.mubr.bf16.gmra.mxu0 %v380
  %v1216 = vpop.f32.mrf.mxu0
  %v1217 = vadd.f32 %v1024, %v1216
  %v1218 = vpop.f32.mrf.mxu0
  %v1219 = vadd.f32 %v1026, %v1218
  %v1220 = vpop.f32.mrf.mxu0
  %v1221 = vadd.f32 %v1028, %v1220
  %v1222 = vpop.f32.mrf.mxu0
  %v1223 = vadd.f32 %v1030, %v1222
  %1224 = vmatprep.mubr.bf16.mxu0 0
  %1225 = vmatmul.mubr.bf16.gmra.mxu0 %v383
  %v1226 = vpop.f32.mrf.mxu0
  %v1227 = vadd.f32 %v1034, %v1226
  %v1228 = vpop.f32.mrf.mxu0
  %v1229 = vadd.f32 %v1036, %v1228
  %v1230 = vpop.f32.mrf.mxu0
  %v1231 = vadd.f32 %v1038, %v1230
  %v1232 = vpop.f32.mrf.mxu0
  %v1233 = vadd.f32 %v1040, %v1232
  %1234 = vmatprep.mubr.bf16.mxu0 0
  %1235 = vmatmul.mubr.bf16.gmra.mxu0 %v386
  %v1236 = vpop.f32.mrf.mxu0
  %v1237 = vadd.f32 %v1044, %v1236
  %v1238 = vpop.f32.mrf.mxu0
  %v1239 = vadd.f32 %v1046, %v1238
  %v1240 = vpop.f32.mrf.mxu0
  %v1241 = vadd.f32 %v1048, %v1240
  %v1242 = vpop.f32.mrf.mxu0
  %v1243 = vadd.f32 %v1050, %v1242
  %1244 = vmatprep.mubr.bf16.mxu0 0
  %1245 = vmatmul.mubr.bf16.gmra.mxu0 %v389
  %v1246 = vpop.f32.mrf.mxu0
  %v1247 = vadd.f32 %v1054, %v1246
  %v1248 = vpop.f32.mrf.mxu0
  %v1249 = vadd.f32 %v1056, %v1248
  %v1250 = vpop.f32.mrf.mxu0
  %v1251 = vadd.f32 %v1058, %v1250
  %v1252 = vpop.f32.mrf.mxu0
  %v1253 = vadd.f32 %v1060, %v1252
  %1254 = vmatprep.mubr.bf16.mxu0 0
  %1255 = vmatmul.mubr.bf16.gmra.mxu0 %v392
  %v1256 = vpop.f32.mrf.mxu0
  %v1257 = vadd.f32 %v1064, %v1256
  %v1258 = vpop.f32.mrf.mxu0
  %v1259 = vadd.f32 %v1066, %v1258
  %v1260 = vpop.f32.mrf.mxu0
  %v1261 = vadd.f32 %v1068, %v1260
  %v1262 = vpop.f32.mrf.mxu0
  %v1263 = vadd.f32 %v1070, %v1262
  %1264 = vmatprep.mubr.bf16.mxu0 0
  %1265 = vmatmul.mubr.bf16.gmra.mxu0 %v395
  %v1266 = vpop.f32.mrf.mxu0
  %v1267 = vadd.f32 %v1074, %v1266
  %v1268 = vpop.f32.mrf.mxu0
  %v1269 = vadd.f32 %v1076, %v1268
  %v1270 = vpop.f32.mrf.mxu0
  %v1271 = vadd.f32 %v1078, %v1270
  %v1272 = vpop.f32.mrf.mxu0
  %v1273 = vadd.f32 %v1080, %v1272
  %1274 = vmatprep.mubr.bf16.mxu0 0
  %1275 = vmatmul.mubr.bf16.gmra.mxu0 %v398
  %v1276 = vpop.f32.mrf.mxu0
  %v1277 = vadd.f32 %v1084, %v1276
  %v1278 = vpop.f32.mrf.mxu0
  %v1279 = vadd.f32 %v1086, %v1278
  %v1280 = vpop.f32.mrf.mxu0
  %v1281 = vadd.f32 %v1088, %v1280
  %v1282 = vpop.f32.mrf.mxu0
  %v1283 = vadd.f32 %v1090, %v1282
  %1284 = vmatprep.mubr.bf16.mxu0 0
  %1285 = vmatmul.mubr.bf16.gmra.mxu0 %v401
  %v1286 = vpop.f32.mrf.mxu0
  %v1287 = vadd.f32 %v1094, %v1286
  %v1288 = vpop.f32.mrf.mxu0
  %v1289 = vadd.f32 %v1096, %v1288
  %v1290 = vpop.f32.mrf.mxu0
  %v1291 = vadd.f32 %v1098, %v1290
  %v1292 = vpop.f32.mrf.mxu0
  %v1293 = vadd.f32 %v1100, %v1292
  %1294 = vmatprep.mubr.bf16.mxu0 0
  %1295 = vmatmul.mubr.bf16.gmra.mxu0 %v404
  %v1296 = vpop.f32.mrf.mxu0
  %v1297 = vadd.f32 %v1104, %v1296
  %v1298 = vpop.f32.mrf.mxu0
  %v1299 = vadd.f32 %v1106, %v1298
  %v1300 = vpop.f32.mrf.mxu0
  %v1301 = vadd.f32 %v1108, %v1300
  %v1302 = vpop.f32.mrf.mxu0
  %v1303 = vadd.f32 %v1110, %v1302
  %1304 = vmatprep.mubr.bf16.mxu0 0
  %1305 = vmatmul.mubr.bf16.gmra.mxu0 %v407
  %v1306 = vpop.f32.mrf.mxu0
  %v1307 = vadd.f32 %v1114, %v1306
  %v1308 = vpop.f32.mrf.mxu0
  %v1309 = vadd.f32 %v1116, %v1308
  %v1310 = vpop.f32.mrf.mxu0
  %v1311 = vadd.f32 %v1118, %v1310
  %v1312 = vpop.f32.mrf.mxu0
  %v1313 = vadd.f32 %v1120, %v1312
  %1314 = vmatprep.mubr.bf16.mxu0 0
  %1315 = vmatmul.mubr.bf16.gmra.mxu0 %v410
  %v1316 = vpop.f32.mrf.mxu0
  %v1317 = vadd.f32 %v1124, %v1316
  %v1318 = vpop.f32.mrf.mxu0
  %v1319 = vadd.f32 %v1126, %v1318
  %v1320 = vpop.f32.mrf.mxu0
  %v1321 = vadd.f32 %v1128, %v1320
  %v1322 = vpop.f32.mrf.mxu0
  %v1323 = vadd.f32 %v1130, %v1322
  %1324 = vdwg.mxu0
  %1325 = vmatprep.subr.bf16.mxu0 %v778
  %1326 = vmatpush1.bf16.msra.mxu0 %v777
  %1327 = vmatprep.subr.bf16.mxu0 %v774
  %1328 = vmatpush1.bf16.msra.mxu0 %v773
  %1329 = vmatprep.subr.bf16.mxu0 %v770
  %1330 = vmatpush1.bf16.msra.mxu0 %v769
  %1331 = vmatprep.subr.bf16.mxu0 %v766
  %1332 = vmatpush1.bf16.msra.mxu0 %v765
  %1333 = vmatprep.subr.bf16.mxu0 %v762
  %1334 = vmatpush1.bf16.msra.mxu0 %v761
  %1335 = vmatprep.subr.bf16.mxu0 %v758
  %1336 = vmatpush1.bf16.msra.mxu0 %v757
  %1337 = vmatprep.subr.bf16.mxu0 %v754
  %1338 = vmatpush1.bf16.msra.mxu0 %v753
  %1339 = vmatprep.subr.bf16.mxu0 %v750
  %1340 = vmatpush1.bf16.msra.mxu0 %v749
  %1341 = vmatprep.subr.bf16.mxu0 %v810
  %1342 = vmatpush2.bf16.msra.mxu0 %v809
  %1343 = vmatprep.subr.bf16.mxu0 %v806
  %1344 = vmatpush2.bf16.msra.mxu0 %v805
  %1345 = vmatprep.subr.bf16.mxu0 %v802
  %1346 = vmatpush2.bf16.msra.mxu0 %v801
  %1347 = vmatprep.subr.bf16.mxu0 %v798
  %1348 = vmatpush2.bf16.msra.mxu0 %v797
  %1349 = vmatprep.subr.bf16.mxu0 %v794
  %1350 = vmatpush2.bf16.msra.mxu0 %v793
  %1351 = vmatprep.subr.bf16.mxu0 %v790
  %1352 = vmatpush2.bf16.msra.mxu0 %v789
  %1353 = vmatprep.subr.bf16.mxu0 %v786
  %1354 = vmatpush2.bf16.msra.mxu0 %v785
  %1355 = vmatprep.subr.bf16.mxu0 %v782
  %1356 = vmatpush2.bf16.msra.mxu0 %v781
  %1357 = vmatprep.mubr.bf16.mxu0 %v364
  %1358 = vmatmul.mubr.bf16.gmra.mxu0 %v363
  %v1359 = vpop.f32.mrf.mxu0
  %v1360 = vadd.f32 %v194, %v1359
  %v1361 = vpop.f32.mrf.mxu0
  %v1362 = vadd.f32 %v198, %v1361
  %v1363 = vpop.f32.mrf.mxu0
  %v1364 = vadd.f32 %v194, %v1363
  %v1365 = vpop.f32.mrf.mxu0
  %v1366 = vadd.f32 %v198, %v1365
  %1367 = vmatprep.mubr.bf16.mxu0 %v367
  %1368 = vmatmul.mubr.bf16.gmra.mxu0 %v366
  %v1369 = vpop.f32.mrf.mxu0
  %v1370 = vadd.f32 %v194, %v1369
  %v1371 = vpop.f32.mrf.mxu0
  %v1372 = vadd.f32 %v198, %v1371
  %v1373 = vpop.f32.mrf.mxu0
  %v1374 = vadd.f32 %v194, %v1373
  %v1375 = vpop.f32.mrf.mxu0
  %v1376 = vadd.f32 %v198, %v1375
  %1377 = vmatprep.mubr.bf16.mxu0 %v370
  %1378 = vmatmul.mubr.bf16.gmra.mxu0 %v369
  %v1379 = vpop.f32.mrf.mxu0
  %v1380 = vadd.f32 %v194, %v1379
  %v1381 = vpop.f32.mrf.mxu0
  %v1382 = vadd.f32 %v198, %v1381
  %v1383 = vpop.f32.mrf.mxu0
  %v1384 = vadd.f32 %v194, %v1383
  %v1385 = vpop.f32.mrf.mxu0
  %v1386 = vadd.f32 %v198, %v1385
  %1387 = vmatprep.mubr.bf16.mxu0 %v373
  %1388 = vmatmul.mubr.bf16.gmra.mxu0 %v372
  %v1389 = vpop.f32.mrf.mxu0
  %v1390 = vadd.f32 %v194, %v1389
  %v1391 = vpop.f32.mrf.mxu0
  %v1392 = vadd.f32 %v198, %v1391
  %v1393 = vpop.f32.mrf.mxu0
  %v1394 = vadd.f32 %v194, %v1393
  %v1395 = vpop.f32.mrf.mxu0
  %v1396 = vadd.f32 %v198, %v1395
  %1397 = vmatprep.mubr.bf16.mxu0 %v376
  %1398 = vmatmul.mubr.bf16.gmra.mxu0 %v375
  %v1399 = vpop.f32.mrf.mxu0
  %v1400 = vadd.f32 %v194, %v1399
  %v1401 = vpop.f32.mrf.mxu0
  %v1402 = vadd.f32 %v198, %v1401
  %v1403 = vpop.f32.mrf.mxu0
  %v1404 = vadd.f32 %v194, %v1403
  %v1405 = vpop.f32.mrf.mxu0
  %v1406 = vadd.f32 %v198, %v1405
  %1407 = vmatprep.mubr.bf16.mxu0 %v379
  %1408 = vmatmul.mubr.bf16.gmra.mxu0 %v378
  %v1409 = vpop.f32.mrf.mxu0
  %v1410 = vadd.f32 %v194, %v1409
  %v1411 = vpop.f32.mrf.mxu0
  %v1412 = vadd.f32 %v198, %v1411
  %v1413 = vpop.f32.mrf.mxu0
  %v1414 = vadd.f32 %v194, %v1413
  %v1415 = vpop.f32.mrf.mxu0
  %v1416 = vadd.f32 %v198, %v1415
  %1417 = vmatprep.mubr.bf16.mxu0 %v382
  %1418 = vmatmul.mubr.bf16.gmra.mxu0 %v381
  %v1419 = vpop.f32.mrf.mxu0
  %v1420 = vadd.f32 %v194, %v1419
  %v1421 = vpop.f32.mrf.mxu0
  %v1422 = vadd.f32 %v198, %v1421
  %v1423 = vpop.f32.mrf.mxu0
  %v1424 = vadd.f32 %v194, %v1423
  %v1425 = vpop.f32.mrf.mxu0
  %v1426 = vadd.f32 %v198, %v1425
  %1427 = vmatprep.mubr.bf16.mxu0 %v385
  %1428 = vmatmul.mubr.bf16.gmra.mxu0 %v384
  %v1429 = vpop.f32.mrf.mxu0
  %v1430 = vadd.f32 %v194, %v1429
  %v1431 = vpop.f32.mrf.mxu0
  %v1432 = vadd.f32 %v198, %v1431
  %v1433 = vpop.f32.mrf.mxu0
  %v1434 = vadd.f32 %v194, %v1433
  %v1435 = vpop.f32.mrf.mxu0
  %v1436 = vadd.f32 %v198, %v1435
  %1437 = vmatprep.mubr.bf16.mxu0 %v388
  %1438 = vmatmul.mubr.bf16.gmra.mxu0 %v387
  %v1439 = vpop.f32.mrf.mxu0
  %v1440 = vadd.f32 %v194, %v1439
  %v1441 = vpop.f32.mrf.mxu0
  %v1442 = vadd.f32 %v198, %v1441
  %v1443 = vpop.f32.mrf.mxu0
  %v1444 = vadd.f32 %v194, %v1443
  %v1445 = vpop.f32.mrf.mxu0
  %v1446 = vadd.f32 %v198, %v1445
  %1447 = vmatprep.mubr.bf16.mxu0 %v391
  %1448 = vmatmul.mubr.bf16.gmra.mxu0 %v390
  %v1449 = vpop.f32.mrf.mxu0
  %v1450 = vadd.f32 %v194, %v1449
  %v1451 = vpop.f32.mrf.mxu0
  %v1452 = vadd.f32 %v198, %v1451
  %v1453 = vpop.f32.mrf.mxu0
  %v1454 = vadd.f32 %v194, %v1453
  %v1455 = vpop.f32.mrf.mxu0
  %v1456 = vadd.f32 %v198, %v1455
  %1457 = vmatprep.mubr.bf16.mxu0 %v394
  %1458 = vmatmul.mubr.bf16.gmra.mxu0 %v393
  %v1459 = vpop.f32.mrf.mxu0
  %v1460 = vadd.f32 %v194, %v1459
  %v1461 = vpop.f32.mrf.mxu0
  %v1462 = vadd.f32 %v198, %v1461
  %v1463 = vpop.f32.mrf.mxu0
  %v1464 = vadd.f32 %v194, %v1463
  %v1465 = vpop.f32.mrf.mxu0
  %v1466 = vadd.f32 %v198, %v1465
  %1467 = vmatprep.mubr.bf16.mxu0 %v397
  %1468 = vmatmul.mubr.bf16.gmra.mxu0 %v396
  %v1469 = vpop.f32.mrf.mxu0
  %v1470 = vadd.f32 %v194, %v1469
  %v1471 = vpop.f32.mrf.mxu0
  %v1472 = vadd.f32 %v198, %v1471
  %v1473 = vpop.f32.mrf.mxu0
  %v1474 = vadd.f32 %v194, %v1473
  %v1475 = vpop.f32.mrf.mxu0
  %v1476 = vadd.f32 %v198, %v1475
  %1477 = vmatprep.mubr.bf16.mxu0 %v400
  %1478 = vmatmul.mubr.bf16.gmra.mxu0 %v399
  %v1479 = vpop.f32.mrf.mxu0
  %v1480 = vadd.f32 %v194, %v1479
  %v1481 = vpop.f32.mrf.mxu0
  %v1482 = vadd.f32 %v198, %v1481
  %v1483 = vpop.f32.mrf.mxu0
  %v1484 = vadd.f32 %v194, %v1483
  %v1485 = vpop.f32.mrf.mxu0
  %v1486 = vadd.f32 %v198, %v1485
  %1487 = vmatprep.mubr.bf16.mxu0 %v403
  %1488 = vmatmul.mubr.bf16.gmra.mxu0 %v402
  %v1489 = vpop.f32.mrf.mxu0
  %v1490 = vadd.f32 %v194, %v1489
  %v1491 = vpop.f32.mrf.mxu0
  %v1492 = vadd.f32 %v198, %v1491
  %v1493 = vpop.f32.mrf.mxu0
  %v1494 = vadd.f32 %v194, %v1493
  %v1495 = vpop.f32.mrf.mxu0
  %v1496 = vadd.f32 %v198, %v1495
  %1497 = vmatprep.mubr.bf16.mxu0 %v406
  %1498 = vmatmul.mubr.bf16.gmra.mxu0 %v405
  %v1499 = vpop.f32.mrf.mxu0
  %v1500 = vadd.f32 %v194, %v1499
  %v1501 = vpop.f32.mrf.mxu0
  %v1502 = vadd.f32 %v198, %v1501
  %v1503 = vpop.f32.mrf.mxu0
  %v1504 = vadd.f32 %v194, %v1503
  %v1505 = vpop.f32.mrf.mxu0
  %v1506 = vadd.f32 %v198, %v1505
  %1507 = vmatprep.mubr.bf16.mxu0 %v409
  %1508 = vmatmul.mubr.bf16.gmra.mxu0 %v408
  %v1509 = vpop.f32.mrf.mxu0
  %v1510 = vadd.f32 %v194, %v1509
  %v1511 = vpop.f32.mrf.mxu0
  %v1512 = vadd.f32 %v198, %v1511
  %v1513 = vpop.f32.mrf.mxu0
  %v1514 = vadd.f32 %v194, %v1513
  %v1515 = vpop.f32.mrf.mxu0
  %v1516 = vadd.f32 %v198, %v1515
  %1517 = vdwg.mxu0
  %1518 = vmatprep.subr.bf16.mxu0 %v842
  %1519 = vmatpush1.bf16.msra.mxu0 %v841
  %1520 = vmatprep.subr.bf16.mxu0 %v838
  %1521 = vmatpush1.bf16.msra.mxu0 %v837
  %1522 = vmatprep.subr.bf16.mxu0 %v834
  %1523 = vmatpush1.bf16.msra.mxu0 %v833
  %1524 = vmatprep.subr.bf16.mxu0 %v830
  %1525 = vmatpush1.bf16.msra.mxu0 %v829
  %1526 = vmatprep.subr.bf16.mxu0 %v826
  %1527 = vmatpush1.bf16.msra.mxu0 %v825
  %1528 = vmatprep.subr.bf16.mxu0 %v822
  %1529 = vmatpush1.bf16.msra.mxu0 %v821
  %1530 = vmatprep.subr.bf16.mxu0 %v818
  %1531 = vmatpush1.bf16.msra.mxu0 %v817
  %1532 = vmatprep.subr.bf16.mxu0 %v814
  %1533 = vmatpush1.bf16.msra.mxu0 %v813
  %1534 = vmatprep.subr.bf16.mxu0 0
  %1535 = vmatpush2.bf16.msra.mxu0 0
  %1536 = vmatprep.subr.bf16.mxu0 0
  %1537 = vmatpush2.bf16.msra.mxu0 0
  %1538 = vmatprep.subr.bf16.mxu0 0
  %1539 = vmatpush2.bf16.msra.mxu0 0
  %1540 = vmatprep.subr.bf16.mxu0 0
  %1541 = vmatpush2.bf16.msra.mxu0 0
  %1542 = vmatprep.subr.bf16.mxu0 0
  %1543 = vmatpush2.bf16.msra.mxu0 0
  %1544 = vmatprep.subr.bf16.mxu0 0
  %1545 = vmatpush2.bf16.msra.mxu0 0
  %1546 = vmatprep.subr.bf16.mxu0 0
  %1547 = vmatpush2.bf16.msra.mxu0 0
  %1548 = vmatprep.subr.bf16.mxu0 0
  %1549 = vmatpush2.bf16.msra.mxu0 0
  %1550 = vmatprep.mubr.bf16.mxu0 0
  %1551 = vmatmul.mubr.bf16.gmra.mxu0 %v365
  %v1552 = vpop.f32.mrf.mxu0
  %v1553 = vadd.f32 %v1360, %v1552
  %v1554 = vpop.f32.mrf.mxu0
  %v1555 = vadd.f32 %v1362, %v1554
  %v1556 = vpop.f32.mrf.mxu0
  %v1557 = vadd.f32 %v1364, %v1556
  %v1558 = vpop.f32.mrf.mxu0
  %v1559 = vadd.f32 %v1366, %v1558
  %1560 = vmatprep.mubr.bf16.mxu0 0
  %1561 = vmatmul.mubr.bf16.gmra.mxu0 %v368
  %v1562 = vpop.f32.mrf.mxu0
  %v1563 = vadd.f32 %v1370, %v1562
  %v1564 = vpop.f32.mrf.mxu0
  %v1565 = vadd.f32 %v1372, %v1564
  %v1566 = vpop.f32.mrf.mxu0
  %v1567 = vadd.f32 %v1374, %v1566
  %v1568 = vpop.f32.mrf.mxu0
  %v1569 = vadd.f32 %v1376, %v1568
  %1570 = vmatprep.mubr.bf16.mxu0 0
  %1571 = vmatmul.mubr.bf16.gmra.mxu0 %v371
  %v1572 = vpop.f32.mrf.mxu0
  %v1573 = vadd.f32 %v1380, %v1572
  %v1574 = vpop.f32.mrf.mxu0
  %v1575 = vadd.f32 %v1382, %v1574
  %v1576 = vpop.f32.mrf.mxu0
  %v1577 = vadd.f32 %v1384, %v1576
  %v1578 = vpop.f32.mrf.mxu0
  %v1579 = vadd.f32 %v1386, %v1578
  %1580 = vmatprep.mubr.bf16.mxu0 0
  %1581 = vmatmul.mubr.bf16.gmra.mxu0 %v374
  %v1582 = vpop.f32.mrf.mxu0
  %v1583 = vadd.f32 %v1390, %v1582
  %v1584 = vpop.f32.mrf.mxu0
  %v1585 = vadd.f32 %v1392, %v1584
  %v1586 = vpop.f32.mrf.mxu0
  %v1587 = vadd.f32 %v1394, %v1586
  %v1588 = vpop.f32.mrf.mxu0
  %v1589 = vadd.f32 %v1396, %v1588
  %1590 = vmatprep.mubr.bf16.mxu0 0
  %1591 = vmatmul.mubr.bf16.gmra.mxu0 %v377
  %v1592 = vpop.f32.mrf.mxu0
  %v1593 = vadd.f32 %v1400, %v1592
  %v1594 = vpop.f32.mrf.mxu0
  %v1595 = vadd.f32 %v1402, %v1594
  %v1596 = vpop.f32.mrf.mxu0
  %v1597 = vadd.f32 %v1404, %v1596
  %v1598 = vpop.f32.mrf.mxu0
  %v1599 = vadd.f32 %v1406, %v1598
  %1600 = vmatprep.mubr.bf16.mxu0 0
  %1601 = vmatmul.mubr.bf16.gmra.mxu0 %v380
  %v1602 = vpop.f32.mrf.mxu0
  %v1603 = vadd.f32 %v1410, %v1602
  %v1604 = vpop.f32.mrf.mxu0
  %v1605 = vadd.f32 %v1412, %v1604
  %v1606 = vpop.f32.mrf.mxu0
  %v1607 = vadd.f32 %v1414, %v1606
  %v1608 = vpop.f32.mrf.mxu0
  %v1609 = vadd.f32 %v1416, %v1608
  %1610 = vmatprep.mubr.bf16.mxu0 0
  %1611 = vmatmul.mubr.bf16.gmra.mxu0 %v383
  %v1612 = vpop.f32.mrf.mxu0
  %v1613 = vadd.f32 %v1420, %v1612
  %v1614 = vpop.f32.mrf.mxu0
  %v1615 = vadd.f32 %v1422, %v1614
  %v1616 = vpop.f32.mrf.mxu0
  %v1617 = vadd.f32 %v1424, %v1616
  %v1618 = vpop.f32.mrf.mxu0
  %v1619 = vadd.f32 %v1426, %v1618
  %1620 = vmatprep.mubr.bf16.mxu0 0
  %1621 = vmatmul.mubr.bf16.gmra.mxu0 %v386
  %v1622 = vpop.f32.mrf.mxu0
  %v1623 = vadd.f32 %v1430, %v1622
  %v1624 = vpop.f32.mrf.mxu0
  %v1625 = vadd.f32 %v1432, %v1624
  %v1626 = vpop.f32.mrf.mxu0
  %v1627 = vadd.f32 %v1434, %v1626
  %v1628 = vpop.f32.mrf.mxu0
  %v1629 = vadd.f32 %v1436, %v1628
  %1630 = vmatprep.mubr.bf16.mxu0 0
  %1631 = vmatmul.mubr.bf16.gmra.mxu0 %v389
  %v1632 = vpop.f32.mrf.mxu0
  %v1633 = vadd.f32 %v1440, %v1632
  %v1634 = vpop.f32.mrf.mxu0
  %v1635 = vadd.f32 %v1442, %v1634
  %v1636 = vpop.f32.mrf.mxu0
  %v1637 = vadd.f32 %v1444, %v1636
  %v1638 = vpop.f32.mrf.mxu0
  %v1639 = vadd.f32 %v1446, %v1638
  %1640 = vmatprep.mubr.bf16.mxu0 0
  %1641 = vmatmul.mubr.bf16.gmra.mxu0 %v392
  %v1642 = vpop.f32.mrf.mxu0
  %v1643 = vadd.f32 %v1450, %v1642
  %v1644 = vpop.f32.mrf.mxu0
  %v1645 = vadd.f32 %v1452, %v1644
  %v1646 = vpop.f32.mrf.mxu0
  %v1647 = vadd.f32 %v1454, %v1646
  %v1648 = vpop.f32.mrf.mxu0
  %v1649 = vadd.f32 %v1456, %v1648
  %1650 = vmatprep.mubr.bf16.mxu0 0
  %1651 = vmatmul.mubr.bf16.gmra.mxu0 %v395
  %v1652 = vpop.f32.mrf.mxu0
  %v1653 = vadd.f32 %v1460, %v1652
  %v1654 = vpop.f32.mrf.mxu0
  %v1655 = vadd.f32 %v1462, %v1654
  %v1656 = vpop.f32.mrf.mxu0
  %v1657 = vadd.f32 %v1464, %v1656
  %v1658 = vpop.f32.mrf.mxu0
  %v1659 = vadd.f32 %v1466, %v1658
  %1660 = vmatprep.mubr.bf16.mxu0 0
  %1661 = vmatmul.mubr.bf16.gmra.mxu0 %v398
  %v1662 = vpop.f32.mrf.mxu0
  %v1663 = vadd.f32 %v1470, %v1662
  %v1664 = vpop.f32.mrf.mxu0
  %v1665 = vadd.f32 %v1472, %v1664
  %v1666 = vpop.f32.mrf.mxu0
  %v1667 = vadd.f32 %v1474, %v1666
  %v1668 = vpop.f32.mrf.mxu0
  %v1669 = vadd.f32 %v1476, %v1668
  %1670 = vmatprep.mubr.bf16.mxu0 0
  %1671 = vmatmul.mubr.bf16.gmra.mxu0 %v401
  %v1672 = vpop.f32.mrf.mxu0
  %v1673 = vadd.f32 %v1480, %v1672
  %v1674 = vpop.f32.mrf.mxu0
  %v1675 = vadd.f32 %v1482, %v1674
  %v1676 = vpop.f32.mrf.mxu0
  %v1677 = vadd.f32 %v1484, %v1676
  %v1678 = vpop.f32.mrf.mxu0
  %v1679 = vadd.f32 %v1486, %v1678
  %1680 = vmatprep.mubr.bf16.mxu0 0
  %1681 = vmatmul.mubr.bf16.gmra.mxu0 %v404
  %v1682 = vpop.f32.mrf.mxu0
  %v1683 = vadd.f32 %v1490, %v1682
  %v1684 = vpop.f32.mrf.mxu0
  %v1685 = vadd.f32 %v1492, %v1684
  %v1686 = vpop.f32.mrf.mxu0
  %v1687 = vadd.f32 %v1494, %v1686
  %v1688 = vpop.f32.mrf.mxu0
  %v1689 = vadd.f32 %v1496, %v1688
  %1690 = vmatprep.mubr.bf16.mxu0 0
  %1691 = vmatmul.mubr.bf16.gmra.mxu0 %v407
  %v1692 = vpop.f32.mrf.mxu0
  %v1693 = vadd.f32 %v1500, %v1692
  %v1694 = vpop.f32.mrf.mxu0
  %v1695 = vadd.f32 %v1502, %v1694
  %v1696 = vpop.f32.mrf.mxu0
  %v1697 = vadd.f32 %v1504, %v1696
  %v1698 = vpop.f32.mrf.mxu0
  %v1699 = vadd.f32 %v1506, %v1698
  %1700 = vmatprep.mubr.bf16.mxu0 0
  %1701 = vmatmul.mubr.bf16.gmra.mxu0 %v410
  %v1702 = vpop.f32.mrf.mxu0
  %v1703 = vadd.f32 %v1510, %v1702
  %v1704 = vpop.f32.mrf.mxu0
  %v1705 = vadd.f32 %v1512, %v1704
  %v1706 = vpop.f32.mrf.mxu0
  %v1707 = vadd.f32 %v1514, %v1706
  %v1708 = vpop.f32.mrf.mxu0
  %v1709 = vadd.f32 %v1516, %v1708
  %1710 = vdwg.mxu0
  %v1711 = vmax.f32 %v1167, 0.0
  %v1712 = vmax.f32 %v1169, 0.0
  %v1713 = vmax.f32 %v1553, 0.0
  %v1714 = vmax.f32 %v1555, 0.0
  %v1715 = vmax.f32 %v1171, 0.0
  %v1716 = vmax.f32 %v1173, 0.0
  %v1717 = vmax.f32 %v1557, 0.0
  %v1718 = vmax.f32 %v1559, 0.0
  %v1719 = vmax.f32 %v1177, 0.0
  %v1720 = vmax.f32 %v1179, 0.0
  %v1721 = vmax.f32 %v1563, 0.0
  %v1722 = vmax.f32 %v1565, 0.0
  %v1723 = vmax.f32 %v1181, 0.0
  %v1724 = vmax.f32 %v1183, 0.0
  %v1725 = vmax.f32 %v1567, 0.0
  %v1726 = vmax.f32 %v1569, 0.0
  %v1727 = vmax.f32 %v1187, 0.0
  %v1728 = vmax.f32 %v1189, 0.0
  %v1729 = vmax.f32 %v1573, 0.0
  %v1730 = vmax.f32 %v1575, 0.0
  %v1731 = vmax.f32 %v1191, 0.0
  %v1732 = vmax.f32 %v1193, 0.0
  %v1733 = vmax.f32 %v1577, 0.0
  %v1734 = vmax.f32 %v1579, 0.0
  %v1735 = vmax.f32 %v1197, 0.0
  %v1736 = vmax.f32 %v1199, 0.0
  %v1737 = vmax.f32 %v1583, 0.0
  %v1738 = vmax.f32 %v1585, 0.0
  %v1739 = vmax.f32 %v1201, 0.0
  %v1740 = vmax.f32 %v1203, 0.0
  %v1741 = vmax.f32 %v1587, 0.0
  %v1742 = vmax.f32 %v1589, 0.0
  %v1743 = vmax.f32 %v1207, 0.0
  %v1744 = vmax.f32 %v1209, 0.0
  %v1745 = vmax.f32 %v1593, 0.0
  %v1746 = vmax.f32 %v1595, 0.0
  %v1747 = vmax.f32 %v1211, 0.0
  %v1748 = vmax.f32 %v1213, 0.0
  %v1749 = vmax.f32 %v1597, 0.0
  %v1750 = vmax.f32 %v1599, 0.0
  %v1751 = vmax.f32 %v1217, 0.0
  %v1752 = vmax.f32 %v1219, 0.0
  %v1753 = vmax.f32 %v1603, 0.0
  %v1754 = vmax.f32 %v1605, 0.0
  %v1755 = vmax.f32 %v1221, 0.0
  %v1756 = vmax.f32 %v1223, 0.0
  %v1757 = vmax.f32 %v1607, 0.0
  %v1758 = vmax.f32 %v1609, 0.0
  %v1759 = vmax.f32 %v1227, 0.0
  %v1760 = vmax.f32 %v1229, 0.0
  %v1761 = vmax.f32 %v1613, 0.0
  %v1762 = vmax.f32 %v1615, 0.0
  %v1763 = vmax.f32 %v1231, 0.0
  %v1764 = vmax.f32 %v1233, 0.0
  %v1765 = vmax.f32 %v1617, 0.0
  %v1766 = vmax.f32 %v1619, 0.0
  %v1767 = vmax.f32 %v1237, 0.0
  %v1768 = vmax.f32 %v1239, 0.0
  %v1769 = vmax.f32 %v1623, 0.0
  %v1770 = vmax.f32 %v1625, 0.0
  %v1771 = vmax.f32 %v1241, 0.0
  %v1772 = vmax.f32 %v1243, 0.0
  %v1773 = vmax.f32 %v1627, 0.0
  %v1774 = vmax.f32 %v1629, 0.0
  %v1775 = vmax.f32 %v1247, 0.0
  %v1776 = vmax.f32 %v1249, 0.0
  %v1777 = vmax.f32 %v1633, 0.0
  %v1778 = vmax.f32 %v1635, 0.0
  %v1779 = vmax.f32 %v1251, 0.0
  %v1780 = vmax.f32 %v1253, 0.0
  %v1781 = vmax.f32 %v1637, 0.0
  %v1782 = vmax.f32 %v1639, 0.0
  %v1783 = vmax.f32 %v1257, 0.0
  %v1784 = vmax.f32 %v1259, 0.0
  %v1785 = vmax.f32 %v1643, 0.0
  %v1786 = vmax.f32 %v1645, 0.0
  %v1787 = vmax.f32 %v1261, 0.0
  %v1788 = vmax.f32 %v1263, 0.0
  %v1789 = vmax.f32 %v1647, 0.0
  %v1790 = vmax.f32 %v1649, 0.0
  %v1791 = vmax.f32 %v1267, 0.0
  %v1792 = vmax.f32 %v1269, 0.0
  %v1793 = vmax.f32 %v1653, 0.0
  %v1794 = vmax.f32 %v1655, 0.0
  %v1795 = vmax.f32 %v1271, 0.0
  %v1796 = vmax.f32 %v1273, 0.0
  %v1797 = vmax.f32 %v1657, 0.0
  %v1798 = vmax.f32 %v1659, 0.0
  %v1799 = vmax.f32 %v1277, 0.0
  %v1800 = vmax.f32 %v1279, 0.0
  %v1801 = vmax.f32 %v1663, 0.0
  %v1802 = vmax.f32 %v1665, 0.0
  %v1803 = vmax.f32 %v1281, 0.0
  %v1804 = vmax.f32 %v1283, 0.0
  %v1805 = vmax.f32 %v1667, 0.0
  %v1806 = vmax.f32 %v1669, 0.0
  %v1807 = vmax.f32 %v1287, 0.0
  %v1808 = vmax.f32 %v1289, 0.0
  %v1809 = vmax.f32 %v1673, 0.0
  %v1810 = vmax.f32 %v1675, 0.0
  %v1811 = vmax.f32 %v1291, 0.0
  %v1812 = vmax.f32 %v1293, 0.0
  %v1813 = vmax.f32 %v1677, 0.0
  %v1814 = vmax.f32 %v1679, 0.0
  %v1815 = vmax.f32 %v1297, 0.0
  %v1816 = vmax.f32 %v1299, 0.0
  %v1817 = vmax.f32 %v1683, 0.0
  %v1818 = vmax.f32 %v1685, 0.0
  %v1819 = vmax.f32 %v1301, 0.0
  %v1820 = vmax.f32 %v1303, 0.0
  %v1821 = vmax.f32 %v1687, 0.0
  %v1822 = vmax.f32 %v1689, 0.0
  %v1823 = vmax.f32 %v1307, 0.0
  %v1824 = vmax.f32 %v1309, 0.0
  %v1825 = vmax.f32 %v1693, 0.0
  %v1826 = vmax.f32 %v1695, 0.0
  %v1827 = vmax.f32 %v1311, 0.0
  %v1828 = vmax.f32 %v1313, 0.0
  %v1829 = vmax.f32 %v1697, 0.0
  %v1830 = vmax.f32 %v1699, 0.0
  %v1831 = vmax.f32 %v1317, 0.0
  %v1832 = vmax.f32 %v1319, 0.0
  %v1833 = vmax.f32 %v1703, 0.0
  %v1834 = vmax.f32 %v1705, 0.0
  %v1835 = vmax.f32 %v1321, 0.0
  %v1836 = vmax.f32 %v1323, 0.0
  %v1837 = vmax.f32 %v1707, 0.0
  %v1838 = vmax.f32 %v1709, 0.0
  %v1839 = vpack.c.bf16 %v1715, %v1711
  %v1840 = vpack.c.bf16 %v1716, %v1712
  %v1841 = vpack.c.bf16 %v1717, %v1713
  %v1842 = vpack.c.bf16 %v1718, %v1714
  %v1843 = vpack.c.bf16 %v1723, %v1719
  %v1844 = vpack.c.bf16 %v1724, %v1720
  %v1845 = vpack.c.bf16 %v1725, %v1721
  %v1846 = vpack.c.bf16 %v1726, %v1722
  %v1847 = vpack.c.bf16 %v1731, %v1727
  %v1848 = vpack.c.bf16 %v1732, %v1728
  %v1849 = vpack.c.bf16 %v1733, %v1729
  %v1850 = vpack.c.bf16 %v1734, %v1730
  %v1851 = vpack.c.bf16 %v1739, %v1735
  %v1852 = vpack.c.bf16 %v1740, %v1736
  %v1853 = vpack.c.bf16 %v1741, %v1737
  %v1854 = vpack.c.bf16 %v1742, %v1738
  %v1855 = vpack.c.bf16 %v1747, %v1743
  %v1856 = vpack.c.bf16 %v1748, %v1744
  %v1857 = vpack.c.bf16 %v1749, %v1745
  %v1858 = vpack.c.bf16 %v1750, %v1746
  %v1859 = vpack.c.bf16 %v1755, %v1751
  %v1860 = vpack.c.bf16 %v1756, %v1752
  %v1861 = vpack.c.bf16 %v1757, %v1753
  %v1862 = vpack.c.bf16 %v1758, %v1754
  %v1863 = vpack.c.bf16 %v1763, %v1759
  %v1864 = vpack.c.bf16 %v1764, %v1760
  %v1865 = vpack.c.bf16 %v1765, %v1761
  %v1866 = vpack.c.bf16 %v1766, %v1762
  %v1867 = vpack.c.bf16 %v1771, %v1767
  %v1868 = vpack.c.bf16 %v1772, %v1768
  %v1869 = vpack.c.bf16 %v1773, %v1769
  %v1870 = vpack.c.bf16 %v1774, %v1770
  %v1871 = vpack.c.bf16 %v1779, %v1775
  %v1872 = vpack.c.bf16 %v1780, %v1776
  %v1873 = vpack.c.bf16 %v1781, %v1777
  %v1874 = vpack.c.bf16 %v1782, %v1778
  %v1875 = vpack.c.bf16 %v1787, %v1783
  %v1876 = vpack.c.bf16 %v1788, %v1784
  %v1877 = vpack.c.bf16 %v1789, %v1785
  %v1878 = vpack.c.bf16 %v1790, %v1786
  %v1879 = vpack.c.bf16 %v1795, %v1791
  %v1880 = vpack.c.bf16 %v1796, %v1792
  %v1881 = vpack.c.bf16 %v1797, %v1793
  %v1882 = vpack.c.bf16 %v1798, %v1794
  %v1883 = vpack.c.bf16 %v1803, %v1799
  %v1884 = vpack.c.bf16 %v1804, %v1800
  %v1885 = vpack.c.bf16 %v1805, %v1801
  %v1886 = vpack.c.bf16 %v1806, %v1802
  %v1887 = vpack.c.bf16 %v1811, %v1807
  %v1888 = vpack.c.bf16 %v1812, %v1808
  %v1889 = vpack.c.bf16 %v1813, %v1809
  %v1890 = vpack.c.bf16 %v1814, %v1810
  %v1891 = vpack.c.bf16 %v1819, %v1815
  %v1892 = vpack.c.bf16 %v1820, %v1816
  %v1893 = vpack.c.bf16 %v1821, %v1817
  %v1894 = vpack.c.bf16 %v1822, %v1818
  %v1895 = vpack.c.bf16 %v1827, %v1823
  %v1896 = vpack.c.bf16 %v1828, %v1824
  %v1897 = vpack.c.bf16 %v1829, %v1825
  %v1898 = vpack.c.bf16 %v1830, %v1826
  %v1899 = vpack.c.bf16 %v1835, %v1831
  %v1900 = vpack.c.bf16 %v1836, %v1832
  %v1901 = vpack.c.bf16 %v1837, %v1833
  %v1902 = vpack.c.bf16 %v1838, %v1834
  %v1903 = vld [vmem:[%s3] sm:$0xff]
  %v1904 = vld [vmem:[%s3 + $0x8] sm:$0xf]
  %v1905 = vld [vmem:[%s3 + $0xc] sm:$0xff]
  %v1906 = vld [vmem:[%s3 + $0x14] sm:$0xf]
  %v1907 = vld [vmem:[%s3 + $0x18] sm:$0xff]
  %v1908 = vld [vmem:[%s3 + $0x20] sm:$0xf]
  %v1909 = vld [vmem:[%s3 + $0x24] sm:$0xff]
  %v1910 = vld [vmem:[%s3 + $0x2c] sm:$0xf]
  %v1911 = vld [vmem:[%s3 + $0x30] sm:$0xff]
  %v1912 = vld [vmem:[%s3 + $0x38] sm:$0xf]
  %v1913 = vld [vmem:[%s3 + $0x3c] sm:$0xff]
  %v1914 = vld [vmem:[%s3 + $0x44] sm:$0xf]
  %v1915 = vld [vmem:[%s3 + $0x48] sm:$0xff]
  %v1916 = vld [vmem:[%s3 + $0x50] sm:$0xf]
  %v1917 = vld [vmem:[%s3 + $0x54] sm:$0xff]
  %v1918 = vld [vmem:[%s3 + $0x5c] sm:$0xf]
  %v1919 = vld [vmem:[%s3 + $0x60] sm:$0xff]
  %v1920 = vld [vmem:[%s3 + $0x68] sm:$0xf]
  %v1921 = vld [vmem:[%s3 + $0x6c] sm:$0xff]
  %v1922 = vld [vmem:[%s3 + $0x74] sm:$0xf]
  %v1923 = vld [vmem:[%s3 + $0x78] sm:$0xff]
  %v1924 = vld [vmem:[%s3 + $0x80] sm:$0xf]
  %v1925 = vld [vmem:[%s3 + $0x84] sm:$0xff]
  %v1926 = vld [vmem:[%s3 + $0x8c] sm:$0xf]
  %v1927 = vld [vmem:[%s3 + $0x90] sm:$0xff]
  %v1928 = vld [vmem:[%s3 + $0x98] sm:$0xf]
  %v1929 = vld [vmem:[%s3 + $0x9c] sm:$0xff]
  %v1930 = vld [vmem:[%s3 + $0xa4] sm:$0xf]
  %v1931 = vld [vmem:[%s3 + $0xa8] sm:$0xff]
  %v1932 = vld [vmem:[%s3 + $0xb0] sm:$0xf]
  %v1933 = vld [vmem:[%s3 + $0xb4] sm:$0xff]
  %v1934 = vld [vmem:[%s3 + $0xbc] sm:$0xf]
  %v1935 = vld [vmem:[%s3 + $0xc0] sm:$0xff]
  %v1936 = vld [vmem:[%s3 + $0xc8] sm:$0xf]
  %v1937 = vld [vmem:[%s3 + $0xcc] sm:$0xff]
  %v1938 = vld [vmem:[%s3 + $0xd4] sm:$0xf]
  %v1939 = vld [vmem:[%s3 + $0xd8] sm:$0xff]
  %v1940 = vld [vmem:[%s3 + $0xe0] sm:$0xf]
  %v1941 = vld [vmem:[%s3 + $0xe4] sm:$0xff]
  %v1942 = vld [vmem:[%s3 + $0xec] sm:$0xf]
  %v1943 = vld [vmem:[%s3 + $0xf0] sm:$0xff]
  %v1944 = vld [vmem:[%s3 + $0xf8] sm:$0xf]
  %v1945 = vld [vmem:[%s3 + $0xfc] sm:$0xff]
  %v1946 = vld [vmem:[%s3 + $0x104] sm:$0xf]
  %v1947 = vld [vmem:[%s3 + $0x108] sm:$0xff]
  %v1948 = vld [vmem:[%s3 + $0x110] sm:$0xf]
  %v1949 = vld [vmem:[%s3 + $0x114] sm:$0xff]
  %v1950 = vld [vmem:[%s3 + $0x11c] sm:$0xf]
  %v1951 = vld [vmem:[%s3 + $0x120] sm:$0xff]
  %v1952 = vld [vmem:[%s3 + $0x128] sm:$0xf]
  %v1953 = vld [vmem:[%s3 + $0x12c] sm:$0xff]
  %v1954 = vld [vmem:[%s3 + $0x134] sm:$0xf]
  %v1955 = vld [vmem:[%s3 + $0x138] sm:$0xff]
  %v1956 = vld [vmem:[%s3 + $0x140] sm:$0xf]
  %v1957 = vld [vmem:[%s3 + $0x144] sm:$0xff]
  %v1958 = vld [vmem:[%s3 + $0x14c] sm:$0xf]
  %v1959 = vld [vmem:[%s3 + $0x150] sm:$0xff]
  %v1960 = vld [vmem:[%s3 + $0x158] sm:$0xf]
  %v1961 = vld [vmem:[%s3 + $0x15c] sm:$0xff]
  %v1962 = vld [vmem:[%s3 + $0x164] sm:$0xf]
  %v1963 = vld [vmem:[%s3 + $0x168] sm:$0xff]
  %v1964 = vld [vmem:[%s3 + $0x170] sm:$0xf]
  %v1965 = vld [vmem:[%s3 + $0x174] sm:$0xff]
  %v1966 = vld [vmem:[%s3 + $0x17c] sm:$0xf]
  %v1967 = vld [vmem:[%s3 + $0x180] sm:$0xff]
  %v1968 = vld [vmem:[%s3 + $0x188] sm:$0xf]
  %v1969 = vld [vmem:[%s3 + $0x18c] sm:$0xff]
  %v1970 = vld [vmem:[%s3 + $0x194] sm:$0xf]
  %v1971 = vld [vmem:[%s3 + $0x198] sm:$0xff]
  %v1972 = vld [vmem:[%s3 + $0x1a0] sm:$0xf]
  %v1973 = vld [vmem:[%s3 + $0x1a4] sm:$0xff]
  %v1974 = vld [vmem:[%s3 + $0x1ac] sm:$0xf]
  %v1975 = vld [vmem:[%s3 + $0x1b0] sm:$0xff]
  %v1976 = vld [vmem:[%s3 + $0x1b8] sm:$0xf]
  %v1977 = vld [vmem:[%s3 + $0x1bc] sm:$0xff]
  %v1978 = vld [vmem:[%s3 + $0x1c4] sm:$0xf]
  %v1979 = vld [vmem:[%s3 + $0x1c8] sm:$0xff]
  %v1980 = vld [vmem:[%s3 + $0x1d0] sm:$0xf]
  %v1981 = vld [vmem:[%s3 + $0x1d4] sm:$0xff]
  %v1982 = vld [vmem:[%s3 + $0x1dc] sm:$0xf]
  %v1983 = vld [vmem:[%s3 + $0x1e0] sm:$0xff]
  %v1984 = vld [vmem:[%s3 + $0x1e8] sm:$0xf]
  %v1985 = vld [vmem:[%s3 + $0x1ec] sm:$0xff]
  %v1986 = vld [vmem:[%s3 + $0x1f4] sm:$0xf]
  %v1987 = vld [vmem:[%s3 + $0x1f8] sm:$0xff]
  %v1988 = vld [vmem:[%s3 + $0x200] sm:$0xf]
  %v1989 = vld [vmem:[%s3 + $0x204] sm:$0xff]
  %v1990 = vld [vmem:[%s3 + $0x20c] sm:$0xf]
  %v1991 = vld [vmem:[%s3 + $0x210] sm:$0xff]
  %v1992 = vld [vmem:[%s3 + $0x218] sm:$0xf]
  %v1993 = vld [vmem:[%s3 + $0x21c] sm:$0xff]
  %v1994 = vld [vmem:[%s3 + $0x224] sm:$0xf]
  %v1995 = vld [vmem:[%s3 + $0x228] sm:$0xff]
  %v1996 = vld [vmem:[%s3 + $0x230] sm:$0xf]
  %v1997 = vld [vmem:[%s3 + $0x234] sm:$0xff]
  %v1998 = vld [vmem:[%s3 + $0x23c] sm:$0xf]
  %v1999 = vld [vmem:[%s3 + $0x240] sm:$0xff]
  %v2000 = vld [vmem:[%s3 + $0x248] sm:$0xf]
  %v2001 = vld [vmem:[%s3 + $0x24c] sm:$0xff]
  %v2002 = vld [vmem:[%s3 + $0x254] sm:$0xf]
  %v2003 = vld [vmem:[%s3 + $0x258] sm:$0xff]
  %v2004 = vld [vmem:[%s3 + $0x260] sm:$0xf]
  %v2005 = vld [vmem:[%s3 + $0x264] sm:$0xff]
  %v2006 = vld [vmem:[%s3 + $0x26c] sm:$0xf]
  %v2007 = vld [vmem:[%s3 + $0x270] sm:$0xff]
  %v2008 = vld [vmem:[%s3 + $0x278] sm:$0xf]
  %v2009 = vld [vmem:[%s3 + $0x27c] sm:$0xff]
  %v2010 = vld [vmem:[%s3 + $0x284] sm:$0xf]
  %v2011 = vld [vmem:[%s3 + $0x288] sm:$0xff]
  %v2012 = vld [vmem:[%s3 + $0x290] sm:$0xf]
  %v2013 = vld [vmem:[%s3 + $0x294] sm:$0xff]
  %v2014 = vld [vmem:[%s3 + $0x29c] sm:$0xf]
  %v2015 = vld [vmem:[%s3 + $0x2a0] sm:$0xff]
  %v2016 = vld [vmem:[%s3 + $0x2a8] sm:$0xf]
  %v2017 = vld [vmem:[%s3 + $0x2ac] sm:$0xff]
  %v2018 = vld [vmem:[%s3 + $0x2b4] sm:$0xf]
  %v2019 = vld [vmem:[%s3 + $0x2b8] sm:$0xff]
  %v2020 = vld [vmem:[%s3 + $0x2c0] sm:$0xf]
  %v2021 = vld [vmem:[%s3 + $0x2c4] sm:$0xff]
  %v2022 = vld [vmem:[%s3 + $0x2cc] sm:$0xf]
  %v2023 = vld [vmem:[%s3 + $0x2d0] sm:$0xff]
  %v2024 = vld [vmem:[%s3 + $0x2d8] sm:$0xf]
  %v2025 = vld [vmem:[%s3 + $0x2dc] sm:$0xff]
  %v2026 = vld [vmem:[%s3 + $0x2e4] sm:$0xf]
  %v2027 = vld [vmem:[%s3 + $0x2e8] sm:$0xff]
  %v2028 = vld [vmem:[%s3 + $0x2f0] sm:$0xf]
  %v2029 = vld [vmem:[%s3 + $0x2f4] sm:$0xff]
  %v2030 = vld [vmem:[%s3 + $0x2fc] sm:$0xf]
  %v2031 = vld [vmem:[%s1 + $0x10] sm:$0xff]
  %v2032 = vld [vmem:[%s1 + $0x18] sm:$0xff]
  %v2033 = vld [vmem:[%s1 + $0x40] sm:$0xff]
  %v2034 = vld [vmem:[%s1 + $0x48] sm:$0xff]
  %v2035 = vld [vmem:[%s1 + $0x70] sm:$0xff]
  %v2036 = vld [vmem:[%s1 + $0x78] sm:$0xff]
  %v2037 = vld [vmem:[%s1 + $0xa0] sm:$0xff]
  %v2038 = vld [vmem:[%s1 + $0xa8] sm:$0xff]
  %v2039 = vld [vmem:[%s1 + $0xd0] sm:$0xff]
  %v2040 = vld [vmem:[%s1 + $0xd8] sm:$0xff]
  %v2041 = vld [vmem:[%s1 + $0x100] sm:$0xff]
  %v2042 = vld [vmem:[%s1 + $0x108] sm:$0xff]
  %v2043 = vld [vmem:[%s1 + $0x130] sm:$0xff]
  %v2044 = vld [vmem:[%s1 + $0x138] sm:$0xff]
  %v2045 = vld [vmem:[%s1 + $0x160] sm:$0xff]
  %v2046 = vld [vmem:[%s1 + $0x168] sm:$0xff]
  %v2047 = vld [vmem:[%s1 + $0x190] sm:$0xff]
  %v2048 = vld [vmem:[%s1 + $0x198] sm:$0xff]
  %v2049 = vld [vmem:[%s1 + $0x1c0] sm:$0xff]
  %v2050 = vld [vmem:[%s1 + $0x1c8] sm:$0xff]
  %v2051 = vld [vmem:[%s1 + $0x1f0] sm:$0xff]
  %v2052 = vld [vmem:[%s1 + $0x1f8] sm:$0xff]
  %v2053 = vld [vmem:[%s1 + $0x220] sm:$0xff]
  %v2054 = vld [vmem:[%s1 + $0x228] sm:$0xff]
  %v2055 = vld [vmem:[%s1 + $0x250] sm:$0xff]
  %v2056 = vld [vmem:[%s1 + $0x258] sm:$0xff]
  %v2057 = vld [vmem:[%s1 + $0x280] sm:$0xff]
  %v2058 = vld [vmem:[%s1 + $0x288] sm:$0xff]
  %v2059 = vld [vmem:[%s1 + $0x2b0] sm:$0xff]
  %v2060 = vld [vmem:[%s1 + $0x2b8] sm:$0xff]
  %v2061 = vld [vmem:[%s1 + $0x2e0] sm:$0xff]
  %v2062 = vld [vmem:[%s1 + $0x2e8] sm:$0xff]
  %v2063 = vld [vmem:[%s1 + $0x310] sm:$0xff]
  %v2064 = vld [vmem:[%s1 + $0x318] sm:$0xff]
  %v2065 = vld [vmem:[%s1 + $0x340] sm:$0xff]
  %v2066 = vld [vmem:[%s1 + $0x348] sm:$0xff]
  %v2067 = vld [vmem:[%s1 + $0x370] sm:$0xff]
  %v2068 = vld [vmem:[%s1 + $0x378] sm:$0xff]
  %v2069 = vld [vmem:[%s1 + $0x3a0] sm:$0xff]
  %v2070 = vld [vmem:[%s1 + $0x3a8] sm:$0xff]
  %v2071 = vld [vmem:[%s1 + $0x3d0] sm:$0xff]
  %v2072 = vld [vmem:[%s1 + $0x3d8] sm:$0xff]
  %v2073 = vld [vmem:[%s1 + $0x400] sm:$0xff]
  %v2074 = vld [vmem:[%s1 + $0x408] sm:$0xff]
  %v2075 = vld [vmem:[%s1 + $0x430] sm:$0xff]
  %v2076 = vld [vmem:[%s1 + $0x438] sm:$0xff]
  %v2077 = vld [vmem:[%s1 + $0x460] sm:$0xff]
  %v2078 = vld [vmem:[%s1 + $0x468] sm:$0xff]
  %v2079 = vld [vmem:[%s1 + $0x490] sm:$0xff]
  %v2080 = vld [vmem:[%s1 + $0x498] sm:$0xff]
  %v2081 = vld [vmem:[%s1 + $0x4c0] sm:$0xff]
  %v2082 = vld [vmem:[%s1 + $0x4c8] sm:$0xff]
  %v2083 = vld [vmem:[%s1 + $0x4f0] sm:$0xff]
  %v2084 = vld [vmem:[%s1 + $0x4f8] sm:$0xff]
  %v2085 = vld [vmem:[%s1 + $0x520] sm:$0xff]
  %v2086 = vld [vmem:[%s1 + $0x528] sm:$0xff]
  %v2087 = vld [vmem:[%s1 + $0x550] sm:$0xff]
  %v2088 = vld [vmem:[%s1 + $0x558] sm:$0xff]
  %v2089 = vld [vmem:[%s1 + $0x580] sm:$0xff]
  %v2090 = vld [vmem:[%s1 + $0x588] sm:$0xff]
  %v2091 = vld [vmem:[%s1 + $0x5b0] sm:$0xff]
  %v2092 = vld [vmem:[%s1 + $0x5b8] sm:$0xff]
  %v2093 = vld [vmem:[%s1 + $0x5e0] sm:$0xff]
  %v2094 = vld [vmem:[%s1 + $0x5e8] sm:$0xff]
  %v2095 = vld [vmem:[%s1 + $0x610] sm:$0xff]
  %v2096 = vld [vmem:[%s1 + $0x618] sm:$0xff]
  %v2097 = vld [vmem:[%s1 + $0x640] sm:$0xff]
  %v2098 = vld [vmem:[%s1 + $0x648] sm:$0xff]
  %v2099 = vld [vmem:[%s1 + $0x670] sm:$0xff]
  %v2100 = vld [vmem:[%s1 + $0x678] sm:$0xff]
  %v2101 = vld [vmem:[%s1 + $0x6a0] sm:$0xff]
  %v2102 = vld [vmem:[%s1 + $0x6a8] sm:$0xff]
  %v2103 = vld [vmem:[%s1 + $0x6d0] sm:$0xff]
  %v2104 = vld [vmem:[%s1 + $0x6d8] sm:$0xff]
  %v2105 = vld [vmem:[%s1 + $0x700] sm:$0xff]
  %v2106 = vld [vmem:[%s1 + $0x708] sm:$0xff]
  %v2107 = vld [vmem:[%s1 + $0x730] sm:$0xff]
  %v2108 = vld [vmem:[%s1 + $0x738] sm:$0xff]
  %v2109 = vld [vmem:[%s1 + $0x760] sm:$0xff]
  %v2110 = vld [vmem:[%s1 + $0x768] sm:$0xff]
  %v2111 = vld [vmem:[%s1 + $0x790] sm:$0xff]
  %v2112 = vld [vmem:[%s1 + $0x798] sm:$0xff]
  %v2113 = vld [vmem:[%s1 + $0x7c0] sm:$0xff]
  %v2114 = vld [vmem:[%s1 + $0x7c8] sm:$0xff]
  %v2115 = vld [vmem:[%s1 + $0x7f0] sm:$0xff]
  %v2116 = vld [vmem:[%s1 + $0x7f8] sm:$0xff]
  %v2117 = vld [vmem:[%s1 + $0x820] sm:$0xff]
  %v2118 = vld [vmem:[%s1 + $0x828] sm:$0xff]
  %v2119 = vld [vmem:[%s1 + $0x850] sm:$0xff]
  %v2120 = vld [vmem:[%s1 + $0x858] sm:$0xff]
  %v2121 = vld [vmem:[%s1 + $0x880] sm:$0xff]
  %v2122 = vld [vmem:[%s1 + $0x888] sm:$0xff]
  %v2123 = vld [vmem:[%s1 + $0x8b0] sm:$0xff]
  %v2124 = vld [vmem:[%s1 + $0x8b8] sm:$0xff]
  %v2125 = vld [vmem:[%s1 + $0x8e0] sm:$0xff]
  %v2126 = vld [vmem:[%s1 + $0x8e8] sm:$0xff]
  %v2127 = vld [vmem:[%s2 + $0x4] sm:$0xf]
  %v2129 = vlaneseq
  %v2130 = vshrl.u32 %v2129, 7
  %v2131 = vsub.s32 0, %v2130
  %v2132 = vrot.slane %v2127, %v2131
  %v2133 = vlaneseq
  %v2134 = vshrl.u32 %v2133, 7
  %v2135 = vsub.s32 1, %v2134
  %v2136 = vrot.slane %v2127, %v2135
  %v2137 = vlaneseq
  %v2138 = vshrl.u32 %v2137, 7
  %v2139 = vsub.s32 2, %v2138
  %v2140 = vrot.slane %v2127, %v2139
  %v2141 = vlaneseq
  %v2142 = vshrl.u32 %v2141, 7
  %v2143 = vsub.s32 3, %v2142
  %v2144 = vrot.slane %v2127, %v2143
  %v2245 = vunpack.c.l.b16 %v2031
  %v2246 = vunpack.c.h.b16 %v2031
  %v2247 = vunpack.c.l.b16 %v2032
  %v2248 = vunpack.c.h.b16 %v2032
  %v2249 = vunpack.c.l.b16 %v2033
  %v2250 = vunpack.c.h.b16 %v2033
  %v2251 = vunpack.c.l.b16 %v2034
  %v2252 = vunpack.c.h.b16 %v2034
  %v2253 = vunpack.c.l.b16 %v2035
  %v2254 = vunpack.c.h.b16 %v2035
  %v2255 = vunpack.c.l.b16 %v2036
  %v2256 = vunpack.c.h.b16 %v2036
  %v2257 = vunpack.c.l.b16 %v2037
  %v2258 = vunpack.c.h.b16 %v2037
  %v2259 = vunpack.c.l.b16 %v2038
  %v2260 = vunpack.c.h.b16 %v2038
  %v2261 = vunpack.c.l.b16 %v2039
  %v2262 = vunpack.c.h.b16 %v2039
  %v2263 = vunpack.c.l.b16 %v2040
  %v2264 = vunpack.c.h.b16 %v2040
  %v2265 = vunpack.c.l.b16 %v2041
  %v2266 = vunpack.c.h.b16 %v2041
  %v2267 = vunpack.c.l.b16 %v2042
  %v2268 = vunpack.c.h.b16 %v2042
  %v2269 = vunpack.c.l.b16 %v2043
  %v2270 = vunpack.c.h.b16 %v2043
  %v2271 = vunpack.c.l.b16 %v2044
  %v2272 = vunpack.c.h.b16 %v2044
  %v2273 = vunpack.c.l.b16 %v2045
  %v2274 = vunpack.c.h.b16 %v2045
  %v2275 = vunpack.c.l.b16 %v2046
  %v2276 = vunpack.c.h.b16 %v2046
  %v2277 = vunpack.c.l.b16 %v2047
  %v2278 = vunpack.c.h.b16 %v2047
  %v2279 = vunpack.c.l.b16 %v2048
  %v2280 = vunpack.c.h.b16 %v2048
  %v2281 = vunpack.c.l.b16 %v2049
  %v2282 = vunpack.c.h.b16 %v2049
  %v2283 = vunpack.c.l.b16 %v2050
  %v2284 = vunpack.c.h.b16 %v2050
  %v2285 = vunpack.c.l.b16 %v2051
  %v2286 = vunpack.c.h.b16 %v2051
  %v2287 = vunpack.c.l.b16 %v2052
  %v2288 = vunpack.c.h.b16 %v2052
  %v2289 = vunpack.c.l.b16 %v2053
  %v2290 = vunpack.c.h.b16 %v2053
  %v2291 = vunpack.c.l.b16 %v2054
  %v2292 = vunpack.c.h.b16 %v2054
  %v2293 = vunpack.c.l.b16 %v2055
  %v2294 = vunpack.c.h.b16 %v2055
  %v2295 = vunpack.c.l.b16 %v2056
  %v2296 = vunpack.c.h.b16 %v2056
  %v2297 = vunpack.c.l.b16 %v2057
  %v2298 = vunpack.c.h.b16 %v2057
  %v2299 = vunpack.c.l.b16 %v2058
  %v2300 = vunpack.c.h.b16 %v2058
  %v2301 = vunpack.c.l.b16 %v2059
  %v2302 = vunpack.c.h.b16 %v2059
  %v2303 = vunpack.c.l.b16 %v2060
  %v2304 = vunpack.c.h.b16 %v2060
  %v2305 = vunpack.c.l.b16 %v2061
  %v2306 = vunpack.c.h.b16 %v2061
  %v2307 = vunpack.c.l.b16 %v2062
  %v2308 = vunpack.c.h.b16 %v2062
  %v2309 = vunpack.c.l.b16 %v2063
  %v2310 = vunpack.c.h.b16 %v2063
  %v2311 = vunpack.c.l.b16 %v2064
  %v2312 = vunpack.c.h.b16 %v2064
  %v2313 = vunpack.c.l.b16 %v2065
  %v2314 = vunpack.c.h.b16 %v2065
  %v2315 = vunpack.c.l.b16 %v2066
  %v2316 = vunpack.c.h.b16 %v2066
  %v2317 = vunpack.c.l.b16 %v2067
  %v2318 = vunpack.c.h.b16 %v2067
  %v2319 = vunpack.c.l.b16 %v2068
  %v2320 = vunpack.c.h.b16 %v2068
  %v2321 = vunpack.c.l.b16 %v2069
  %v2322 = vunpack.c.h.b16 %v2069
  %v2323 = vunpack.c.l.b16 %v2070
  %v2324 = vunpack.c.h.b16 %v2070
  %v2325 = vunpack.c.l.b16 %v2071
  %v2326 = vunpack.c.h.b16 %v2071
  %v2327 = vunpack.c.l.b16 %v2072
  %v2328 = vunpack.c.h.b16 %v2072
  %v2329 = vunpack.c.l.b16 %v2073
  %v2330 = vunpack.c.h.b16 %v2073
  %v2331 = vunpack.c.l.b16 %v2074
  %v2332 = vunpack.c.h.b16 %v2074
  %v2333 = vunpack.c.l.b16 %v2075
  %v2334 = vunpack.c.h.b16 %v2075
  %v2335 = vunpack.c.l.b16 %v2076
  %v2336 = vunpack.c.h.b16 %v2076
  %v2337 = vunpack.c.l.b16 %v2077
  %v2338 = vunpack.c.h.b16 %v2077
  %v2339 = vunpack.c.l.b16 %v2078
  %v2340 = vunpack.c.h.b16 %v2078
  %v2341 = vunpack.c.l.b16 %v2079
  %v2342 = vunpack.c.h.b16 %v2079
  %v2343 = vunpack.c.l.b16 %v2080
  %v2344 = vunpack.c.h.b16 %v2080
  %v2345 = vunpack.c.l.b16 %v2081
  %v2346 = vunpack.c.h.b16 %v2081
  %v2347 = vunpack.c.l.b16 %v2082
  %v2348 = vunpack.c.h.b16 %v2082
  %v2349 = vunpack.c.l.b16 %v2083
  %v2350 = vunpack.c.h.b16 %v2083
  %v2351 = vunpack.c.l.b16 %v2084
  %v2352 = vunpack.c.h.b16 %v2084
  %v2353 = vunpack.c.l.b16 %v2085
  %v2354 = vunpack.c.h.b16 %v2085
  %v2355 = vunpack.c.l.b16 %v2086
  %v2356 = vunpack.c.h.b16 %v2086
  %v2357 = vunpack.c.l.b16 %v2087
  %v2358 = vunpack.c.h.b16 %v2087
  %v2359 = vunpack.c.l.b16 %v2088
  %v2360 = vunpack.c.h.b16 %v2088
  %v2361 = vunpack.c.l.b16 %v2089
  %v2362 = vunpack.c.h.b16 %v2089
  %v2363 = vunpack.c.l.b16 %v2090
  %v2364 = vunpack.c.h.b16 %v2090
  %v2365 = vunpack.c.l.b16 %v2091
  %v2366 = vunpack.c.h.b16 %v2091
  %v2367 = vunpack.c.l.b16 %v2092
  %v2368 = vunpack.c.h.b16 %v2092
  %v2369 = vunpack.c.l.b16 %v2093
  %v2370 = vunpack.c.h.b16 %v2093
  %v2371 = vunpack.c.l.b16 %v2094
  %v2372 = vunpack.c.h.b16 %v2094
  %v2373 = vunpack.c.l.b16 %v2095
  %v2374 = vunpack.c.h.b16 %v2095
  %v2375 = vunpack.c.l.b16 %v2096
  %v2376 = vunpack.c.h.b16 %v2096
  %v2377 = vunpack.c.l.b16 %v2097
  %v2378 = vunpack.c.h.b16 %v2097
  %v2379 = vunpack.c.l.b16 %v2098
  %v2380 = vunpack.c.h.b16 %v2098
  %v2381 = vunpack.c.l.b16 %v2099
  %v2382 = vunpack.c.h.b16 %v2099
  %v2383 = vunpack.c.l.b16 %v2100
  %v2384 = vunpack.c.h.b16 %v2100
  %v2385 = vunpack.c.l.b16 %v2101
  %v2386 = vunpack.c.h.b16 %v2101
  %v2387 = vunpack.c.l.b16 %v2102
  %v2388 = vunpack.c.h.b16 %v2102
  %v2389 = vunpack.c.l.b16 %v2103
  %v2390 = vunpack.c.h.b16 %v2103
  %v2391 = vunpack.c.l.b16 %v2104
  %v2392 = vunpack.c.h.b16 %v2104
  %v2393 = vunpack.c.l.b16 %v2105
  %v2394 = vunpack.c.h.b16 %v2105
  %v2395 = vunpack.c.l.b16 %v2106
  %v2396 = vunpack.c.h.b16 %v2106
  %v2397 = vunpack.c.l.b16 %v2107
  %v2398 = vunpack.c.h.b16 %v2107
  %v2399 = vunpack.c.l.b16 %v2108
  %v2400 = vunpack.c.h.b16 %v2108
  %v2401 = vunpack.c.l.b16 %v2109
  %v2402 = vunpack.c.h.b16 %v2109
  %v2403 = vunpack.c.l.b16 %v2110
  %v2404 = vunpack.c.h.b16 %v2110
  %v2405 = vunpack.c.l.b16 %v2111
  %v2406 = vunpack.c.h.b16 %v2111
  %v2407 = vunpack.c.l.b16 %v2112
  %v2408 = vunpack.c.h.b16 %v2112
  %v2409 = vunpack.c.l.b16 %v2113
  %v2410 = vunpack.c.h.b16 %v2113
  %v2411 = vunpack.c.l.b16 %v2114
  %v2412 = vunpack.c.h.b16 %v2114
  %v2413 = vunpack.c.l.b16 %v2115
  %v2414 = vunpack.c.h.b16 %v2115
  %v2415 = vunpack.c.l.b16 %v2116
  %v2416 = vunpack.c.h.b16 %v2116
  %v2417 = vunpack.c.l.b16 %v2117
  %v2418 = vunpack.c.h.b16 %v2117
  %v2419 = vunpack.c.l.b16 %v2118
  %v2420 = vunpack.c.h.b16 %v2118
  %v2421 = vunpack.c.l.b16 %v2119
  %v2422 = vunpack.c.h.b16 %v2119
  %v2423 = vunpack.c.l.b16 %v2120
  %v2424 = vunpack.c.h.b16 %v2120
  %v2425 = vunpack.c.l.b16 %v2121
  %v2426 = vunpack.c.h.b16 %v2121
  %v2427 = vunpack.c.l.b16 %v2122
  %v2428 = vunpack.c.h.b16 %v2122
  %v2429 = vunpack.c.l.b16 %v2123
  %v2430 = vunpack.c.h.b16 %v2123
  %v2431 = vunpack.c.l.b16 %v2124
  %v2432 = vunpack.c.h.b16 %v2124
  %v2433 = vunpack.c.l.b16 %v2125
  %v2434 = vunpack.c.h.b16 %v2125
  %v2435 = vunpack.c.l.b16 %v2126
  %v2436 = vunpack.c.h.b16 %v2126
  %v2437 = vpack.c.b16 %v2249, %v2245
  %v2438 = vpack.c.b16 %v2250, %v2246
  %v2439 = vpack.c.b16 %v2251, %v2247
  %v2440 = vpack.c.b16 %v2252, %v2248
  %v2441 = vpack.c.b16 %v2257, %v2253
  %v2442 = vpack.c.b16 %v2258, %v2254
  %v2443 = vpack.c.b16 %v2259, %v2255
  %v2444 = vpack.c.b16 %v2260, %v2256
  %v2445 = vpack.c.b16 %v2265, %v2261
  %v2446 = vpack.c.b16 %v2266, %v2262
  %v2447 = vpack.c.b16 %v2267, %v2263
  %v2448 = vpack.c.b16 %v2268, %v2264
  %v2449 = vpack.c.b16 %v2273, %v2269
  %v2450 = vpack.c.b16 %v2274, %v2270
  %v2451 = vpack.c.b16 %v2275, %v2271
  %v2452 = vpack.c.b16 %v2276, %v2272
  %v2453 = vpack.c.b16 %v2281, %v2277
  %v2454 = vpack.c.b16 %v2282, %v2278
  %v2455 = vpack.c.b16 %v2283, %v2279
  %v2456 = vpack.c.b16 %v2284, %v2280
  %v2457 = vpack.c.b16 %v2289, %v2285
  %v2458 = vpack.c.b16 %v2290, %v2286
  %v2459 = vpack.c.b16 %v2291, %v2287
  %v2460 = vpack.c.b16 %v2292, %v2288
  %v2461 = vpack.c.b16 %v2297, %v2293
  %v2462 = vpack.c.b16 %v2298, %v2294
  %v2463 = vpack.c.b16 %v2299, %v2295
  %v2464 = vpack.c.b16 %v2300, %v2296
  %v2465 = vpack.c.b16 %v2305, %v2301
  %v2466 = vpack.c.b16 %v2306, %v2302
  %v2467 = vpack.c.b16 %v2307, %v2303
  %v2468 = vpack.c.b16 %v2308, %v2304
  %v2469 = vpack.c.b16 %v2313, %v2309
  %v2470 = vpack.c.b16 %v2314, %v2310
  %v2471 = vpack.c.b16 %v2315, %v2311
  %v2472 = vpack.c.b16 %v2316, %v2312
  %v2473 = vpack.c.b16 %v2321, %v2317
  %v2474 = vpack.c.b16 %v2322, %v2318
  %v2475 = vpack.c.b16 %v2323, %v2319
  %v2476 = vpack.c.b16 %v2324, %v2320
  %v2477 = vpack.c.b16 %v2329, %v2325
  %v2478 = vpack.c.b16 %v2330, %v2326
  %v2479 = vpack.c.b16 %v2331, %v2327
  %v2480 = vpack.c.b16 %v2332, %v2328
  %v2481 = vpack.c.b16 %v2337, %v2333
  %v2482 = vpack.c.b16 %v2338, %v2334
  %v2483 = vpack.c.b16 %v2339, %v2335
  %v2484 = vpack.c.b16 %v2340, %v2336
  %v2485 = vpack.c.b16 %v2345, %v2341
  %v2486 = vpack.c.b16 %v2346, %v2342
  %v2487 = vpack.c.b16 %v2347, %v2343
  %v2488 = vpack.c.b16 %v2348, %v2344
  %v2489 = vpack.c.b16 %v2353, %v2349
  %v2490 = vpack.c.b16 %v2354, %v2350
  %v2491 = vpack.c.b16 %v2355, %v2351
  %v2492 = vpack.c.b16 %v2356, %v2352
  %v2493 = vpack.c.b16 %v2361, %v2357
  %v2494 = vpack.c.b16 %v2362, %v2358
  %v2495 = vpack.c.b16 %v2363, %v2359
  %v2496 = vpack.c.b16 %v2364, %v2360
  %v2497 = vpack.c.b16 %v2369, %v2365
  %v2498 = vpack.c.b16 %v2370, %v2366
  %v2499 = vpack.c.b16 %v2371, %v2367
  %v2500 = vpack.c.b16 %v2372, %v2368
  %v2501 = vpack.c.b16 %v2377, %v2373
  %v2502 = vpack.c.b16 %v2378, %v2374
  %v2503 = vpack.c.b16 %v2379, %v2375
  %v2504 = vpack.c.b16 %v2380, %v2376
  %v2505 = vpack.c.b16 %v2385, %v2381
  %v2506 = vpack.c.b16 %v2386, %v2382
  %v2507 = vpack.c.b16 %v2387, %v2383
  %v2508 = vpack.c.b16 %v2388, %v2384
  %v2509 = vpack.c.b16 %v2393, %v2389
  %v2510 = vpack.c.b16 %v2394, %v2390
  %v2511 = vpack.c.b16 %v2395, %v2391
  %v2512 = vpack.c.b16 %v2396, %v2392
  %v2513 = vpack.c.b16 %v2401, %v2397
  %v2514 = vpack.c.b16 %v2402, %v2398
  %v2515 = vpack.c.b16 %v2403, %v2399
  %v2516 = vpack.c.b16 %v2404, %v2400
  %v2517 = vpack.c.b16 %v2409, %v2405
  %v2518 = vpack.c.b16 %v2410, %v2406
  %v2519 = vpack.c.b16 %v2411, %v2407
  %v2520 = vpack.c.b16 %v2412, %v2408
  %v2521 = vpack.c.b16 %v2417, %v2413
  %v2522 = vpack.c.b16 %v2418, %v2414
  %v2523 = vpack.c.b16 %v2419, %v2415
  %v2524 = vpack.c.b16 %v2420, %v2416
  %v2525 = vpack.c.b16 %v2425, %v2421
  %v2526 = vpack.c.b16 %v2426, %v2422
  %v2527 = vpack.c.b16 %v2427, %v2423
  %v2528 = vpack.c.b16 %v2428, %v2424
  %v2529 = vpack.c.b16 %v2433, %v2429
  %v2530 = vpack.c.b16 %v2434, %v2430
  %v2531 = vpack.c.b16 %v2435, %v2431
  %v2532 = vpack.c.b16 %v2436, %v2432
  %2629 = vmatprep.subr.bf16.mxu0 %v2466
  %2630 = vmatpush1.bf16.msra.mxu0 %v2465
  %2631 = vmatprep.subr.bf16.mxu0 %v2462
  %2632 = vmatpush1.bf16.msra.mxu0 %v2461
  %2633 = vmatprep.subr.bf16.mxu0 %v2458
  %2634 = vmatpush1.bf16.msra.mxu0 %v2457
  %2635 = vmatprep.subr.bf16.mxu0 %v2454
  %2636 = vmatpush1.bf16.msra.mxu0 %v2453
  %2637 = vmatprep.subr.bf16.mxu0 %v2450
  %2638 = vmatpush1.bf16.msra.mxu0 %v2449
  %2639 = vmatprep.subr.bf16.mxu0 %v2446
  %2640 = vmatpush1.bf16.msra.mxu0 %v2445
  %2641 = vmatprep.subr.bf16.mxu0 %v2442
  %2642 = vmatpush1.bf16.msra.mxu0 %v2441
  %2643 = vmatprep.subr.bf16.mxu0 %v2438
  %2644 = vmatpush1.bf16.msra.mxu0 %v2437
  %2645 = vmatprep.subr.bf16.mxu0 %v2498
  %2646 = vmatpush2.bf16.msra.mxu0 %v2497
  %2647 = vmatprep.subr.bf16.mxu0 %v2494
  %2648 = vmatpush2.bf16.msra.mxu0 %v2493
  %2649 = vmatprep.subr.bf16.mxu0 %v2490
  %2650 = vmatpush2.bf16.msra.mxu0 %v2489
  %2651 = vmatprep.subr.bf16.mxu0 %v2486
  %2652 = vmatpush2.bf16.msra.mxu0 %v2485
  %2653 = vmatprep.subr.bf16.mxu0 %v2482
  %2654 = vmatpush2.bf16.msra.mxu0 %v2481
  %2655 = vmatprep.subr.bf16.mxu0 %v2478
  %2656 = vmatpush2.bf16.msra.mxu0 %v2477
  %2657 = vmatprep.subr.bf16.mxu0 %v2474
  %2658 = vmatpush2.bf16.msra.mxu0 %v2473
  %2659 = vmatprep.subr.bf16.mxu0 %v2470
  %2660 = vmatpush2.bf16.msra.mxu0 %v2469
  %2661 = vmatprep.mubr.bf16.mxu0 %v364
  %2662 = vmatmul.mubr.bf16.gmra.mxu0 %v363
  %v2663 = vpop.f32.mrf.mxu0
  %v2664 = vadd.f32 %v2132, %v2663
  %v2665 = vpop.f32.mrf.mxu0
  %v2666 = vadd.f32 %v2136, %v2665
  %v2667 = vpop.f32.mrf.mxu0
  %v2668 = vadd.f32 %v2132, %v2667
  %v2669 = vpop.f32.mrf.mxu0
  %v2670 = vadd.f32 %v2136, %v2669
  %2671 = vmatprep.mubr.bf16.mxu0 %v367
  %2672 = vmatmul.mubr.bf16.gmra.mxu0 %v366
  %v2673 = vpop.f32.mrf.mxu0
  %v2674 = vadd.f32 %v2132, %v2673
  %v2675 = vpop.f32.mrf.mxu0
  %v2676 = vadd.f32 %v2136, %v2675
  %v2677 = vpop.f32.mrf.mxu0
  %v2678 = vadd.f32 %v2132, %v2677
  %v2679 = vpop.f32.mrf.mxu0
  %v2680 = vadd.f32 %v2136, %v2679
  %2681 = vmatprep.mubr.bf16.mxu0 %v370
  %2682 = vmatmul.mubr.bf16.gmra.mxu0 %v369
  %v2683 = vpop.f32.mrf.mxu0
  %v2684 = vadd.f32 %v2132, %v2683
  %v2685 = vpop.f32.mrf.mxu0
  %v2686 = vadd.f32 %v2136, %v2685
  %v2687 = vpop.f32.mrf.mxu0
  %v2688 = vadd.f32 %v2132, %v2687
  %v2689 = vpop.f32.mrf.mxu0
  %v2690 = vadd.f32 %v2136, %v2689
  %2691 = vmatprep.mubr.bf16.mxu0 %v373
  %2692 = vmatmul.mubr.bf16.gmra.mxu0 %v372
  %v2693 = vpop.f32.mrf.mxu0
  %v2694 = vadd.f32 %v2132, %v2693
  %v2695 = vpop.f32.mrf.mxu0
  %v2696 = vadd.f32 %v2136, %v2695
  %v2697 = vpop.f32.mrf.mxu0
  %v2698 = vadd.f32 %v2132, %v2697
  %v2699 = vpop.f32.mrf.mxu0
  %v2700 = vadd.f32 %v2136, %v2699
  %2701 = vmatprep.mubr.bf16.mxu0 %v376
  %2702 = vmatmul.mubr.bf16.gmra.mxu0 %v375
  %v2703 = vpop.f32.mrf.mxu0
  %v2704 = vadd.f32 %v2132, %v2703
  %v2705 = vpop.f32.mrf.mxu0
  %v2706 = vadd.f32 %v2136, %v2705
  %v2707 = vpop.f32.mrf.mxu0
  %v2708 = vadd.f32 %v2132, %v2707
  %v2709 = vpop.f32.mrf.mxu0
  %v2710 = vadd.f32 %v2136, %v2709
  %2711 = vmatprep.mubr.bf16.mxu0 %v379
  %2712 = vmatmul.mubr.bf16.gmra.mxu0 %v378
  %v2713 = vpop.f32.mrf.mxu0
  %v2714 = vadd.f32 %v2132, %v2713
  %v2715 = vpop.f32.mrf.mxu0
  %v2716 = vadd.f32 %v2136, %v2715
  %v2717 = vpop.f32.mrf.mxu0
  %v2718 = vadd.f32 %v2132, %v2717
  %v2719 = vpop.f32.mrf.mxu0
  %v2720 = vadd.f32 %v2136, %v2719
  %2721 = vmatprep.mubr.bf16.mxu0 %v382
  %2722 = vmatmul.mubr.bf16.gmra.mxu0 %v381
  %v2723 = vpop.f32.mrf.mxu0
  %v2724 = vadd.f32 %v2132, %v2723
  %v2725 = vpop.f32.mrf.mxu0
  %v2726 = vadd.f32 %v2136, %v2725
  %v2727 = vpop.f32.mrf.mxu0
  %v2728 = vadd.f32 %v2132, %v2727
  %v2729 = vpop.f32.mrf.mxu0
  %v2730 = vadd.f32 %v2136, %v2729
  %2731 = vmatprep.mubr.bf16.mxu0 %v385
  %2732 = vmatmul.mubr.bf16.gmra.mxu0 %v384
  %v2733 = vpop.f32.mrf.mxu0
  %v2734 = vadd.f32 %v2132, %v2733
  %v2735 = vpop.f32.mrf.mxu0
  %v2736 = vadd.f32 %v2136, %v2735
  %v2737 = vpop.f32.mrf.mxu0
  %v2738 = vadd.f32 %v2132, %v2737
  %v2739 = vpop.f32.mrf.mxu0
  %v2740 = vadd.f32 %v2136, %v2739
  %2741 = vmatprep.mubr.bf16.mxu0 %v388
  %2742 = vmatmul.mubr.bf16.gmra.mxu0 %v387
  %v2743 = vpop.f32.mrf.mxu0
  %v2744 = vadd.f32 %v2132, %v2743
  %v2745 = vpop.f32.mrf.mxu0
  %v2746 = vadd.f32 %v2136, %v2745
  %v2747 = vpop.f32.mrf.mxu0
  %v2748 = vadd.f32 %v2132, %v2747
  %v2749 = vpop.f32.mrf.mxu0
  %v2750 = vadd.f32 %v2136, %v2749
  %2751 = vmatprep.mubr.bf16.mxu0 %v391
  %2752 = vmatmul.mubr.bf16.gmra.mxu0 %v390
  %v2753 = vpop.f32.mrf.mxu0
  %v2754 = vadd.f32 %v2132, %v2753
  %v2755 = vpop.f32.mrf.mxu0
  %v2756 = vadd.f32 %v2136, %v2755
  %v2757 = vpop.f32.mrf.mxu0
  %v2758 = vadd.f32 %v2132, %v2757
  %v2759 = vpop.f32.mrf.mxu0
  %v2760 = vadd.f32 %v2136, %v2759
  %2761 = vmatprep.mubr.bf16.mxu0 %v394
  %2762 = vmatmul.mubr.bf16.gmra.mxu0 %v393
  %v2763 = vpop.f32.mrf.mxu0
  %v2764 = vadd.f32 %v2132, %v2763
  %v2765 = vpop.f32.mrf.mxu0
  %v2766 = vadd.f32 %v2136, %v2765
  %v2767 = vpop.f32.mrf.mxu0
  %v2768 = vadd.f32 %v2132, %v2767
  %v2769 = vpop.f32.mrf.mxu0
  %v2770 = vadd.f32 %v2136, %v2769
  %2771 = vmatprep.mubr.bf16.mxu0 %v397
  %2772 = vmatmul.mubr.bf16.gmra.mxu0 %v396
  %v2773 = vpop.f32.mrf.mxu0
  %v2774 = vadd.f32 %v2132, %v2773
  %v2775 = vpop.f32.mrf.mxu0
  %v2776 = vadd.f32 %v2136, %v2775
  %v2777 = vpop.f32.mrf.mxu0
  %v2778 = vadd.f32 %v2132, %v2777
  %v2779 = vpop.f32.mrf.mxu0
  %v2780 = vadd.f32 %v2136, %v2779
  %2781 = vmatprep.mubr.bf16.mxu0 %v400
  %2782 = vmatmul.mubr.bf16.gmra.mxu0 %v399
  %v2783 = vpop.f32.mrf.mxu0
  %v2784 = vadd.f32 %v2132, %v2783
  %v2785 = vpop.f32.mrf.mxu0
  %v2786 = vadd.f32 %v2136, %v2785
  %v2787 = vpop.f32.mrf.mxu0
  %v2788 = vadd.f32 %v2132, %v2787
  %v2789 = vpop.f32.mrf.mxu0
  %v2790 = vadd.f32 %v2136, %v2789
  %2791 = vmatprep.mubr.bf16.mxu0 %v403
  %2792 = vmatmul.mubr.bf16.gmra.mxu0 %v402
  %v2793 = vpop.f32.mrf.mxu0
  %v2794 = vadd.f32 %v2132, %v2793
  %v2795 = vpop.f32.mrf.mxu0
  %v2796 = vadd.f32 %v2136, %v2795
  %v2797 = vpop.f32.mrf.mxu0
  %v2798 = vadd.f32 %v2132, %v2797
  %v2799 = vpop.f32.mrf.mxu0
  %v2800 = vadd.f32 %v2136, %v2799
  %2801 = vmatprep.mubr.bf16.mxu0 %v406
  %2802 = vmatmul.mubr.bf16.gmra.mxu0 %v405
  %v2803 = vpop.f32.mrf.mxu0
  %v2804 = vadd.f32 %v2132, %v2803
  %v2805 = vpop.f32.mrf.mxu0
  %v2806 = vadd.f32 %v2136, %v2805
  %v2807 = vpop.f32.mrf.mxu0
  %v2808 = vadd.f32 %v2132, %v2807
  %v2809 = vpop.f32.mrf.mxu0
  %v2810 = vadd.f32 %v2136, %v2809
  %2811 = vmatprep.mubr.bf16.mxu0 %v409
  %2812 = vmatmul.mubr.bf16.gmra.mxu0 %v408
  %v2813 = vpop.f32.mrf.mxu0
  %v2814 = vadd.f32 %v2132, %v2813
  %v2815 = vpop.f32.mrf.mxu0
  %v2816 = vadd.f32 %v2136, %v2815
  %v2817 = vpop.f32.mrf.mxu0
  %v2818 = vadd.f32 %v2132, %v2817
  %v2819 = vpop.f32.mrf.mxu0
  %v2820 = vadd.f32 %v2136, %v2819
  %2821 = vdwg.mxu0
  %2822 = vmatprep.subr.bf16.mxu0 %v2530
  %2823 = vmatpush1.bf16.msra.mxu0 %v2529
  %2824 = vmatprep.subr.bf16.mxu0 %v2526
  %2825 = vmatpush1.bf16.msra.mxu0 %v2525
  %2826 = vmatprep.subr.bf16.mxu0 %v2522
  %2827 = vmatpush1.bf16.msra.mxu0 %v2521
  %2828 = vmatprep.subr.bf16.mxu0 %v2518
  %2829 = vmatpush1.bf16.msra.mxu0 %v2517
  %2830 = vmatprep.subr.bf16.mxu0 %v2514
  %2831 = vmatpush1.bf16.msra.mxu0 %v2513
  %2832 = vmatprep.subr.bf16.mxu0 %v2510
  %2833 = vmatpush1.bf16.msra.mxu0 %v2509
  %2834 = vmatprep.subr.bf16.mxu0 %v2506
  %2835 = vmatpush1.bf16.msra.mxu0 %v2505
  %2836 = vmatprep.subr.bf16.mxu0 %v2502
  %2837 = vmatpush1.bf16.msra.mxu0 %v2501
  %2838 = vmatprep.subr.bf16.mxu0 0
  %2839 = vmatpush2.bf16.msra.mxu0 0
  %2840 = vmatprep.subr.bf16.mxu0 0
  %2841 = vmatpush2.bf16.msra.mxu0 0
  %2842 = vmatprep.subr.bf16.mxu0 0
  %2843 = vmatpush2.bf16.msra.mxu0 0
  %2844 = vmatprep.subr.bf16.mxu0 0
  %2845 = vmatpush2.bf16.msra.mxu0 0
  %2846 = vmatprep.subr.bf16.mxu0 0
  %2847 = vmatpush2.bf16.msra.mxu0 0
  %2848 = vmatprep.subr.bf16.mxu0 0
  %2849 = vmatpush2.bf16.msra.mxu0 0
  %2850 = vmatprep.subr.bf16.mxu0 0
  %2851 = vmatpush2.bf16.msra.mxu0 0
  %2852 = vmatprep.subr.bf16.mxu0 0
  %2853 = vmatpush2.bf16.msra.mxu0 0
  %2854 = vmatprep.mubr.bf16.mxu0 0
  %2855 = vmatmul.mubr.bf16.gmra.mxu0 %v365
  %v2856 = vpop.f32.mrf.mxu0
  %v2857 = vadd.f32 %v2664, %v2856
  %v2858 = vpop.f32.mrf.mxu0
  %v2859 = vadd.f32 %v2666, %v2858
  %v2860 = vpop.f32.mrf.mxu0
  %v2861 = vadd.f32 %v2668, %v2860
  %v2862 = vpop.f32.mrf.mxu0
  %v2863 = vadd.f32 %v2670, %v2862
  %2864 = vmatprep.mubr.bf16.mxu0 0
  %2865 = vmatmul.mubr.bf16.gmra.mxu0 %v368
  %v2866 = vpop.f32.mrf.mxu0
  %v2867 = vadd.f32 %v2674, %v2866
  %v2868 = vpop.f32.mrf.mxu0
  %v2869 = vadd.f32 %v2676, %v2868
  %v2870 = vpop.f32.mrf.mxu0
  %v2871 = vadd.f32 %v2678, %v2870
  %v2872 = vpop.f32.mrf.mxu0
  %v2873 = vadd.f32 %v2680, %v2872
  %2874 = vmatprep.mubr.bf16.mxu0 0
  %2875 = vmatmul.mubr.bf16.gmra.mxu0 %v371
  %v2876 = vpop.f32.mrf.mxu0
  %v2877 = vadd.f32 %v2684, %v2876
  %v2878 = vpop.f32.mrf.mxu0
  %v2879 = vadd.f32 %v2686, %v2878
  %v2880 = vpop.f32.mrf.mxu0
  %v2881 = vadd.f32 %v2688, %v2880
  %v2882 = vpop.f32.mrf.mxu0
  %v2883 = vadd.f32 %v2690, %v2882
  %2884 = vmatprep.mubr.bf16.mxu0 0
  %2885 = vmatmul.mubr.bf16.gmra.mxu0 %v374
  %v2886 = vpop.f32.mrf.mxu0
  %v2887 = vadd.f32 %v2694, %v2886
  %v2888 = vpop.f32.mrf.mxu0
  %v2889 = vadd.f32 %v2696, %v2888
  %v2890 = vpop.f32.mrf.mxu0
  %v2891 = vadd.f32 %v2698, %v2890
  %v2892 = vpop.f32.mrf.mxu0
  %v2893 = vadd.f32 %v2700, %v2892
  %2894 = vmatprep.mubr.bf16.mxu0 0
  %2895 = vmatmul.mubr.bf16.gmra.mxu0 %v377
  %v2896 = vpop.f32.mrf.mxu0
  %v2897 = vadd.f32 %v2704, %v2896
  %v2898 = vpop.f32.mrf.mxu0
  %v2899 = vadd.f32 %v2706, %v2898
  %v2900 = vpop.f32.mrf.mxu0
  %v2901 = vadd.f32 %v2708, %v2900
  %v2902 = vpop.f32.mrf.mxu0
  %v2903 = vadd.f32 %v2710, %v2902
  %2904 = vmatprep.mubr.bf16.mxu0 0
  %2905 = vmatmul.mubr.bf16.gmra.mxu0 %v380
  %v2906 = vpop.f32.mrf.mxu0
  %v2907 = vadd.f32 %v2714, %v2906
  %v2908 = vpop.f32.mrf.mxu0
  %v2909 = vadd.f32 %v2716, %v2908
  %v2910 = vpop.f32.mrf.mxu0
  %v2911 = vadd.f32 %v2718, %v2910
  %v2912 = vpop.f32.mrf.mxu0
  %v2913 = vadd.f32 %v2720, %v2912
  %2914 = vmatprep.mubr.bf16.mxu0 0
  %2915 = vmatmul.mubr.bf16.gmra.mxu0 %v383
  %v2916 = vpop.f32.mrf.mxu0
  %v2917 = vadd.f32 %v2724, %v2916
  %v2918 = vpop.f32.mrf.mxu0
  %v2919 = vadd.f32 %v2726, %v2918
  %v2920 = vpop.f32.mrf.mxu0
  %v2921 = vadd.f32 %v2728, %v2920
  %v2922 = vpop.f32.mrf.mxu0
  %v2923 = vadd.f32 %v2730, %v2922
  %2924 = vmatprep.mubr.bf16.mxu0 0
  %2925 = vmatmul.mubr.bf16.gmra.mxu0 %v386
  %v2926 = vpop.f32.mrf.mxu0
  %v2927 = vadd.f32 %v2734, %v2926
  %v2928 = vpop.f32.mrf.mxu0
  %v2929 = vadd.f32 %v2736, %v2928
  %v2930 = vpop.f32.mrf.mxu0
  %v2931 = vadd.f32 %v2738, %v2930
  %v2932 = vpop.f32.mrf.mxu0
  %v2933 = vadd.f32 %v2740, %v2932
  %2934 = vmatprep.mubr.bf16.mxu0 0
  %2935 = vmatmul.mubr.bf16.gmra.mxu0 %v389
  %v2936 = vpop.f32.mrf.mxu0
  %v2937 = vadd.f32 %v2744, %v2936
  %v2938 = vpop.f32.mrf.mxu0
  %v2939 = vadd.f32 %v2746, %v2938
  %v2940 = vpop.f32.mrf.mxu0
  %v2941 = vadd.f32 %v2748, %v2940
  %v2942 = vpop.f32.mrf.mxu0
  %v2943 = vadd.f32 %v2750, %v2942
  %2944 = vmatprep.mubr.bf16.mxu0 0
  %2945 = vmatmul.mubr.bf16.gmra.mxu0 %v392
  %v2946 = vpop.f32.mrf.mxu0
  %v2947 = vadd.f32 %v2754, %v2946
  %v2948 = vpop.f32.mrf.mxu0
  %v2949 = vadd.f32 %v2756, %v2948
  %v2950 = vpop.f32.mrf.mxu0
  %v2951 = vadd.f32 %v2758, %v2950
  %v2952 = vpop.f32.mrf.mxu0
  %v2953 = vadd.f32 %v2760, %v2952
  %2954 = vmatprep.mubr.bf16.mxu0 0
  %2955 = vmatmul.mubr.bf16.gmra.mxu0 %v395
  %v2956 = vpop.f32.mrf.mxu0
  %v2957 = vadd.f32 %v2764, %v2956
  %v2958 = vpop.f32.mrf.mxu0
  %v2959 = vadd.f32 %v2766, %v2958
  %v2960 = vpop.f32.mrf.mxu0
  %v2961 = vadd.f32 %v2768, %v2960
  %v2962 = vpop.f32.mrf.mxu0
  %v2963 = vadd.f32 %v2770, %v2962
  %2964 = vmatprep.mubr.bf16.mxu0 0
  %2965 = vmatmul.mubr.bf16.gmra.mxu0 %v398
  %v2966 = vpop.f32.mrf.mxu0
  %v2967 = vadd.f32 %v2774, %v2966
  %v2968 = vpop.f32.mrf.mxu0
  %v2969 = vadd.f32 %v2776, %v2968
  %v2970 = vpop.f32.mrf.mxu0
  %v2971 = vadd.f32 %v2778, %v2970
  %v2972 = vpop.f32.mrf.mxu0
  %v2973 = vadd.f32 %v2780, %v2972
  %2974 = vmatprep.mubr.bf16.mxu0 0
  %2975 = vmatmul.mubr.bf16.gmra.mxu0 %v401
  %v2976 = vpop.f32.mrf.mxu0
  %v2977 = vadd.f32 %v2784, %v2976
  %v2978 = vpop.f32.mrf.mxu0
  %v2979 = vadd.f32 %v2786, %v2978
  %v2980 = vpop.f32.mrf.mxu0
  %v2981 = vadd.f32 %v2788, %v2980
  %v2982 = vpop.f32.mrf.mxu0
  %v2983 = vadd.f32 %v2790, %v2982
  %2984 = vmatprep.mubr.bf16.mxu0 0
  %2985 = vmatmul.mubr.bf16.gmra.mxu0 %v404
  %v2986 = vpop.f32.mrf.mxu0
  %v2987 = vadd.f32 %v2794, %v2986
  %v2988 = vpop.f32.mrf.mxu0
  %v2989 = vadd.f32 %v2796, %v2988
  %v2990 = vpop.f32.mrf.mxu0
  %v2991 = vadd.f32 %v2798, %v2990
  %v2992 = vpop.f32.mrf.mxu0
  %v2993 = vadd.f32 %v2800, %v2992
  %2994 = vmatprep.mubr.bf16.mxu0 0
  %2995 = vmatmul.mubr.bf16.gmra.mxu0 %v407
  %v2996 = vpop.f32.mrf.mxu0
  %v2997 = vadd.f32 %v2804, %v2996
  %v2998 = vpop.f32.mrf.mxu0
  %v2999 = vadd.f32 %v2806, %v2998
  %v3000 = vpop.f32.mrf.mxu0
  %v3001 = vadd.f32 %v2808, %v3000
  %v3002 = vpop.f32.mrf.mxu0
  %v3003 = vadd.f32 %v2810, %v3002
  %3004 = vmatprep.mubr.bf16.mxu0 0
  %3005 = vmatmul.mubr.bf16.gmra.mxu0 %v410
  %v3006 = vpop.f32.mrf.mxu0
  %v3007 = vadd.f32 %v2814, %v3006
  %v3008 = vpop.f32.mrf.mxu0
  %v3009 = vadd.f32 %v2816, %v3008
  %v3010 = vpop.f32.mrf.mxu0
  %v3011 = vadd.f32 %v2818, %v3010
  %v3012 = vpop.f32.mrf.mxu0
  %v3013 = vadd.f32 %v2820, %v3012
  %3014 = vdwg.mxu0
  %3015 = vmatprep.subr.bf16.mxu0 %v2468
  %3016 = vmatpush1.bf16.msra.mxu0 %v2467
  %3017 = vmatprep.subr.bf16.mxu0 %v2464
  %3018 = vmatpush1.bf16.msra.mxu0 %v2463
  %3019 = vmatprep.subr.bf16.mxu0 %v2460
  %3020 = vmatpush1.bf16.msra.mxu0 %v2459
  %3021 = vmatprep.subr.bf16.mxu0 %v2456
  %3022 = vmatpush1.bf16.msra.mxu0 %v2455
  %3023 = vmatprep.subr.bf16.mxu0 %v2452
  %3024 = vmatpush1.bf16.msra.mxu0 %v2451
  %3025 = vmatprep.subr.bf16.mxu0 %v2448
  %3026 = vmatpush1.bf16.msra.mxu0 %v2447
  %3027 = vmatprep.subr.bf16.mxu0 %v2444
  %3028 = vmatpush1.bf16.msra.mxu0 %v2443
  %3029 = vmatprep.subr.bf16.mxu0 %v2440
  %3030 = vmatpush1.bf16.msra.mxu0 %v2439
  %3031 = vmatprep.subr.bf16.mxu0 %v2500
  %3032 = vmatpush2.bf16.msra.mxu0 %v2499
  %3033 = vmatprep.subr.bf16.mxu0 %v2496
  %3034 = vmatpush2.bf16.msra.mxu0 %v2495
  %3035 = vmatprep.subr.bf16.mxu0 %v2492
  %3036 = vmatpush2.bf16.msra.mxu0 %v2491
  %3037 = vmatprep.subr.bf16.mxu0 %v2488
  %3038 = vmatpush2.bf16.msra.mxu0 %v2487
  %3039 = vmatprep.subr.bf16.mxu0 %v2484
  %3040 = vmatpush2.bf16.msra.mxu0 %v2483
  %3041 = vmatprep.subr.bf16.mxu0 %v2480
  %3042 = vmatpush2.bf16.msra.mxu0 %v2479
  %3043 = vmatprep.subr.bf16.mxu0 %v2476
  %3044 = vmatpush2.bf16.msra.mxu0 %v2475
  %3045 = vmatprep.subr.bf16.mxu0 %v2472
  %3046 = vmatpush2.bf16.msra.mxu0 %v2471
  %3047 = vmatprep.mubr.bf16.mxu0 %v364
  %3048 = vmatmul.mubr.bf16.gmra.mxu0 %v363
  %v3049 = vpop.f32.mrf.mxu0
  %v3050 = vadd.f32 %v2140, %v3049
  %v3051 = vpop.f32.mrf.mxu0
  %v3052 = vadd.f32 %v2144, %v3051
  %v3053 = vpop.f32.mrf.mxu0
  %v3054 = vadd.f32 %v2140, %v3053
  %v3055 = vpop.f32.mrf.mxu0
  %v3056 = vadd.f32 %v2144, %v3055
  %3057 = vmatprep.mubr.bf16.mxu0 %v367
  %3058 = vmatmul.mubr.bf16.gmra.mxu0 %v366
  %v3059 = vpop.f32.mrf.mxu0
  %v3060 = vadd.f32 %v2140, %v3059
  %v3061 = vpop.f32.mrf.mxu0
  %v3062 = vadd.f32 %v2144, %v3061
  %v3063 = vpop.f32.mrf.mxu0
  %v3064 = vadd.f32 %v2140, %v3063
  %v3065 = vpop.f32.mrf.mxu0
  %v3066 = vadd.f32 %v2144, %v3065
  %3067 = vmatprep.mubr.bf16.mxu0 %v370
  %3068 = vmatmul.mubr.bf16.gmra.mxu0 %v369
  %v3069 = vpop.f32.mrf.mxu0
  %v3070 = vadd.f32 %v2140, %v3069
  %v3071 = vpop.f32.mrf.mxu0
  %v3072 = vadd.f32 %v2144, %v3071
  %v3073 = vpop.f32.mrf.mxu0
  %v3074 = vadd.f32 %v2140, %v3073
  %v3075 = vpop.f32.mrf.mxu0
  %v3076 = vadd.f32 %v2144, %v3075
  %3077 = vmatprep.mubr.bf16.mxu0 %v373
  %3078 = vmatmul.mubr.bf16.gmra.mxu0 %v372
  %v3079 = vpop.f32.mrf.mxu0
  %v3080 = vadd.f32 %v2140, %v3079
  %v3081 = vpop.f32.mrf.mxu0
  %v3082 = vadd.f32 %v2144, %v3081
  %v3083 = vpop.f32.mrf.mxu0
  %v3084 = vadd.f32 %v2140, %v3083
  %v3085 = vpop.f32.mrf.mxu0
  %v3086 = vadd.f32 %v2144, %v3085
  %3087 = vmatprep.mubr.bf16.mxu0 %v376
  %3088 = vmatmul.mubr.bf16.gmra.mxu0 %v375
  %v3089 = vpop.f32.mrf.mxu0
  %v3090 = vadd.f32 %v2140, %v3089
  %v3091 = vpop.f32.mrf.mxu0
  %v3092 = vadd.f32 %v2144, %v3091
  %v3093 = vpop.f32.mrf.mxu0
  %v3094 = vadd.f32 %v2140, %v3093
  %v3095 = vpop.f32.mrf.mxu0
  %v3096 = vadd.f32 %v2144, %v3095
  %3097 = vmatprep.mubr.bf16.mxu0 %v379
  %3098 = vmatmul.mubr.bf16.gmra.mxu0 %v378
  %v3099 = vpop.f32.mrf.mxu0
  %v3100 = vadd.f32 %v2140, %v3099
  %v3101 = vpop.f32.mrf.mxu0
  %v3102 = vadd.f32 %v2144, %v3101
  %v3103 = vpop.f32.mrf.mxu0
  %v3104 = vadd.f32 %v2140, %v3103
  %v3105 = vpop.f32.mrf.mxu0
  %v3106 = vadd.f32 %v2144, %v3105
  %3107 = vmatprep.mubr.bf16.mxu0 %v382
  %3108 = vmatmul.mubr.bf16.gmra.mxu0 %v381
  %v3109 = vpop.f32.mrf.mxu0
  %v3110 = vadd.f32 %v2140, %v3109
  %v3111 = vpop.f32.mrf.mxu0
  %v3112 = vadd.f32 %v2144, %v3111
  %v3113 = vpop.f32.mrf.mxu0
  %v3114 = vadd.f32 %v2140, %v3113
  %v3115 = vpop.f32.mrf.mxu0
  %v3116 = vadd.f32 %v2144, %v3115
  %3117 = vmatprep.mubr.bf16.mxu0 %v385
  %3118 = vmatmul.mubr.bf16.gmra.mxu0 %v384
  %v3119 = vpop.f32.mrf.mxu0
  %v3120 = vadd.f32 %v2140, %v3119
  %v3121 = vpop.f32.mrf.mxu0
  %v3122 = vadd.f32 %v2144, %v3121
  %v3123 = vpop.f32.mrf.mxu0
  %v3124 = vadd.f32 %v2140, %v3123
  %v3125 = vpop.f32.mrf.mxu0
  %v3126 = vadd.f32 %v2144, %v3125
  %3127 = vmatprep.mubr.bf16.mxu0 %v388
  %3128 = vmatmul.mubr.bf16.gmra.mxu0 %v387
  %v3129 = vpop.f32.mrf.mxu0
  %v3130 = vadd.f32 %v2140, %v3129
  %v3131 = vpop.f32.mrf.mxu0
  %v3132 = vadd.f32 %v2144, %v3131
  %v3133 = vpop.f32.mrf.mxu0
  %v3134 = vadd.f32 %v2140, %v3133
  %v3135 = vpop.f32.mrf.mxu0
  %v3136 = vadd.f32 %v2144, %v3135
  %3137 = vmatprep.mubr.bf16.mxu0 %v391
  %3138 = vmatmul.mubr.bf16.gmra.mxu0 %v390
  %v3139 = vpop.f32.mrf.mxu0
  %v3140 = vadd.f32 %v2140, %v3139
  %v3141 = vpop.f32.mrf.mxu0
  %v3142 = vadd.f32 %v2144, %v3141
  %v3143 = vpop.f32.mrf.mxu0
  %v3144 = vadd.f32 %v2140, %v3143
  %v3145 = vpop.f32.mrf.mxu0
  %v3146 = vadd.f32 %v2144, %v3145
  %3147 = vmatprep.mubr.bf16.mxu0 %v394
  %3148 = vmatmul.mubr.bf16.gmra.mxu0 %v393
  %v3149 = vpop.f32.mrf.mxu0
  %v3150 = vadd.f32 %v2140, %v3149
  %v3151 = vpop.f32.mrf.mxu0
  %v3152 = vadd.f32 %v2144, %v3151
  %v3153 = vpop.f32.mrf.mxu0
  %v3154 = vadd.f32 %v2140, %v3153
  %v3155 = vpop.f32.mrf.mxu0
  %v3156 = vadd.f32 %v2144, %v3155
  %3157 = vmatprep.mubr.bf16.mxu0 %v397
  %3158 = vmatmul.mubr.bf16.gmra.mxu0 %v396
  %v3159 = vpop.f32.mrf.mxu0
  %v3160 = vadd.f32 %v2140, %v3159
  %v3161 = vpop.f32.mrf.mxu0
  %v3162 = vadd.f32 %v2144, %v3161
  %v3163 = vpop.f32.mrf.mxu0
  %v3164 = vadd.f32 %v2140, %v3163
  %v3165 = vpop.f32.mrf.mxu0
  %v3166 = vadd.f32 %v2144, %v3165
  %3167 = vmatprep.mubr.bf16.mxu0 %v400
  %3168 = vmatmul.mubr.bf16.gmra.mxu0 %v399
  %v3169 = vpop.f32.mrf.mxu0
  %v3170 = vadd.f32 %v2140, %v3169
  %v3171 = vpop.f32.mrf.mxu0
  %v3172 = vadd.f32 %v2144, %v3171
  %v3173 = vpop.f32.mrf.mxu0
  %v3174 = vadd.f32 %v2140, %v3173
  %v3175 = vpop.f32.mrf.mxu0
  %v3176 = vadd.f32 %v2144, %v3175
  %3177 = vmatprep.mubr.bf16.mxu0 %v403
  %3178 = vmatmul.mubr.bf16.gmra.mxu0 %v402
  %v3179 = vpop.f32.mrf.mxu0
  %v3180 = vadd.f32 %v2140, %v3179
  %v3181 = vpop.f32.mrf.mxu0
  %v3182 = vadd.f32 %v2144, %v3181
  %v3183 = vpop.f32.mrf.mxu0
  %v3184 = vadd.f32 %v2140, %v3183
  %v3185 = vpop.f32.mrf.mxu0
  %v3186 = vadd.f32 %v2144, %v3185
  %3187 = vmatprep.mubr.bf16.mxu0 %v406
  %3188 = vmatmul.mubr.bf16.gmra.mxu0 %v405
  %v3189 = vpop.f32.mrf.mxu0
  %v3190 = vadd.f32 %v2140, %v3189
  %v3191 = vpop.f32.mrf.mxu0
  %v3192 = vadd.f32 %v2144, %v3191
  %v3193 = vpop.f32.mrf.mxu0
  %v3194 = vadd.f32 %v2140, %v3193
  %v3195 = vpop.f32.mrf.mxu0
  %v3196 = vadd.f32 %v2144, %v3195
  %3197 = vmatprep.mubr.bf16.mxu0 %v409
  %3198 = vmatmul.mubr.bf16.gmra.mxu0 %v408
  %v3199 = vpop.f32.mrf.mxu0
  %v3200 = vadd.f32 %v2140, %v3199
  %v3201 = vpop.f32.mrf.mxu0
  %v3202 = vadd.f32 %v2144, %v3201
  %v3203 = vpop.f32.mrf.mxu0
  %v3204 = vadd.f32 %v2140, %v3203
  %v3205 = vpop.f32.mrf.mxu0
  %v3206 = vadd.f32 %v2144, %v3205
  %3207 = vdwg.mxu0
  %3208 = vmatprep.subr.bf16.mxu0 %v2532
  %3209 = vmatpush1.bf16.msra.mxu0 %v2531
  %3210 = vmatprep.subr.bf16.mxu0 %v2528
  %3211 = vmatpush1.bf16.msra.mxu0 %v2527
  %3212 = vmatprep.subr.bf16.mxu0 %v2524
  %3213 = vmatpush1.bf16.msra.mxu0 %v2523
  %3214 = vmatprep.subr.bf16.mxu0 %v2520
  %3215 = vmatpush1.bf16.msra.mxu0 %v2519
  %3216 = vmatprep.subr.bf16.mxu0 %v2516
  %3217 = vmatpush1.bf16.msra.mxu0 %v2515
  %3218 = vmatprep.subr.bf16.mxu0 %v2512
  %3219 = vmatpush1.bf16.msra.mxu0 %v2511
  %3220 = vmatprep.subr.bf16.mxu0 %v2508
  %3221 = vmatpush1.bf16.msra.mxu0 %v2507
  %3222 = vmatprep.subr.bf16.mxu0 %v2504
  %3223 = vmatpush1.bf16.msra.mxu0 %v2503
  %3224 = vmatprep.subr.bf16.mxu0 0
  %3225 = vmatpush2.bf16.msra.mxu0 0
  %3226 = vmatprep.subr.bf16.mxu0 0
  %3227 = vmatpush2.bf16.msra.mxu0 0
  %3228 = vmatprep.subr.bf16.mxu0 0
  %3229 = vmatpush2.bf16.msra.mxu0 0
  %3230 = vmatprep.subr.bf16.mxu0 0
  %3231 = vmatpush2.bf16.msra.mxu0 0
  %3232 = vmatprep.subr.bf16.mxu0 0
  %3233 = vmatpush2.bf16.msra.mxu0 0
  %3234 = vmatprep.subr.bf16.mxu0 0
  %3235 = vmatpush2.bf16.msra.mxu0 0
  %3236 = vmatprep.subr.bf16.mxu0 0
  %3237 = vmatpush2.bf16.msra.mxu0 0
  %3238 = vmatprep.subr.bf16.mxu0 0
  %3239 = vmatpush2.bf16.msra.mxu0 0
  %3240 = vmatprep.mubr.bf16.mxu0 0
  %3241 = vmatmul.mubr.bf16.gmra.mxu0 %v365
  %v3242 = vpop.f32.mrf.mxu0
  %v3243 = vadd.f32 %v3050, %v3242
  %v3244 = vpop.f32.mrf.mxu0
  %v3245 = vadd.f32 %v3052, %v3244
  %v3246 = vpop.f32.mrf.mxu0
  %v3247 = vadd.f32 %v3054, %v3246
  %v3248 = vpop.f32.mrf.mxu0
  %v3249 = vadd.f32 %v3056, %v3248
  %3250 = vmatprep.mubr.bf16.mxu0 0
  %3251 = vmatmul.mubr.bf16.gmra.mxu0 %v368
  %v3252 = vpop.f32.mrf.mxu0
  %v3253 = vadd.f32 %v3060, %v3252
  %v3254 = vpop.f32.mrf.mxu0
  %v3255 = vadd.f32 %v3062, %v3254
  %v3256 = vpop.f32.mrf.mxu0
  %v3257 = vadd.f32 %v3064, %v3256
  %v3258 = vpop.f32.mrf.mxu0
  %v3259 = vadd.f32 %v3066, %v3258
  %3260 = vmatprep.mubr.bf16.mxu0 0
  %3261 = vmatmul.mubr.bf16.gmra.mxu0 %v371
  %v3262 = vpop.f32.mrf.mxu0
  %v3263 = vadd.f32 %v3070, %v3262
  %v3264 = vpop.f32.mrf.mxu0
  %v3265 = vadd.f32 %v3072, %v3264
  %v3266 = vpop.f32.mrf.mxu0
  %v3267 = vadd.f32 %v3074, %v3266
  %v3268 = vpop.f32.mrf.mxu0
  %v3269 = vadd.f32 %v3076, %v3268
  %3270 = vmatprep.mubr.bf16.mxu0 0
  %3271 = vmatmul.mubr.bf16.gmra.mxu0 %v374
  %v3272 = vpop.f32.mrf.mxu0
  %v3273 = vadd.f32 %v3080, %v3272
  %v3274 = vpop.f32.mrf.mxu0
  %v3275 = vadd.f32 %v3082, %v3274
  %v3276 = vpop.f32.mrf.mxu0
  %v3277 = vadd.f32 %v3084, %v3276
  %v3278 = vpop.f32.mrf.mxu0
  %v3279 = vadd.f32 %v3086, %v3278
  %3280 = vmatprep.mubr.bf16.mxu0 0
  %3281 = vmatmul.mubr.bf16.gmra.mxu0 %v377
  %v3282 = vpop.f32.mrf.mxu0
  %v3283 = vadd.f32 %v3090, %v3282
  %v3284 = vpop.f32.mrf.mxu0
  %v3285 = vadd.f32 %v3092, %v3284
  %v3286 = vpop.f32.mrf.mxu0
  %v3287 = vadd.f32 %v3094, %v3286
  %v3288 = vpop.f32.mrf.mxu0
  %v3289 = vadd.f32 %v3096, %v3288
  %3290 = vmatprep.mubr.bf16.mxu0 0
  %3291 = vmatmul.mubr.bf16.gmra.mxu0 %v380
  %v3292 = vpop.f32.mrf.mxu0
  %v3293 = vadd.f32 %v3100, %v3292
  %v3294 = vpop.f32.mrf.mxu0
  %v3295 = vadd.f32 %v3102, %v3294
  %v3296 = vpop.f32.mrf.mxu0
  %v3297 = vadd.f32 %v3104, %v3296
  %v3298 = vpop.f32.mrf.mxu0
  %v3299 = vadd.f32 %v3106, %v3298
  %3300 = vmatprep.mubr.bf16.mxu0 0
  %3301 = vmatmul.mubr.bf16.gmra.mxu0 %v383
  %v3302 = vpop.f32.mrf.mxu0
  %v3303 = vadd.f32 %v3110, %v3302
  %v3304 = vpop.f32.mrf.mxu0
  %v3305 = vadd.f32 %v3112, %v3304
  %v3306 = vpop.f32.mrf.mxu0
  %v3307 = vadd.f32 %v3114, %v3306
  %v3308 = vpop.f32.mrf.mxu0
  %v3309 = vadd.f32 %v3116, %v3308
  %3310 = vmatprep.mubr.bf16.mxu0 0
  %3311 = vmatmul.mubr.bf16.gmra.mxu0 %v386
  %v3312 = vpop.f32.mrf.mxu0
  %v3313 = vadd.f32 %v3120, %v3312
  %v3314 = vpop.f32.mrf.mxu0
  %v3315 = vadd.f32 %v3122, %v3314
  %v3316 = vpop.f32.mrf.mxu0
  %v3317 = vadd.f32 %v3124, %v3316
  %v3318 = vpop.f32.mrf.mxu0
  %v3319 = vadd.f32 %v3126, %v3318
  %3320 = vmatprep.mubr.bf16.mxu0 0
  %3321 = vmatmul.mubr.bf16.gmra.mxu0 %v389
  %v3322 = vpop.f32.mrf.mxu0
  %v3323 = vadd.f32 %v3130, %v3322
  %v3324 = vpop.f32.mrf.mxu0
  %v3325 = vadd.f32 %v3132, %v3324
  %v3326 = vpop.f32.mrf.mxu0
  %v3327 = vadd.f32 %v3134, %v3326
  %v3328 = vpop.f32.mrf.mxu0
  %v3329 = vadd.f32 %v3136, %v3328
  %3330 = vmatprep.mubr.bf16.mxu0 0
  %3331 = vmatmul.mubr.bf16.gmra.mxu0 %v392
  %v3332 = vpop.f32.mrf.mxu0
  %v3333 = vadd.f32 %v3140, %v3332
  %v3334 = vpop.f32.mrf.mxu0
  %v3335 = vadd.f32 %v3142, %v3334
  %v3336 = vpop.f32.mrf.mxu0
  %v3337 = vadd.f32 %v3144, %v3336
  %v3338 = vpop.f32.mrf.mxu0
  %v3339 = vadd.f32 %v3146, %v3338
  %3340 = vmatprep.mubr.bf16.mxu0 0
  %3341 = vmatmul.mubr.bf16.gmra.mxu0 %v395
  %v3342 = vpop.f32.mrf.mxu0
  %v3343 = vadd.f32 %v3150, %v3342
  %v3344 = vpop.f32.mrf.mxu0
  %v3345 = vadd.f32 %v3152, %v3344
  %v3346 = vpop.f32.mrf.mxu0
  %v3347 = vadd.f32 %v3154, %v3346
  %v3348 = vpop.f32.mrf.mxu0
  %v3349 = vadd.f32 %v3156, %v3348
  %3350 = vmatprep.mubr.bf16.mxu0 0
  %3351 = vmatmul.mubr.bf16.gmra.mxu0 %v398
  %v3352 = vpop.f32.mrf.mxu0
  %v3353 = vadd.f32 %v3160, %v3352
  %v3354 = vpop.f32.mrf.mxu0
  %v3355 = vadd.f32 %v3162, %v3354
  %v3356 = vpop.f32.mrf.mxu0
  %v3357 = vadd.f32 %v3164, %v3356
  %v3358 = vpop.f32.mrf.mxu0
  %v3359 = vadd.f32 %v3166, %v3358
  %3360 = vmatprep.mubr.bf16.mxu0 0
  %3361 = vmatmul.mubr.bf16.gmra.mxu0 %v401
  %v3362 = vpop.f32.mrf.mxu0
  %v3363 = vadd.f32 %v3170, %v3362
  %v3364 = vpop.f32.mrf.mxu0
  %v3365 = vadd.f32 %v3172, %v3364
  %v3366 = vpop.f32.mrf.mxu0
  %v3367 = vadd.f32 %v3174, %v3366
  %v3368 = vpop.f32.mrf.mxu0
  %v3369 = vadd.f32 %v3176, %v3368
  %3370 = vmatprep.mubr.bf16.mxu0 0
  %3371 = vmatmul.mubr.bf16.gmra.mxu0 %v404
  %v3372 = vpop.f32.mrf.mxu0
  %v3373 = vadd.f32 %v3180, %v3372
  %v3374 = vpop.f32.mrf.mxu0
  %v3375 = vadd.f32 %v3182, %v3374
  %v3376 = vpop.f32.mrf.mxu0
  %v3377 = vadd.f32 %v3184, %v3376
  %v3378 = vpop.f32.mrf.mxu0
  %v3379 = vadd.f32 %v3186, %v3378
  %3380 = vmatprep.mubr.bf16.mxu0 0
  %3381 = vmatmul.mubr.bf16.gmra.mxu0 %v407
  %v3382 = vpop.f32.mrf.mxu0
  %v3383 = vadd.f32 %v3190, %v3382
  %v3384 = vpop.f32.mrf.mxu0
  %v3385 = vadd.f32 %v3192, %v3384
  %v3386 = vpop.f32.mrf.mxu0
  %v3387 = vadd.f32 %v3194, %v3386
  %v3388 = vpop.f32.mrf.mxu0
  %v3389 = vadd.f32 %v3196, %v3388
  %3390 = vmatprep.mubr.bf16.mxu0 0
  %3391 = vmatmul.mubr.bf16.gmra.mxu0 %v410
  %v3392 = vpop.f32.mrf.mxu0
  %v3393 = vadd.f32 %v3200, %v3392
  %v3394 = vpop.f32.mrf.mxu0
  %v3395 = vadd.f32 %v3202, %v3394
  %v3396 = vpop.f32.mrf.mxu0
  %v3397 = vadd.f32 %v3204, %v3396
  %v3398 = vpop.f32.mrf.mxu0
  %v3399 = vadd.f32 %v3206, %v3398
  %3400 = vdwg.mxu0
  %v3401 = vmax.f32 %v2857, 0.0
  %v3402 = vmax.f32 %v2859, 0.0
  %v3403 = vmax.f32 %v3243, 0.0
  %v3404 = vmax.f32 %v3245, 0.0
  %v3405 = vmax.f32 %v2861, 0.0
  %v3406 = vmax.f32 %v2863, 0.0
  %v3407 = vmax.f32 %v3247, 0.0
  %v3408 = vmax.f32 %v3249, 0.0
  %v3409 = vmax.f32 %v2867, 0.0
  %v3410 = vmax.f32 %v2869, 0.0
  %v3411 = vmax.f32 %v3253, 0.0
  %v3412 = vmax.f32 %v3255, 0.0
  %v3413 = vmax.f32 %v2871, 0.0
  %v3414 = vmax.f32 %v2873, 0.0
  %v3415 = vmax.f32 %v3257, 0.0
  %v3416 = vmax.f32 %v3259, 0.0
  %v3417 = vmax.f32 %v2877, 0.0
  %v3418 = vmax.f32 %v2879, 0.0
  %v3419 = vmax.f32 %v3263, 0.0
  %v3420 = vmax.f32 %v3265, 0.0
  %v3421 = vmax.f32 %v2881, 0.0
  %v3422 = vmax.f32 %v2883, 0.0
  %v3423 = vmax.f32 %v3267, 0.0
  %v3424 = vmax.f32 %v3269, 0.0
  %v3425 = vmax.f32 %v2887, 0.0
  %v3426 = vmax.f32 %v2889, 0.0
  %v3427 = vmax.f32 %v3273, 0.0
  %v3428 = vmax.f32 %v3275, 0.0
  %v3429 = vmax.f32 %v2891, 0.0
  %v3430 = vmax.f32 %v2893, 0.0
  %v3431 = vmax.f32 %v3277, 0.0
  %v3432 = vmax.f32 %v3279, 0.0
  %v3433 = vmax.f32 %v2897, 0.0
  %v3434 = vmax.f32 %v2899, 0.0
  %v3435 = vmax.f32 %v3283, 0.0
  %v3436 = vmax.f32 %v3285, 0.0
  %v3437 = vmax.f32 %v2901, 0.0
  %v3438 = vmax.f32 %v2903, 0.0
  %v3439 = vmax.f32 %v3287, 0.0
  %v3440 = vmax.f32 %v3289, 0.0
  %v3441 = vmax.f32 %v2907, 0.0
  %v3442 = vmax.f32 %v2909, 0.0
  %v3443 = vmax.f32 %v3293, 0.0
  %v3444 = vmax.f32 %v3295, 0.0
  %v3445 = vmax.f32 %v2911, 0.0
  %v3446 = vmax.f32 %v2913, 0.0
  %v3447 = vmax.f32 %v3297, 0.0
  %v3448 = vmax.f32 %v3299, 0.0
  %v3449 = vmax.f32 %v2917, 0.0
  %v3450 = vmax.f32 %v2919, 0.0
  %v3451 = vmax.f32 %v3303, 0.0
  %v3452 = vmax.f32 %v3305, 0.0
  %v3453 = vmax.f32 %v2921, 0.0
  %v3454 = vmax.f32 %v2923, 0.0
  %v3455 = vmax.f32 %v3307, 0.0
  %v3456 = vmax.f32 %v3309, 0.0
  %v3457 = vmax.f32 %v2927, 0.0
  %v3458 = vmax.f32 %v2929, 0.0
  %v3459 = vmax.f32 %v3313, 0.0
  %v3460 = vmax.f32 %v3315, 0.0
  %v3461 = vmax.f32 %v2931, 0.0
  %v3462 = vmax.f32 %v2933, 0.0
  %v3463 = vmax.f32 %v3317, 0.0
  %v3464 = vmax.f32 %v3319, 0.0
  %v3465 = vmax.f32 %v2937, 0.0
  %v3466 = vmax.f32 %v2939, 0.0
  %v3467 = vmax.f32 %v3323, 0.0
  %v3468 = vmax.f32 %v3325, 0.0
  %v3469 = vmax.f32 %v2941, 0.0
  %v3470 = vmax.f32 %v2943, 0.0
  %v3471 = vmax.f32 %v3327, 0.0
  %v3472 = vmax.f32 %v3329, 0.0
  %v3473 = vmax.f32 %v2947, 0.0
  %v3474 = vmax.f32 %v2949, 0.0
  %v3475 = vmax.f32 %v3333, 0.0
  %v3476 = vmax.f32 %v3335, 0.0
  %v3477 = vmax.f32 %v2951, 0.0
  %v3478 = vmax.f32 %v2953, 0.0
  %v3479 = vmax.f32 %v3337, 0.0
  %v3480 = vmax.f32 %v3339, 0.0
  %v3481 = vmax.f32 %v2957, 0.0
  %v3482 = vmax.f32 %v2959, 0.0
  %v3483 = vmax.f32 %v3343, 0.0
  %v3484 = vmax.f32 %v3345, 0.0
  %v3485 = vmax.f32 %v2961, 0.0
  %v3486 = vmax.f32 %v2963, 0.0
  %v3487 = vmax.f32 %v3347, 0.0
  %v3488 = vmax.f32 %v3349, 0.0
  %v3489 = vmax.f32 %v2967, 0.0
  %v3490 = vmax.f32 %v2969, 0.0
  %v3491 = vmax.f32 %v3353, 0.0
  %v3492 = vmax.f32 %v3355, 0.0
  %v3493 = vmax.f32 %v2971, 0.0
  %v3494 = vmax.f32 %v2973, 0.0
  %v3495 = vmax.f32 %v3357, 0.0
  %v3496 = vmax.f32 %v3359, 0.0
  %v3497 = vmax.f32 %v2977, 0.0
  %v3498 = vmax.f32 %v2979, 0.0
  %v3499 = vmax.f32 %v3363, 0.0
  %v3500 = vmax.f32 %v3365, 0.0
  %v3501 = vmax.f32 %v2981, 0.0
  %v3502 = vmax.f32 %v2983, 0.0
  %v3503 = vmax.f32 %v3367, 0.0
  %v3504 = vmax.f32 %v3369, 0.0
  %v3505 = vmax.f32 %v2987, 0.0
  %v3506 = vmax.f32 %v2989, 0.0
  %v3507 = vmax.f32 %v3373, 0.0
  %v3508 = vmax.f32 %v3375, 0.0
  %v3509 = vmax.f32 %v2991, 0.0
  %v3510 = vmax.f32 %v2993, 0.0
  %v3511 = vmax.f32 %v3377, 0.0
  %v3512 = vmax.f32 %v3379, 0.0
  %v3513 = vmax.f32 %v2997, 0.0
  %v3514 = vmax.f32 %v2999, 0.0
  %v3515 = vmax.f32 %v3383, 0.0
  %v3516 = vmax.f32 %v3385, 0.0
  %v3517 = vmax.f32 %v3001, 0.0
  %v3518 = vmax.f32 %v3003, 0.0
  %v3519 = vmax.f32 %v3387, 0.0
  %v3520 = vmax.f32 %v3389, 0.0
  %v3521 = vmax.f32 %v3007, 0.0
  %v3522 = vmax.f32 %v3009, 0.0
  %v3523 = vmax.f32 %v3393, 0.0
  %v3524 = vmax.f32 %v3395, 0.0
  %v3525 = vmax.f32 %v3011, 0.0
  %v3526 = vmax.f32 %v3013, 0.0
  %v3527 = vmax.f32 %v3397, 0.0
  %v3528 = vmax.f32 %v3399, 0.0
  %v3529 = vpack.c.bf16 %v3405, %v3401
  %v3530 = vpack.c.bf16 %v3406, %v3402
  %v3531 = vpack.c.bf16 %v3407, %v3403
  %v3532 = vpack.c.bf16 %v3408, %v3404
  %v3533 = vpack.c.bf16 %v3413, %v3409
  %v3534 = vpack.c.bf16 %v3414, %v3410
  %v3535 = vpack.c.bf16 %v3415, %v3411
  %v3536 = vpack.c.bf16 %v3416, %v3412
  %v3537 = vpack.c.bf16 %v3421, %v3417
  %v3538 = vpack.c.bf16 %v3422, %v3418
  %v3539 = vpack.c.bf16 %v3423, %v3419
  %v3540 = vpack.c.bf16 %v3424, %v3420
  %v3541 = vpack.c.bf16 %v3429, %v3425
  %v3542 = vpack.c.bf16 %v3430, %v3426
  %v3543 = vpack.c.bf16 %v3431, %v3427
  %v3544 = vpack.c.bf16 %v3432, %v3428
  %v3545 = vpack.c.bf16 %v3437, %v3433
  %v3546 = vpack.c.bf16 %v3438, %v3434
  %v3547 = vpack.c.bf16 %v3439, %v3435
  %v3548 = vpack.c.bf16 %v3440, %v3436
  %v3549 = vpack.c.bf16 %v3445, %v3441
  %v3550 = vpack.c.bf16 %v3446, %v3442
  %v3551 = vpack.c.bf16 %v3447, %v3443
  %v3552 = vpack.c.bf16 %v3448, %v3444
  %v3553 = vpack.c.bf16 %v3453, %v3449
  %v3554 = vpack.c.bf16 %v3454, %v3450
  %v3555 = vpack.c.bf16 %v3455, %v3451
  %v3556 = vpack.c.bf16 %v3456, %v3452
  %v3557 = vpack.c.bf16 %v3461, %v3457
  %v3558 = vpack.c.bf16 %v3462, %v3458
  %v3559 = vpack.c.bf16 %v3463, %v3459
  %v3560 = vpack.c.bf16 %v3464, %v3460
  %v3561 = vpack.c.bf16 %v3469, %v3465
  %v3562 = vpack.c.bf16 %v3470, %v3466
  %v3563 = vpack.c.bf16 %v3471, %v3467
  %v3564 = vpack.c.bf16 %v3472, %v3468
  %v3565 = vpack.c.bf16 %v3477, %v3473
  %v3566 = vpack.c.bf16 %v3478, %v3474
  %v3567 = vpack.c.bf16 %v3479, %v3475
  %v3568 = vpack.c.bf16 %v3480, %v3476
  %v3569 = vpack.c.bf16 %v3485, %v3481
  %v3570 = vpack.c.bf16 %v3486, %v3482
  %v3571 = vpack.c.bf16 %v3487, %v3483
  %v3572 = vpack.c.bf16 %v3488, %v3484
  %v3573 = vpack.c.bf16 %v3493, %v3489
  %v3574 = vpack.c.bf16 %v3494, %v3490
  %v3575 = vpack.c.bf16 %v3495, %v3491
  %v3576 = vpack.c.bf16 %v3496, %v3492
  %v3577 = vpack.c.bf16 %v3501, %v3497
  %v3578 = vpack.c.bf16 %v3502, %v3498
  %v3579 = vpack.c.bf16 %v3503, %v3499
  %v3580 = vpack.c.bf16 %v3504, %v3500
  %v3581 = vpack.c.bf16 %v3509, %v3505
  %v3582 = vpack.c.bf16 %v3510, %v3506
  %v3583 = vpack.c.bf16 %v3511, %v3507
  %v3584 = vpack.c.bf16 %v3512, %v3508
  %v3585 = vpack.c.bf16 %v3517, %v3513
  %v3586 = vpack.c.bf16 %v3518, %v3514
  %v3587 = vpack.c.bf16 %v3519, %v3515
  %v3588 = vpack.c.bf16 %v3520, %v3516
  %v3589 = vpack.c.bf16 %v3525, %v3521
  %v3590 = vpack.c.bf16 %v3526, %v3522
  %v3591 = vpack.c.bf16 %v3527, %v3523
  %v3592 = vpack.c.bf16 %v3528, %v3524
  %v3593 = vld [vmem:[%s3 + $0x300] sm:$0xff]
  %v3594 = vld [vmem:[%s3 + $0x308] sm:$0xf]
  %v3595 = vld [vmem:[%s3 + $0x30c] sm:$0xff]
  %v3596 = vld [vmem:[%s3 + $0x314] sm:$0xf]
  %v3597 = vld [vmem:[%s3 + $0x318] sm:$0xff]
  %v3598 = vld [vmem:[%s3 + $0x320] sm:$0xf]
  %v3599 = vld [vmem:[%s3 + $0x324] sm:$0xff]
  %v3600 = vld [vmem:[%s3 + $0x32c] sm:$0xf]
  %v3601 = vld [vmem:[%s3 + $0x330] sm:$0xff]
  %v3602 = vld [vmem:[%s3 + $0x338] sm:$0xf]
  %v3603 = vld [vmem:[%s3 + $0x33c] sm:$0xff]
  %v3604 = vld [vmem:[%s3 + $0x344] sm:$0xf]
  %v3605 = vld [vmem:[%s3 + $0x348] sm:$0xff]
  %v3606 = vld [vmem:[%s3 + $0x350] sm:$0xf]
  %v3607 = vld [vmem:[%s3 + $0x354] sm:$0xff]
  %v3608 = vld [vmem:[%s3 + $0x35c] sm:$0xf]
  %v3609 = vld [vmem:[%s3 + $0x360] sm:$0xff]
  %v3610 = vld [vmem:[%s3 + $0x368] sm:$0xf]
  %v3611 = vld [vmem:[%s3 + $0x36c] sm:$0xff]
  %v3612 = vld [vmem:[%s3 + $0x374] sm:$0xf]
  %v3613 = vld [vmem:[%s3 + $0x378] sm:$0xff]
  %v3614 = vld [vmem:[%s3 + $0x380] sm:$0xf]
  %v3615 = vld [vmem:[%s3 + $0x384] sm:$0xff]
  %v3616 = vld [vmem:[%s3 + $0x38c] sm:$0xf]
  %v3617 = vld [vmem:[%s3 + $0x390] sm:$0xff]
  %v3618 = vld [vmem:[%s3 + $0x398] sm:$0xf]
  %v3619 = vld [vmem:[%s3 + $0x39c] sm:$0xff]
  %v3620 = vld [vmem:[%s3 + $0x3a4] sm:$0xf]
  %v3621 = vld [vmem:[%s3 + $0x3a8] sm:$0xff]
  %v3622 = vld [vmem:[%s3 + $0x3b0] sm:$0xf]
  %v3623 = vld [vmem:[%s3 + $0x3b4] sm:$0xff]
  %v3624 = vld [vmem:[%s3 + $0x3bc] sm:$0xf]
  %v3625 = vld [vmem:[%s3 + $0x3c0] sm:$0xff]
  %v3626 = vld [vmem:[%s3 + $0x3c8] sm:$0xf]
  %v3627 = vld [vmem:[%s3 + $0x3cc] sm:$0xff]
  %v3628 = vld [vmem:[%s3 + $0x3d4] sm:$0xf]
  %v3629 = vld [vmem:[%s3 + $0x3d8] sm:$0xff]
  %v3630 = vld [vmem:[%s3 + $0x3e0] sm:$0xf]
  %v3631 = vld [vmem:[%s3 + $0x3e4] sm:$0xff]
  %v3632 = vld [vmem:[%s3 + $0x3ec] sm:$0xf]
  %v3633 = vld [vmem:[%s3 + $0x3f0] sm:$0xff]
  %v3634 = vld [vmem:[%s3 + $0x3f8] sm:$0xf]
  %v3635 = vld [vmem:[%s3 + $0x3fc] sm:$0xff]
  %v3636 = vld [vmem:[%s3 + $0x404] sm:$0xf]
  %v3637 = vld [vmem:[%s3 + $0x408] sm:$0xff]
  %v3638 = vld [vmem:[%s3 + $0x410] sm:$0xf]
  %v3639 = vld [vmem:[%s3 + $0x414] sm:$0xff]
  %v3640 = vld [vmem:[%s3 + $0x41c] sm:$0xf]
  %v3641 = vld [vmem:[%s3 + $0x420] sm:$0xff]
  %v3642 = vld [vmem:[%s3 + $0x428] sm:$0xf]
  %v3643 = vld [vmem:[%s3 + $0x42c] sm:$0xff]
  %v3644 = vld [vmem:[%s3 + $0x434] sm:$0xf]
  %v3645 = vld [vmem:[%s3 + $0x438] sm:$0xff]
  %v3646 = vld [vmem:[%s3 + $0x440] sm:$0xf]
  %v3647 = vld [vmem:[%s3 + $0x444] sm:$0xff]
  %v3648 = vld [vmem:[%s3 + $0x44c] sm:$0xf]
  %v3649 = vld [vmem:[%s3 + $0x450] sm:$0xff]
  %v3650 = vld [vmem:[%s3 + $0x458] sm:$0xf]
  %v3651 = vld [vmem:[%s3 + $0x45c] sm:$0xff]
  %v3652 = vld [vmem:[%s3 + $0x464] sm:$0xf]
  %v3653 = vld [vmem:[%s3 + $0x468] sm:$0xff]
  %v3654 = vld [vmem:[%s3 + $0x470] sm:$0xf]
  %v3655 = vld [vmem:[%s3 + $0x474] sm:$0xff]
  %v3656 = vld [vmem:[%s3 + $0x47c] sm:$0xf]
  %v3657 = vld [vmem:[%s3 + $0x480] sm:$0xff]
  %v3658 = vld [vmem:[%s3 + $0x488] sm:$0xf]
  %v3659 = vld [vmem:[%s3 + $0x48c] sm:$0xff]
  %v3660 = vld [vmem:[%s3 + $0x494] sm:$0xf]
  %v3661 = vld [vmem:[%s3 + $0x498] sm:$0xff]
  %v3662 = vld [vmem:[%s3 + $0x4a0] sm:$0xf]
  %v3663 = vld [vmem:[%s3 + $0x4a4] sm:$0xff]
  %v3664 = vld [vmem:[%s3 + $0x4ac] sm:$0xf]
  %v3665 = vld [vmem:[%s3 + $0x4b0] sm:$0xff]
  %v3666 = vld [vmem:[%s3 + $0x4b8] sm:$0xf]
  %v3667 = vld [vmem:[%s3 + $0x4bc] sm:$0xff]
  %v3668 = vld [vmem:[%s3 + $0x4c4] sm:$0xf]
  %v3669 = vld [vmem:[%s3 + $0x4c8] sm:$0xff]
  %v3670 = vld [vmem:[%s3 + $0x4d0] sm:$0xf]
  %v3671 = vld [vmem:[%s3 + $0x4d4] sm:$0xff]
  %v3672 = vld [vmem:[%s3 + $0x4dc] sm:$0xf]
  %v3673 = vld [vmem:[%s3 + $0x4e0] sm:$0xff]
  %v3674 = vld [vmem:[%s3 + $0x4e8] sm:$0xf]
  %v3675 = vld [vmem:[%s3 + $0x4ec] sm:$0xff]
  %v3676 = vld [vmem:[%s3 + $0x4f4] sm:$0xf]
  %v3677 = vld [vmem:[%s3 + $0x4f8] sm:$0xff]
  %v3678 = vld [vmem:[%s3 + $0x500] sm:$0xf]
  %v3679 = vld [vmem:[%s3 + $0x504] sm:$0xff]
  %v3680 = vld [vmem:[%s3 + $0x50c] sm:$0xf]
  %v3681 = vld [vmem:[%s3 + $0x510] sm:$0xff]
  %v3682 = vld [vmem:[%s3 + $0x518] sm:$0xf]
  %v3683 = vld [vmem:[%s3 + $0x51c] sm:$0xff]
  %v3684 = vld [vmem:[%s3 + $0x524] sm:$0xf]
  %v3685 = vld [vmem:[%s3 + $0x528] sm:$0xff]
  %v3686 = vld [vmem:[%s3 + $0x530] sm:$0xf]
  %v3687 = vld [vmem:[%s3 + $0x534] sm:$0xff]
  %v3688 = vld [vmem:[%s3 + $0x53c] sm:$0xf]
  %v3689 = vld [vmem:[%s3 + $0x540] sm:$0xff]
  %v3690 = vld [vmem:[%s3 + $0x548] sm:$0xf]
  %v3691 = vld [vmem:[%s3 + $0x54c] sm:$0xff]
  %v3692 = vld [vmem:[%s3 + $0x554] sm:$0xf]
  %v3693 = vld [vmem:[%s3 + $0x558] sm:$0xff]
  %v3694 = vld [vmem:[%s3 + $0x560] sm:$0xf]
  %v3695 = vld [vmem:[%s3 + $0x564] sm:$0xff]
  %v3696 = vld [vmem:[%s3 + $0x56c] sm:$0xf]
  %v3697 = vld [vmem:[%s3 + $0x570] sm:$0xff]
  %v3698 = vld [vmem:[%s3 + $0x578] sm:$0xf]
  %v3699 = vld [vmem:[%s3 + $0x57c] sm:$0xff]
  %v3700 = vld [vmem:[%s3 + $0x584] sm:$0xf]
  %v3701 = vld [vmem:[%s3 + $0x588] sm:$0xff]
  %v3702 = vld [vmem:[%s3 + $0x590] sm:$0xf]
  %v3703 = vld [vmem:[%s3 + $0x594] sm:$0xff]
  %v3704 = vld [vmem:[%s3 + $0x59c] sm:$0xf]
  %v3705 = vld [vmem:[%s3 + $0x5a0] sm:$0xff]
  %v3706 = vld [vmem:[%s3 + $0x5a8] sm:$0xf]
  %v3707 = vld [vmem:[%s3 + $0x5ac] sm:$0xff]
  %v3708 = vld [vmem:[%s3 + $0x5b4] sm:$0xf]
  %v3709 = vld [vmem:[%s3 + $0x5b8] sm:$0xff]
  %v3710 = vld [vmem:[%s3 + $0x5c0] sm:$0xf]
  %v3711 = vld [vmem:[%s3 + $0x5c4] sm:$0xff]
  %v3712 = vld [vmem:[%s3 + $0x5cc] sm:$0xf]
  %v3713 = vld [vmem:[%s3 + $0x5d0] sm:$0xff]
  %v3714 = vld [vmem:[%s3 + $0x5d8] sm:$0xf]
  %v3715 = vld [vmem:[%s3 + $0x5dc] sm:$0xff]
  %v3716 = vld [vmem:[%s3 + $0x5e4] sm:$0xf]
  %v3717 = vld [vmem:[%s3 + $0x5e8] sm:$0xff]
  %v3718 = vld [vmem:[%s3 + $0x5f0] sm:$0xf]
  %v3719 = vld [vmem:[%s3 + $0x5f4] sm:$0xff]
  %v3720 = vld [vmem:[%s3 + $0x5fc] sm:$0xf]
  %v3849 = vunpack.c.l.b16 %v3593
  %v3850 = vunpack.c.h.b16 %v3593
  %v3851 = vunpack.c.l.b16 %v3594
  %v3852 = vunpack.c.l.b16 %v3595
  %v3853 = vunpack.c.h.b16 %v3595
  %v3854 = vunpack.c.l.b16 %v3596
  %v3855 = vunpack.c.l.b16 %v3597
  %v3856 = vunpack.c.h.b16 %v3597
  %v3857 = vunpack.c.l.b16 %v3598
  %v3858 = vunpack.c.l.b16 %v3599
  %v3859 = vunpack.c.h.b16 %v3599
  %v3860 = vunpack.c.l.b16 %v3600
  %v3861 = vunpack.c.l.b16 %v3601
  %v3862 = vunpack.c.h.b16 %v3601
  %v3863 = vunpack.c.l.b16 %v3602
  %v3864 = vunpack.c.l.b16 %v3603
  %v3865 = vunpack.c.h.b16 %v3603
  %v3866 = vunpack.c.l.b16 %v3604
  %v3867 = vunpack.c.l.b16 %v3605
  %v3868 = vunpack.c.h.b16 %v3605
  %v3869 = vunpack.c.l.b16 %v3606
  %v3870 = vunpack.c.l.b16 %v3607
  %v3871 = vunpack.c.h.b16 %v3607
  %v3872 = vunpack.c.l.b16 %v3608
  %v3873 = vunpack.c.l.b16 %v3609
  %v3874 = vunpack.c.h.b16 %v3609
  %v3875 = vunpack.c.l.b16 %v3610
  %v3876 = vunpack.c.l.b16 %v3611
  %v3877 = vunpack.c.h.b16 %v3611
  %v3878 = vunpack.c.l.b16 %v3612
  %v3879 = vunpack.c.l.b16 %v3613
  %v3880 = vunpack.c.h.b16 %v3613
  %v3881 = vunpack.c.l.b16 %v3614
  %v3882 = vunpack.c.l.b16 %v3615
  %v3883 = vunpack.c.h.b16 %v3615
  %v3884 = vunpack.c.l.b16 %v3616
  %v3885 = vunpack.c.l.b16 %v3617
  %v3886 = vunpack.c.h.b16 %v3617
  %v3887 = vunpack.c.l.b16 %v3618
  %v3888 = vunpack.c.l.b16 %v3619
  %v3889 = vunpack.c.h.b16 %v3619
  %v3890 = vunpack.c.l.b16 %v3620
  %v3891 = vunpack.c.l.b16 %v3621
  %v3892 = vunpack.c.h.b16 %v3621
  %v3893 = vunpack.c.l.b16 %v3622
  %v3894 = vunpack.c.l.b16 %v3623
  %v3895 = vunpack.c.h.b16 %v3623
  %v3896 = vunpack.c.l.b16 %v3624
  %v3897 = vunpack.c.l.b16 %v3625
  %v3898 = vunpack.c.h.b16 %v3625
  %v3899 = vunpack.c.l.b16 %v3626
  %v3900 = vunpack.c.l.b16 %v3627
  %v3901 = vunpack.c.h.b16 %v3627
  %v3902 = vunpack.c.l.b16 %v3628
  %v3903 = vunpack.c.l.b16 %v3629
  %v3904 = vunpack.c.h.b16 %v3629
  %v3905 = vunpack.c.l.b16 %v3630
  %v3906 = vunpack.c.l.b16 %v3631
  %v3907 = vunpack.c.h.b16 %v3631
  %v3908 = vunpack.c.l.b16 %v3632
  %v3909 = vunpack.c.l.b16 %v3633
  %v3910 = vunpack.c.h.b16 %v3633
  %v3911 = vunpack.c.l.b16 %v3634
  %v3912 = vunpack.c.l.b16 %v3635
  %v3913 = vunpack.c.h.b16 %v3635
  %v3914 = vunpack.c.l.b16 %v3636
  %v3915 = vunpack.c.l.b16 %v3637
  %v3916 = vunpack.c.h.b16 %v3637
  %v3917 = vunpack.c.l.b16 %v3638
  %v3918 = vunpack.c.l.b16 %v3639
  %v3919 = vunpack.c.h.b16 %v3639
  %v3920 = vunpack.c.l.b16 %v3640
  %v3921 = vunpack.c.l.b16 %v3641
  %v3922 = vunpack.c.h.b16 %v3641
  %v3923 = vunpack.c.l.b16 %v3642
  %v3924 = vunpack.c.l.b16 %v3643
  %v3925 = vunpack.c.h.b16 %v3643
  %v3926 = vunpack.c.l.b16 %v3644
  %v3927 = vunpack.c.l.b16 %v3645
  %v3928 = vunpack.c.h.b16 %v3645
  %v3929 = vunpack.c.l.b16 %v3646
  %v3930 = vunpack.c.l.b16 %v3647
  %v3931 = vunpack.c.h.b16 %v3647
  %v3932 = vunpack.c.l.b16 %v3648
  %v3933 = vunpack.c.l.b16 %v3649
  %v3934 = vunpack.c.h.b16 %v3649
  %v3935 = vunpack.c.l.b16 %v3650
  %v3936 = vunpack.c.l.b16 %v3651
  %v3937 = vunpack.c.h.b16 %v3651
  %v3938 = vunpack.c.l.b16 %v3652
  %v3939 = vunpack.c.l.b16 %v3653
  %v3940 = vunpack.c.h.b16 %v3653
  %v3941 = vunpack.c.l.b16 %v3654
  %v3942 = vunpack.c.l.b16 %v3655
  %v3943 = vunpack.c.h.b16 %v3655
  %v3944 = vunpack.c.l.b16 %v3656
  %v3945 = vunpack.c.l.b16 %v3657
  %v3946 = vunpack.c.h.b16 %v3657
  %v3947 = vunpack.c.l.b16 %v3658
  %v3948 = vunpack.c.l.b16 %v3659
  %v3949 = vunpack.c.h.b16 %v3659
  %v3950 = vunpack.c.l.b16 %v3660
  %v3951 = vunpack.c.l.b16 %v3661
  %v3952 = vunpack.c.h.b16 %v3661
  %v3953 = vunpack.c.l.b16 %v3662
  %v3954 = vunpack.c.l.b16 %v3663
  %v3955 = vunpack.c.h.b16 %v3663
  %v3956 = vunpack.c.l.b16 %v3664
  %v3957 = vunpack.c.l.b16 %v3665
  %v3958 = vunpack.c.h.b16 %v3665
  %v3959 = vunpack.c.l.b16 %v3666
  %v3960 = vunpack.c.l.b16 %v3667
  %v3961 = vunpack.c.h.b16 %v3667
  %v3962 = vunpack.c.l.b16 %v3668
  %v3963 = vunpack.c.l.b16 %v3669
  %v3964 = vunpack.c.h.b16 %v3669
  %v3965 = vunpack.c.l.b16 %v3670
  %v3966 = vunpack.c.l.b16 %v3671
  %v3967 = vunpack.c.h.b16 %v3671
  %v3968 = vunpack.c.l.b16 %v3672
  %v3969 = vunpack.c.l.b16 %v3673
  %v3970 = vunpack.c.h.b16 %v3673
  %v3971 = vunpack.c.l.b16 %v3674
  %v3972 = vunpack.c.l.b16 %v3675
  %v3973 = vunpack.c.h.b16 %v3675
  %v3974 = vunpack.c.l.b16 %v3676
  %v3975 = vunpack.c.l.b16 %v3677
  %v3976 = vunpack.c.h.b16 %v3677
  %v3977 = vunpack.c.l.b16 %v3678
  %v3978 = vunpack.c.l.b16 %v3679
  %v3979 = vunpack.c.h.b16 %v3679
  %v3980 = vunpack.c.l.b16 %v3680
  %v3981 = vunpack.c.l.b16 %v3681
  %v3982 = vunpack.c.h.b16 %v3681
  %v3983 = vunpack.c.l.b16 %v3682
  %v3984 = vunpack.c.l.b16 %v3683
  %v3985 = vunpack.c.h.b16 %v3683
  %v3986 = vunpack.c.l.b16 %v3684
  %v3987 = vunpack.c.l.b16 %v3685
  %v3988 = vunpack.c.h.b16 %v3685
  %v3989 = vunpack.c.l.b16 %v3686
  %v3990 = vunpack.c.l.b16 %v3687
  %v3991 = vunpack.c.h.b16 %v3687
  %v3992 = vunpack.c.l.b16 %v3688
  %v3993 = vunpack.c.l.b16 %v3689
  %v3994 = vunpack.c.h.b16 %v3689
  %v3995 = vunpack.c.l.b16 %v3690
  %v3996 = vunpack.c.l.b16 %v3691
  %v3997 = vunpack.c.h.b16 %v3691
  %v3998 = vunpack.c.l.b16 %v3692
  %v3999 = vunpack.c.l.b16 %v3693
  %v4000 = vunpack.c.h.b16 %v3693
  %v4001 = vunpack.c.l.b16 %v3694
  %v4002 = vunpack.c.l.b16 %v3695
  %v4003 = vunpack.c.h.b16 %v3695
  %v4004 = vunpack.c.l.b16 %v3696
  %v4005 = vunpack.c.l.b16 %v3697
  %v4006 = vunpack.c.h.b16 %v3697
  %v4007 = vunpack.c.l.b16 %v3698
  %v4008 = vunpack.c.l.b16 %v3699
  %v4009 = vunpack.c.h.b16 %v3699
  %v4010 = vunpack.c.l.b16 %v3700
  %v4011 = vunpack.c.l.b16 %v3701
  %v4012 = vunpack.c.h.b16 %v3701
  %v4013 = vunpack.c.l.b16 %v3702
  %v4014 = vunpack.c.l.b16 %v3703
  %v4015 = vunpack.c.h.b16 %v3703
  %v4016 = vunpack.c.l.b16 %v3704
  %v4017 = vunpack.c.l.b16 %v3705
  %v4018 = vunpack.c.h.b16 %v3705
  %v4019 = vunpack.c.l.b16 %v3706
  %v4020 = vunpack.c.l.b16 %v3707
  %v4021 = vunpack.c.h.b16 %v3707
  %v4022 = vunpack.c.l.b16 %v3708
  %v4023 = vunpack.c.l.b16 %v3709
  %v4024 = vunpack.c.h.b16 %v3709
  %v4025 = vunpack.c.l.b16 %v3710
  %v4026 = vunpack.c.l.b16 %v3711
  %v4027 = vunpack.c.h.b16 %v3711
  %v4028 = vunpack.c.l.b16 %v3712
  %v4029 = vunpack.c.l.b16 %v3713
  %v4030 = vunpack.c.h.b16 %v3713
  %v4031 = vunpack.c.l.b16 %v3714
  %v4032 = vunpack.c.l.b16 %v3715
  %v4033 = vunpack.c.h.b16 %v3715
  %v4034 = vunpack.c.l.b16 %v3716
  %v4035 = vunpack.c.l.b16 %v3717
  %v4036 = vunpack.c.h.b16 %v3717
  %v4037 = vunpack.c.l.b16 %v3718
  %v4038 = vunpack.c.l.b16 %v3719
  %v4039 = vunpack.c.h.b16 %v3719
  %v4040 = vunpack.c.l.b16 %v3720
  %v4041 = vpack.c.b16 %v3852, %v3849
  %v4042 = vpack.c.b16 %v3853, %v3850
  %v4043 = vpack.c.b16 %v3854, %v3851
  %v4044 = vpack.c.b16 %v3858, %v3855
  %v4045 = vpack.c.b16 %v3859, %v3856
  %v4046 = vpack.c.b16 %v3860, %v3857
  %v4047 = vpack.c.b16 %v3864, %v3861
  %v4048 = vpack.c.b16 %v3865, %v3862
  %v4049 = vpack.c.b16 %v3866, %v3863
  %v4050 = vpack.c.b16 %v3870, %v3867
  %v4051 = vpack.c.b16 %v3871, %v3868
  %v4052 = vpack.c.b16 %v3872, %v3869
  %v4053 = vpack.c.b16 %v3876, %v3873
  %v4054 = vpack.c.b16 %v3877, %v3874
  %v4055 = vpack.c.b16 %v3878, %v3875
  %v4056 = vpack.c.b16 %v3882, %v3879
  %v4057 = vpack.c.b16 %v3883, %v3880
  %v4058 = vpack.c.b16 %v3884, %v3881
  %v4059 = vpack.c.b16 %v3888, %v3885
  %v4060 = vpack.c.b16 %v3889, %v3886
  %v4061 = vpack.c.b16 %v3890, %v3887
  %v4062 = vpack.c.b16 %v3894, %v3891
  %v4063 = vpack.c.b16 %v3895, %v3892
  %v4064 = vpack.c.b16 %v3896, %v3893
  %v4065 = vpack.c.b16 %v3900, %v3897
  %v4066 = vpack.c.b16 %v3901, %v3898
  %v4067 = vpack.c.b16 %v3902, %v3899
  %v4068 = vpack.c.b16 %v3906, %v3903
  %v4069 = vpack.c.b16 %v3907, %v3904
  %v4070 = vpack.c.b16 %v3908, %v3905
  %v4071 = vpack.c.b16 %v3912, %v3909
  %v4072 = vpack.c.b16 %v3913, %v3910
  %v4073 = vpack.c.b16 %v3914, %v3911
  %v4074 = vpack.c.b16 %v3918, %v3915
  %v4075 = vpack.c.b16 %v3919, %v3916
  %v4076 = vpack.c.b16 %v3920, %v3917
  %v4077 = vpack.c.b16 %v3924, %v3921
  %v4078 = vpack.c.b16 %v3925, %v3922
  %v4079 = vpack.c.b16 %v3926, %v3923
  %v4080 = vpack.c.b16 %v3930, %v3927
  %v4081 = vpack.c.b16 %v3931, %v3928
  %v4082 = vpack.c.b16 %v3932, %v3929
  %v4083 = vpack.c.b16 %v3936, %v3933
  %v4084 = vpack.c.b16 %v3937, %v3934
  %v4085 = vpack.c.b16 %v3938, %v3935
  %v4086 = vpack.c.b16 %v3942, %v3939
  %v4087 = vpack.c.b16 %v3943, %v3940
  %v4088 = vpack.c.b16 %v3944, %v3941
  %v4089 = vpack.c.b16 %v3948, %v3945
  %v4090 = vpack.c.b16 %v3949, %v3946
  %v4091 = vpack.c.b16 %v3950, %v3947
  %v4092 = vpack.c.b16 %v3954, %v3951
  %v4093 = vpack.c.b16 %v3955, %v3952
  %v4094 = vpack.c.b16 %v3956, %v3953
  %v4095 = vpack.c.b16 %v3960, %v3957
  %v4096 = vpack.c.b16 %v3961, %v3958
  %v4097 = vpack.c.b16 %v3962, %v3959
  %v4098 = vpack.c.b16 %v3966, %v3963
  %v4099 = vpack.c.b16 %v3967, %v3964
  %v4100 = vpack.c.b16 %v3968, %v3965
  %v4101 = vpack.c.b16 %v3972, %v3969
  %v4102 = vpack.c.b16 %v3973, %v3970
  %v4103 = vpack.c.b16 %v3974, %v3971
  %v4104 = vpack.c.b16 %v3978, %v3975
  %v4105 = vpack.c.b16 %v3979, %v3976
  %v4106 = vpack.c.b16 %v3980, %v3977
  %v4107 = vpack.c.b16 %v3984, %v3981
  %v4108 = vpack.c.b16 %v3985, %v3982
  %v4109 = vpack.c.b16 %v3986, %v3983
  %v4110 = vpack.c.b16 %v3990, %v3987
  %v4111 = vpack.c.b16 %v3991, %v3988
  %v4112 = vpack.c.b16 %v3992, %v3989
  %v4113 = vpack.c.b16 %v3996, %v3993
  %v4114 = vpack.c.b16 %v3997, %v3994
  %v4115 = vpack.c.b16 %v3998, %v3995
  %v4116 = vpack.c.b16 %v4002, %v3999
  %v4117 = vpack.c.b16 %v4003, %v4000
  %v4118 = vpack.c.b16 %v4004, %v4001
  %v4119 = vpack.c.b16 %v4008, %v4005
  %v4120 = vpack.c.b16 %v4009, %v4006
  %v4121 = vpack.c.b16 %v4010, %v4007
  %v4122 = vpack.c.b16 %v4014, %v4011
  %v4123 = vpack.c.b16 %v4015, %v4012
  %v4124 = vpack.c.b16 %v4016, %v4013
  %v4125 = vpack.c.b16 %v4020, %v4017
  %v4126 = vpack.c.b16 %v4021, %v4018
  %v4127 = vpack.c.b16 %v4022, %v4019
  %v4128 = vpack.c.b16 %v4026, %v4023
  %v4129 = vpack.c.b16 %v4027, %v4024
  %v4130 = vpack.c.b16 %v4028, %v4025
  %v4131 = vpack.c.b16 %v4032, %v4029
  %v4132 = vpack.c.b16 %v4033, %v4030
  %v4133 = vpack.c.b16 %v4034, %v4031
  %v4134 = vpack.c.b16 %v4038, %v4035
  %v4135 = vpack.c.b16 %v4039, %v4036
  %v4136 = vpack.c.b16 %v4040, %v4037
  %4233 = vmatprep.subr.bf16.mxu0 %v4063
  %4234 = vmatpush1.bf16.msra.mxu0 %v4062
  %4235 = vmatprep.subr.bf16.mxu0 %v4060
  %4236 = vmatpush1.bf16.msra.mxu0 %v4059
  %4237 = vmatprep.subr.bf16.mxu0 %v4057
  %4238 = vmatpush1.bf16.msra.mxu0 %v4056
  %4239 = vmatprep.subr.bf16.mxu0 %v4054
  %4240 = vmatpush1.bf16.msra.mxu0 %v4053
  %4241 = vmatprep.subr.bf16.mxu0 %v4051
  %4242 = vmatpush1.bf16.msra.mxu0 %v4050
  %4243 = vmatprep.subr.bf16.mxu0 %v4048
  %4244 = vmatpush1.bf16.msra.mxu0 %v4047
  %4245 = vmatprep.subr.bf16.mxu0 %v4045
  %4246 = vmatpush1.bf16.msra.mxu0 %v4044
  %4247 = vmatprep.subr.bf16.mxu0 %v4042
  %4248 = vmatpush1.bf16.msra.mxu0 %v4041
  %4249 = vmatprep.subr.bf16.mxu0 %v4087
  %4250 = vmatpush2.bf16.msra.mxu0 %v4086
  %4251 = vmatprep.subr.bf16.mxu0 %v4084
  %4252 = vmatpush2.bf16.msra.mxu0 %v4083
  %4253 = vmatprep.subr.bf16.mxu0 %v4081
  %4254 = vmatpush2.bf16.msra.mxu0 %v4080
  %4255 = vmatprep.subr.bf16.mxu0 %v4078
  %4256 = vmatpush2.bf16.msra.mxu0 %v4077
  %4257 = vmatprep.subr.bf16.mxu0 %v4075
  %4258 = vmatpush2.bf16.msra.mxu0 %v4074
  %4259 = vmatprep.subr.bf16.mxu0 %v4072
  %4260 = vmatpush2.bf16.msra.mxu0 %v4071
  %4261 = vmatprep.subr.bf16.mxu0 %v4069
  %4262 = vmatpush2.bf16.msra.mxu0 %v4068
  %4263 = vmatprep.subr.bf16.mxu0 %v4066
  %4264 = vmatpush2.bf16.msra.mxu0 %v4065
  %4265 = vmatprep.mubr.bf16.mxu0 %v3530
  %4266 = vmatmul.mubr.bf16.gmra.mxu0 %v3529
  %v4267 = vpop.f32.mrf.mxu0
  %v4268 = vadd.f32 0.0, %v4267
  %v4269 = vpop.f32.mrf.mxu0
  %v4270 = vadd.f32 0.0, %v4269
  %v4271 = vpop.f32.mrf.mxu0
  %v4272 = vadd.f32 0.0, %v4271
  %v4273 = vpop.f32.mrf.mxu0
  %v4274 = vadd.f32 0.0, %v4273
  %4275 = vmatprep.mubr.bf16.mxu0 %v3534
  %4276 = vmatmul.mubr.bf16.gmra.mxu0 %v3533
  %v4277 = vpop.f32.mrf.mxu0
  %v4278 = vadd.f32 0.0, %v4277
  %v4279 = vpop.f32.mrf.mxu0
  %v4280 = vadd.f32 0.0, %v4279
  %v4281 = vpop.f32.mrf.mxu0
  %v4282 = vadd.f32 0.0, %v4281
  %v4283 = vpop.f32.mrf.mxu0
  %v4284 = vadd.f32 0.0, %v4283
  %4285 = vmatprep.mubr.bf16.mxu0 %v3538
  %4286 = vmatmul.mubr.bf16.gmra.mxu0 %v3537
  %v4287 = vpop.f32.mrf.mxu0
  %v4288 = vadd.f32 0.0, %v4287
  %v4289 = vpop.f32.mrf.mxu0
  %v4290 = vadd.f32 0.0, %v4289
  %v4291 = vpop.f32.mrf.mxu0
  %v4292 = vadd.f32 0.0, %v4291
  %v4293 = vpop.f32.mrf.mxu0
  %v4294 = vadd.f32 0.0, %v4293
  %4295 = vmatprep.mubr.bf16.mxu0 %v3542
  %4296 = vmatmul.mubr.bf16.gmra.mxu0 %v3541
  %v4297 = vpop.f32.mrf.mxu0
  %v4298 = vadd.f32 0.0, %v4297
  %v4299 = vpop.f32.mrf.mxu0
  %v4300 = vadd.f32 0.0, %v4299
  %v4301 = vpop.f32.mrf.mxu0
  %v4302 = vadd.f32 0.0, %v4301
  %v4303 = vpop.f32.mrf.mxu0
  %v4304 = vadd.f32 0.0, %v4303
  %4305 = vmatprep.mubr.bf16.mxu0 %v3546
  %4306 = vmatmul.mubr.bf16.gmra.mxu0 %v3545
  %v4307 = vpop.f32.mrf.mxu0
  %v4308 = vadd.f32 0.0, %v4307
  %v4309 = vpop.f32.mrf.mxu0
  %v4310 = vadd.f32 0.0, %v4309
  %v4311 = vpop.f32.mrf.mxu0
  %v4312 = vadd.f32 0.0, %v4311
  %v4313 = vpop.f32.mrf.mxu0
  %v4314 = vadd.f32 0.0, %v4313
  %4315 = vmatprep.mubr.bf16.mxu0 %v3550
  %4316 = vmatmul.mubr.bf16.gmra.mxu0 %v3549
  %v4317 = vpop.f32.mrf.mxu0
  %v4318 = vadd.f32 0.0, %v4317
  %v4319 = vpop.f32.mrf.mxu0
  %v4320 = vadd.f32 0.0, %v4319
  %v4321 = vpop.f32.mrf.mxu0
  %v4322 = vadd.f32 0.0, %v4321
  %v4323 = vpop.f32.mrf.mxu0
  %v4324 = vadd.f32 0.0, %v4323
  %4325 = vmatprep.mubr.bf16.mxu0 %v3554
  %4326 = vmatmul.mubr.bf16.gmra.mxu0 %v3553
  %v4327 = vpop.f32.mrf.mxu0
  %v4328 = vadd.f32 0.0, %v4327
  %v4329 = vpop.f32.mrf.mxu0
  %v4330 = vadd.f32 0.0, %v4329
  %v4331 = vpop.f32.mrf.mxu0
  %v4332 = vadd.f32 0.0, %v4331
  %v4333 = vpop.f32.mrf.mxu0
  %v4334 = vadd.f32 0.0, %v4333
  %4335 = vmatprep.mubr.bf16.mxu0 %v3558
  %4336 = vmatmul.mubr.bf16.gmra.mxu0 %v3557
  %v4337 = vpop.f32.mrf.mxu0
  %v4338 = vadd.f32 0.0, %v4337
  %v4339 = vpop.f32.mrf.mxu0
  %v4340 = vadd.f32 0.0, %v4339
  %v4341 = vpop.f32.mrf.mxu0
  %v4342 = vadd.f32 0.0, %v4341
  %v4343 = vpop.f32.mrf.mxu0
  %v4344 = vadd.f32 0.0, %v4343
  %4345 = vmatprep.mubr.bf16.mxu0 %v3562
  %4346 = vmatmul.mubr.bf16.gmra.mxu0 %v3561
  %v4347 = vpop.f32.mrf.mxu0
  %v4348 = vadd.f32 0.0, %v4347
  %v4349 = vpop.f32.mrf.mxu0
  %v4350 = vadd.f32 0.0, %v4349
  %v4351 = vpop.f32.mrf.mxu0
  %v4352 = vadd.f32 0.0, %v4351
  %v4353 = vpop.f32.mrf.mxu0
  %v4354 = vadd.f32 0.0, %v4353
  %4355 = vmatprep.mubr.bf16.mxu0 %v3566
  %4356 = vmatmul.mubr.bf16.gmra.mxu0 %v3565
  %v4357 = vpop.f32.mrf.mxu0
  %v4358 = vadd.f32 0.0, %v4357
  %v4359 = vpop.f32.mrf.mxu0
  %v4360 = vadd.f32 0.0, %v4359
  %v4361 = vpop.f32.mrf.mxu0
  %v4362 = vadd.f32 0.0, %v4361
  %v4363 = vpop.f32.mrf.mxu0
  %v4364 = vadd.f32 0.0, %v4363
  %4365 = vmatprep.mubr.bf16.mxu0 %v3570
  %4366 = vmatmul.mubr.bf16.gmra.mxu0 %v3569
  %v4367 = vpop.f32.mrf.mxu0
  %v4368 = vadd.f32 0.0, %v4367
  %v4369 = vpop.f32.mrf.mxu0
  %v4370 = vadd.f32 0.0, %v4369
  %v4371 = vpop.f32.mrf.mxu0
  %v4372 = vadd.f32 0.0, %v4371
  %v4373 = vpop.f32.mrf.mxu0
  %v4374 = vadd.f32 0.0, %v4373
  %4375 = vmatprep.mubr.bf16.mxu0 %v3574
  %4376 = vmatmul.mubr.bf16.gmra.mxu0 %v3573
  %v4377 = vpop.f32.mrf.mxu0
  %v4378 = vadd.f32 0.0, %v4377
  %v4379 = vpop.f32.mrf.mxu0
  %v4380 = vadd.f32 0.0, %v4379
  %v4381 = vpop.f32.mrf.mxu0
  %v4382 = vadd.f32 0.0, %v4381
  %v4383 = vpop.f32.mrf.mxu0
  %v4384 = vadd.f32 0.0, %v4383
  %4385 = vmatprep.mubr.bf16.mxu0 %v3578
  %4386 = vmatmul.mubr.bf16.gmra.mxu0 %v3577
  %v4387 = vpop.f32.mrf.mxu0
  %v4388 = vadd.f32 0.0, %v4387
  %v4389 = vpop.f32.mrf.mxu0
  %v4390 = vadd.f32 0.0, %v4389
  %v4391 = vpop.f32.mrf.mxu0
  %v4392 = vadd.f32 0.0, %v4391
  %v4393 = vpop.f32.mrf.mxu0
  %v4394 = vadd.f32 0.0, %v4393
  %4395 = vmatprep.mubr.bf16.mxu0 %v3582
  %4396 = vmatmul.mubr.bf16.gmra.mxu0 %v3581
  %v4397 = vpop.f32.mrf.mxu0
  %v4398 = vadd.f32 0.0, %v4397
  %v4399 = vpop.f32.mrf.mxu0
  %v4400 = vadd.f32 0.0, %v4399
  %v4401 = vpop.f32.mrf.mxu0
  %v4402 = vadd.f32 0.0, %v4401
  %v4403 = vpop.f32.mrf.mxu0
  %v4404 = vadd.f32 0.0, %v4403
  %4405 = vmatprep.mubr.bf16.mxu0 %v3586
  %4406 = vmatmul.mubr.bf16.gmra.mxu0 %v3585
  %v4407 = vpop.f32.mrf.mxu0
  %v4408 = vadd.f32 0.0, %v4407
  %v4409 = vpop.f32.mrf.mxu0
  %v4410 = vadd.f32 0.0, %v4409
  %v4411 = vpop.f32.mrf.mxu0
  %v4412 = vadd.f32 0.0, %v4411
  %v4413 = vpop.f32.mrf.mxu0
  %v4414 = vadd.f32 0.0, %v4413
  %4415 = vmatprep.mubr.bf16.mxu0 %v3590
  %4416 = vmatmul.mubr.bf16.gmra.mxu0 %v3589
  %v4417 = vpop.f32.mrf.mxu0
  %v4418 = vadd.f32 0.0, %v4417
  %v4419 = vpop.f32.mrf.mxu0
  %v4420 = vadd.f32 0.0, %v4419
  %v4421 = vpop.f32.mrf.mxu0
  %v4422 = vadd.f32 0.0, %v4421
  %v4423 = vpop.f32.mrf.mxu0
  %v4424 = vadd.f32 0.0, %v4423
  %4425 = vdwg.mxu0
  %4426 = vmatprep.subr.bf16.mxu0 %v4111
  %4427 = vmatpush1.bf16.msra.mxu0 %v4110
  %4428 = vmatprep.subr.bf16.mxu0 %v4108
  %4429 = vmatpush1.bf16.msra.mxu0 %v4107
  %4430 = vmatprep.subr.bf16.mxu0 %v4105
  %4431 = vmatpush1.bf16.msra.mxu0 %v4104
  %4432 = vmatprep.subr.bf16.mxu0 %v4102
  %4433 = vmatpush1.bf16.msra.mxu0 %v4101
  %4434 = vmatprep.subr.bf16.mxu0 %v4099
  %4435 = vmatpush1.bf16.msra.mxu0 %v4098
  %4436 = vmatprep.subr.bf16.mxu0 %v4096
  %4437 = vmatpush1.bf16.msra.mxu0 %v4095
  %4438 = vmatprep.subr.bf16.mxu0 %v4093
  %4439 = vmatpush1.bf16.msra.mxu0 %v4092
  %4440 = vmatprep.subr.bf16.mxu0 %v4090
  %4441 = vmatpush1.bf16.msra.mxu0 %v4089
  %4442 = vmatprep.subr.bf16.mxu0 %v4135
  %4443 = vmatpush2.bf16.msra.mxu0 %v4134
  %4444 = vmatprep.subr.bf16.mxu0 %v4132
  %4445 = vmatpush2.bf16.msra.mxu0 %v4131
  %4446 = vmatprep.subr.bf16.mxu0 %v4129
  %4447 = vmatpush2.bf16.msra.mxu0 %v4128
  %4448 = vmatprep.subr.bf16.mxu0 %v4126
  %4449 = vmatpush2.bf16.msra.mxu0 %v4125
  %4450 = vmatprep.subr.bf16.mxu0 %v4123
  %4451 = vmatpush2.bf16.msra.mxu0 %v4122
  %4452 = vmatprep.subr.bf16.mxu0 %v4120
  %4453 = vmatpush2.bf16.msra.mxu0 %v4119
  %4454 = vmatprep.subr.bf16.mxu0 %v4117
  %4455 = vmatpush2.bf16.msra.mxu0 %v4116
  %4456 = vmatprep.subr.bf16.mxu0 %v4114
  %4457 = vmatpush2.bf16.msra.mxu0 %v4113
  %4458 = vmatprep.mubr.bf16.mxu0 %v3532
  %4459 = vmatmul.mubr.bf16.gmra.mxu0 %v3531
  %v4460 = vpop.f32.mrf.mxu0
  %v4461 = vadd.f32 %v4268, %v4460
  %v4462 = vpop.f32.mrf.mxu0
  %v4463 = vadd.f32 %v4270, %v4462
  %v4464 = vpop.f32.mrf.mxu0
  %v4465 = vadd.f32 %v4272, %v4464
  %v4466 = vpop.f32.mrf.mxu0
  %v4467 = vadd.f32 %v4274, %v4466
  %4468 = vmatprep.mubr.bf16.mxu0 %v3536
  %4469 = vmatmul.mubr.bf16.gmra.mxu0 %v3535
  %v4470 = vpop.f32.mrf.mxu0
  %v4471 = vadd.f32 %v4278, %v4470
  %v4472 = vpop.f32.mrf.mxu0
  %v4473 = vadd.f32 %v4280, %v4472
  %v4474 = vpop.f32.mrf.mxu0
  %v4475 = vadd.f32 %v4282, %v4474
  %v4476 = vpop.f32.mrf.mxu0
  %v4477 = vadd.f32 %v4284, %v4476
  %4478 = vmatprep.mubr.bf16.mxu0 %v3540
  %4479 = vmatmul.mubr.bf16.gmra.mxu0 %v3539
  %v4480 = vpop.f32.mrf.mxu0
  %v4481 = vadd.f32 %v4288, %v4480
  %v4482 = vpop.f32.mrf.mxu0
  %v4483 = vadd.f32 %v4290, %v4482
  %v4484 = vpop.f32.mrf.mxu0
  %v4485 = vadd.f32 %v4292, %v4484
  %v4486 = vpop.f32.mrf.mxu0
  %v4487 = vadd.f32 %v4294, %v4486
  %4488 = vmatprep.mubr.bf16.mxu0 %v3544
  %4489 = vmatmul.mubr.bf16.gmra.mxu0 %v3543
  %v4490 = vpop.f32.mrf.mxu0
  %v4491 = vadd.f32 %v4298, %v4490
  %v4492 = vpop.f32.mrf.mxu0
  %v4493 = vadd.f32 %v4300, %v4492
  %v4494 = vpop.f32.mrf.mxu0
  %v4495 = vadd.f32 %v4302, %v4494
  %v4496 = vpop.f32.mrf.mxu0
  %v4497 = vadd.f32 %v4304, %v4496
  %4498 = vmatprep.mubr.bf16.mxu0 %v3548
  %4499 = vmatmul.mubr.bf16.gmra.mxu0 %v3547
  %v4500 = vpop.f32.mrf.mxu0
  %v4501 = vadd.f32 %v4308, %v4500
  %v4502 = vpop.f32.mrf.mxu0
  %v4503 = vadd.f32 %v4310, %v4502
  %v4504 = vpop.f32.mrf.mxu0
  %v4505 = vadd.f32 %v4312, %v4504
  %v4506 = vpop.f32.mrf.mxu0
  %v4507 = vadd.f32 %v4314, %v4506
  %4508 = vmatprep.mubr.bf16.mxu0 %v3552
  %4509 = vmatmul.mubr.bf16.gmra.mxu0 %v3551
  %v4510 = vpop.f32.mrf.mxu0
  %v4511 = vadd.f32 %v4318, %v4510
  %v4512 = vpop.f32.mrf.mxu0
  %v4513 = vadd.f32 %v4320, %v4512
  %v4514 = vpop.f32.mrf.mxu0
  %v4515 = vadd.f32 %v4322, %v4514
  %v4516 = vpop.f32.mrf.mxu0
  %v4517 = vadd.f32 %v4324, %v4516
  %4518 = vmatprep.mubr.bf16.mxu0 %v3556
  %4519 = vmatmul.mubr.bf16.gmra.mxu0 %v3555
  %v4520 = vpop.f32.mrf.mxu0
  %v4521 = vadd.f32 %v4328, %v4520
  %v4522 = vpop.f32.mrf.mxu0
  %v4523 = vadd.f32 %v4330, %v4522
  %v4524 = vpop.f32.mrf.mxu0
  %v4525 = vadd.f32 %v4332, %v4524
  %v4526 = vpop.f32.mrf.mxu0
  %v4527 = vadd.f32 %v4334, %v4526
  %4528 = vmatprep.mubr.bf16.mxu0 %v3560
  %4529 = vmatmul.mubr.bf16.gmra.mxu0 %v3559
  %v4530 = vpop.f32.mrf.mxu0
  %v4531 = vadd.f32 %v4338, %v4530
  %v4532 = vpop.f32.mrf.mxu0
  %v4533 = vadd.f32 %v4340, %v4532
  %v4534 = vpop.f32.mrf.mxu0
  %v4535 = vadd.f32 %v4342, %v4534
  %v4536 = vpop.f32.mrf.mxu0
  %v4537 = vadd.f32 %v4344, %v4536
  %4538 = vmatprep.mubr.bf16.mxu0 %v3564
  %4539 = vmatmul.mubr.bf16.gmra.mxu0 %v3563
  %v4540 = vpop.f32.mrf.mxu0
  %v4541 = vadd.f32 %v4348, %v4540
  %v4542 = vpop.f32.mrf.mxu0
  %v4543 = vadd.f32 %v4350, %v4542
  %v4544 = vpop.f32.mrf.mxu0
  %v4545 = vadd.f32 %v4352, %v4544
  %v4546 = vpop.f32.mrf.mxu0
  %v4547 = vadd.f32 %v4354, %v4546
  %4548 = vmatprep.mubr.bf16.mxu0 %v3568
  %4549 = vmatmul.mubr.bf16.gmra.mxu0 %v3567
  %v4550 = vpop.f32.mrf.mxu0
  %v4551 = vadd.f32 %v4358, %v4550
  %v4552 = vpop.f32.mrf.mxu0
  %v4553 = vadd.f32 %v4360, %v4552
  %v4554 = vpop.f32.mrf.mxu0
  %v4555 = vadd.f32 %v4362, %v4554
  %v4556 = vpop.f32.mrf.mxu0
  %v4557 = vadd.f32 %v4364, %v4556
  %4558 = vmatprep.mubr.bf16.mxu0 %v3572
  %4559 = vmatmul.mubr.bf16.gmra.mxu0 %v3571
  %v4560 = vpop.f32.mrf.mxu0
  %v4561 = vadd.f32 %v4368, %v4560
  %v4562 = vpop.f32.mrf.mxu0
  %v4563 = vadd.f32 %v4370, %v4562
  %v4564 = vpop.f32.mrf.mxu0
  %v4565 = vadd.f32 %v4372, %v4564
  %v4566 = vpop.f32.mrf.mxu0
  %v4567 = vadd.f32 %v4374, %v4566
  %4568 = vmatprep.mubr.bf16.mxu0 %v3576
  %4569 = vmatmul.mubr.bf16.gmra.mxu0 %v3575
  %v4570 = vpop.f32.mrf.mxu0
  %v4571 = vadd.f32 %v4378, %v4570
  %v4572 = vpop.f32.mrf.mxu0
  %v4573 = vadd.f32 %v4380, %v4572
  %v4574 = vpop.f32.mrf.mxu0
  %v4575 = vadd.f32 %v4382, %v4574
  %v4576 = vpop.f32.mrf.mxu0
  %v4577 = vadd.f32 %v4384, %v4576
  %4578 = vmatprep.mubr.bf16.mxu0 %v3580
  %4579 = vmatmul.mubr.bf16.gmra.mxu0 %v3579
  %v4580 = vpop.f32.mrf.mxu0
  %v4581 = vadd.f32 %v4388, %v4580
  %v4582 = vpop.f32.mrf.mxu0
  %v4583 = vadd.f32 %v4390, %v4582
  %v4584 = vpop.f32.mrf.mxu0
  %v4585 = vadd.f32 %v4392, %v4584
  %v4586 = vpop.f32.mrf.mxu0
  %v4587 = vadd.f32 %v4394, %v4586
  %4588 = vmatprep.mubr.bf16.mxu0 %v3584
  %4589 = vmatmul.mubr.bf16.gmra.mxu0 %v3583
  %v4590 = vpop.f32.mrf.mxu0
  %v4591 = vadd.f32 %v4398, %v4590
  %v4592 = vpop.f32.mrf.mxu0
  %v4593 = vadd.f32 %v4400, %v4592
  %v4594 = vpop.f32.mrf.mxu0
  %v4595 = vadd.f32 %v4402, %v4594
  %v4596 = vpop.f32.mrf.mxu0
  %v4597 = vadd.f32 %v4404, %v4596
  %4598 = vmatprep.mubr.bf16.mxu0 %v3588
  %4599 = vmatmul.mubr.bf16.gmra.mxu0 %v3587
  %v4600 = vpop.f32.mrf.mxu0
  %v4601 = vadd.f32 %v4408, %v4600
  %v4602 = vpop.f32.mrf.mxu0
  %v4603 = vadd.f32 %v4410, %v4602
  %v4604 = vpop.f32.mrf.mxu0
  %v4605 = vadd.f32 %v4412, %v4604
  %v4606 = vpop.f32.mrf.mxu0
  %v4607 = vadd.f32 %v4414, %v4606
  %4608 = vmatprep.mubr.bf16.mxu0 %v3592
  %4609 = vmatmul.mubr.bf16.gmra.mxu0 %v3591
  %v4610 = vpop.f32.mrf.mxu0
  %v4611 = vadd.f32 %v4418, %v4610
  %v4612 = vpop.f32.mrf.mxu0
  %v4613 = vadd.f32 %v4420, %v4612
  %v4614 = vpop.f32.mrf.mxu0
  %v4615 = vadd.f32 %v4422, %v4614
  %v4616 = vpop.f32.mrf.mxu0
  %v4617 = vadd.f32 %v4424, %v4616
  %4618 = vdwg.mxu0
  %4619 = vmatprep.subr.bf16.mxu0 0
  %4620 = vmatpush1.bf16.msra.mxu0 %v4064
  %4621 = vmatprep.subr.bf16.mxu0 0
  %4622 = vmatpush1.bf16.msra.mxu0 %v4061
  %4623 = vmatprep.subr.bf16.mxu0 0
  %4624 = vmatpush1.bf16.msra.mxu0 %v4058
  %4625 = vmatprep.subr.bf16.mxu0 0
  %4626 = vmatpush1.bf16.msra.mxu0 %v4055
  %4627 = vmatprep.subr.bf16.mxu0 0
  %4628 = vmatpush1.bf16.msra.mxu0 %v4052
  %4629 = vmatprep.subr.bf16.mxu0 0
  %4630 = vmatpush1.bf16.msra.mxu0 %v4049
  %4631 = vmatprep.subr.bf16.mxu0 0
  %4632 = vmatpush1.bf16.msra.mxu0 %v4046
  %4633 = vmatprep.subr.bf16.mxu0 0
  %4634 = vmatpush1.bf16.msra.mxu0 %v4043
  %4635 = vmatprep.subr.bf16.mxu0 0
  %4636 = vmatpush2.bf16.msra.mxu0 %v4088
  %4637 = vmatprep.subr.bf16.mxu0 0
  %4638 = vmatpush2.bf16.msra.mxu0 %v4085
  %4639 = vmatprep.subr.bf16.mxu0 0
  %4640 = vmatpush2.bf16.msra.mxu0 %v4082
  %4641 = vmatprep.subr.bf16.mxu0 0
  %4642 = vmatpush2.bf16.msra.mxu0 %v4079
  %4643 = vmatprep.subr.bf16.mxu0 0
  %4644 = vmatpush2.bf16.msra.mxu0 %v4076
  %4645 = vmatprep.subr.bf16.mxu0 0
  %4646 = vmatpush2.bf16.msra.mxu0 %v4073
  %4647 = vmatprep.subr.bf16.mxu0 0
  %4648 = vmatpush2.bf16.msra.mxu0 %v4070
  %4649 = vmatprep.subr.bf16.mxu0 0
  %4650 = vmatpush2.bf16.msra.mxu0 %v4067
  %4651 = vmatprep.mubr.bf16.mxu0 %v3530
  %4652 = vmatmul.mubr.bf16.gmra.mxu0 %v3529
  %v4653 = vpop.f32.mrf.mxu0
  %v4654 = vadd.f32 0.0, %v4653
  %v4655 = vpop.f32.mrf.mxu0
  %v4656 = vpop.f32.mrf.mxu0
  %v4657 = vadd.f32 0.0, %v4656
  %v4658 = vpop.f32.mrf.mxu0
  %4659 = vmatprep.mubr.bf16.mxu0 %v3534
  %4660 = vmatmul.mubr.bf16.gmra.mxu0 %v3533
  %v4661 = vpop.f32.mrf.mxu0
  %v4662 = vadd.f32 0.0, %v4661
  %v4663 = vpop.f32.mrf.mxu0
  %v4664 = vpop.f32.mrf.mxu0
  %v4665 = vadd.f32 0.0, %v4664
  %v4666 = vpop.f32.mrf.mxu0
  %4667 = vmatprep.mubr.bf16.mxu0 %v3538
  %4668 = vmatmul.mubr.bf16.gmra.mxu0 %v3537
  %v4669 = vpop.f32.mrf.mxu0
  %v4670 = vadd.f32 0.0, %v4669
  %v4671 = vpop.f32.mrf.mxu0
  %v4672 = vpop.f32.mrf.mxu0
  %v4673 = vadd.f32 0.0, %v4672
  %v4674 = vpop.f32.mrf.mxu0
  %4675 = vmatprep.mubr.bf16.mxu0 %v3542
  %4676 = vmatmul.mubr.bf16.gmra.mxu0 %v3541
  %v4677 = vpop.f32.mrf.mxu0
  %v4678 = vadd.f32 0.0, %v4677
  %v4679 = vpop.f32.mrf.mxu0
  %v4680 = vpop.f32.mrf.mxu0
  %v4681 = vadd.f32 0.0, %v4680
  %v4682 = vpop.f32.mrf.mxu0
  %4683 = vmatprep.mubr.bf16.mxu0 %v3546
  %4684 = vmatmul.mubr.bf16.gmra.mxu0 %v3545
  %v4685 = vpop.f32.mrf.mxu0
  %v4686 = vadd.f32 0.0, %v4685
  %v4687 = vpop.f32.mrf.mxu0
  %v4688 = vpop.f32.mrf.mxu0
  %v4689 = vadd.f32 0.0, %v4688
  %v4690 = vpop.f32.mrf.mxu0
  %4691 = vmatprep.mubr.bf16.mxu0 %v3550
  %4692 = vmatmul.mubr.bf16.gmra.mxu0 %v3549
  %v4693 = vpop.f32.mrf.mxu0
  %v4694 = vadd.f32 0.0, %v4693
  %v4695 = vpop.f32.mrf.mxu0
  %v4696 = vpop.f32.mrf.mxu0
  %v4697 = vadd.f32 0.0, %v4696
  %v4698 = vpop.f32.mrf.mxu0
  %4699 = vmatprep.mubr.bf16.mxu0 %v3554
  %4700 = vmatmul.mubr.bf16.gmra.mxu0 %v3553
  %v4701 = vpop.f32.mrf.mxu0
  %v4702 = vadd.f32 0.0, %v4701
  %v4703 = vpop.f32.mrf.mxu0
  %v4704 = vpop.f32.mrf.mxu0
  %v4705 = vadd.f32 0.0, %v4704
  %v4706 = vpop.f32.mrf.mxu0
  %4707 = vmatprep.mubr.bf16.mxu0 %v3558
  %4708 = vmatmul.mubr.bf16.gmra.mxu0 %v3557
  %v4709 = vpop.f32.mrf.mxu0
  %v4710 = vadd.f32 0.0, %v4709
  %v4711 = vpop.f32.mrf.mxu0
  %v4712 = vpop.f32.mrf.mxu0
  %v4713 = vadd.f32 0.0, %v4712
  %v4714 = vpop.f32.mrf.mxu0
  %4715 = vmatprep.mubr.bf16.mxu0 %v3562
  %4716 = vmatmul.mubr.bf16.gmra.mxu0 %v3561
  %v4717 = vpop.f32.mrf.mxu0
  %v4718 = vadd.f32 0.0, %v4717
  %v4719 = vpop.f32.mrf.mxu0
  %v4720 = vpop.f32.mrf.mxu0
  %v4721 = vadd.f32 0.0, %v4720
  %v4722 = vpop.f32.mrf.mxu0
  %4723 = vmatprep.mubr.bf16.mxu0 %v3566
  %4724 = vmatmul.mubr.bf16.gmra.mxu0 %v3565
  %v4725 = vpop.f32.mrf.mxu0
  %v4726 = vadd.f32 0.0, %v4725
  %v4727 = vpop.f32.mrf.mxu0
  %v4728 = vpop.f32.mrf.mxu0
  %v4729 = vadd.f32 0.0, %v4728
  %v4730 = vpop.f32.mrf.mxu0
  %4731 = vmatprep.mubr.bf16.mxu0 %v3570
  %4732 = vmatmul.mubr.bf16.gmra.mxu0 %v3569
  %v4733 = vpop.f32.mrf.mxu0
  %v4734 = vadd.f32 0.0, %v4733
  %v4735 = vpop.f32.mrf.mxu0
  %v4736 = vpop.f32.mrf.mxu0
  %v4737 = vadd.f32 0.0, %v4736
  %v4738 = vpop.f32.mrf.mxu0
  %4739 = vmatprep.mubr.bf16.mxu0 %v3574
  %4740 = vmatmul.mubr.bf16.gmra.mxu0 %v3573
  %v4741 = vpop.f32.mrf.mxu0
  %v4742 = vadd.f32 0.0, %v4741
  %v4743 = vpop.f32.mrf.mxu0
  %v4744 = vpop.f32.mrf.mxu0
  %v4745 = vadd.f32 0.0, %v4744
  %v4746 = vpop.f32.mrf.mxu0
  %4747 = vmatprep.mubr.bf16.mxu0 %v3578
  %4748 = vmatmul.mubr.bf16.gmra.mxu0 %v3577
  %v4749 = vpop.f32.mrf.mxu0
  %v4750 = vadd.f32 0.0, %v4749
  %v4751 = vpop.f32.mrf.mxu0
  %v4752 = vpop.f32.mrf.mxu0
  %v4753 = vadd.f32 0.0, %v4752
  %v4754 = vpop.f32.mrf.mxu0
  %4755 = vmatprep.mubr.bf16.mxu0 %v3582
  %4756 = vmatmul.mubr.bf16.gmra.mxu0 %v3581
  %v4757 = vpop.f32.mrf.mxu0
  %v4758 = vadd.f32 0.0, %v4757
  %v4759 = vpop.f32.mrf.mxu0
  %v4760 = vpop.f32.mrf.mxu0
  %v4761 = vadd.f32 0.0, %v4760
  %v4762 = vpop.f32.mrf.mxu0
  %4763 = vmatprep.mubr.bf16.mxu0 %v3586
  %4764 = vmatmul.mubr.bf16.gmra.mxu0 %v3585
  %v4765 = vpop.f32.mrf.mxu0
  %v4766 = vadd.f32 0.0, %v4765
  %v4767 = vpop.f32.mrf.mxu0
  %v4768 = vpop.f32.mrf.mxu0
  %v4769 = vadd.f32 0.0, %v4768
  %v4770 = vpop.f32.mrf.mxu0
  %4771 = vmatprep.mubr.bf16.mxu0 %v3590
  %4772 = vmatmul.mubr.bf16.gmra.mxu0 %v3589
  %v4773 = vpop.f32.mrf.mxu0
  %v4774 = vadd.f32 0.0, %v4773
  %v4775 = vpop.f32.mrf.mxu0
  %v4776 = vpop.f32.mrf.mxu0
  %v4777 = vadd.f32 0.0, %v4776
  %v4778 = vpop.f32.mrf.mxu0
  %4779 = vdwg.mxu0
  %4780 = vmatprep.subr.bf16.mxu0 0
  %4781 = vmatpush1.bf16.msra.mxu0 %v4112
  %4782 = vmatprep.subr.bf16.mxu0 0
  %4783 = vmatpush1.bf16.msra.mxu0 %v4109
  %4784 = vmatprep.subr.bf16.mxu0 0
  %4785 = vmatpush1.bf16.msra.mxu0 %v4106
  %4786 = vmatprep.subr.bf16.mxu0 0
  %4787 = vmatpush1.bf16.msra.mxu0 %v4103
  %4788 = vmatprep.subr.bf16.mxu0 0
  %4789 = vmatpush1.bf16.msra.mxu0 %v4100
  %4790 = vmatprep.subr.bf16.mxu0 0
  %4791 = vmatpush1.bf16.msra.mxu0 %v4097
  %4792 = vmatprep.subr.bf16.mxu0 0
  %4793 = vmatpush1.bf16.msra.mxu0 %v4094
  %4794 = vmatprep.subr.bf16.mxu0 0
  %4795 = vmatpush1.bf16.msra.mxu0 %v4091
  %4796 = vmatprep.subr.bf16.mxu0 0
  %4797 = vmatpush2.bf16.msra.mxu0 %v4136
  %4798 = vmatprep.subr.bf16.mxu0 0
  %4799 = vmatpush2.bf16.msra.mxu0 %v4133
  %4800 = vmatprep.subr.bf16.mxu0 0
  %4801 = vmatpush2.bf16.msra.mxu0 %v4130
  %4802 = vmatprep.subr.bf16.mxu0 0
  %4803 = vmatpush2.bf16.msra.mxu0 %v4127
  %4804 = vmatprep.subr.bf16.mxu0 0
  %4805 = vmatpush2.bf16.msra.mxu0 %v4124
  %4806 = vmatprep.subr.bf16.mxu0 0
  %4807 = vmatpush2.bf16.msra.mxu0 %v4121
  %4808 = vmatprep.subr.bf16.mxu0 0
  %4809 = vmatpush2.bf16.msra.mxu0 %v4118
  %4810 = vmatprep.subr.bf16.mxu0 0
  %4811 = vmatpush2.bf16.msra.mxu0 %v4115
  %4812 = vmatprep.mubr.bf16.mxu0 %v3532
  %4813 = vmatmul.mubr.bf16.gmra.mxu0 %v3531
  %v4814 = vpop.f32.mrf.mxu0
  %v4815 = vadd.f32 %v4654, %v4814
  %v4816 = vpop.f32.mrf.mxu0
  %v4817 = vpop.f32.mrf.mxu0
  %v4818 = vadd.f32 %v4657, %v4817
  %v4819 = vpop.f32.mrf.mxu0
  %4820 = vmatprep.mubr.bf16.mxu0 %v3536
  %4821 = vmatmul.mubr.bf16.gmra.mxu0 %v3535
  %v4822 = vpop.f32.mrf.mxu0
  %v4823 = vadd.f32 %v4662, %v4822
  %v4824 = vpop.f32.mrf.mxu0
  %v4825 = vpop.f32.mrf.mxu0
  %v4826 = vadd.f32 %v4665, %v4825
  %v4827 = vpop.f32.mrf.mxu0
  %4828 = vmatprep.mubr.bf16.mxu0 %v3540
  %4829 = vmatmul.mubr.bf16.gmra.mxu0 %v3539
  %v4830 = vpop.f32.mrf.mxu0
  %v4831 = vadd.f32 %v4670, %v4830
  %v4832 = vpop.f32.mrf.mxu0
  %v4833 = vpop.f32.mrf.mxu0
  %v4834 = vadd.f32 %v4673, %v4833
  %v4835 = vpop.f32.mrf.mxu0
  %4836 = vmatprep.mubr.bf16.mxu0 %v3544
  %4837 = vmatmul.mubr.bf16.gmra.mxu0 %v3543
  %v4838 = vpop.f32.mrf.mxu0
  %v4839 = vadd.f32 %v4678, %v4838
  %v4840 = vpop.f32.mrf.mxu0
  %v4841 = vpop.f32.mrf.mxu0
  %v4842 = vadd.f32 %v4681, %v4841
  %v4843 = vpop.f32.mrf.mxu0
  %4844 = vmatprep.mubr.bf16.mxu0 %v3548
  %4845 = vmatmul.mubr.bf16.gmra.mxu0 %v3547
  %v4846 = vpop.f32.mrf.mxu0
  %v4847 = vadd.f32 %v4686, %v4846
  %v4848 = vpop.f32.mrf.mxu0
  %v4849 = vpop.f32.mrf.mxu0
  %v4850 = vadd.f32 %v4689, %v4849
  %v4851 = vpop.f32.mrf.mxu0
  %4852 = vmatprep.mubr.bf16.mxu0 %v3552
  %4853 = vmatmul.mubr.bf16.gmra.mxu0 %v3551
  %v4854 = vpop.f32.mrf.mxu0
  %v4855 = vadd.f32 %v4694, %v4854
  %v4856 = vpop.f32.mrf.mxu0
  %v4857 = vpop.f32.mrf.mxu0
  %v4858 = vadd.f32 %v4697, %v4857
  %v4859 = vpop.f32.mrf.mxu0
  %4860 = vmatprep.mubr.bf16.mxu0 %v3556
  %4861 = vmatmul.mubr.bf16.gmra.mxu0 %v3555
  %v4862 = vpop.f32.mrf.mxu0
  %v4863 = vadd.f32 %v4702, %v4862
  %v4864 = vpop.f32.mrf.mxu0
  %v4865 = vpop.f32.mrf.mxu0
  %v4866 = vadd.f32 %v4705, %v4865
  %v4867 = vpop.f32.mrf.mxu0
  %4868 = vmatprep.mubr.bf16.mxu0 %v3560
  %4869 = vmatmul.mubr.bf16.gmra.mxu0 %v3559
  %v4870 = vpop.f32.mrf.mxu0
  %v4871 = vadd.f32 %v4710, %v4870
  %v4872 = vpop.f32.mrf.mxu0
  %v4873 = vpop.f32.mrf.mxu0
  %v4874 = vadd.f32 %v4713, %v4873
  %v4875 = vpop.f32.mrf.mxu0
  %4876 = vmatprep.mubr.bf16.mxu0 %v3564
  %4877 = vmatmul.mubr.bf16.gmra.mxu0 %v3563
  %v4878 = vpop.f32.mrf.mxu0
  %v4879 = vadd.f32 %v4718, %v4878
  %v4880 = vpop.f32.mrf.mxu0
  %v4881 = vpop.f32.mrf.mxu0
  %v4882 = vadd.f32 %v4721, %v4881
  %v4883 = vpop.f32.mrf.mxu0
  %4884 = vmatprep.mubr.bf16.mxu0 %v3568
  %4885 = vmatmul.mubr.bf16.gmra.mxu0 %v3567
  %v4886 = vpop.f32.mrf.mxu0
  %v4887 = vadd.f32 %v4726, %v4886
  %v4888 = vpop.f32.mrf.mxu0
  %v4889 = vpop.f32.mrf.mxu0
  %v4890 = vadd.f32 %v4729, %v4889
  %v4891 = vpop.f32.mrf.mxu0
  %4892 = vmatprep.mubr.bf16.mxu0 %v3572
  %4893 = vmatmul.mubr.bf16.gmra.mxu0 %v3571
  %v4894 = vpop.f32.mrf.mxu0
  %v4895 = vadd.f32 %v4734, %v4894
  %v4896 = vpop.f32.mrf.mxu0
  %v4897 = vpop.f32.mrf.mxu0
  %v4898 = vadd.f32 %v4737, %v4897
  %v4899 = vpop.f32.mrf.mxu0
  %4900 = vmatprep.mubr.bf16.mxu0 %v3576
  %4901 = vmatmul.mubr.bf16.gmra.mxu0 %v3575
  %v4902 = vpop.f32.mrf.mxu0
  %v4903 = vadd.f32 %v4742, %v4902
  %v4904 = vpop.f32.mrf.mxu0
  %v4905 = vpop.f32.mrf.mxu0
  %v4906 = vadd.f32 %v4745, %v4905
  %v4907 = vpop.f32.mrf.mxu0
  %4908 = vmatprep.mubr.bf16.mxu0 %v3580
  %4909 = vmatmul.mubr.bf16.gmra.mxu0 %v3579
  %v4910 = vpop.f32.mrf.mxu0
  %v4911 = vadd.f32 %v4750, %v4910
  %v4912 = vpop.f32.mrf.mxu0
  %v4913 = vpop.f32.mrf.mxu0
  %v4914 = vadd.f32 %v4753, %v4913
  %v4915 = vpop.f32.mrf.mxu0
  %4916 = vmatprep.mubr.bf16.mxu0 %v3584
  %4917 = vmatmul.mubr.bf16.gmra.mxu0 %v3583
  %v4918 = vpop.f32.mrf.mxu0
  %v4919 = vadd.f32 %v4758, %v4918
  %v4920 = vpop.f32.mrf.mxu0
  %v4921 = vpop.f32.mrf.mxu0
  %v4922 = vadd.f32 %v4761, %v4921
  %v4923 = vpop.f32.mrf.mxu0
  %4924 = vmatprep.mubr.bf16.mxu0 %v3588
  %4925 = vmatmul.mubr.bf16.gmra.mxu0 %v3587
  %v4926 = vpop.f32.mrf.mxu0
  %v4927 = vadd.f32 %v4766, %v4926
  %v4928 = vpop.f32.mrf.mxu0
  %v4929 = vpop.f32.mrf.mxu0
  %v4930 = vadd.f32 %v4769, %v4929
  %v4931 = vpop.f32.mrf.mxu0
  %4932 = vmatprep.mubr.bf16.mxu0 %v3592
  %4933 = vmatmul.mubr.bf16.gmra.mxu0 %v3591
  %v4934 = vpop.f32.mrf.mxu0
  %v4935 = vadd.f32 %v4774, %v4934
  %v4936 = vpop.f32.mrf.mxu0
  %v4937 = vpop.f32.mrf.mxu0
  %v4938 = vadd.f32 %v4777, %v4937
  %v4939 = vpop.f32.mrf.mxu0
  %4940 = vdwg.mxu0
  %v5069 = vunpack.c.l.b16 %v1903
  %v5070 = vunpack.c.h.b16 %v1903
  %v5071 = vunpack.c.l.b16 %v1904
  %v5072 = vunpack.c.l.b16 %v1905
  %v5073 = vunpack.c.h.b16 %v1905
  %v5074 = vunpack.c.l.b16 %v1906
  %v5075 = vunpack.c.l.b16 %v1907
  %v5076 = vunpack.c.h.b16 %v1907
  %v5077 = vunpack.c.l.b16 %v1908
  %v5078 = vunpack.c.l.b16 %v1909
  %v5079 = vunpack.c.h.b16 %v1909
  %v5080 = vunpack.c.l.b16 %v1910
  %v5081 = vunpack.c.l.b16 %v1911
  %v5082 = vunpack.c.h.b16 %v1911
  %v5083 = vunpack.c.l.b16 %v1912
  %v5084 = vunpack.c.l.b16 %v1913
  %v5085 = vunpack.c.h.b16 %v1913
  %v5086 = vunpack.c.l.b16 %v1914
  %v5087 = vunpack.c.l.b16 %v1915
  %v5088 = vunpack.c.h.b16 %v1915
  %v5089 = vunpack.c.l.b16 %v1916
  %v5090 = vunpack.c.l.b16 %v1917
  %v5091 = vunpack.c.h.b16 %v1917
  %v5092 = vunpack.c.l.b16 %v1918
  %v5093 = vunpack.c.l.b16 %v1919
  %v5094 = vunpack.c.h.b16 %v1919
  %v5095 = vunpack.c.l.b16 %v1920
  %v5096 = vunpack.c.l.b16 %v1921
  %v5097 = vunpack.c.h.b16 %v1921
  %v5098 = vunpack.c.l.b16 %v1922
  %v5099 = vunpack.c.l.b16 %v1923
  %v5100 = vunpack.c.h.b16 %v1923
  %v5101 = vunpack.c.l.b16 %v1924
  %v5102 = vunpack.c.l.b16 %v1925
  %v5103 = vunpack.c.h.b16 %v1925
  %v5104 = vunpack.c.l.b16 %v1926
  %v5105 = vunpack.c.l.b16 %v1927
  %v5106 = vunpack.c.h.b16 %v1927
  %v5107 = vunpack.c.l.b16 %v1928
  %v5108 = vunpack.c.l.b16 %v1929
  %v5109 = vunpack.c.h.b16 %v1929
  %v5110 = vunpack.c.l.b16 %v1930
  %v5111 = vunpack.c.l.b16 %v1931
  %v5112 = vunpack.c.h.b16 %v1931
  %v5113 = vunpack.c.l.b16 %v1932
  %v5114 = vunpack.c.l.b16 %v1933
  %v5115 = vunpack.c.h.b16 %v1933
  %v5116 = vunpack.c.l.b16 %v1934
  %v5117 = vunpack.c.l.b16 %v1935
  %v5118 = vunpack.c.h.b16 %v1935
  %v5119 = vunpack.c.l.b16 %v1936
  %v5120 = vunpack.c.l.b16 %v1937
  %v5121 = vunpack.c.h.b16 %v1937
  %v5122 = vunpack.c.l.b16 %v1938
  %v5123 = vunpack.c.l.b16 %v1939
  %v5124 = vunpack.c.h.b16 %v1939
  %v5125 = vunpack.c.l.b16 %v1940
  %v5126 = vunpack.c.l.b16 %v1941
  %v5127 = vunpack.c.h.b16 %v1941
  %v5128 = vunpack.c.l.b16 %v1942
  %v5129 = vunpack.c.l.b16 %v1943
  %v5130 = vunpack.c.h.b16 %v1943
  %v5131 = vunpack.c.l.b16 %v1944
  %v5132 = vunpack.c.l.b16 %v1945
  %v5133 = vunpack.c.h.b16 %v1945
  %v5134 = vunpack.c.l.b16 %v1946
  %v5135 = vunpack.c.l.b16 %v1947
  %v5136 = vunpack.c.h.b16 %v1947
  %v5137 = vunpack.c.l.b16 %v1948
  %v5138 = vunpack.c.l.b16 %v1949
  %v5139 = vunpack.c.h.b16 %v1949
  %v5140 = vunpack.c.l.b16 %v1950
  %v5141 = vunpack.c.l.b16 %v1951
  %v5142 = vunpack.c.h.b16 %v1951
  %v5143 = vunpack.c.l.b16 %v1952
  %v5144 = vunpack.c.l.b16 %v1953
  %v5145 = vunpack.c.h.b16 %v1953
  %v5146 = vunpack.c.l.b16 %v1954
  %v5147 = vunpack.c.l.b16 %v1955
  %v5148 = vunpack.c.h.b16 %v1955
  %v5149 = vunpack.c.l.b16 %v1956
  %v5150 = vunpack.c.l.b16 %v1957
  %v5151 = vunpack.c.h.b16 %v1957
  %v5152 = vunpack.c.l.b16 %v1958
  %v5153 = vunpack.c.l.b16 %v1959
  %v5154 = vunpack.c.h.b16 %v1959
  %v5155 = vunpack.c.l.b16 %v1960
  %v5156 = vunpack.c.l.b16 %v1961
  %v5157 = vunpack.c.h.b16 %v1961
  %v5158 = vunpack.c.l.b16 %v1962
  %v5159 = vunpack.c.l.b16 %v1963
  %v5160 = vunpack.c.h.b16 %v1963
  %v5161 = vunpack.c.l.b16 %v1964
  %v5162 = vunpack.c.l.b16 %v1965
  %v5163 = vunpack.c.h.b16 %v1965
  %v5164 = vunpack.c.l.b16 %v1966
  %v5165 = vunpack.c.l.b16 %v1967
  %v5166 = vunpack.c.h.b16 %v1967
  %v5167 = vunpack.c.l.b16 %v1968
  %v5168 = vunpack.c.l.b16 %v1969
  %v5169 = vunpack.c.h.b16 %v1969
  %v5170 = vunpack.c.l.b16 %v1970
  %v5171 = vunpack.c.l.b16 %v1971
  %v5172 = vunpack.c.h.b16 %v1971
  %v5173 = vunpack.c.l.b16 %v1972
  %v5174 = vunpack.c.l.b16 %v1973
  %v5175 = vunpack.c.h.b16 %v1973
  %v5176 = vunpack.c.l.b16 %v1974
  %v5177 = vunpack.c.l.b16 %v1975
  %v5178 = vunpack.c.h.b16 %v1975
  %v5179 = vunpack.c.l.b16 %v1976
  %v5180 = vunpack.c.l.b16 %v1977
  %v5181 = vunpack.c.h.b16 %v1977
  %v5182 = vunpack.c.l.b16 %v1978
  %v5183 = vunpack.c.l.b16 %v1979
  %v5184 = vunpack.c.h.b16 %v1979
  %v5185 = vunpack.c.l.b16 %v1980
  %v5186 = vunpack.c.l.b16 %v1981
  %v5187 = vunpack.c.h.b16 %v1981
  %v5188 = vunpack.c.l.b16 %v1982
  %v5189 = vunpack.c.l.b16 %v1983
  %v5190 = vunpack.c.h.b16 %v1983
  %v5191 = vunpack.c.l.b16 %v1984
  %v5192 = vunpack.c.l.b16 %v1985
  %v5193 = vunpack.c.h.b16 %v1985
  %v5194 = vunpack.c.l.b16 %v1986
  %v5195 = vunpack.c.l.b16 %v1987
  %v5196 = vunpack.c.h.b16 %v1987
  %v5197 = vunpack.c.l.b16 %v1988
  %v5198 = vunpack.c.l.b16 %v1989
  %v5199 = vunpack.c.h.b16 %v1989
  %v5200 = vunpack.c.l.b16 %v1990
  %v5201 = vunpack.c.l.b16 %v1991
  %v5202 = vunpack.c.h.b16 %v1991
  %v5203 = vunpack.c.l.b16 %v1992
  %v5204 = vunpack.c.l.b16 %v1993
  %v5205 = vunpack.c.h.b16 %v1993
  %v5206 = vunpack.c.l.b16 %v1994
  %v5207 = vunpack.c.l.b16 %v1995
  %v5208 = vunpack.c.h.b16 %v1995
  %v5209 = vunpack.c.l.b16 %v1996
  %v5210 = vunpack.c.l.b16 %v1997
  %v5211 = vunpack.c.h.b16 %v1997
  %v5212 = vunpack.c.l.b16 %v1998
  %v5213 = vunpack.c.l.b16 %v1999
  %v5214 = vunpack.c.h.b16 %v1999
  %v5215 = vunpack.c.l.b16 %v2000
  %v5216 = vunpack.c.l.b16 %v2001
  %v5217 = vunpack.c.h.b16 %v2001
  %v5218 = vunpack.c.l.b16 %v2002
  %v5219 = vunpack.c.l.b16 %v2003
  %v5220 = vunpack.c.h.b16 %v2003
  %v5221 = vunpack.c.l.b16 %v2004
  %v5222 = vunpack.c.l.b16 %v2005
  %v5223 = vunpack.c.h.b16 %v2005
  %v5224 = vunpack.c.l.b16 %v2006
  %v5225 = vunpack.c.l.b16 %v2007
  %v5226 = vunpack.c.h.b16 %v2007
  %v5227 = vunpack.c.l.b16 %v2008
  %v5228 = vunpack.c.l.b16 %v2009
  %v5229 = vunpack.c.h.b16 %v2009
  %v5230 = vunpack.c.l.b16 %v2010
  %v5231 = vunpack.c.l.b16 %v2011
  %v5232 = vunpack.c.h.b16 %v2011
  %v5233 = vunpack.c.l.b16 %v2012
  %v5234 = vunpack.c.l.b16 %v2013
  %v5235 = vunpack.c.h.b16 %v2013
  %v5236 = vunpack.c.l.b16 %v2014
  %v5237 = vunpack.c.l.b16 %v2015
  %v5238 = vunpack.c.h.b16 %v2015
  %v5239 = vunpack.c.l.b16 %v2016
  %v5240 = vunpack.c.l.b16 %v2017
  %v5241 = vunpack.c.h.b16 %v2017
  %v5242 = vunpack.c.l.b16 %v2018
  %v5243 = vunpack.c.l.b16 %v2019
  %v5244 = vunpack.c.h.b16 %v2019
  %v5245 = vunpack.c.l.b16 %v2020
  %v5246 = vunpack.c.l.b16 %v2021
  %v5247 = vunpack.c.h.b16 %v2021
  %v5248 = vunpack.c.l.b16 %v2022
  %v5249 = vunpack.c.l.b16 %v2023
  %v5250 = vunpack.c.h.b16 %v2023
  %v5251 = vunpack.c.l.b16 %v2024
  %v5252 = vunpack.c.l.b16 %v2025
  %v5253 = vunpack.c.h.b16 %v2025
  %v5254 = vunpack.c.l.b16 %v2026
  %v5255 = vunpack.c.l.b16 %v2027
  %v5256 = vunpack.c.h.b16 %v2027
  %v5257 = vunpack.c.l.b16 %v2028
  %v5258 = vunpack.c.l.b16 %v2029
  %v5259 = vunpack.c.h.b16 %v2029
  %v5260 = vunpack.c.l.b16 %v2030
  %v5261 = vpack.c.b16 %v5072, %v5069
  %v5262 = vpack.c.b16 %v5073, %v5070
  %v5263 = vpack.c.b16 %v5074, %v5071
  %v5264 = vpack.c.b16 %v5078, %v5075
  %v5265 = vpack.c.b16 %v5079, %v5076
  %v5266 = vpack.c.b16 %v5080, %v5077
  %v5267 = vpack.c.b16 %v5084, %v5081
  %v5268 = vpack.c.b16 %v5085, %v5082
  %v5269 = vpack.c.b16 %v5086, %v5083
  %v5270 = vpack.c.b16 %v5090, %v5087
  %v5271 = vpack.c.b16 %v5091, %v5088
  %v5272 = vpack.c.b16 %v5092, %v5089
  %v5273 = vpack.c.b16 %v5096, %v5093
  %v5274 = vpack.c.b16 %v5097, %v5094
  %v5275 = vpack.c.b16 %v5098, %v5095
  %v5276 = vpack.c.b16 %v5102, %v5099
  %v5277 = vpack.c.b16 %v5103, %v5100
  %v5278 = vpack.c.b16 %v5104, %v5101
  %v5279 = vpack.c.b16 %v5108, %v5105
  %v5280 = vpack.c.b16 %v5109, %v5106
  %v5281 = vpack.c.b16 %v5110, %v5107
  %v5282 = vpack.c.b16 %v5114, %v5111
  %v5283 = vpack.c.b16 %v5115, %v5112
  %v5284 = vpack.c.b16 %v5116, %v5113
  %v5285 = vpack.c.b16 %v5120, %v5117
  %v5286 = vpack.c.b16 %v5121, %v5118
  %v5287 = vpack.c.b16 %v5122, %v5119
  %v5288 = vpack.c.b16 %v5126, %v5123
  %v5289 = vpack.c.b16 %v5127, %v5124
  %v5290 = vpack.c.b16 %v5128, %v5125
  %v5291 = vpack.c.b16 %v5132, %v5129
  %v5292 = vpack.c.b16 %v5133, %v5130
  %v5293 = vpack.c.b16 %v5134, %v5131
  %v5294 = vpack.c.b16 %v5138, %v5135
  %v5295 = vpack.c.b16 %v5139, %v5136
  %v5296 = vpack.c.b16 %v5140, %v5137
  %v5297 = vpack.c.b16 %v5144, %v5141
  %v5298 = vpack.c.b16 %v5145, %v5142
  %v5299 = vpack.c.b16 %v5146, %v5143
  %v5300 = vpack.c.b16 %v5150, %v5147
  %v5301 = vpack.c.b16 %v5151, %v5148
  %v5302 = vpack.c.b16 %v5152, %v5149
  %v5303 = vpack.c.b16 %v5156, %v5153
  %v5304 = vpack.c.b16 %v5157, %v5154
  %v5305 = vpack.c.b16 %v5158, %v5155
  %v5306 = vpack.c.b16 %v5162, %v5159
  %v5307 = vpack.c.b16 %v5163, %v5160
  %v5308 = vpack.c.b16 %v5164, %v5161
  %v5309 = vpack.c.b16 %v5168, %v5165
  %v5310 = vpack.c.b16 %v5169, %v5166
  %v5311 = vpack.c.b16 %v5170, %v5167
  %v5312 = vpack.c.b16 %v5174, %v5171
  %v5313 = vpack.c.b16 %v5175, %v5172
  %v5314 = vpack.c.b16 %v5176, %v5173
  %v5315 = vpack.c.b16 %v5180, %v5177
  %v5316 = vpack.c.b16 %v5181, %v5178
  %v5317 = vpack.c.b16 %v5182, %v5179
  %v5318 = vpack.c.b16 %v5186, %v5183
  %v5319 = vpack.c.b16 %v5187, %v5184
  %v5320 = vpack.c.b16 %v5188, %v5185
  %v5321 = vpack.c.b16 %v5192, %v5189
  %v5322 = vpack.c.b16 %v5193, %v5190
  %v5323 = vpack.c.b16 %v5194, %v5191
  %v5324 = vpack.c.b16 %v5198, %v5195
  %v5325 = vpack.c.b16 %v5199, %v5196
  %v5326 = vpack.c.b16 %v5200, %v5197
  %v5327 = vpack.c.b16 %v5204, %v5201
  %v5328 = vpack.c.b16 %v5205, %v5202
  %v5329 = vpack.c.b16 %v5206, %v5203
  %v5330 = vpack.c.b16 %v5210, %v5207
  %v5331 = vpack.c.b16 %v5211, %v5208
  %v5332 = vpack.c.b16 %v5212, %v5209
  %v5333 = vpack.c.b16 %v5216, %v5213
  %v5334 = vpack.c.b16 %v5217, %v5214
  %v5335 = vpack.c.b16 %v5218, %v5215
  %v5336 = vpack.c.b16 %v5222, %v5219
  %v5337 = vpack.c.b16 %v5223, %v5220
  %v5338 = vpack.c.b16 %v5224, %v5221
  %v5339 = vpack.c.b16 %v5228, %v5225
  %v5340 = vpack.c.b16 %v5229, %v5226
  %v5341 = vpack.c.b16 %v5230, %v5227
  %v5342 = vpack.c.b16 %v5234, %v5231
  %v5343 = vpack.c.b16 %v5235, %v5232
  %v5344 = vpack.c.b16 %v5236, %v5233
  %v5345 = vpack.c.b16 %v5240, %v5237
  %v5346 = vpack.c.b16 %v5241, %v5238
  %v5347 = vpack.c.b16 %v5242, %v5239
  %v5348 = vpack.c.b16 %v5246, %v5243
  %v5349 = vpack.c.b16 %v5247, %v5244
  %v5350 = vpack.c.b16 %v5248, %v5245
  %v5351 = vpack.c.b16 %v5252, %v5249
  %v5352 = vpack.c.b16 %v5253, %v5250
  %v5353 = vpack.c.b16 %v5254, %v5251
  %v5354 = vpack.c.b16 %v5258, %v5255
  %v5355 = vpack.c.b16 %v5259, %v5256
  %v5356 = vpack.c.b16 %v5260, %v5257
  %5453 = vmatprep.subr.bf16.mxu0 %v5283
  %5454 = vmatpush1.bf16.msra.mxu0 %v5282
  %5455 = vmatprep.subr.bf16.mxu0 %v5280
  %5456 = vmatpush1.bf16.msra.mxu0 %v5279
  %5457 = vmatprep.subr.bf16.mxu0 %v5277
  %5458 = vmatpush1.bf16.msra.mxu0 %v5276
  %5459 = vmatprep.subr.bf16.mxu0 %v5274
  %5460 = vmatpush1.bf16.msra.mxu0 %v5273
  %5461 = vmatprep.subr.bf16.mxu0 %v5271
  %5462 = vmatpush1.bf16.msra.mxu0 %v5270
  %5463 = vmatprep.subr.bf16.mxu0 %v5268
  %5464 = vmatpush1.bf16.msra.mxu0 %v5267
  %5465 = vmatprep.subr.bf16.mxu0 %v5265
  %5466 = vmatpush1.bf16.msra.mxu0 %v5264
  %5467 = vmatprep.subr.bf16.mxu0 %v5262
  %5468 = vmatpush1.bf16.msra.mxu0 %v5261
  %5469 = vmatprep.subr.bf16.mxu0 %v5307
  %5470 = vmatpush2.bf16.msra.mxu0 %v5306
  %5471 = vmatprep.subr.bf16.mxu0 %v5304
  %5472 = vmatpush2.bf16.msra.mxu0 %v5303
  %5473 = vmatprep.subr.bf16.mxu0 %v5301
  %5474 = vmatpush2.bf16.msra.mxu0 %v5300
  %5475 = vmatprep.subr.bf16.mxu0 %v5298
  %5476 = vmatpush2.bf16.msra.mxu0 %v5297
  %5477 = vmatprep.subr.bf16.mxu0 %v5295
  %5478 = vmatpush2.bf16.msra.mxu0 %v5294
  %5479 = vmatprep.subr.bf16.mxu0 %v5292
  %5480 = vmatpush2.bf16.msra.mxu0 %v5291
  %5481 = vmatprep.subr.bf16.mxu0 %v5289
  %5482 = vmatpush2.bf16.msra.mxu0 %v5288
  %5483 = vmatprep.subr.bf16.mxu0 %v5286
  %5484 = vmatpush2.bf16.msra.mxu0 %v5285
  %5485 = vmatprep.mubr.bf16.mxu0 %v1840
  %5486 = vmatmul.mubr.bf16.gmra.mxu0 %v1839
  %v5487 = vpop.f32.mrf.mxu0
  %v5488 = vadd.f32 %v4461, %v5487
  %v5489 = vpop.f32.mrf.mxu0
  %v5490 = vadd.f32 %v4463, %v5489
  %v5491 = vpop.f32.mrf.mxu0
  %v5492 = vadd.f32 %v4465, %v5491
  %v5493 = vpop.f32.mrf.mxu0
  %v5494 = vadd.f32 %v4467, %v5493
  %5495 = vmatprep.mubr.bf16.mxu0 %v1844
  %5496 = vmatmul.mubr.bf16.gmra.mxu0 %v1843
  %v5497 = vpop.f32.mrf.mxu0
  %v5498 = vadd.f32 %v4471, %v5497
  %v5499 = vpop.f32.mrf.mxu0
  %v5500 = vadd.f32 %v4473, %v5499
  %v5501 = vpop.f32.mrf.mxu0
  %v5502 = vadd.f32 %v4475, %v5501
  %v5503 = vpop.f32.mrf.mxu0
  %v5504 = vadd.f32 %v4477, %v5503
  %5505 = vmatprep.mubr.bf16.mxu0 %v1848
  %5506 = vmatmul.mubr.bf16.gmra.mxu0 %v1847
  %v5507 = vpop.f32.mrf.mxu0
  %v5508 = vadd.f32 %v4481, %v5507
  %v5509 = vpop.f32.mrf.mxu0
  %v5510 = vadd.f32 %v4483, %v5509
  %v5511 = vpop.f32.mrf.mxu0
  %v5512 = vadd.f32 %v4485, %v5511
  %v5513 = vpop.f32.mrf.mxu0
  %v5514 = vadd.f32 %v4487, %v5513
  %5515 = vmatprep.mubr.bf16.mxu0 %v1852
  %5516 = vmatmul.mubr.bf16.gmra.mxu0 %v1851
  %v5517 = vpop.f32.mrf.mxu0
  %v5518 = vadd.f32 %v4491, %v5517
  %v5519 = vpop.f32.mrf.mxu0
  %v5520 = vadd.f32 %v4493, %v5519
  %v5521 = vpop.f32.mrf.mxu0
  %v5522 = vadd.f32 %v4495, %v5521
  %v5523 = vpop.f32.mrf.mxu0
  %v5524 = vadd.f32 %v4497, %v5523
  %5525 = vmatprep.mubr.bf16.mxu0 %v1856
  %5526 = vmatmul.mubr.bf16.gmra.mxu0 %v1855
  %v5527 = vpop.f32.mrf.mxu0
  %v5528 = vadd.f32 %v4501, %v5527
  %v5529 = vpop.f32.mrf.mxu0
  %v5530 = vadd.f32 %v4503, %v5529
  %v5531 = vpop.f32.mrf.mxu0
  %v5532 = vadd.f32 %v4505, %v5531
  %v5533 = vpop.f32.mrf.mxu0
  %v5534 = vadd.f32 %v4507, %v5533
  %5535 = vmatprep.mubr.bf16.mxu0 %v1860
  %5536 = vmatmul.mubr.bf16.gmra.mxu0 %v1859
  %v5537 = vpop.f32.mrf.mxu0
  %v5538 = vadd.f32 %v4511, %v5537
  %v5539 = vpop.f32.mrf.mxu0
  %v5540 = vadd.f32 %v4513, %v5539
  %v5541 = vpop.f32.mrf.mxu0
  %v5542 = vadd.f32 %v4515, %v5541
  %v5543 = vpop.f32.mrf.mxu0
  %v5544 = vadd.f32 %v4517, %v5543
  %5545 = vmatprep.mubr.bf16.mxu0 %v1864
  %5546 = vmatmul.mubr.bf16.gmra.mxu0 %v1863
  %v5547 = vpop.f32.mrf.mxu0
  %v5548 = vadd.f32 %v4521, %v5547
  %v5549 = vpop.f32.mrf.mxu0
  %v5550 = vadd.f32 %v4523, %v5549
  %v5551 = vpop.f32.mrf.mxu0
  %v5552 = vadd.f32 %v4525, %v5551
  %v5553 = vpop.f32.mrf.mxu0
  %v5554 = vadd.f32 %v4527, %v5553
  %5555 = vmatprep.mubr.bf16.mxu0 %v1868
  %5556 = vmatmul.mubr.bf16.gmra.mxu0 %v1867
  %v5557 = vpop.f32.mrf.mxu0
  %v5558 = vadd.f32 %v4531, %v5557
  %v5559 = vpop.f32.mrf.mxu0
  %v5560 = vadd.f32 %v4533, %v5559
  %v5561 = vpop.f32.mrf.mxu0
  %v5562 = vadd.f32 %v4535, %v5561
  %v5563 = vpop.f32.mrf.mxu0
  %v5564 = vadd.f32 %v4537, %v5563
  %5565 = vmatprep.mubr.bf16.mxu0 %v1872
  %5566 = vmatmul.mubr.bf16.gmra.mxu0 %v1871
  %v5567 = vpop.f32.mrf.mxu0
  %v5568 = vadd.f32 %v4541, %v5567
  %v5569 = vpop.f32.mrf.mxu0
  %v5570 = vadd.f32 %v4543, %v5569
  %v5571 = vpop.f32.mrf.mxu0
  %v5572 = vadd.f32 %v4545, %v5571
  %v5573 = vpop.f32.mrf.mxu0
  %v5574 = vadd.f32 %v4547, %v5573
  %5575 = vmatprep.mubr.bf16.mxu0 %v1876
  %5576 = vmatmul.mubr.bf16.gmra.mxu0 %v1875
  %v5577 = vpop.f32.mrf.mxu0
  %v5578 = vadd.f32 %v4551, %v5577
  %v5579 = vpop.f32.mrf.mxu0
  %v5580 = vadd.f32 %v4553, %v5579
  %v5581 = vpop.f32.mrf.mxu0
  %v5582 = vadd.f32 %v4555, %v5581
  %v5583 = vpop.f32.mrf.mxu0
  %v5584 = vadd.f32 %v4557, %v5583
  %5585 = vmatprep.mubr.bf16.mxu0 %v1880
  %5586 = vmatmul.mubr.bf16.gmra.mxu0 %v1879
  %v5587 = vpop.f32.mrf.mxu0
  %v5588 = vadd.f32 %v4561, %v5587
  %v5589 = vpop.f32.mrf.mxu0
  %v5590 = vadd.f32 %v4563, %v5589
  %v5591 = vpop.f32.mrf.mxu0
  %v5592 = vadd.f32 %v4565, %v5591
  %v5593 = vpop.f32.mrf.mxu0
  %v5594 = vadd.f32 %v4567, %v5593
  %5595 = vmatprep.mubr.bf16.mxu0 %v1884
  %5596 = vmatmul.mubr.bf16.gmra.mxu0 %v1883
  %v5597 = vpop.f32.mrf.mxu0
  %v5598 = vadd.f32 %v4571, %v5597
  %v5599 = vpop.f32.mrf.mxu0
  %v5600 = vadd.f32 %v4573, %v5599
  %v5601 = vpop.f32.mrf.mxu0
  %v5602 = vadd.f32 %v4575, %v5601
  %v5603 = vpop.f32.mrf.mxu0
  %v5604 = vadd.f32 %v4577, %v5603
  %5605 = vmatprep.mubr.bf16.mxu0 %v1888
  %5606 = vmatmul.mubr.bf16.gmra.mxu0 %v1887
  %v5607 = vpop.f32.mrf.mxu0
  %v5608 = vadd.f32 %v4581, %v5607
  %v5609 = vpop.f32.mrf.mxu0
  %v5610 = vadd.f32 %v4583, %v5609
  %v5611 = vpop.f32.mrf.mxu0
  %v5612 = vadd.f32 %v4585, %v5611
  %v5613 = vpop.f32.mrf.mxu0
  %v5614 = vadd.f32 %v4587, %v5613
  %5615 = vmatprep.mubr.bf16.mxu0 %v1892
  %5616 = vmatmul.mubr.bf16.gmra.mxu0 %v1891
  %v5617 = vpop.f32.mrf.mxu0
  %v5618 = vadd.f32 %v4591, %v5617
  %v5619 = vpop.f32.mrf.mxu0
  %v5620 = vadd.f32 %v4593, %v5619
  %v5621 = vpop.f32.mrf.mxu0
  %v5622 = vadd.f32 %v4595, %v5621
  %v5623 = vpop.f32.mrf.mxu0
  %v5624 = vadd.f32 %v4597, %v5623
  %5625 = vmatprep.mubr.bf16.mxu0 %v1896
  %5626 = vmatmul.mubr.bf16.gmra.mxu0 %v1895
  %v5627 = vpop.f32.mrf.mxu0
  %v5628 = vadd.f32 %v4601, %v5627
  %v5629 = vpop.f32.mrf.mxu0
  %v5630 = vadd.f32 %v4603, %v5629
  %v5631 = vpop.f32.mrf.mxu0
  %v5632 = vadd.f32 %v4605, %v5631
  %v5633 = vpop.f32.mrf.mxu0
  %v5634 = vadd.f32 %v4607, %v5633
  %5635 = vmatprep.mubr.bf16.mxu0 %v1900
  %5636 = vmatmul.mubr.bf16.gmra.mxu0 %v1899
  %v5637 = vpop.f32.mrf.mxu0
  %v5638 = vadd.f32 %v4611, %v5637
  %v5639 = vpop.f32.mrf.mxu0
  %v5640 = vadd.f32 %v4613, %v5639
  %v5641 = vpop.f32.mrf.mxu0
  %v5642 = vadd.f32 %v4615, %v5641
  %v5643 = vpop.f32.mrf.mxu0
  %v5644 = vadd.f32 %v4617, %v5643
  %5645 = vdwg.mxu0
  %5646 = vmatprep.subr.bf16.mxu0 %v5331
  %5647 = vmatpush1.bf16.msra.mxu0 %v5330
  %5648 = vmatprep.subr.bf16.mxu0 %v5328
  %5649 = vmatpush1.bf16.msra.mxu0 %v5327
  %5650 = vmatprep.subr.bf16.mxu0 %v5325
  %5651 = vmatpush1.bf16.msra.mxu0 %v5324
  %5652 = vmatprep.subr.bf16.mxu0 %v5322
  %5653 = vmatpush1.bf16.msra.mxu0 %v5321
  %5654 = vmatprep.subr.bf16.mxu0 %v5319
  %5655 = vmatpush1.bf16.msra.mxu0 %v5318
  %5656 = vmatprep.subr.bf16.mxu0 %v5316
  %5657 = vmatpush1.bf16.msra.mxu0 %v5315
  %5658 = vmatprep.subr.bf16.mxu0 %v5313
  %5659 = vmatpush1.bf16.msra.mxu0 %v5312
  %5660 = vmatprep.subr.bf16.mxu0 %v5310
  %5661 = vmatpush1.bf16.msra.mxu0 %v5309
  %5662 = vmatprep.subr.bf16.mxu0 %v5355
  %5663 = vmatpush2.bf16.msra.mxu0 %v5354
  %5664 = vmatprep.subr.bf16.mxu0 %v5352
  %5665 = vmatpush2.bf16.msra.mxu0 %v5351
  %5666 = vmatprep.subr.bf16.mxu0 %v5349
  %5667 = vmatpush2.bf16.msra.mxu0 %v5348
  %5668 = vmatprep.subr.bf16.mxu0 %v5346
  %5669 = vmatpush2.bf16.msra.mxu0 %v5345
  %5670 = vmatprep.subr.bf16.mxu0 %v5343
  %5671 = vmatpush2.bf16.msra.mxu0 %v5342
  %5672 = vmatprep.subr.bf16.mxu0 %v5340
  %5673 = vmatpush2.bf16.msra.mxu0 %v5339
  %5674 = vmatprep.subr.bf16.mxu0 %v5337
  %5675 = vmatpush2.bf16.msra.mxu0 %v5336
  %5676 = vmatprep.subr.bf16.mxu0 %v5334
  %5677 = vmatpush2.bf16.msra.mxu0 %v5333
  %5678 = vmatprep.mubr.bf16.mxu0 %v1842
  %5679 = vmatmul.mubr.bf16.gmra.mxu0 %v1841
  %v5680 = vpop.f32.mrf.mxu0
  %v5681 = vadd.f32 %v5488, %v5680
  %v5682 = vpop.f32.mrf.mxu0
  %v5683 = vadd.f32 %v5490, %v5682
  %v5684 = vpop.f32.mrf.mxu0
  %v5685 = vadd.f32 %v5492, %v5684
  %v5686 = vpop.f32.mrf.mxu0
  %v5687 = vadd.f32 %v5494, %v5686
  %5688 = vmatprep.mubr.bf16.mxu0 %v1846
  %5689 = vmatmul.mubr.bf16.gmra.mxu0 %v1845
  %v5690 = vpop.f32.mrf.mxu0
  %v5691 = vadd.f32 %v5498, %v5690
  %v5692 = vpop.f32.mrf.mxu0
  %v5693 = vadd.f32 %v5500, %v5692
  %v5694 = vpop.f32.mrf.mxu0
  %v5695 = vadd.f32 %v5502, %v5694
  %v5696 = vpop.f32.mrf.mxu0
  %v5697 = vadd.f32 %v5504, %v5696
  %5698 = vmatprep.mubr.bf16.mxu0 %v1850
  %5699 = vmatmul.mubr.bf16.gmra.mxu0 %v1849
  %v5700 = vpop.f32.mrf.mxu0
  %v5701 = vadd.f32 %v5508, %v5700
  %v5702 = vpop.f32.mrf.mxu0
  %v5703 = vadd.f32 %v5510, %v5702
  %v5704 = vpop.f32.mrf.mxu0
  %v5705 = vadd.f32 %v5512, %v5704
  %v5706 = vpop.f32.mrf.mxu0
  %v5707 = vadd.f32 %v5514, %v5706
  %5708 = vmatprep.mubr.bf16.mxu0 %v1854
  %5709 = vmatmul.mubr.bf16.gmra.mxu0 %v1853
  %v5710 = vpop.f32.mrf.mxu0
  %v5711 = vadd.f32 %v5518, %v5710
  %v5712 = vpop.f32.mrf.mxu0
  %v5713 = vadd.f32 %v5520, %v5712
  %v5714 = vpop.f32.mrf.mxu0
  %v5715 = vadd.f32 %v5522, %v5714
  %v5716 = vpop.f32.mrf.mxu0
  %v5717 = vadd.f32 %v5524, %v5716
  %5718 = vmatprep.mubr.bf16.mxu0 %v1858
  %5719 = vmatmul.mubr.bf16.gmra.mxu0 %v1857
  %v5720 = vpop.f32.mrf.mxu0
  %v5721 = vadd.f32 %v5528, %v5720
  %v5722 = vpop.f32.mrf.mxu0
  %v5723 = vadd.f32 %v5530, %v5722
  %v5724 = vpop.f32.mrf.mxu0
  %v5725 = vadd.f32 %v5532, %v5724
  %v5726 = vpop.f32.mrf.mxu0
  %v5727 = vadd.f32 %v5534, %v5726
  %5728 = vmatprep.mubr.bf16.mxu0 %v1862
  %5729 = vmatmul.mubr.bf16.gmra.mxu0 %v1861
  %v5730 = vpop.f32.mrf.mxu0
  %v5731 = vadd.f32 %v5538, %v5730
  %v5732 = vpop.f32.mrf.mxu0
  %v5733 = vadd.f32 %v5540, %v5732
  %v5734 = vpop.f32.mrf.mxu0
  %v5735 = vadd.f32 %v5542, %v5734
  %v5736 = vpop.f32.mrf.mxu0
  %v5737 = vadd.f32 %v5544, %v5736
  %5738 = vmatprep.mubr.bf16.mxu0 %v1866
  %5739 = vmatmul.mubr.bf16.gmra.mxu0 %v1865
  %v5740 = vpop.f32.mrf.mxu0
  %v5741 = vadd.f32 %v5548, %v5740
  %v5742 = vpop.f32.mrf.mxu0
  %v5743 = vadd.f32 %v5550, %v5742
  %v5744 = vpop.f32.mrf.mxu0
  %v5745 = vadd.f32 %v5552, %v5744
  %v5746 = vpop.f32.mrf.mxu0
  %v5747 = vadd.f32 %v5554, %v5746
  %5748 = vmatprep.mubr.bf16.mxu0 %v1870
  %5749 = vmatmul.mubr.bf16.gmra.mxu0 %v1869
  %v5750 = vpop.f32.mrf.mxu0
  %v5751 = vadd.f32 %v5558, %v5750
  %v5752 = vpop.f32.mrf.mxu0
  %v5753 = vadd.f32 %v5560, %v5752
  %v5754 = vpop.f32.mrf.mxu0
  %v5755 = vadd.f32 %v5562, %v5754
  %v5756 = vpop.f32.mrf.mxu0
  %v5757 = vadd.f32 %v5564, %v5756
  %5758 = vmatprep.mubr.bf16.mxu0 %v1874
  %5759 = vmatmul.mubr.bf16.gmra.mxu0 %v1873
  %v5760 = vpop.f32.mrf.mxu0
  %v5761 = vadd.f32 %v5568, %v5760
  %v5762 = vpop.f32.mrf.mxu0
  %v5763 = vadd.f32 %v5570, %v5762
  %v5764 = vpop.f32.mrf.mxu0
  %v5765 = vadd.f32 %v5572, %v5764
  %v5766 = vpop.f32.mrf.mxu0
  %v5767 = vadd.f32 %v5574, %v5766
  %5768 = vmatprep.mubr.bf16.mxu0 %v1878
  %5769 = vmatmul.mubr.bf16.gmra.mxu0 %v1877
  %v5770 = vpop.f32.mrf.mxu0
  %v5771 = vadd.f32 %v5578, %v5770
  %v5772 = vpop.f32.mrf.mxu0
  %v5773 = vadd.f32 %v5580, %v5772
  %v5774 = vpop.f32.mrf.mxu0
  %v5775 = vadd.f32 %v5582, %v5774
  %v5776 = vpop.f32.mrf.mxu0
  %v5777 = vadd.f32 %v5584, %v5776
  %5778 = vmatprep.mubr.bf16.mxu0 %v1882
  %5779 = vmatmul.mubr.bf16.gmra.mxu0 %v1881
  %v5780 = vpop.f32.mrf.mxu0
  %v5781 = vadd.f32 %v5588, %v5780
  %v5782 = vpop.f32.mrf.mxu0
  %v5783 = vadd.f32 %v5590, %v5782
  %v5784 = vpop.f32.mrf.mxu0
  %v5785 = vadd.f32 %v5592, %v5784
  %v5786 = vpop.f32.mrf.mxu0
  %v5787 = vadd.f32 %v5594, %v5786
  %5788 = vmatprep.mubr.bf16.mxu0 %v1886
  %5789 = vmatmul.mubr.bf16.gmra.mxu0 %v1885
  %v5790 = vpop.f32.mrf.mxu0
  %v5791 = vadd.f32 %v5598, %v5790
  %v5792 = vpop.f32.mrf.mxu0
  %v5793 = vadd.f32 %v5600, %v5792
  %v5794 = vpop.f32.mrf.mxu0
  %v5795 = vadd.f32 %v5602, %v5794
  %v5796 = vpop.f32.mrf.mxu0
  %v5797 = vadd.f32 %v5604, %v5796
  %5798 = vmatprep.mubr.bf16.mxu0 %v1890
  %5799 = vmatmul.mubr.bf16.gmra.mxu0 %v1889
  %v5800 = vpop.f32.mrf.mxu0
  %v5801 = vadd.f32 %v5608, %v5800
  %v5802 = vpop.f32.mrf.mxu0
  %v5803 = vadd.f32 %v5610, %v5802
  %v5804 = vpop.f32.mrf.mxu0
  %v5805 = vadd.f32 %v5612, %v5804
  %v5806 = vpop.f32.mrf.mxu0
  %v5807 = vadd.f32 %v5614, %v5806
  %5808 = vmatprep.mubr.bf16.mxu0 %v1894
  %5809 = vmatmul.mubr.bf16.gmra.mxu0 %v1893
  %v5810 = vpop.f32.mrf.mxu0
  %v5811 = vadd.f32 %v5618, %v5810
  %v5812 = vpop.f32.mrf.mxu0
  %v5813 = vadd.f32 %v5620, %v5812
  %v5814 = vpop.f32.mrf.mxu0
  %v5815 = vadd.f32 %v5622, %v5814
  %v5816 = vpop.f32.mrf.mxu0
  %v5817 = vadd.f32 %v5624, %v5816
  %5818 = vmatprep.mubr.bf16.mxu0 %v1898
  %5819 = vmatmul.mubr.bf16.gmra.mxu0 %v1897
  %v5820 = vpop.f32.mrf.mxu0
  %v5821 = vadd.f32 %v5628, %v5820
  %v5822 = vpop.f32.mrf.mxu0
  %v5823 = vadd.f32 %v5630, %v5822
  %v5824 = vpop.f32.mrf.mxu0
  %v5825 = vadd.f32 %v5632, %v5824
  %v5826 = vpop.f32.mrf.mxu0
  %v5827 = vadd.f32 %v5634, %v5826
  %5828 = vmatprep.mubr.bf16.mxu0 %v1902
  %5829 = vmatmul.mubr.bf16.gmra.mxu0 %v1901
  %v5830 = vpop.f32.mrf.mxu0
  %v5831 = vadd.f32 %v5638, %v5830
  %v5832 = vpop.f32.mrf.mxu0
  %v5833 = vadd.f32 %v5640, %v5832
  %v5834 = vpop.f32.mrf.mxu0
  %v5835 = vadd.f32 %v5642, %v5834
  %v5836 = vpop.f32.mrf.mxu0
  %v5837 = vadd.f32 %v5644, %v5836
  %5838 = vdwg.mxu0
  %5839 = vmatprep.subr.bf16.mxu0 0
  %5840 = vmatpush1.bf16.msra.mxu0 %v5284
  %5841 = vmatprep.subr.bf16.mxu0 0
  %5842 = vmatpush1.bf16.msra.mxu0 %v5281
  %5843 = vmatprep.subr.bf16.mxu0 0
  %5844 = vmatpush1.bf16.msra.mxu0 %v5278
  %5845 = vmatprep.subr.bf16.mxu0 0
  %5846 = vmatpush1.bf16.msra.mxu0 %v5275
  %5847 = vmatprep.subr.bf16.mxu0 0
  %5848 = vmatpush1.bf16.msra.mxu0 %v5272
  %5849 = vmatprep.subr.bf16.mxu0 0
  %5850 = vmatpush1.bf16.msra.mxu0 %v5269
  %5851 = vmatprep.subr.bf16.mxu0 0
  %5852 = vmatpush1.bf16.msra.mxu0 %v5266
  %5853 = vmatprep.subr.bf16.mxu0 0
  %5854 = vmatpush1.bf16.msra.mxu0 %v5263
  %5855 = vmatprep.subr.bf16.mxu0 0
  %5856 = vmatpush2.bf16.msra.mxu0 %v5308
  %5857 = vmatprep.subr.bf16.mxu0 0
  %5858 = vmatpush2.bf16.msra.mxu0 %v5305
  %5859 = vmatprep.subr.bf16.mxu0 0
  %5860 = vmatpush2.bf16.msra.mxu0 %v5302
  %5861 = vmatprep.subr.bf16.mxu0 0
  %5862 = vmatpush2.bf16.msra.mxu0 %v5299
  %5863 = vmatprep.subr.bf16.mxu0 0
  %5864 = vmatpush2.bf16.msra.mxu0 %v5296
  %5865 = vmatprep.subr.bf16.mxu0 0
  %5866 = vmatpush2.bf16.msra.mxu0 %v5293
  %5867 = vmatprep.subr.bf16.mxu0 0
  %5868 = vmatpush2.bf16.msra.mxu0 %v5290
  %5869 = vmatprep.subr.bf16.mxu0 0
  %5870 = vmatpush2.bf16.msra.mxu0 %v5287
  %5871 = vmatprep.mubr.bf16.mxu0 %v1840
  %5872 = vmatmul.mubr.bf16.gmra.mxu0 %v1839
  %v5873 = vpop.f32.mrf.mxu0
  %v5874 = vadd.f32 %v4815, %v5873
  %v5875 = vpop.f32.mrf.mxu0
  %v5876 = vpop.f32.mrf.mxu0
  %v5877 = vadd.f32 %v4818, %v5876
  %v5878 = vpop.f32.mrf.mxu0
  %5879 = vmatprep.mubr.bf16.mxu0 %v1844
  %5880 = vmatmul.mubr.bf16.gmra.mxu0 %v1843
  %v5881 = vpop.f32.mrf.mxu0
  %v5882 = vadd.f32 %v4823, %v5881
  %v5883 = vpop.f32.mrf.mxu0
  %v5884 = vpop.f32.mrf.mxu0
  %v5885 = vadd.f32 %v4826, %v5884
  %v5886 = vpop.f32.mrf.mxu0
  %5887 = vmatprep.mubr.bf16.mxu0 %v1848
  %5888 = vmatmul.mubr.bf16.gmra.mxu0 %v1847
  %v5889 = vpop.f32.mrf.mxu0
  %v5890 = vadd.f32 %v4831, %v5889
  %v5891 = vpop.f32.mrf.mxu0
  %v5892 = vpop.f32.mrf.mxu0
  %v5893 = vadd.f32 %v4834, %v5892
  %v5894 = vpop.f32.mrf.mxu0
  %5895 = vmatprep.mubr.bf16.mxu0 %v1852
  %5896 = vmatmul.mubr.bf16.gmra.mxu0 %v1851
  %v5897 = vpop.f32.mrf.mxu0
  %v5898 = vadd.f32 %v4839, %v5897
  %v5899 = vpop.f32.mrf.mxu0
  %v5900 = vpop.f32.mrf.mxu0
  %v5901 = vadd.f32 %v4842, %v5900
  %v5902 = vpop.f32.mrf.mxu0
  %5903 = vmatprep.mubr.bf16.mxu0 %v1856
  %5904 = vmatmul.mubr.bf16.gmra.mxu0 %v1855
  %v5905 = vpop.f32.mrf.mxu0
  %v5906 = vadd.f32 %v4847, %v5905
  %v5907 = vpop.f32.mrf.mxu0
  %v5908 = vpop.f32.mrf.mxu0
  %v5909 = vadd.f32 %v4850, %v5908
  %v5910 = vpop.f32.mrf.mxu0
  %5911 = vmatprep.mubr.bf16.mxu0 %v1860
  %5912 = vmatmul.mubr.bf16.gmra.mxu0 %v1859
  %v5913 = vpop.f32.mrf.mxu0
  %v5914 = vadd.f32 %v4855, %v5913
  %v5915 = vpop.f32.mrf.mxu0
  %v5916 = vpop.f32.mrf.mxu0
  %v5917 = vadd.f32 %v4858, %v5916
  %v5918 = vpop.f32.mrf.mxu0
  %5919 = vmatprep.mubr.bf16.mxu0 %v1864
  %5920 = vmatmul.mubr.bf16.gmra.mxu0 %v1863
  %v5921 = vpop.f32.mrf.mxu0
  %v5922 = vadd.f32 %v4863, %v5921
  %v5923 = vpop.f32.mrf.mxu0
  %v5924 = vpop.f32.mrf.mxu0
  %v5925 = vadd.f32 %v4866, %v5924
  %v5926 = vpop.f32.mrf.mxu0
  %5927 = vmatprep.mubr.bf16.mxu0 %v1868
  %5928 = vmatmul.mubr.bf16.gmra.mxu0 %v1867
  %v5929 = vpop.f32.mrf.mxu0
  %v5930 = vadd.f32 %v4871, %v5929
  %v5931 = vpop.f32.mrf.mxu0
  %v5932 = vpop.f32.mrf.mxu0
  %v5933 = vadd.f32 %v4874, %v5932
  %v5934 = vpop.f32.mrf.mxu0
  %5935 = vmatprep.mubr.bf16.mxu0 %v1872
  %5936 = vmatmul.mubr.bf16.gmra.mxu0 %v1871
  %v5937 = vpop.f32.mrf.mxu0
  %v5938 = vadd.f32 %v4879, %v5937
  %v5939 = vpop.f32.mrf.mxu0
  %v5940 = vpop.f32.mrf.mxu0
  %v5941 = vadd.f32 %v4882, %v5940
  %v5942 = vpop.f32.mrf.mxu0
  %5943 = vmatprep.mubr.bf16.mxu0 %v1876
  %5944 = vmatmul.mubr.bf16.gmra.mxu0 %v1875
  %v5945 = vpop.f32.mrf.mxu0
  %v5946 = vadd.f32 %v4887, %v5945
  %v5947 = vpop.f32.mrf.mxu0
  %v5948 = vpop.f32.mrf.mxu0
  %v5949 = vadd.f32 %v4890, %v5948
  %v5950 = vpop.f32.mrf.mxu0
  %5951 = vmatprep.mubr.bf16.mxu0 %v1880
  %5952 = vmatmul.mubr.bf16.gmra.mxu0 %v1879
  %v5953 = vpop.f32.mrf.mxu0
  %v5954 = vadd.f32 %v4895, %v5953
  %v5955 = vpop.f32.mrf.mxu0
  %v5956 = vpop.f32.mrf.mxu0
  %v5957 = vadd.f32 %v4898, %v5956
  %v5958 = vpop.f32.mrf.mxu0
  %5959 = vmatprep.mubr.bf16.mxu0 %v1884
  %5960 = vmatmul.mubr.bf16.gmra.mxu0 %v1883
  %v5961 = vpop.f32.mrf.mxu0
  %v5962 = vadd.f32 %v4903, %v5961
  %v5963 = vpop.f32.mrf.mxu0
  %v5964 = vpop.f32.mrf.mxu0
  %v5965 = vadd.f32 %v4906, %v5964
  %v5966 = vpop.f32.mrf.mxu0
  %5967 = vmatprep.mubr.bf16.mxu0 %v1888
  %5968 = vmatmul.mubr.bf16.gmra.mxu0 %v1887
  %v5969 = vpop.f32.mrf.mxu0
  %v5970 = vadd.f32 %v4911, %v5969
  %v5971 = vpop.f32.mrf.mxu0
  %v5972 = vpop.f32.mrf.mxu0
  %v5973 = vadd.f32 %v4914, %v5972
  %v5974 = vpop.f32.mrf.mxu0
  %5975 = vmatprep.mubr.bf16.mxu0 %v1892
  %5976 = vmatmul.mubr.bf16.gmra.mxu0 %v1891
  %v5977 = vpop.f32.mrf.mxu0
  %v5978 = vadd.f32 %v4919, %v5977
  %v5979 = vpop.f32.mrf.mxu0
  %v5980 = vpop.f32.mrf.mxu0
  %v5981 = vadd.f32 %v4922, %v5980
  %v5982 = vpop.f32.mrf.mxu0
  %5983 = vmatprep.mubr.bf16.mxu0 %v1896
  %5984 = vmatmul.mubr.bf16.gmra.mxu0 %v1895
  %v5985 = vpop.f32.mrf.mxu0
  %v5986 = vadd.f32 %v4927, %v5985
  %v5987 = vpop.f32.mrf.mxu0
  %v5988 = vpop.f32.mrf.mxu0
  %v5989 = vadd.f32 %v4930, %v5988
  %v5990 = vpop.f32.mrf.mxu0
  %5991 = vmatprep.mubr.bf16.mxu0 %v1900
  %5992 = vmatmul.mubr.bf16.gmra.mxu0 %v1899
  %v5993 = vpop.f32.mrf.mxu0
  %v5994 = vadd.f32 %v4935, %v5993
  %v5995 = vpop.f32.mrf.mxu0
  %v5996 = vpop.f32.mrf.mxu0
  %v5997 = vadd.f32 %v4938, %v5996
  %v5998 = vpop.f32.mrf.mxu0
  %5999 = vdwg.mxu0
  %6000 = vmatprep.subr.bf16.mxu0 0
  %6001 = vmatpush1.bf16.msra.mxu0 %v5332
  %6002 = vmatprep.subr.bf16.mxu0 0
  %6003 = vmatpush1.bf16.msra.mxu0 %v5329
  %6004 = vmatprep.subr.bf16.mxu0 0
  %6005 = vmatpush1.bf16.msra.mxu0 %v5326
  %6006 = vmatprep.subr.bf16.mxu0 0
  %6007 = vmatpush1.bf16.msra.mxu0 %v5323
  %6008 = vmatprep.subr.bf16.mxu0 0
  %6009 = vmatpush1.bf16.msra.mxu0 %v5320
  %6010 = vmatprep.subr.bf16.mxu0 0
  %6011 = vmatpush1.bf16.msra.mxu0 %v5317
  %6012 = vmatprep.subr.bf16.mxu0 0
  %6013 = vmatpush1.bf16.msra.mxu0 %v5314
  %6014 = vmatprep.subr.bf16.mxu0 0
  %6015 = vmatpush1.bf16.msra.mxu0 %v5311
  %6016 = vmatprep.subr.bf16.mxu0 0
  %6017 = vmatpush2.bf16.msra.mxu0 %v5356
  %6018 = vmatprep.subr.bf16.mxu0 0
  %6019 = vmatpush2.bf16.msra.mxu0 %v5353
  %6020 = vmatprep.subr.bf16.mxu0 0
  %6021 = vmatpush2.bf16.msra.mxu0 %v5350
  %6022 = vmatprep.subr.bf16.mxu0 0
  %6023 = vmatpush2.bf16.msra.mxu0 %v5347
  %6024 = vmatprep.subr.bf16.mxu0 0
  %6025 = vmatpush2.bf16.msra.mxu0 %v5344
  %6026 = vmatprep.subr.bf16.mxu0 0
  %6027 = vmatpush2.bf16.msra.mxu0 %v5341
  %6028 = vmatprep.subr.bf16.mxu0 0
  %6029 = vmatpush2.bf16.msra.mxu0 %v5338
  %6030 = vmatprep.subr.bf16.mxu0 0
  %6031 = vmatpush2.bf16.msra.mxu0 %v5335
  %6032 = vmatprep.mubr.bf16.mxu0 %v1842
  %6033 = vmatmul.mubr.bf16.gmra.mxu0 %v1841
  %v6034 = vpop.f32.mrf.mxu0
  %v6035 = vadd.f32 %v5874, %v6034
  %v6036 = vpop.f32.mrf.mxu0
  %v6037 = vpop.f32.mrf.mxu0
  %v6038 = vadd.f32 %v5877, %v6037
  %v6039 = vpop.f32.mrf.mxu0
  %6040 = vmatprep.mubr.bf16.mxu0 %v1846
  %6041 = vmatmul.mubr.bf16.gmra.mxu0 %v1845
  %v6042 = vpop.f32.mrf.mxu0
  %v6043 = vadd.f32 %v5882, %v6042
  %v6044 = vpop.f32.mrf.mxu0
  %v6045 = vpop.f32.mrf.mxu0
  %v6046 = vadd.f32 %v5885, %v6045
  %v6047 = vpop.f32.mrf.mxu0
  %6048 = vmatprep.mubr.bf16.mxu0 %v1850
  %6049 = vmatmul.mubr.bf16.gmra.mxu0 %v1849
  %v6050 = vpop.f32.mrf.mxu0
  %v6051 = vadd.f32 %v5890, %v6050
  %v6052 = vpop.f32.mrf.mxu0
  %v6053 = vpop.f32.mrf.mxu0
  %v6054 = vadd.f32 %v5893, %v6053
  %v6055 = vpop.f32.mrf.mxu0
  %6056 = vmatprep.mubr.bf16.mxu0 %v1854
  %6057 = vmatmul.mubr.bf16.gmra.mxu0 %v1853
  %v6058 = vpop.f32.mrf.mxu0
  %v6059 = vadd.f32 %v5898, %v6058
  %v6060 = vpop.f32.mrf.mxu0
  %v6061 = vpop.f32.mrf.mxu0
  %v6062 = vadd.f32 %v5901, %v6061
  %v6063 = vpop.f32.mrf.mxu0
  %6064 = vmatprep.mubr.bf16.mxu0 %v1858
  %6065 = vmatmul.mubr.bf16.gmra.mxu0 %v1857
  %v6066 = vpop.f32.mrf.mxu0
  %v6067 = vadd.f32 %v5906, %v6066
  %v6068 = vpop.f32.mrf.mxu0
  %v6069 = vpop.f32.mrf.mxu0
  %v6070 = vadd.f32 %v5909, %v6069
  %v6071 = vpop.f32.mrf.mxu0
  %6072 = vmatprep.mubr.bf16.mxu0 %v1862
  %6073 = vmatmul.mubr.bf16.gmra.mxu0 %v1861
  %v6074 = vpop.f32.mrf.mxu0
  %v6075 = vadd.f32 %v5914, %v6074
  %v6076 = vpop.f32.mrf.mxu0
  %v6077 = vpop.f32.mrf.mxu0
  %v6078 = vadd.f32 %v5917, %v6077
  %v6079 = vpop.f32.mrf.mxu0
  %6080 = vmatprep.mubr.bf16.mxu0 %v1866
  %6081 = vmatmul.mubr.bf16.gmra.mxu0 %v1865
  %v6082 = vpop.f32.mrf.mxu0
  %v6083 = vadd.f32 %v5922, %v6082
  %v6084 = vpop.f32.mrf.mxu0
  %v6085 = vpop.f32.mrf.mxu0
  %v6086 = vadd.f32 %v5925, %v6085
  %v6087 = vpop.f32.mrf.mxu0
  %6088 = vmatprep.mubr.bf16.mxu0 %v1870
  %6089 = vmatmul.mubr.bf16.gmra.mxu0 %v1869
  %v6090 = vpop.f32.mrf.mxu0
  %v6091 = vadd.f32 %v5930, %v6090
  %v6092 = vpop.f32.mrf.mxu0
  %v6093 = vpop.f32.mrf.mxu0
  %v6094 = vadd.f32 %v5933, %v6093
  %v6095 = vpop.f32.mrf.mxu0
  %6096 = vmatprep.mubr.bf16.mxu0 %v1874
  %6097 = vmatmul.mubr.bf16.gmra.mxu0 %v1873
  %v6098 = vpop.f32.mrf.mxu0
  %v6099 = vadd.f32 %v5938, %v6098
  %v6100 = vpop.f32.mrf.mxu0
  %v6101 = vpop.f32.mrf.mxu0
  %v6102 = vadd.f32 %v5941, %v6101
  %v6103 = vpop.f32.mrf.mxu0
  %6104 = vmatprep.mubr.bf16.mxu0 %v1878
  %6105 = vmatmul.mubr.bf16.gmra.mxu0 %v1877
  %v6106 = vpop.f32.mrf.mxu0
  %v6107 = vadd.f32 %v5946, %v6106
  %v6108 = vpop.f32.mrf.mxu0
  %v6109 = vpop.f32.mrf.mxu0
  %v6110 = vadd.f32 %v5949, %v6109
  %v6111 = vpop.f32.mrf.mxu0
  %6112 = vmatprep.mubr.bf16.mxu0 %v1882
  %6113 = vmatmul.mubr.bf16.gmra.mxu0 %v1881
  %v6114 = vpop.f32.mrf.mxu0
  %v6115 = vadd.f32 %v5954, %v6114
  %v6116 = vpop.f32.mrf.mxu0
  %v6117 = vpop.f32.mrf.mxu0
  %v6118 = vadd.f32 %v5957, %v6117
  %v6119 = vpop.f32.mrf.mxu0
  %6120 = vmatprep.mubr.bf16.mxu0 %v1886
  %6121 = vmatmul.mubr.bf16.gmra.mxu0 %v1885
  %v6122 = vpop.f32.mrf.mxu0
  %v6123 = vadd.f32 %v5962, %v6122
  %v6124 = vpop.f32.mrf.mxu0
  %v6125 = vpop.f32.mrf.mxu0
  %v6126 = vadd.f32 %v5965, %v6125
  %v6127 = vpop.f32.mrf.mxu0
  %6128 = vmatprep.mubr.bf16.mxu0 %v1890
  %6129 = vmatmul.mubr.bf16.gmra.mxu0 %v1889
  %v6130 = vpop.f32.mrf.mxu0
  %v6131 = vadd.f32 %v5970, %v6130
  %v6132 = vpop.f32.mrf.mxu0
  %v6133 = vpop.f32.mrf.mxu0
  %v6134 = vadd.f32 %v5973, %v6133
  %v6135 = vpop.f32.mrf.mxu0
  %6136 = vmatprep.mubr.bf16.mxu0 %v1894
  %6137 = vmatmul.mubr.bf16.gmra.mxu0 %v1893
  %v6138 = vpop.f32.mrf.mxu0
  %v6139 = vadd.f32 %v5978, %v6138
  %v6140 = vpop.f32.mrf.mxu0
  %v6141 = vpop.f32.mrf.mxu0
  %v6142 = vadd.f32 %v5981, %v6141
  %v6143 = vpop.f32.mrf.mxu0
  %6144 = vmatprep.mubr.bf16.mxu0 %v1898
  %6145 = vmatmul.mubr.bf16.gmra.mxu0 %v1897
  %v6146 = vpop.f32.mrf.mxu0
  %v6147 = vadd.f32 %v5986, %v6146
  %v6148 = vpop.f32.mrf.mxu0
  %v6149 = vpop.f32.mrf.mxu0
  %v6150 = vadd.f32 %v5989, %v6149
  %v6151 = vpop.f32.mrf.mxu0
  %6152 = vmatprep.mubr.bf16.mxu0 %v1902
  %6153 = vmatmul.mubr.bf16.gmra.mxu0 %v1901
  %v6154 = vpop.f32.mrf.mxu0
  %v6155 = vadd.f32 %v5994, %v6154
  %v6156 = vpop.f32.mrf.mxu0
  %v6157 = vpop.f32.mrf.mxu0
  %v6158 = vadd.f32 %v5997, %v6157
  %v6159 = vpop.f32.mrf.mxu0
  %6160 = vdwg.mxu0
  %v6161 = vld [vmem:[%s1 + $0x20] sm:$0xff]
  %v6162 = vld [vmem:[%s1 + $0x28] sm:$0xff]
  %v6163 = vld [vmem:[%s1 + $0x50] sm:$0xff]
  %v6164 = vld [vmem:[%s1 + $0x58] sm:$0xff]
  %v6165 = vld [vmem:[%s1 + $0x80] sm:$0xff]
  %v6166 = vld [vmem:[%s1 + $0x88] sm:$0xff]
  %v6167 = vld [vmem:[%s1 + $0xb0] sm:$0xff]
  %v6168 = vld [vmem:[%s1 + $0xb8] sm:$0xff]
  %v6169 = vld [vmem:[%s1 + $0xe0] sm:$0xff]
  %v6170 = vld [vmem:[%s1 + $0xe8] sm:$0xff]
  %v6171 = vld [vmem:[%s1 + $0x110] sm:$0xff]
  %v6172 = vld [vmem:[%s1 + $0x118] sm:$0xff]
  %v6173 = vld [vmem:[%s1 + $0x140] sm:$0xff]
  %v6174 = vld [vmem:[%s1 + $0x148] sm:$0xff]
  %v6175 = vld [vmem:[%s1 + $0x170] sm:$0xff]
  %v6176 = vld [vmem:[%s1 + $0x178] sm:$0xff]
  %v6177 = vld [vmem:[%s1 + $0x1a0] sm:$0xff]
  %v6178 = vld [vmem:[%s1 + $0x1a8] sm:$0xff]
  %v6179 = vld [vmem:[%s1 + $0x1d0] sm:$0xff]
  %v6180 = vld [vmem:[%s1 + $0x1d8] sm:$0xff]
  %v6181 = vld [vmem:[%s1 + $0x200] sm:$0xff]
  %v6182 = vld [vmem:[%s1 + $0x208] sm:$0xff]
  %v6183 = vld [vmem:[%s1 + $0x230] sm:$0xff]
  %v6184 = vld [vmem:[%s1 + $0x238] sm:$0xff]
  %v6185 = vld [vmem:[%s1 + $0x260] sm:$0xff]
  %v6186 = vld [vmem:[%s1 + $0x268] sm:$0xff]
  %v6187 = vld [vmem:[%s1 + $0x290] sm:$0xff]
  %v6188 = vld [vmem:[%s1 + $0x298] sm:$0xff]
  %v6189 = vld [vmem:[%s1 + $0x2c0] sm:$0xff]
  %v6190 = vld [vmem:[%s1 + $0x2c8] sm:$0xff]
  %v6191 = vld [vmem:[%s1 + $0x2f0] sm:$0xff]
  %v6192 = vld [vmem:[%s1 + $0x2f8] sm:$0xff]
  %v6193 = vld [vmem:[%s1 + $0x320] sm:$0xff]
  %v6194 = vld [vmem:[%s1 + $0x328] sm:$0xff]
  %v6195 = vld [vmem:[%s1 + $0x350] sm:$0xff]
  %v6196 = vld [vmem:[%s1 + $0x358] sm:$0xff]
  %v6197 = vld [vmem:[%s1 + $0x380] sm:$0xff]
  %v6198 = vld [vmem:[%s1 + $0x388] sm:$0xff]
  %v6199 = vld [vmem:[%s1 + $0x3b0] sm:$0xff]
  %v6200 = vld [vmem:[%s1 + $0x3b8] sm:$0xff]
  %v6201 = vld [vmem:[%s1 + $0x3e0] sm:$0xff]
  %v6202 = vld [vmem:[%s1 + $0x3e8] sm:$0xff]
  %v6203 = vld [vmem:[%s1 + $0x410] sm:$0xff]
  %v6204 = vld [vmem:[%s1 + $0x418] sm:$0xff]
  %v6205 = vld [vmem:[%s1 + $0x440] sm:$0xff]
  %v6206 = vld [vmem:[%s1 + $0x448] sm:$0xff]
  %v6207 = vld [vmem:[%s1 + $0x470] sm:$0xff]
  %v6208 = vld [vmem:[%s1 + $0x478] sm:$0xff]
  %v6209 = vld [vmem:[%s1 + $0x4a0] sm:$0xff]
  %v6210 = vld [vmem:[%s1 + $0x4a8] sm:$0xff]
  %v6211 = vld [vmem:[%s1 + $0x4d0] sm:$0xff]
  %v6212 = vld [vmem:[%s1 + $0x4d8] sm:$0xff]
  %v6213 = vld [vmem:[%s1 + $0x500] sm:$0xff]
  %v6214 = vld [vmem:[%s1 + $0x508] sm:$0xff]
  %v6215 = vld [vmem:[%s1 + $0x530] sm:$0xff]
  %v6216 = vld [vmem:[%s1 + $0x538] sm:$0xff]
  %v6217 = vld [vmem:[%s1 + $0x560] sm:$0xff]
  %v6218 = vld [vmem:[%s1 + $0x568] sm:$0xff]
  %v6219 = vld [vmem:[%s1 + $0x590] sm:$0xff]
  %v6220 = vld [vmem:[%s1 + $0x598] sm:$0xff]
  %v6221 = vld [vmem:[%s1 + $0x5c0] sm:$0xff]
  %v6222 = vld [vmem:[%s1 + $0x5c8] sm:$0xff]
  %v6223 = vld [vmem:[%s1 + $0x5f0] sm:$0xff]
  %v6224 = vld [vmem:[%s1 + $0x5f8] sm:$0xff]
  %v6225 = vld [vmem:[%s1 + $0x620] sm:$0xff]
  %v6226 = vld [vmem:[%s1 + $0x628] sm:$0xff]
  %v6227 = vld [vmem:[%s1 + $0x650] sm:$0xff]
  %v6228 = vld [vmem:[%s1 + $0x658] sm:$0xff]
  %v6229 = vld [vmem:[%s1 + $0x680] sm:$0xff]
  %v6230 = vld [vmem:[%s1 + $0x688] sm:$0xff]
  %v6231 = vld [vmem:[%s1 + $0x6b0] sm:$0xff]
  %v6232 = vld [vmem:[%s1 + $0x6b8] sm:$0xff]
  %v6233 = vld [vmem:[%s1 + $0x6e0] sm:$0xff]
  %v6234 = vld [vmem:[%s1 + $0x6e8] sm:$0xff]
  %v6235 = vld [vmem:[%s1 + $0x710] sm:$0xff]
  %v6236 = vld [vmem:[%s1 + $0x718] sm:$0xff]
  %v6237 = vld [vmem:[%s1 + $0x740] sm:$0xff]
  %v6238 = vld [vmem:[%s1 + $0x748] sm:$0xff]
  %v6239 = vld [vmem:[%s1 + $0x770] sm:$0xff]
  %v6240 = vld [vmem:[%s1 + $0x778] sm:$0xff]
  %v6241 = vld [vmem:[%s1 + $0x7a0] sm:$0xff]
  %v6242 = vld [vmem:[%s1 + $0x7a8] sm:$0xff]
  %v6243 = vld [vmem:[%s1 + $0x7d0] sm:$0xff]
  %v6244 = vld [vmem:[%s1 + $0x7d8] sm:$0xff]
  %v6245 = vld [vmem:[%s1 + $0x800] sm:$0xff]
  %v6246 = vld [vmem:[%s1 + $0x808] sm:$0xff]
  %v6247 = vld [vmem:[%s1 + $0x830] sm:$0xff]
  %v6248 = vld [vmem:[%s1 + $0x838] sm:$0xff]
  %v6249 = vld [vmem:[%s1 + $0x860] sm:$0xff]
  %v6250 = vld [vmem:[%s1 + $0x868] sm:$0xff]
  %v6251 = vld [vmem:[%s1 + $0x890] sm:$0xff]
  %v6252 = vld [vmem:[%s1 + $0x898] sm:$0xff]
  %v6253 = vld [vmem:[%s1 + $0x8c0] sm:$0xff]
  %v6254 = vld [vmem:[%s1 + $0x8c8] sm:$0xff]
  %v6255 = vld [vmem:[%s1 + $0x8f0] sm:$0xff]
  %v6256 = vld [vmem:[%s1 + $0x8f8] sm:$0xff]
  %v6257 = vld [vmem:[%s2 + $0x8] sm:$0xf]
  %v6259 = vlaneseq
  %v6260 = vshrl.u32 %v6259, 7
  %v6261 = vsub.s32 0, %v6260
  %v6262 = vrot.slane %v6257, %v6261
  %v6263 = vlaneseq
  %v6264 = vshrl.u32 %v6263, 7
  %v6265 = vsub.s32 1, %v6264
  %v6266 = vrot.slane %v6257, %v6265
  %v6267 = vlaneseq
  %v6268 = vshrl.u32 %v6267, 7
  %v6269 = vsub.s32 2, %v6268
  %v6270 = vrot.slane %v6257, %v6269
  %v6271 = vlaneseq
  %v6272 = vshrl.u32 %v6271, 7
  %v6273 = vsub.s32 3, %v6272
  %v6274 = vrot.slane %v6257, %v6273
  %v6375 = vunpack.c.l.b16 %v6161
  %v6376 = vunpack.c.h.b16 %v6161
  %v6377 = vunpack.c.l.b16 %v6162
  %v6378 = vunpack.c.h.b16 %v6162
  %v6379 = vunpack.c.l.b16 %v6163
  %v6380 = vunpack.c.h.b16 %v6163
  %v6381 = vunpack.c.l.b16 %v6164
  %v6382 = vunpack.c.h.b16 %v6164
  %v6383 = vunpack.c.l.b16 %v6165
  %v6384 = vunpack.c.h.b16 %v6165
  %v6385 = vunpack.c.l.b16 %v6166
  %v6386 = vunpack.c.h.b16 %v6166
  %v6387 = vunpack.c.l.b16 %v6167
  %v6388 = vunpack.c.h.b16 %v6167
  %v6389 = vunpack.c.l.b16 %v6168
  %v6390 = vunpack.c.h.b16 %v6168
  %v6391 = vunpack.c.l.b16 %v6169
  %v6392 = vunpack.c.h.b16 %v6169
  %v6393 = vunpack.c.l.b16 %v6170
  %v6394 = vunpack.c.h.b16 %v6170
  %v6395 = vunpack.c.l.b16 %v6171
  %v6396 = vunpack.c.h.b16 %v6171
  %v6397 = vunpack.c.l.b16 %v6172
  %v6398 = vunpack.c.h.b16 %v6172
  %v6399 = vunpack.c.l.b16 %v6173
  %v6400 = vunpack.c.h.b16 %v6173
  %v6401 = vunpack.c.l.b16 %v6174
  %v6402 = vunpack.c.h.b16 %v6174
  %v6403 = vunpack.c.l.b16 %v6175
  %v6404 = vunpack.c.h.b16 %v6175
  %v6405 = vunpack.c.l.b16 %v6176
  %v6406 = vunpack.c.h.b16 %v6176
  %v6407 = vunpack.c.l.b16 %v6177
  %v6408 = vunpack.c.h.b16 %v6177
  %v6409 = vunpack.c.l.b16 %v6178
  %v6410 = vunpack.c.h.b16 %v6178
  %v6411 = vunpack.c.l.b16 %v6179
  %v6412 = vunpack.c.h.b16 %v6179
  %v6413 = vunpack.c.l.b16 %v6180
  %v6414 = vunpack.c.h.b16 %v6180
  %v6415 = vunpack.c.l.b16 %v6181
  %v6416 = vunpack.c.h.b16 %v6181
  %v6417 = vunpack.c.l.b16 %v6182
  %v6418 = vunpack.c.h.b16 %v6182
  %v6419 = vunpack.c.l.b16 %v6183
  %v6420 = vunpack.c.h.b16 %v6183
  %v6421 = vunpack.c.l.b16 %v6184
  %v6422 = vunpack.c.h.b16 %v6184
  %v6423 = vunpack.c.l.b16 %v6185
  %v6424 = vunpack.c.h.b16 %v6185
  %v6425 = vunpack.c.l.b16 %v6186
  %v6426 = vunpack.c.h.b16 %v6186
  %v6427 = vunpack.c.l.b16 %v6187
  %v6428 = vunpack.c.h.b16 %v6187
  %v6429 = vunpack.c.l.b16 %v6188
  %v6430 = vunpack.c.h.b16 %v6188
  %v6431 = vunpack.c.l.b16 %v6189
  %v6432 = vunpack.c.h.b16 %v6189
  %v6433 = vunpack.c.l.b16 %v6190
  %v6434 = vunpack.c.h.b16 %v6190
  %v6435 = vunpack.c.l.b16 %v6191
  %v6436 = vunpack.c.h.b16 %v6191
  %v6437 = vunpack.c.l.b16 %v6192
  %v6438 = vunpack.c.h.b16 %v6192
  %v6439 = vunpack.c.l.b16 %v6193
  %v6440 = vunpack.c.h.b16 %v6193
  %v6441 = vunpack.c.l.b16 %v6194
  %v6442 = vunpack.c.h.b16 %v6194
  %v6443 = vunpack.c.l.b16 %v6195
  %v6444 = vunpack.c.h.b16 %v6195
  %v6445 = vunpack.c.l.b16 %v6196
  %v6446 = vunpack.c.h.b16 %v6196
  %v6447 = vunpack.c.l.b16 %v6197
  %v6448 = vunpack.c.h.b16 %v6197
  %v6449 = vunpack.c.l.b16 %v6198
  %v6450 = vunpack.c.h.b16 %v6198
  %v6451 = vunpack.c.l.b16 %v6199
  %v6452 = vunpack.c.h.b16 %v6199
  %v6453 = vunpack.c.l.b16 %v6200
  %v6454 = vunpack.c.h.b16 %v6200
  %v6455 = vunpack.c.l.b16 %v6201
  %v6456 = vunpack.c.h.b16 %v6201
  %v6457 = vunpack.c.l.b16 %v6202
  %v6458 = vunpack.c.h.b16 %v6202
  %v6459 = vunpack.c.l.b16 %v6203
  %v6460 = vunpack.c.h.b16 %v6203
  %v6461 = vunpack.c.l.b16 %v6204
  %v6462 = vunpack.c.h.b16 %v6204
  %v6463 = vunpack.c.l.b16 %v6205
  %v6464 = vunpack.c.h.b16 %v6205
  %v6465 = vunpack.c.l.b16 %v6206
  %v6466 = vunpack.c.h.b16 %v6206
  %v6467 = vunpack.c.l.b16 %v6207
  %v6468 = vunpack.c.h.b16 %v6207
  %v6469 = vunpack.c.l.b16 %v6208
  %v6470 = vunpack.c.h.b16 %v6208
  %v6471 = vunpack.c.l.b16 %v6209
  %v6472 = vunpack.c.h.b16 %v6209
  %v6473 = vunpack.c.l.b16 %v6210
  %v6474 = vunpack.c.h.b16 %v6210
  %v6475 = vunpack.c.l.b16 %v6211
  %v6476 = vunpack.c.h.b16 %v6211
  %v6477 = vunpack.c.l.b16 %v6212
  %v6478 = vunpack.c.h.b16 %v6212
  %v6479 = vunpack.c.l.b16 %v6213
  %v6480 = vunpack.c.h.b16 %v6213
  %v6481 = vunpack.c.l.b16 %v6214
  %v6482 = vunpack.c.h.b16 %v6214
  %v6483 = vunpack.c.l.b16 %v6215
  %v6484 = vunpack.c.h.b16 %v6215
  %v6485 = vunpack.c.l.b16 %v6216
  %v6486 = vunpack.c.h.b16 %v6216
  %v6487 = vunpack.c.l.b16 %v6217
  %v6488 = vunpack.c.h.b16 %v6217
  %v6489 = vunpack.c.l.b16 %v6218
  %v6490 = vunpack.c.h.b16 %v6218
  %v6491 = vunpack.c.l.b16 %v6219
  %v6492 = vunpack.c.h.b16 %v6219
  %v6493 = vunpack.c.l.b16 %v6220
  %v6494 = vunpack.c.h.b16 %v6220
  %v6495 = vunpack.c.l.b16 %v6221
  %v6496 = vunpack.c.h.b16 %v6221
  %v6497 = vunpack.c.l.b16 %v6222
  %v6498 = vunpack.c.h.b16 %v6222
  %v6499 = vunpack.c.l.b16 %v6223
  %v6500 = vunpack.c.h.b16 %v6223
  %v6501 = vunpack.c.l.b16 %v6224
  %v6502 = vunpack.c.h.b16 %v6224
  %v6503 = vunpack.c.l.b16 %v6225
  %v6504 = vunpack.c.h.b16 %v6225
  %v6505 = vunpack.c.l.b16 %v6226
  %v6506 = vunpack.c.h.b16 %v6226
  %v6507 = vunpack.c.l.b16 %v6227
  %v6508 = vunpack.c.h.b16 %v6227
  %v6509 = vunpack.c.l.b16 %v6228
  %v6510 = vunpack.c.h.b16 %v6228
  %v6511 = vunpack.c.l.b16 %v6229
  %v6512 = vunpack.c.h.b16 %v6229
  %v6513 = vunpack.c.l.b16 %v6230
  %v6514 = vunpack.c.h.b16 %v6230
  %v6515 = vunpack.c.l.b16 %v6231
  %v6516 = vunpack.c.h.b16 %v6231
  %v6517 = vunpack.c.l.b16 %v6232
  %v6518 = vunpack.c.h.b16 %v6232
  %v6519 = vunpack.c.l.b16 %v6233
  %v6520 = vunpack.c.h.b16 %v6233
  %v6521 = vunpack.c.l.b16 %v6234
  %v6522 = vunpack.c.h.b16 %v6234
  %v6523 = vunpack.c.l.b16 %v6235
  %v6524 = vunpack.c.h.b16 %v6235
  %v6525 = vunpack.c.l.b16 %v6236
  %v6526 = vunpack.c.h.b16 %v6236
  %v6527 = vunpack.c.l.b16 %v6237
  %v6528 = vunpack.c.h.b16 %v6237
  %v6529 = vunpack.c.l.b16 %v6238
  %v6530 = vunpack.c.h.b16 %v6238
  %v6531 = vunpack.c.l.b16 %v6239
  %v6532 = vunpack.c.h.b16 %v6239
  %v6533 = vunpack.c.l.b16 %v6240
  %v6534 = vunpack.c.h.b16 %v6240
  %v6535 = vunpack.c.l.b16 %v6241
  %v6536 = vunpack.c.h.b16 %v6241
  %v6537 = vunpack.c.l.b16 %v6242
  %v6538 = vunpack.c.h.b16 %v6242
  %v6539 = vunpack.c.l.b16 %v6243
  %v6540 = vunpack.c.h.b16 %v6243
  %v6541 = vunpack.c.l.b16 %v6244
  %v6542 = vunpack.c.h.b16 %v6244
  %v6543 = vunpack.c.l.b16 %v6245
  %v6544 = vunpack.c.h.b16 %v6245
  %v6545 = vunpack.c.l.b16 %v6246
  %v6546 = vunpack.c.h.b16 %v6246
  %v6547 = vunpack.c.l.b16 %v6247
  %v6548 = vunpack.c.h.b16 %v6247
  %v6549 = vunpack.c.l.b16 %v6248
  %v6550 = vunpack.c.h.b16 %v6248
  %v6551 = vunpack.c.l.b16 %v6249
  %v6552 = vunpack.c.h.b16 %v6249
  %v6553 = vunpack.c.l.b16 %v6250
  %v6554 = vunpack.c.h.b16 %v6250
  %v6555 = vunpack.c.l.b16 %v6251
  %v6556 = vunpack.c.h.b16 %v6251
  %v6557 = vunpack.c.l.b16 %v6252
  %v6558 = vunpack.c.h.b16 %v6252
  %v6559 = vunpack.c.l.b16 %v6253
  %v6560 = vunpack.c.h.b16 %v6253
  %v6561 = vunpack.c.l.b16 %v6254
  %v6562 = vunpack.c.h.b16 %v6254
  %v6563 = vunpack.c.l.b16 %v6255
  %v6564 = vunpack.c.h.b16 %v6255
  %v6565 = vunpack.c.l.b16 %v6256
  %v6566 = vunpack.c.h.b16 %v6256
  %v6567 = vpack.c.b16 %v6379, %v6375
  %v6568 = vpack.c.b16 %v6380, %v6376
  %v6569 = vpack.c.b16 %v6381, %v6377
  %v6570 = vpack.c.b16 %v6382, %v6378
  %v6571 = vpack.c.b16 %v6387, %v6383
  %v6572 = vpack.c.b16 %v6388, %v6384
  %v6573 = vpack.c.b16 %v6389, %v6385
  %v6574 = vpack.c.b16 %v6390, %v6386
  %v6575 = vpack.c.b16 %v6395, %v6391
  %v6576 = vpack.c.b16 %v6396, %v6392
  %v6577 = vpack.c.b16 %v6397, %v6393
  %v6578 = vpack.c.b16 %v6398, %v6394
  %v6579 = vpack.c.b16 %v6403, %v6399
  %v6580 = vpack.c.b16 %v6404, %v6400
  %v6581 = vpack.c.b16 %v6405, %v6401
  %v6582 = vpack.c.b16 %v6406, %v6402
  %v6583 = vpack.c.b16 %v6411, %v6407
  %v6584 = vpack.c.b16 %v6412, %v6408
  %v6585 = vpack.c.b16 %v6413, %v6409
  %v6586 = vpack.c.b16 %v6414, %v6410
  %v6587 = vpack.c.b16 %v6419, %v6415
  %v6588 = vpack.c.b16 %v6420, %v6416
  %v6589 = vpack.c.b16 %v6421, %v6417
  %v6590 = vpack.c.b16 %v6422, %v6418
  %v6591 = vpack.c.b16 %v6427, %v6423
  %v6592 = vpack.c.b16 %v6428, %v6424
  %v6593 = vpack.c.b16 %v6429, %v6425
  %v6594 = vpack.c.b16 %v6430, %v6426
  %v6595 = vpack.c.b16 %v6435, %v6431
  %v6596 = vpack.c.b16 %v6436, %v6432
  %v6597 = vpack.c.b16 %v6437, %v6433
  %v6598 = vpack.c.b16 %v6438, %v6434
  %v6599 = vpack.c.b16 %v6443, %v6439
  %v6600 = vpack.c.b16 %v6444, %v6440
  %v6601 = vpack.c.b16 %v6445, %v6441
  %v6602 = vpack.c.b16 %v6446, %v6442
  %v6603 = vpack.c.b16 %v6451, %v6447
  %v6604 = vpack.c.b16 %v6452, %v6448
  %v6605 = vpack.c.b16 %v6453, %v6449
  %v6606 = vpack.c.b16 %v6454, %v6450
  %v6607 = vpack.c.b16 %v6459, %v6455
  %v6608 = vpack.c.b16 %v6460, %v6456
  %v6609 = vpack.c.b16 %v6461, %v6457
  %v6610 = vpack.c.b16 %v6462, %v6458
  %v6611 = vpack.c.b16 %v6467, %v6463
  %v6612 = vpack.c.b16 %v6468, %v6464
  %v6613 = vpack.c.b16 %v6469, %v6465
  %v6614 = vpack.c.b16 %v6470, %v6466
  %v6615 = vpack.c.b16 %v6475, %v6471
  %v6616 = vpack.c.b16 %v6476, %v6472
  %v6617 = vpack.c.b16 %v6477, %v6473
  %v6618 = vpack.c.b16 %v6478, %v6474
  %v6619 = vpack.c.b16 %v6483, %v6479
  %v6620 = vpack.c.b16 %v6484, %v6480
  %v6621 = vpack.c.b16 %v6485, %v6481
  %v6622 = vpack.c.b16 %v6486, %v6482
  %v6623 = vpack.c.b16 %v6491, %v6487
  %v6624 = vpack.c.b16 %v6492, %v6488
  %v6625 = vpack.c.b16 %v6493, %v6489
  %v6626 = vpack.c.b16 %v6494, %v6490
  %v6627 = vpack.c.b16 %v6499, %v6495
  %v6628 = vpack.c.b16 %v6500, %v6496
  %v6629 = vpack.c.b16 %v6501, %v6497
  %v6630 = vpack.c.b16 %v6502, %v6498
  %v6631 = vpack.c.b16 %v6507, %v6503
  %v6632 = vpack.c.b16 %v6508, %v6504
  %v6633 = vpack.c.b16 %v6509, %v6505
  %v6634 = vpack.c.b16 %v6510, %v6506
  %v6635 = vpack.c.b16 %v6515, %v6511
  %v6636 = vpack.c.b16 %v6516, %v6512
  %v6637 = vpack.c.b16 %v6517, %v6513
  %v6638 = vpack.c.b16 %v6518, %v6514
  %v6639 = vpack.c.b16 %v6523, %v6519
  %v6640 = vpack.c.b16 %v6524, %v6520
  %v6641 = vpack.c.b16 %v6525, %v6521
  %v6642 = vpack.c.b16 %v6526, %v6522
  %v6643 = vpack.c.b16 %v6531, %v6527
  %v6644 = vpack.c.b16 %v6532, %v6528
  %v6645 = vpack.c.b16 %v6533, %v6529
  %v6646 = vpack.c.b16 %v6534, %v6530
  %v6647 = vpack.c.b16 %v6539, %v6535
  %v6648 = vpack.c.b16 %v6540, %v6536
  %v6649 = vpack.c.b16 %v6541, %v6537
  %v6650 = vpack.c.b16 %v6542, %v6538
  %v6651 = vpack.c.b16 %v6547, %v6543
  %v6652 = vpack.c.b16 %v6548, %v6544
  %v6653 = vpack.c.b16 %v6549, %v6545
  %v6654 = vpack.c.b16 %v6550, %v6546
  %v6655 = vpack.c.b16 %v6555, %v6551
  %v6656 = vpack.c.b16 %v6556, %v6552
  %v6657 = vpack.c.b16 %v6557, %v6553
  %v6658 = vpack.c.b16 %v6558, %v6554
  %v6659 = vpack.c.b16 %v6563, %v6559
  %v6660 = vpack.c.b16 %v6564, %v6560
  %v6661 = vpack.c.b16 %v6565, %v6561
  %v6662 = vpack.c.b16 %v6566, %v6562
  %6759 = vmatprep.subr.bf16.mxu0 %v6596
  %6760 = vmatpush1.bf16.msra.mxu0 %v6595
  %6761 = vmatprep.subr.bf16.mxu0 %v6592
  %6762 = vmatpush1.bf16.msra.mxu0 %v6591
  %6763 = vmatprep.subr.bf16.mxu0 %v6588
  %6764 = vmatpush1.bf16.msra.mxu0 %v6587
  %6765 = vmatprep.subr.bf16.mxu0 %v6584
  %6766 = vmatpush1.bf16.msra.mxu0 %v6583
  %6767 = vmatprep.subr.bf16.mxu0 %v6580
  %6768 = vmatpush1.bf16.msra.mxu0 %v6579
  %6769 = vmatprep.subr.bf16.mxu0 %v6576
  %6770 = vmatpush1.bf16.msra.mxu0 %v6575
  %6771 = vmatprep.subr.bf16.mxu0 %v6572
  %6772 = vmatpush1.bf16.msra.mxu0 %v6571
  %6773 = vmatprep.subr.bf16.mxu0 %v6568
  %6774 = vmatpush1.bf16.msra.mxu0 %v6567
  %6775 = vmatprep.subr.bf16.mxu0 %v6628
  %6776 = vmatpush2.bf16.msra.mxu0 %v6627
  %6777 = vmatprep.subr.bf16.mxu0 %v6624
  %6778 = vmatpush2.bf16.msra.mxu0 %v6623
  %6779 = vmatprep.subr.bf16.mxu0 %v6620
  %6780 = vmatpush2.bf16.msra.mxu0 %v6619
  %6781 = vmatprep.subr.bf16.mxu0 %v6616
  %6782 = vmatpush2.bf16.msra.mxu0 %v6615
  %6783 = vmatprep.subr.bf16.mxu0 %v6612
  %6784 = vmatpush2.bf16.msra.mxu0 %v6611
  %6785 = vmatprep.subr.bf16.mxu0 %v6608
  %6786 = vmatpush2.bf16.msra.mxu0 %v6607
  %6787 = vmatprep.subr.bf16.mxu0 %v6604
  %6788 = vmatpush2.bf16.msra.mxu0 %v6603
  %6789 = vmatprep.subr.bf16.mxu0 %v6600
  %6790 = vmatpush2.bf16.msra.mxu0 %v6599
  %6791 = vmatprep.mubr.bf16.mxu0 %v364
  %6792 = vmatmul.mubr.bf16.gmra.mxu0 %v363
  %v6793 = vpop.f32.mrf.mxu0
  %v6794 = vadd.f32 %v6262, %v6793
  %v6795 = vpop.f32.mrf.mxu0
  %v6796 = vadd.f32 %v6266, %v6795
  %v6797 = vpop.f32.mrf.mxu0
  %v6798 = vadd.f32 %v6262, %v6797
  %v6799 = vpop.f32.mrf.mxu0
  %v6800 = vadd.f32 %v6266, %v6799
  %6801 = vmatprep.mubr.bf16.mxu0 %v367
  %6802 = vmatmul.mubr.bf16.gmra.mxu0 %v366
  %v6803 = vpop.f32.mrf.mxu0
  %v6804 = vadd.f32 %v6262, %v6803
  %v6805 = vpop.f32.mrf.mxu0
  %v6806 = vadd.f32 %v6266, %v6805
  %v6807 = vpop.f32.mrf.mxu0
  %v6808 = vadd.f32 %v6262, %v6807
  %v6809 = vpop.f32.mrf.mxu0
  %v6810 = vadd.f32 %v6266, %v6809
  %6811 = vmatprep.mubr.bf16.mxu0 %v370
  %6812 = vmatmul.mubr.bf16.gmra.mxu0 %v369
  %v6813 = vpop.f32.mrf.mxu0
  %v6814 = vadd.f32 %v6262, %v6813
  %v6815 = vpop.f32.mrf.mxu0
  %v6816 = vadd.f32 %v6266, %v6815
  %v6817 = vpop.f32.mrf.mxu0
  %v6818 = vadd.f32 %v6262, %v6817
  %v6819 = vpop.f32.mrf.mxu0
  %v6820 = vadd.f32 %v6266, %v6819
  %6821 = vmatprep.mubr.bf16.mxu0 %v373
  %6822 = vmatmul.mubr.bf16.gmra.mxu0 %v372
  %v6823 = vpop.f32.mrf.mxu0
  %v6824 = vadd.f32 %v6262, %v6823
  %v6825 = vpop.f32.mrf.mxu0
  %v6826 = vadd.f32 %v6266, %v6825
  %v6827 = vpop.f32.mrf.mxu0
  %v6828 = vadd.f32 %v6262, %v6827
  %v6829 = vpop.f32.mrf.mxu0
  %v6830 = vadd.f32 %v6266, %v6829
  %6831 = vmatprep.mubr.bf16.mxu0 %v376
  %6832 = vmatmul.mubr.bf16.gmra.mxu0 %v375
  %v6833 = vpop.f32.mrf.mxu0
  %v6834 = vadd.f32 %v6262, %v6833
  %v6835 = vpop.f32.mrf.mxu0
  %v6836 = vadd.f32 %v6266, %v6835
  %v6837 = vpop.f32.mrf.mxu0
  %v6838 = vadd.f32 %v6262, %v6837
  %v6839 = vpop.f32.mrf.mxu0
  %v6840 = vadd.f32 %v6266, %v6839
  %6841 = vmatprep.mubr.bf16.mxu0 %v379
  %6842 = vmatmul.mubr.bf16.gmra.mxu0 %v378
  %v6843 = vpop.f32.mrf.mxu0
  %v6844 = vadd.f32 %v6262, %v6843
  %v6845 = vpop.f32.mrf.mxu0
  %v6846 = vadd.f32 %v6266, %v6845
  %v6847 = vpop.f32.mrf.mxu0
  %v6848 = vadd.f32 %v6262, %v6847
  %v6849 = vpop.f32.mrf.mxu0
  %v6850 = vadd.f32 %v6266, %v6849
  %6851 = vmatprep.mubr.bf16.mxu0 %v382
  %6852 = vmatmul.mubr.bf16.gmra.mxu0 %v381
  %v6853 = vpop.f32.mrf.mxu0
  %v6854 = vadd.f32 %v6262, %v6853
  %v6855 = vpop.f32.mrf.mxu0
  %v6856 = vadd.f32 %v6266, %v6855
  %v6857 = vpop.f32.mrf.mxu0
  %v6858 = vadd.f32 %v6262, %v6857
  %v6859 = vpop.f32.mrf.mxu0
  %v6860 = vadd.f32 %v6266, %v6859
  %6861 = vmatprep.mubr.bf16.mxu0 %v385
  %6862 = vmatmul.mubr.bf16.gmra.mxu0 %v384
  %v6863 = vpop.f32.mrf.mxu0
  %v6864 = vadd.f32 %v6262, %v6863
  %v6865 = vpop.f32.mrf.mxu0
  %v6866 = vadd.f32 %v6266, %v6865
  %v6867 = vpop.f32.mrf.mxu0
  %v6868 = vadd.f32 %v6262, %v6867
  %v6869 = vpop.f32.mrf.mxu0
  %v6870 = vadd.f32 %v6266, %v6869
  %6871 = vmatprep.mubr.bf16.mxu0 %v388
  %6872 = vmatmul.mubr.bf16.gmra.mxu0 %v387
  %v6873 = vpop.f32.mrf.mxu0
  %v6874 = vadd.f32 %v6262, %v6873
  %v6875 = vpop.f32.mrf.mxu0
  %v6876 = vadd.f32 %v6266, %v6875
  %v6877 = vpop.f32.mrf.mxu0
  %v6878 = vadd.f32 %v6262, %v6877
  %v6879 = vpop.f32.mrf.mxu0
  %v6880 = vadd.f32 %v6266, %v6879
  %6881 = vmatprep.mubr.bf16.mxu0 %v391
  %6882 = vmatmul.mubr.bf16.gmra.mxu0 %v390
  %v6883 = vpop.f32.mrf.mxu0
  %v6884 = vadd.f32 %v6262, %v6883
  %v6885 = vpop.f32.mrf.mxu0
  %v6886 = vadd.f32 %v6266, %v6885
  %v6887 = vpop.f32.mrf.mxu0
  %v6888 = vadd.f32 %v6262, %v6887
  %v6889 = vpop.f32.mrf.mxu0
  %v6890 = vadd.f32 %v6266, %v6889
  %6891 = vmatprep.mubr.bf16.mxu0 %v394
  %6892 = vmatmul.mubr.bf16.gmra.mxu0 %v393
  %v6893 = vpop.f32.mrf.mxu0
  %v6894 = vadd.f32 %v6262, %v6893
  %v6895 = vpop.f32.mrf.mxu0
  %v6896 = vadd.f32 %v6266, %v6895
  %v6897 = vpop.f32.mrf.mxu0
  %v6898 = vadd.f32 %v6262, %v6897
  %v6899 = vpop.f32.mrf.mxu0
  %v6900 = vadd.f32 %v6266, %v6899
  %6901 = vmatprep.mubr.bf16.mxu0 %v397
  %6902 = vmatmul.mubr.bf16.gmra.mxu0 %v396
  %v6903 = vpop.f32.mrf.mxu0
  %v6904 = vadd.f32 %v6262, %v6903
  %v6905 = vpop.f32.mrf.mxu0
  %v6906 = vadd.f32 %v6266, %v6905
  %v6907 = vpop.f32.mrf.mxu0
  %v6908 = vadd.f32 %v6262, %v6907
  %v6909 = vpop.f32.mrf.mxu0
  %v6910 = vadd.f32 %v6266, %v6909
  %6911 = vmatprep.mubr.bf16.mxu0 %v400
  %6912 = vmatmul.mubr.bf16.gmra.mxu0 %v399
  %v6913 = vpop.f32.mrf.mxu0
  %v6914 = vadd.f32 %v6262, %v6913
  %v6915 = vpop.f32.mrf.mxu0
  %v6916 = vadd.f32 %v6266, %v6915
  %v6917 = vpop.f32.mrf.mxu0
  %v6918 = vadd.f32 %v6262, %v6917
  %v6919 = vpop.f32.mrf.mxu0
  %v6920 = vadd.f32 %v6266, %v6919
  %6921 = vmatprep.mubr.bf16.mxu0 %v403
  %6922 = vmatmul.mubr.bf16.gmra.mxu0 %v402
  %v6923 = vpop.f32.mrf.mxu0
  %v6924 = vadd.f32 %v6262, %v6923
  %v6925 = vpop.f32.mrf.mxu0
  %v6926 = vadd.f32 %v6266, %v6925
  %v6927 = vpop.f32.mrf.mxu0
  %v6928 = vadd.f32 %v6262, %v6927
  %v6929 = vpop.f32.mrf.mxu0
  %v6930 = vadd.f32 %v6266, %v6929
  %6931 = vmatprep.mubr.bf16.mxu0 %v406
  %6932 = vmatmul.mubr.bf16.gmra.mxu0 %v405
  %v6933 = vpop.f32.mrf.mxu0
  %v6934 = vadd.f32 %v6262, %v6933
  %v6935 = vpop.f32.mrf.mxu0
  %v6936 = vadd.f32 %v6266, %v6935
  %v6937 = vpop.f32.mrf.mxu0
  %v6938 = vadd.f32 %v6262, %v6937
  %v6939 = vpop.f32.mrf.mxu0
  %v6940 = vadd.f32 %v6266, %v6939
  %6941 = vmatprep.mubr.bf16.mxu0 %v409
  %6942 = vmatmul.mubr.bf16.gmra.mxu0 %v408
  %v6943 = vpop.f32.mrf.mxu0
  %v6944 = vadd.f32 %v6262, %v6943
  %v6945 = vpop.f32.mrf.mxu0
  %v6946 = vadd.f32 %v6266, %v6945
  %v6947 = vpop.f32.mrf.mxu0
  %v6948 = vadd.f32 %v6262, %v6947
  %v6949 = vpop.f32.mrf.mxu0
  %v6950 = vadd.f32 %v6266, %v6949
  %6951 = vdwg.mxu0
  %6952 = vmatprep.subr.bf16.mxu0 %v6660
  %6953 = vmatpush1.bf16.msra.mxu0 %v6659
  %6954 = vmatprep.subr.bf16.mxu0 %v6656
  %6955 = vmatpush1.bf16.msra.mxu0 %v6655
  %6956 = vmatprep.subr.bf16.mxu0 %v6652
  %6957 = vmatpush1.bf16.msra.mxu0 %v6651
  %6958 = vmatprep.subr.bf16.mxu0 %v6648
  %6959 = vmatpush1.bf16.msra.mxu0 %v6647
  %6960 = vmatprep.subr.bf16.mxu0 %v6644
  %6961 = vmatpush1.bf16.msra.mxu0 %v6643
  %6962 = vmatprep.subr.bf16.mxu0 %v6640
  %6963 = vmatpush1.bf16.msra.mxu0 %v6639
  %6964 = vmatprep.subr.bf16.mxu0 %v6636
  %6965 = vmatpush1.bf16.msra.mxu0 %v6635
  %6966 = vmatprep.subr.bf16.mxu0 %v6632
  %6967 = vmatpush1.bf16.msra.mxu0 %v6631
  %6968 = vmatprep.subr.bf16.mxu0 0
  %6969 = vmatpush2.bf16.msra.mxu0 0
  %6970 = vmatprep.subr.bf16.mxu0 0
  %6971 = vmatpush2.bf16.msra.mxu0 0
  %6972 = vmatprep.subr.bf16.mxu0 0
  %6973 = vmatpush2.bf16.msra.mxu0 0
  %6974 = vmatprep.subr.bf16.mxu0 0
  %6975 = vmatpush2.bf16.msra.mxu0 0
  %6976 = vmatprep.subr.bf16.mxu0 0
  %6977 = vmatpush2.bf16.msra.mxu0 0
  %6978 = vmatprep.subr.bf16.mxu0 0
  %6979 = vmatpush2.bf16.msra.mxu0 0
  %6980 = vmatprep.subr.bf16.mxu0 0
  %6981 = vmatpush2.bf16.msra.mxu0 0
  %6982 = vmatprep.subr.bf16.mxu0 0
  %6983 = vmatpush2.bf16.msra.mxu0 0
  %6984 = vmatprep.mubr.bf16.mxu0 0
  %6985 = vmatmul.mubr.bf16.gmra.mxu0 %v365
  %v6986 = vpop.f32.mrf.mxu0
  %v6987 = vadd.f32 %v6794, %v6986
  %v6988 = vpop.f32.mrf.mxu0
  %v6989 = vadd.f32 %v6796, %v6988
  %v6990 = vpop.f32.mrf.mxu0
  %v6991 = vadd.f32 %v6798, %v6990
  %v6992 = vpop.f32.mrf.mxu0
  %v6993 = vadd.f32 %v6800, %v6992
  %6994 = vmatprep.mubr.bf16.mxu0 0
  %6995 = vmatmul.mubr.bf16.gmra.mxu0 %v368
  %v6996 = vpop.f32.mrf.mxu0
  %v6997 = vadd.f32 %v6804, %v6996
  %v6998 = vpop.f32.mrf.mxu0
  %v6999 = vadd.f32 %v6806, %v6998
  %v7000 = vpop.f32.mrf.mxu0
  %v7001 = vadd.f32 %v6808, %v7000
  %v7002 = vpop.f32.mrf.mxu0
  %v7003 = vadd.f32 %v6810, %v7002
  %7004 = vmatprep.mubr.bf16.mxu0 0
  %7005 = vmatmul.mubr.bf16.gmra.mxu0 %v371
  %v7006 = vpop.f32.mrf.mxu0
  %v7007 = vadd.f32 %v6814, %v7006
  %v7008 = vpop.f32.mrf.mxu0
  %v7009 = vadd.f32 %v6816, %v7008
  %v7010 = vpop.f32.mrf.mxu0
  %v7011 = vadd.f32 %v6818, %v7010
  %v7012 = vpop.f32.mrf.mxu0
  %v7013 = vadd.f32 %v6820, %v7012
  %7014 = vmatprep.mubr.bf16.mxu0 0
  %7015 = vmatmul.mubr.bf16.gmra.mxu0 %v374
  %v7016 = vpop.f32.mrf.mxu0
  %v7017 = vadd.f32 %v6824, %v7016
  %v7018 = vpop.f32.mrf.mxu0
  %v7019 = vadd.f32 %v6826, %v7018
  %v7020 = vpop.f32.mrf.mxu0
  %v7021 = vadd.f32 %v6828, %v7020
  %v7022 = vpop.f32.mrf.mxu0
  %v7023 = vadd.f32 %v6830, %v7022
  %7024 = vmatprep.mubr.bf16.mxu0 0
  %7025 = vmatmul.mubr.bf16.gmra.mxu0 %v377
  %v7026 = vpop.f32.mrf.mxu0
  %v7027 = vadd.f32 %v6834, %v7026
  %v7028 = vpop.f32.mrf.mxu0
  %v7029 = vadd.f32 %v6836, %v7028
  %v7030 = vpop.f32.mrf.mxu0
  %v7031 = vadd.f32 %v6838, %v7030
  %v7032 = vpop.f32.mrf.mxu0
  %v7033 = vadd.f32 %v6840, %v7032
  %7034 = vmatprep.mubr.bf16.mxu0 0
  %7035 = vmatmul.mubr.bf16.gmra.mxu0 %v380
  %v7036 = vpop.f32.mrf.mxu0
  %v7037 = vadd.f32 %v6844, %v7036
  %v7038 = vpop.f32.mrf.mxu0
  %v7039 = vadd.f32 %v6846, %v7038
  %v7040 = vpop.f32.mrf.mxu0
  %v7041 = vadd.f32 %v6848, %v7040
  %v7042 = vpop.f32.mrf.mxu0
  %v7043 = vadd.f32 %v6850, %v7042
  %7044 = vmatprep.mubr.bf16.mxu0 0
  %7045 = vmatmul.mubr.bf16.gmra.mxu0 %v383
  %v7046 = vpop.f32.mrf.mxu0
  %v7047 = vadd.f32 %v6854, %v7046
  %v7048 = vpop.f32.mrf.mxu0
  %v7049 = vadd.f32 %v6856, %v7048
  %v7050 = vpop.f32.mrf.mxu0
  %v7051 = vadd.f32 %v6858, %v7050
  %v7052 = vpop.f32.mrf.mxu0
  %v7053 = vadd.f32 %v6860, %v7052
  %7054 = vmatprep.mubr.bf16.mxu0 0
  %7055 = vmatmul.mubr.bf16.gmra.mxu0 %v386
  %v7056 = vpop.f32.mrf.mxu0
  %v7057 = vadd.f32 %v6864, %v7056
  %v7058 = vpop.f32.mrf.mxu0
  %v7059 = vadd.f32 %v6866, %v7058
  %v7060 = vpop.f32.mrf.mxu0
  %v7061 = vadd.f32 %v6868, %v7060
  %v7062 = vpop.f32.mrf.mxu0
  %v7063 = vadd.f32 %v6870, %v7062
  %7064 = vmatprep.mubr.bf16.mxu0 0
  %7065 = vmatmul.mubr.bf16.gmra.mxu0 %v389
  %v7066 = vpop.f32.mrf.mxu0
  %v7067 = vadd.f32 %v6874, %v7066
  %v7068 = vpop.f32.mrf.mxu0
  %v7069 = vadd.f32 %v6876, %v7068
  %v7070 = vpop.f32.mrf.mxu0
  %v7071 = vadd.f32 %v6878, %v7070
  %v7072 = vpop.f32.mrf.mxu0
  %v7073 = vadd.f32 %v6880, %v7072
  %7074 = vmatprep.mubr.bf16.mxu0 0
  %7075 = vmatmul.mubr.bf16.gmra.mxu0 %v392
  %v7076 = vpop.f32.mrf.mxu0
  %v7077 = vadd.f32 %v6884, %v7076
  %v7078 = vpop.f32.mrf.mxu0
  %v7079 = vadd.f32 %v6886, %v7078
  %v7080 = vpop.f32.mrf.mxu0
  %v7081 = vadd.f32 %v6888, %v7080
  %v7082 = vpop.f32.mrf.mxu0
  %v7083 = vadd.f32 %v6890, %v7082
  %7084 = vmatprep.mubr.bf16.mxu0 0
  %7085 = vmatmul.mubr.bf16.gmra.mxu0 %v395
  %v7086 = vpop.f32.mrf.mxu0
  %v7087 = vadd.f32 %v6894, %v7086
  %v7088 = vpop.f32.mrf.mxu0
  %v7089 = vadd.f32 %v6896, %v7088
  %v7090 = vpop.f32.mrf.mxu0
  %v7091 = vadd.f32 %v6898, %v7090
  %v7092 = vpop.f32.mrf.mxu0
  %v7093 = vadd.f32 %v6900, %v7092
  %7094 = vmatprep.mubr.bf16.mxu0 0
  %7095 = vmatmul.mubr.bf16.gmra.mxu0 %v398
  %v7096 = vpop.f32.mrf.mxu0
  %v7097 = vadd.f32 %v6904, %v7096
  %v7098 = vpop.f32.mrf.mxu0
  %v7099 = vadd.f32 %v6906, %v7098
  %v7100 = vpop.f32.mrf.mxu0
  %v7101 = vadd.f32 %v6908, %v7100
  %v7102 = vpop.f32.mrf.mxu0
  %v7103 = vadd.f32 %v6910, %v7102
  %7104 = vmatprep.mubr.bf16.mxu0 0
  %7105 = vmatmul.mubr.bf16.gmra.mxu0 %v401
  %v7106 = vpop.f32.mrf.mxu0
  %v7107 = vadd.f32 %v6914, %v7106
  %v7108 = vpop.f32.mrf.mxu0
  %v7109 = vadd.f32 %v6916, %v7108
  %v7110 = vpop.f32.mrf.mxu0
  %v7111 = vadd.f32 %v6918, %v7110
  %v7112 = vpop.f32.mrf.mxu0
  %v7113 = vadd.f32 %v6920, %v7112
  %7114 = vmatprep.mubr.bf16.mxu0 0
  %7115 = vmatmul.mubr.bf16.gmra.mxu0 %v404
  %v7116 = vpop.f32.mrf.mxu0
  %v7117 = vadd.f32 %v6924, %v7116
  %v7118 = vpop.f32.mrf.mxu0
  %v7119 = vadd.f32 %v6926, %v7118
  %v7120 = vpop.f32.mrf.mxu0
  %v7121 = vadd.f32 %v6928, %v7120
  %v7122 = vpop.f32.mrf.mxu0
  %v7123 = vadd.f32 %v6930, %v7122
  %7124 = vmatprep.mubr.bf16.mxu0 0
  %7125 = vmatmul.mubr.bf16.gmra.mxu0 %v407
  %v7126 = vpop.f32.mrf.mxu0
  %v7127 = vadd.f32 %v6934, %v7126
  %v7128 = vpop.f32.mrf.mxu0
  %v7129 = vadd.f32 %v6936, %v7128
  %v7130 = vpop.f32.mrf.mxu0
  %v7131 = vadd.f32 %v6938, %v7130
  %v7132 = vpop.f32.mrf.mxu0
  %v7133 = vadd.f32 %v6940, %v7132
  %7134 = vmatprep.mubr.bf16.mxu0 0
  %7135 = vmatmul.mubr.bf16.gmra.mxu0 %v410
  %v7136 = vpop.f32.mrf.mxu0
  %v7137 = vadd.f32 %v6944, %v7136
  %v7138 = vpop.f32.mrf.mxu0
  %v7139 = vadd.f32 %v6946, %v7138
  %v7140 = vpop.f32.mrf.mxu0
  %v7141 = vadd.f32 %v6948, %v7140
  %v7142 = vpop.f32.mrf.mxu0
  %v7143 = vadd.f32 %v6950, %v7142
  %7144 = vdwg.mxu0
  %7145 = vmatprep.subr.bf16.mxu0 %v6598
  %7146 = vmatpush1.bf16.msra.mxu0 %v6597
  %7147 = vmatprep.subr.bf16.mxu0 %v6594
  %7148 = vmatpush1.bf16.msra.mxu0 %v6593
  %7149 = vmatprep.subr.bf16.mxu0 %v6590
  %7150 = vmatpush1.bf16.msra.mxu0 %v6589
  %7151 = vmatprep.subr.bf16.mxu0 %v6586
  %7152 = vmatpush1.bf16.msra.mxu0 %v6585
  %7153 = vmatprep.subr.bf16.mxu0 %v6582
  %7154 = vmatpush1.bf16.msra.mxu0 %v6581
  %7155 = vmatprep.subr.bf16.mxu0 %v6578
  %7156 = vmatpush1.bf16.msra.mxu0 %v6577
  %7157 = vmatprep.subr.bf16.mxu0 %v6574
  %7158 = vmatpush1.bf16.msra.mxu0 %v6573
  %7159 = vmatprep.subr.bf16.mxu0 %v6570
  %7160 = vmatpush1.bf16.msra.mxu0 %v6569
  %7161 = vmatprep.subr.bf16.mxu0 %v6630
  %7162 = vmatpush2.bf16.msra.mxu0 %v6629
  %7163 = vmatprep.subr.bf16.mxu0 %v6626
  %7164 = vmatpush2.bf16.msra.mxu0 %v6625
  %7165 = vmatprep.subr.bf16.mxu0 %v6622
  %7166 = vmatpush2.bf16.msra.mxu0 %v6621
  %7167 = vmatprep.subr.bf16.mxu0 %v6618
  %7168 = vmatpush2.bf16.msra.mxu0 %v6617
  %7169 = vmatprep.subr.bf16.mxu0 %v6614
  %7170 = vmatpush2.bf16.msra.mxu0 %v6613
  %7171 = vmatprep.subr.bf16.mxu0 %v6610
  %7172 = vmatpush2.bf16.msra.mxu0 %v6609
  %7173 = vmatprep.subr.bf16.mxu0 %v6606
  %7174 = vmatpush2.bf16.msra.mxu0 %v6605
  %7175 = vmatprep.subr.bf16.mxu0 %v6602
  %7176 = vmatpush2.bf16.msra.mxu0 %v6601
  %7177 = vmatprep.mubr.bf16.mxu0 %v364
  %7178 = vmatmul.mubr.bf16.gmra.mxu0 %v363
  %v7179 = vpop.f32.mrf.mxu0
  %v7180 = vadd.f32 %v6270, %v7179
  %v7181 = vpop.f32.mrf.mxu0
  %v7182 = vadd.f32 %v6274, %v7181
  %v7183 = vpop.f32.mrf.mxu0
  %v7184 = vadd.f32 %v6270, %v7183
  %v7185 = vpop.f32.mrf.mxu0
  %v7186 = vadd.f32 %v6274, %v7185
  %7187 = vmatprep.mubr.bf16.mxu0 %v367
  %7188 = vmatmul.mubr.bf16.gmra.mxu0 %v366
  %v7189 = vpop.f32.mrf.mxu0
  %v7190 = vadd.f32 %v6270, %v7189
  %v7191 = vpop.f32.mrf.mxu0
  %v7192 = vadd.f32 %v6274, %v7191
  %v7193 = vpop.f32.mrf.mxu0
  %v7194 = vadd.f32 %v6270, %v7193
  %v7195 = vpop.f32.mrf.mxu0
  %v7196 = vadd.f32 %v6274, %v7195
  %7197 = vmatprep.mubr.bf16.mxu0 %v370
  %7198 = vmatmul.mubr.bf16.gmra.mxu0 %v369
  %v7199 = vpop.f32.mrf.mxu0
  %v7200 = vadd.f32 %v6270, %v7199
  %v7201 = vpop.f32.mrf.mxu0
  %v7202 = vadd.f32 %v6274, %v7201
  %v7203 = vpop.f32.mrf.mxu0
  %v7204 = vadd.f32 %v6270, %v7203
  %v7205 = vpop.f32.mrf.mxu0
  %v7206 = vadd.f32 %v6274, %v7205
  %7207 = vmatprep.mubr.bf16.mxu0 %v373
  %7208 = vmatmul.mubr.bf16.gmra.mxu0 %v372
  %v7209 = vpop.f32.mrf.mxu0
  %v7210 = vadd.f32 %v6270, %v7209
  %v7211 = vpop.f32.mrf.mxu0
  %v7212 = vadd.f32 %v6274, %v7211
  %v7213 = vpop.f32.mrf.mxu0
  %v7214 = vadd.f32 %v6270, %v7213
  %v7215 = vpop.f32.mrf.mxu0
  %v7216 = vadd.f32 %v6274, %v7215
  %7217 = vmatprep.mubr.bf16.mxu0 %v376
  %7218 = vmatmul.mubr.bf16.gmra.mxu0 %v375
  %v7219 = vpop.f32.mrf.mxu0
  %v7220 = vadd.f32 %v6270, %v7219
  %v7221 = vpop.f32.mrf.mxu0
  %v7222 = vadd.f32 %v6274, %v7221
  %v7223 = vpop.f32.mrf.mxu0
  %v7224 = vadd.f32 %v6270, %v7223
  %v7225 = vpop.f32.mrf.mxu0
  %v7226 = vadd.f32 %v6274, %v7225
  %7227 = vmatprep.mubr.bf16.mxu0 %v379
  %7228 = vmatmul.mubr.bf16.gmra.mxu0 %v378
  %v7229 = vpop.f32.mrf.mxu0
  %v7230 = vadd.f32 %v6270, %v7229
  %v7231 = vpop.f32.mrf.mxu0
  %v7232 = vadd.f32 %v6274, %v7231
  %v7233 = vpop.f32.mrf.mxu0
  %v7234 = vadd.f32 %v6270, %v7233
  %v7235 = vpop.f32.mrf.mxu0
  %v7236 = vadd.f32 %v6274, %v7235
  %7237 = vmatprep.mubr.bf16.mxu0 %v382
  %7238 = vmatmul.mubr.bf16.gmra.mxu0 %v381
  %v7239 = vpop.f32.mrf.mxu0
  %v7240 = vadd.f32 %v6270, %v7239
  %v7241 = vpop.f32.mrf.mxu0
  %v7242 = vadd.f32 %v6274, %v7241
  %v7243 = vpop.f32.mrf.mxu0
  %v7244 = vadd.f32 %v6270, %v7243
  %v7245 = vpop.f32.mrf.mxu0
  %v7246 = vadd.f32 %v6274, %v7245
  %7247 = vmatprep.mubr.bf16.mxu0 %v385
  %7248 = vmatmul.mubr.bf16.gmra.mxu0 %v384
  %v7249 = vpop.f32.mrf.mxu0
  %v7250 = vadd.f32 %v6270, %v7249
  %v7251 = vpop.f32.mrf.mxu0
  %v7252 = vadd.f32 %v6274, %v7251
  %v7253 = vpop.f32.mrf.mxu0
  %v7254 = vadd.f32 %v6270, %v7253
  %v7255 = vpop.f32.mrf.mxu0
  %v7256 = vadd.f32 %v6274, %v7255
  %7257 = vmatprep.mubr.bf16.mxu0 %v388
  %7258 = vmatmul.mubr.bf16.gmra.mxu0 %v387
  %v7259 = vpop.f32.mrf.mxu0
  %v7260 = vadd.f32 %v6270, %v7259
  %v7261 = vpop.f32.mrf.mxu0
  %v7262 = vadd.f32 %v6274, %v7261
  %v7263 = vpop.f32.mrf.mxu0
  %v7264 = vadd.f32 %v6270, %v7263
  %v7265 = vpop.f32.mrf.mxu0
  %v7266 = vadd.f32 %v6274, %v7265
  %7267 = vmatprep.mubr.bf16.mxu0 %v391
  %7268 = vmatmul.mubr.bf16.gmra.mxu0 %v390
  %v7269 = vpop.f32.mrf.mxu0
  %v7270 = vadd.f32 %v6270, %v7269
  %v7271 = vpop.f32.mrf.mxu0
  %v7272 = vadd.f32 %v6274, %v7271
  %v7273 = vpop.f32.mrf.mxu0
  %v7274 = vadd.f32 %v6270, %v7273
  %v7275 = vpop.f32.mrf.mxu0
  %v7276 = vadd.f32 %v6274, %v7275
  %7277 = vmatprep.mubr.bf16.mxu0 %v394
  %7278 = vmatmul.mubr.bf16.gmra.mxu0 %v393
  %v7279 = vpop.f32.mrf.mxu0
  %v7280 = vadd.f32 %v6270, %v7279
  %v7281 = vpop.f32.mrf.mxu0
  %v7282 = vadd.f32 %v6274, %v7281
  %v7283 = vpop.f32.mrf.mxu0
  %v7284 = vadd.f32 %v6270, %v7283
  %v7285 = vpop.f32.mrf.mxu0
  %v7286 = vadd.f32 %v6274, %v7285
  %7287 = vmatprep.mubr.bf16.mxu0 %v397
  %7288 = vmatmul.mubr.bf16.gmra.mxu0 %v396
  %v7289 = vpop.f32.mrf.mxu0
  %v7290 = vadd.f32 %v6270, %v7289
  %v7291 = vpop.f32.mrf.mxu0
  %v7292 = vadd.f32 %v6274, %v7291
  %v7293 = vpop.f32.mrf.mxu0
  %v7294 = vadd.f32 %v6270, %v7293
  %v7295 = vpop.f32.mrf.mxu0
  %v7296 = vadd.f32 %v6274, %v7295
  %7297 = vmatprep.mubr.bf16.mxu0 %v400
  %7298 = vmatmul.mubr.bf16.gmra.mxu0 %v399
  %v7299 = vpop.f32.mrf.mxu0
  %v7300 = vadd.f32 %v6270, %v7299
  %v7301 = vpop.f32.mrf.mxu0
  %v7302 = vadd.f32 %v6274, %v7301
  %v7303 = vpop.f32.mrf.mxu0
  %v7304 = vadd.f32 %v6270, %v7303
  %v7305 = vpop.f32.mrf.mxu0
  %v7306 = vadd.f32 %v6274, %v7305
  %7307 = vmatprep.mubr.bf16.mxu0 %v403
  %7308 = vmatmul.mubr.bf16.gmra.mxu0 %v402
  %v7309 = vpop.f32.mrf.mxu0
  %v7310 = vadd.f32 %v6270, %v7309
  %v7311 = vpop.f32.mrf.mxu0
  %v7312 = vadd.f32 %v6274, %v7311
  %v7313 = vpop.f32.mrf.mxu0
  %v7314 = vadd.f32 %v6270, %v7313
  %v7315 = vpop.f32.mrf.mxu0
  %v7316 = vadd.f32 %v6274, %v7315
  %7317 = vmatprep.mubr.bf16.mxu0 %v406
  %7318 = vmatmul.mubr.bf16.gmra.mxu0 %v405
  %v7319 = vpop.f32.mrf.mxu0
  %v7320 = vadd.f32 %v6270, %v7319
  %v7321 = vpop.f32.mrf.mxu0
  %v7322 = vadd.f32 %v6274, %v7321
  %v7323 = vpop.f32.mrf.mxu0
  %v7324 = vadd.f32 %v6270, %v7323
  %v7325 = vpop.f32.mrf.mxu0
  %v7326 = vadd.f32 %v6274, %v7325
  %7327 = vmatprep.mubr.bf16.mxu0 %v409
  %7328 = vmatmul.mubr.bf16.gmra.mxu0 %v408
  %v7329 = vpop.f32.mrf.mxu0
  %v7330 = vadd.f32 %v6270, %v7329
  %v7331 = vpop.f32.mrf.mxu0
  %v7332 = vadd.f32 %v6274, %v7331
  %v7333 = vpop.f32.mrf.mxu0
  %v7334 = vadd.f32 %v6270, %v7333
  %v7335 = vpop.f32.mrf.mxu0
  %v7336 = vadd.f32 %v6274, %v7335
  %7337 = vdwg.mxu0
  %7338 = vmatprep.subr.bf16.mxu0 %v6662
  %7339 = vmatpush1.bf16.msra.mxu0 %v6661
  %7340 = vmatprep.subr.bf16.mxu0 %v6658
  %7341 = vmatpush1.bf16.msra.mxu0 %v6657
  %7342 = vmatprep.subr.bf16.mxu0 %v6654
  %7343 = vmatpush1.bf16.msra.mxu0 %v6653
  %7344 = vmatprep.subr.bf16.mxu0 %v6650
  %7345 = vmatpush1.bf16.msra.mxu0 %v6649
  %7346 = vmatprep.subr.bf16.mxu0 %v6646
  %7347 = vmatpush1.bf16.msra.mxu0 %v6645
  %7348 = vmatprep.subr.bf16.mxu0 %v6642
  %7349 = vmatpush1.bf16.msra.mxu0 %v6641
  %7350 = vmatprep.subr.bf16.mxu0 %v6638
  %7351 = vmatpush1.bf16.msra.mxu0 %v6637
  %7352 = vmatprep.subr.bf16.mxu0 %v6634
  %7353 = vmatpush1.bf16.msra.mxu0 %v6633
  %7354 = vmatprep.subr.bf16.mxu0 0
  %7355 = vmatpush2.bf16.msra.mxu0 0
  %7356 = vmatprep.subr.bf16.mxu0 0
  %7357 = vmatpush2.bf16.msra.mxu0 0
  %7358 = vmatprep.subr.bf16.mxu0 0
  %7359 = vmatpush2.bf16.msra.mxu0 0
  %7360 = vmatprep.subr.bf16.mxu0 0
  %7361 = vmatpush2.bf16.msra.mxu0 0
  %7362 = vmatprep.subr.bf16.mxu0 0
  %7363 = vmatpush2.bf16.msra.mxu0 0
  %7364 = vmatprep.subr.bf16.mxu0 0
  %7365 = vmatpush2.bf16.msra.mxu0 0
  %7366 = vmatprep.subr.bf16.mxu0 0
  %7367 = vmatpush2.bf16.msra.mxu0 0
  %7368 = vmatprep.subr.bf16.mxu0 0
  %7369 = vmatpush2.bf16.msra.mxu0 0
  %7370 = vmatprep.mubr.bf16.mxu0 0
  %7371 = vmatmul.mubr.bf16.gmra.mxu0 %v365
  %v7372 = vpop.f32.mrf.mxu0
  %v7373 = vadd.f32 %v7180, %v7372
  %v7374 = vpop.f32.mrf.mxu0
  %v7375 = vadd.f32 %v7182, %v7374
  %v7376 = vpop.f32.mrf.mxu0
  %v7377 = vadd.f32 %v7184, %v7376
  %v7378 = vpop.f32.mrf.mxu0
  %v7379 = vadd.f32 %v7186, %v7378
  %7380 = vmatprep.mubr.bf16.mxu0 0
  %7381 = vmatmul.mubr.bf16.gmra.mxu0 %v368
  %v7382 = vpop.f32.mrf.mxu0
  %v7383 = vadd.f32 %v7190, %v7382
  %v7384 = vpop.f32.mrf.mxu0
  %v7385 = vadd.f32 %v7192, %v7384
  %v7386 = vpop.f32.mrf.mxu0
  %v7387 = vadd.f32 %v7194, %v7386
  %v7388 = vpop.f32.mrf.mxu0
  %v7389 = vadd.f32 %v7196, %v7388
  %7390 = vmatprep.mubr.bf16.mxu0 0
  %7391 = vmatmul.mubr.bf16.gmra.mxu0 %v371
  %v7392 = vpop.f32.mrf.mxu0
  %v7393 = vadd.f32 %v7200, %v7392
  %v7394 = vpop.f32.mrf.mxu0
  %v7395 = vadd.f32 %v7202, %v7394
  %v7396 = vpop.f32.mrf.mxu0
  %v7397 = vadd.f32 %v7204, %v7396
  %v7398 = vpop.f32.mrf.mxu0
  %v7399 = vadd.f32 %v7206, %v7398
  %7400 = vmatprep.mubr.bf16.mxu0 0
  %7401 = vmatmul.mubr.bf16.gmra.mxu0 %v374
  %v7402 = vpop.f32.mrf.mxu0
  %v7403 = vadd.f32 %v7210, %v7402
  %v7404 = vpop.f32.mrf.mxu0
  %v7405 = vadd.f32 %v7212, %v7404
  %v7406 = vpop.f32.mrf.mxu0
  %v7407 = vadd.f32 %v7214, %v7406
  %v7408 = vpop.f32.mrf.mxu0
  %v7409 = vadd.f32 %v7216, %v7408
  %7410 = vmatprep.mubr.bf16.mxu0 0
  %7411 = vmatmul.mubr.bf16.gmra.mxu0 %v377
  %v7412 = vpop.f32.mrf.mxu0
  %v7413 = vadd.f32 %v7220, %v7412
  %v7414 = vpop.f32.mrf.mxu0
  %v7415 = vadd.f32 %v7222, %v7414
  %v7416 = vpop.f32.mrf.mxu0
  %v7417 = vadd.f32 %v7224, %v7416
  %v7418 = vpop.f32.mrf.mxu0
  %v7419 = vadd.f32 %v7226, %v7418
  %7420 = vmatprep.mubr.bf16.mxu0 0
  %7421 = vmatmul.mubr.bf16.gmra.mxu0 %v380
  %v7422 = vpop.f32.mrf.mxu0
  %v7423 = vadd.f32 %v7230, %v7422
  %v7424 = vpop.f32.mrf.mxu0
  %v7425 = vadd.f32 %v7232, %v7424
  %v7426 = vpop.f32.mrf.mxu0
  %v7427 = vadd.f32 %v7234, %v7426
  %v7428 = vpop.f32.mrf.mxu0
  %v7429 = vadd.f32 %v7236, %v7428
  %7430 = vmatprep.mubr.bf16.mxu0 0
  %7431 = vmatmul.mubr.bf16.gmra.mxu0 %v383
  %v7432 = vpop.f32.mrf.mxu0
  %v7433 = vadd.f32 %v7240, %v7432
  %v7434 = vpop.f32.mrf.mxu0
  %v7435 = vadd.f32 %v7242, %v7434
  %v7436 = vpop.f32.mrf.mxu0
  %v7437 = vadd.f32 %v7244, %v7436
  %v7438 = vpop.f32.mrf.mxu0
  %v7439 = vadd.f32 %v7246, %v7438
  %7440 = vmatprep.mubr.bf16.mxu0 0
  %7441 = vmatmul.mubr.bf16.gmra.mxu0 %v386
  %v7442 = vpop.f32.mrf.mxu0
  %v7443 = vadd.f32 %v7250, %v7442
  %v7444 = vpop.f32.mrf.mxu0
  %v7445 = vadd.f32 %v7252, %v7444
  %v7446 = vpop.f32.mrf.mxu0
  %v7447 = vadd.f32 %v7254, %v7446
  %v7448 = vpop.f32.mrf.mxu0
  %v7449 = vadd.f32 %v7256, %v7448
  %7450 = vmatprep.mubr.bf16.mxu0 0
  %7451 = vmatmul.mubr.bf16.gmra.mxu0 %v389
  %v7452 = vpop.f32.mrf.mxu0
  %v7453 = vadd.f32 %v7260, %v7452
  %v7454 = vpop.f32.mrf.mxu0
  %v7455 = vadd.f32 %v7262, %v7454
  %v7456 = vpop.f32.mrf.mxu0
  %v7457 = vadd.f32 %v7264, %v7456
  %v7458 = vpop.f32.mrf.mxu0
  %v7459 = vadd.f32 %v7266, %v7458
  %7460 = vmatprep.mubr.bf16.mxu0 0
  %7461 = vmatmul.mubr.bf16.gmra.mxu0 %v392
  %v7462 = vpop.f32.mrf.mxu0
  %v7463 = vadd.f32 %v7270, %v7462
  %v7464 = vpop.f32.mrf.mxu0
  %v7465 = vadd.f32 %v7272, %v7464
  %v7466 = vpop.f32.mrf.mxu0
  %v7467 = vadd.f32 %v7274, %v7466
  %v7468 = vpop.f32.mrf.mxu0
  %v7469 = vadd.f32 %v7276, %v7468
  %7470 = vmatprep.mubr.bf16.mxu0 0
  %7471 = vmatmul.mubr.bf16.gmra.mxu0 %v395
  %v7472 = vpop.f32.mrf.mxu0
  %v7473 = vadd.f32 %v7280, %v7472
  %v7474 = vpop.f32.mrf.mxu0
  %v7475 = vadd.f32 %v7282, %v7474
  %v7476 = vpop.f32.mrf.mxu0
  %v7477 = vadd.f32 %v7284, %v7476
  %v7478 = vpop.f32.mrf.mxu0
  %v7479 = vadd.f32 %v7286, %v7478
  %7480 = vmatprep.mubr.bf16.mxu0 0
  %7481 = vmatmul.mubr.bf16.gmra.mxu0 %v398
  %v7482 = vpop.f32.mrf.mxu0
  %v7483 = vadd.f32 %v7290, %v7482
  %v7484 = vpop.f32.mrf.mxu0
  %v7485 = vadd.f32 %v7292, %v7484
  %v7486 = vpop.f32.mrf.mxu0
  %v7487 = vadd.f32 %v7294, %v7486
  %v7488 = vpop.f32.mrf.mxu0
  %v7489 = vadd.f32 %v7296, %v7488
  %7490 = vmatprep.mubr.bf16.mxu0 0
  %7491 = vmatmul.mubr.bf16.gmra.mxu0 %v401
  %v7492 = vpop.f32.mrf.mxu0
  %v7493 = vadd.f32 %v7300, %v7492
  %v7494 = vpop.f32.mrf.mxu0
  %v7495 = vadd.f32 %v7302, %v7494
  %v7496 = vpop.f32.mrf.mxu0
  %v7497 = vadd.f32 %v7304, %v7496
  %v7498 = vpop.f32.mrf.mxu0
  %v7499 = vadd.f32 %v7306, %v7498
  %7500 = vmatprep.mubr.bf16.mxu0 0
  %7501 = vmatmul.mubr.bf16.gmra.mxu0 %v404
  %v7502 = vpop.f32.mrf.mxu0
  %v7503 = vadd.f32 %v7310, %v7502
  %v7504 = vpop.f32.mrf.mxu0
  %v7505 = vadd.f32 %v7312, %v7504
  %v7506 = vpop.f32.mrf.mxu0
  %v7507 = vadd.f32 %v7314, %v7506
  %v7508 = vpop.f32.mrf.mxu0
  %v7509 = vadd.f32 %v7316, %v7508
  %7510 = vmatprep.mubr.bf16.mxu0 0
  %7511 = vmatmul.mubr.bf16.gmra.mxu0 %v407
  %v7512 = vpop.f32.mrf.mxu0
  %v7513 = vadd.f32 %v7320, %v7512
  %v7514 = vpop.f32.mrf.mxu0
  %v7515 = vadd.f32 %v7322, %v7514
  %v7516 = vpop.f32.mrf.mxu0
  %v7517 = vadd.f32 %v7324, %v7516
  %v7518 = vpop.f32.mrf.mxu0
  %v7519 = vadd.f32 %v7326, %v7518
  %7520 = vmatprep.mubr.bf16.mxu0 0
  %7521 = vmatmul.mubr.bf16.gmra.mxu0 %v410
  %v7522 = vpop.f32.mrf.mxu0
  %v7523 = vadd.f32 %v7330, %v7522
  %v7524 = vpop.f32.mrf.mxu0
  %v7525 = vadd.f32 %v7332, %v7524
  %v7526 = vpop.f32.mrf.mxu0
  %v7527 = vadd.f32 %v7334, %v7526
  %v7528 = vpop.f32.mrf.mxu0
  %v7529 = vadd.f32 %v7336, %v7528
  %7530 = vdwg.mxu0
  %v7531 = vmax.f32 %v6987, 0.0
  %v7532 = vmax.f32 %v6989, 0.0
  %v7533 = vmax.f32 %v7373, 0.0
  %v7534 = vmax.f32 %v7375, 0.0
  %v7535 = vmax.f32 %v6991, 0.0
  %v7536 = vmax.f32 %v6993, 0.0
  %v7537 = vmax.f32 %v7377, 0.0
  %v7538 = vmax.f32 %v7379, 0.0
  %v7539 = vmax.f32 %v6997, 0.0
  %v7540 = vmax.f32 %v6999, 0.0
  %v7541 = vmax.f32 %v7383, 0.0
  %v7542 = vmax.f32 %v7385, 0.0
  %v7543 = vmax.f32 %v7001, 0.0
  %v7544 = vmax.f32 %v7003, 0.0
  %v7545 = vmax.f32 %v7387, 0.0
  %v7546 = vmax.f32 %v7389, 0.0
  %v7547 = vmax.f32 %v7007, 0.0
  %v7548 = vmax.f32 %v7009, 0.0
  %v7549 = vmax.f32 %v7393, 0.0
  %v7550 = vmax.f32 %v7395, 0.0
  %v7551 = vmax.f32 %v7011, 0.0
  %v7552 = vmax.f32 %v7013, 0.0
  %v7553 = vmax.f32 %v7397, 0.0
  %v7554 = vmax.f32 %v7399, 0.0
  %v7555 = vmax.f32 %v7017, 0.0
  %v7556 = vmax.f32 %v7019, 0.0
  %v7557 = vmax.f32 %v7403, 0.0
  %v7558 = vmax.f32 %v7405, 0.0
  %v7559 = vmax.f32 %v7021, 0.0
  %v7560 = vmax.f32 %v7023, 0.0
  %v7561 = vmax.f32 %v7407, 0.0
  %v7562 = vmax.f32 %v7409, 0.0
  %v7563 = vmax.f32 %v7027, 0.0
  %v7564 = vmax.f32 %v7029, 0.0
  %v7565 = vmax.f32 %v7413, 0.0
  %v7566 = vmax.f32 %v7415, 0.0
  %v7567 = vmax.f32 %v7031, 0.0
  %v7568 = vmax.f32 %v7033, 0.0
  %v7569 = vmax.f32 %v7417, 0.0
  %v7570 = vmax.f32 %v7419, 0.0
  %v7571 = vmax.f32 %v7037, 0.0
  %v7572 = vmax.f32 %v7039, 0.0
  %v7573 = vmax.f32 %v7423, 0.0
  %v7574 = vmax.f32 %v7425, 0.0
  %v7575 = vmax.f32 %v7041, 0.0
  %v7576 = vmax.f32 %v7043, 0.0
  %v7577 = vmax.f32 %v7427, 0.0
  %v7578 = vmax.f32 %v7429, 0.0
  %v7579 = vmax.f32 %v7047, 0.0
  %v7580 = vmax.f32 %v7049, 0.0
  %v7581 = vmax.f32 %v7433, 0.0
  %v7582 = vmax.f32 %v7435, 0.0
  %v7583 = vmax.f32 %v7051, 0.0
  %v7584 = vmax.f32 %v7053, 0.0
  %v7585 = vmax.f32 %v7437, 0.0
  %v7586 = vmax.f32 %v7439, 0.0
  %v7587 = vmax.f32 %v7057, 0.0
  %v7588 = vmax.f32 %v7059, 0.0
  %v7589 = vmax.f32 %v7443, 0.0
  %v7590 = vmax.f32 %v7445, 0.0
  %v7591 = vmax.f32 %v7061, 0.0
  %v7592 = vmax.f32 %v7063, 0.0
  %v7593 = vmax.f32 %v7447, 0.0
  %v7594 = vmax.f32 %v7449, 0.0
  %v7595 = vmax.f32 %v7067, 0.0
  %v7596 = vmax.f32 %v7069, 0.0
  %v7597 = vmax.f32 %v7453, 0.0
  %v7598 = vmax.f32 %v7455, 0.0
  %v7599 = vmax.f32 %v7071, 0.0
  %v7600 = vmax.f32 %v7073, 0.0
  %v7601 = vmax.f32 %v7457, 0.0
  %v7602 = vmax.f32 %v7459, 0.0
  %v7603 = vmax.f32 %v7077, 0.0
  %v7604 = vmax.f32 %v7079, 0.0
  %v7605 = vmax.f32 %v7463, 0.0
  %v7606 = vmax.f32 %v7465, 0.0
  %v7607 = vmax.f32 %v7081, 0.0
  %v7608 = vmax.f32 %v7083, 0.0
  %v7609 = vmax.f32 %v7467, 0.0
  %v7610 = vmax.f32 %v7469, 0.0
  %v7611 = vmax.f32 %v7087, 0.0
  %v7612 = vmax.f32 %v7089, 0.0
  %v7613 = vmax.f32 %v7473, 0.0
  %v7614 = vmax.f32 %v7475, 0.0
  %v7615 = vmax.f32 %v7091, 0.0
  %v7616 = vmax.f32 %v7093, 0.0
  %v7617 = vmax.f32 %v7477, 0.0
  %v7618 = vmax.f32 %v7479, 0.0
  %v7619 = vmax.f32 %v7097, 0.0
  %v7620 = vmax.f32 %v7099, 0.0
  %v7621 = vmax.f32 %v7483, 0.0
  %v7622 = vmax.f32 %v7485, 0.0
  %v7623 = vmax.f32 %v7101, 0.0
  %v7624 = vmax.f32 %v7103, 0.0
  %v7625 = vmax.f32 %v7487, 0.0
  %v7626 = vmax.f32 %v7489, 0.0
  %v7627 = vmax.f32 %v7107, 0.0
  %v7628 = vmax.f32 %v7109, 0.0
  %v7629 = vmax.f32 %v7493, 0.0
  %v7630 = vmax.f32 %v7495, 0.0
  %v7631 = vmax.f32 %v7111, 0.0
  %v7632 = vmax.f32 %v7113, 0.0
  %v7633 = vmax.f32 %v7497, 0.0
  %v7634 = vmax.f32 %v7499, 0.0
  %v7635 = vmax.f32 %v7117, 0.0
  %v7636 = vmax.f32 %v7119, 0.0
  %v7637 = vmax.f32 %v7503, 0.0
  %v7638 = vmax.f32 %v7505, 0.0
  %v7639 = vmax.f32 %v7121, 0.0
  %v7640 = vmax.f32 %v7123, 0.0
  %v7641 = vmax.f32 %v7507, 0.0
  %v7642 = vmax.f32 %v7509, 0.0
  %v7643 = vmax.f32 %v7127, 0.0
  %v7644 = vmax.f32 %v7129, 0.0
  %v7645 = vmax.f32 %v7513, 0.0
  %v7646 = vmax.f32 %v7515, 0.0
  %v7647 = vmax.f32 %v7131, 0.0
  %v7648 = vmax.f32 %v7133, 0.0
  %v7649 = vmax.f32 %v7517, 0.0
  %v7650 = vmax.f32 %v7519, 0.0
  %v7651 = vmax.f32 %v7137, 0.0
  %v7652 = vmax.f32 %v7139, 0.0
  %v7653 = vmax.f32 %v7523, 0.0
  %v7654 = vmax.f32 %v7525, 0.0
  %v7655 = vmax.f32 %v7141, 0.0
  %v7656 = vmax.f32 %v7143, 0.0
  %v7657 = vmax.f32 %v7527, 0.0
  %v7658 = vmax.f32 %v7529, 0.0
  %v7659 = vpack.c.bf16 %v7535, %v7531
  %v7660 = vpack.c.bf16 %v7536, %v7532
  %v7661 = vpack.c.bf16 %v7537, %v7533
  %v7662 = vpack.c.bf16 %v7538, %v7534
  %v7663 = vpack.c.bf16 %v7543, %v7539
  %v7664 = vpack.c.bf16 %v7544, %v7540
  %v7665 = vpack.c.bf16 %v7545, %v7541
  %v7666 = vpack.c.bf16 %v7546, %v7542
  %v7667 = vpack.c.bf16 %v7551, %v7547
  %v7668 = vpack.c.bf16 %v7552, %v7548
  %v7669 = vpack.c.bf16 %v7553, %v7549
  %v7670 = vpack.c.bf16 %v7554, %v7550
  %v7671 = vpack.c.bf16 %v7559, %v7555
  %v7672 = vpack.c.bf16 %v7560, %v7556
  %v7673 = vpack.c.bf16 %v7561, %v7557
  %v7674 = vpack.c.bf16 %v7562, %v7558
  %v7675 = vpack.c.bf16 %v7567, %v7563
  %v7676 = vpack.c.bf16 %v7568, %v7564
  %v7677 = vpack.c.bf16 %v7569, %v7565
  %v7678 = vpack.c.bf16 %v7570, %v7566
  %v7679 = vpack.c.bf16 %v7575, %v7571
  %v7680 = vpack.c.bf16 %v7576, %v7572
  %v7681 = vpack.c.bf16 %v7577, %v7573
  %v7682 = vpack.c.bf16 %v7578, %v7574
  %v7683 = vpack.c.bf16 %v7583, %v7579
  %v7684 = vpack.c.bf16 %v7584, %v7580
  %v7685 = vpack.c.bf16 %v7585, %v7581
  %v7686 = vpack.c.bf16 %v7586, %v7582
  %v7687 = vpack.c.bf16 %v7591, %v7587
  %v7688 = vpack.c.bf16 %v7592, %v7588
  %v7689 = vpack.c.bf16 %v7593, %v7589
  %v7690 = vpack.c.bf16 %v7594, %v7590
  %v7691 = vpack.c.bf16 %v7599, %v7595
  %v7692 = vpack.c.bf16 %v7600, %v7596
  %v7693 = vpack.c.bf16 %v7601, %v7597
  %v7694 = vpack.c.bf16 %v7602, %v7598
  %v7695 = vpack.c.bf16 %v7607, %v7603
  %v7696 = vpack.c.bf16 %v7608, %v7604
  %v7697 = vpack.c.bf16 %v7609, %v7605
  %v7698 = vpack.c.bf16 %v7610, %v7606
  %v7699 = vpack.c.bf16 %v7615, %v7611
  %v7700 = vpack.c.bf16 %v7616, %v7612
  %v7701 = vpack.c.bf16 %v7617, %v7613
  %v7702 = vpack.c.bf16 %v7618, %v7614
  %v7703 = vpack.c.bf16 %v7623, %v7619
  %v7704 = vpack.c.bf16 %v7624, %v7620
  %v7705 = vpack.c.bf16 %v7625, %v7621
  %v7706 = vpack.c.bf16 %v7626, %v7622
  %v7707 = vpack.c.bf16 %v7631, %v7627
  %v7708 = vpack.c.bf16 %v7632, %v7628
  %v7709 = vpack.c.bf16 %v7633, %v7629
  %v7710 = vpack.c.bf16 %v7634, %v7630
  %v7711 = vpack.c.bf16 %v7639, %v7635
  %v7712 = vpack.c.bf16 %v7640, %v7636
  %v7713 = vpack.c.bf16 %v7641, %v7637
  %v7714 = vpack.c.bf16 %v7642, %v7638
  %v7715 = vpack.c.bf16 %v7647, %v7643
  %v7716 = vpack.c.bf16 %v7648, %v7644
  %v7717 = vpack.c.bf16 %v7649, %v7645
  %v7718 = vpack.c.bf16 %v7650, %v7646
  %v7719 = vpack.c.bf16 %v7655, %v7651
  %v7720 = vpack.c.bf16 %v7656, %v7652
  %v7721 = vpack.c.bf16 %v7657, %v7653
  %v7722 = vpack.c.bf16 %v7658, %v7654
  %v7723 = vld [vmem:[%s3 + $0x600] sm:$0xff]
  %v7724 = vld [vmem:[%s3 + $0x608] sm:$0xf]
  %v7725 = vld [vmem:[%s3 + $0x60c] sm:$0xff]
  %v7726 = vld [vmem:[%s3 + $0x614] sm:$0xf]
  %v7727 = vld [vmem:[%s3 + $0x618] sm:$0xff]
  %v7728 = vld [vmem:[%s3 + $0x620] sm:$0xf]
  %v7729 = vld [vmem:[%s3 + $0x624] sm:$0xff]
  %v7730 = vld [vmem:[%s3 + $0x62c] sm:$0xf]
  %v7731 = vld [vmem:[%s3 + $0x630] sm:$0xff]
  %v7732 = vld [vmem:[%s3 + $0x638] sm:$0xf]
  %v7733 = vld [vmem:[%s3 + $0x63c] sm:$0xff]
  %v7734 = vld [vmem:[%s3 + $0x644] sm:$0xf]
  %v7735 = vld [vmem:[%s3 + $0x648] sm:$0xff]
  %v7736 = vld [vmem:[%s3 + $0x650] sm:$0xf]
  %v7737 = vld [vmem:[%s3 + $0x654] sm:$0xff]
  %v7738 = vld [vmem:[%s3 + $0x65c] sm:$0xf]
  %v7739 = vld [vmem:[%s3 + $0x660] sm:$0xff]
  %v7740 = vld [vmem:[%s3 + $0x668] sm:$0xf]
  %v7741 = vld [vmem:[%s3 + $0x66c] sm:$0xff]
  %v7742 = vld [vmem:[%s3 + $0x674] sm:$0xf]
  %v7743 = vld [vmem:[%s3 + $0x678] sm:$0xff]
  %v7744 = vld [vmem:[%s3 + $0x680] sm:$0xf]
  %v7745 = vld [vmem:[%s3 + $0x684] sm:$0xff]
  %v7746 = vld [vmem:[%s3 + $0x68c] sm:$0xf]
  %v7747 = vld [vmem:[%s3 + $0x690] sm:$0xff]
  %v7748 = vld [vmem:[%s3 + $0x698] sm:$0xf]
  %v7749 = vld [vmem:[%s3 + $0x69c] sm:$0xff]
  %v7750 = vld [vmem:[%s3 + $0x6a4] sm:$0xf]
  %v7751 = vld [vmem:[%s3 + $0x6a8] sm:$0xff]
  %v7752 = vld [vmem:[%s3 + $0x6b0] sm:$0xf]
  %v7753 = vld [vmem:[%s3 + $0x6b4] sm:$0xff]
  %v7754 = vld [vmem:[%s3 + $0x6bc] sm:$0xf]
  %v7755 = vld [vmem:[%s3 + $0x6c0] sm:$0xff]
  %v7756 = vld [vmem:[%s3 + $0x6c8] sm:$0xf]
  %v7757 = vld [vmem:[%s3 + $0x6cc] sm:$0xff]
  %v7758 = vld [vmem:[%s3 + $0x6d4] sm:$0xf]
  %v7759 = vld [vmem:[%s3 + $0x6d8] sm:$0xff]
  %v7760 = vld [vmem:[%s3 + $0x6e0] sm:$0xf]
  %v7761 = vld [vmem:[%s3 + $0x6e4] sm:$0xff]
  %v7762 = vld [vmem:[%s3 + $0x6ec] sm:$0xf]
  %v7763 = vld [vmem:[%s3 + $0x6f0] sm:$0xff]
  %v7764 = vld [vmem:[%s3 + $0x6f8] sm:$0xf]
  %v7765 = vld [vmem:[%s3 + $0x6fc] sm:$0xff]
  %v7766 = vld [vmem:[%s3 + $0x704] sm:$0xf]
  %v7767 = vld [vmem:[%s3 + $0x708] sm:$0xff]
  %v7768 = vld [vmem:[%s3 + $0x710] sm:$0xf]
  %v7769 = vld [vmem:[%s3 + $0x714] sm:$0xff]
  %v7770 = vld [vmem:[%s3 + $0x71c] sm:$0xf]
  %v7771 = vld [vmem:[%s3 + $0x720] sm:$0xff]
  %v7772 = vld [vmem:[%s3 + $0x728] sm:$0xf]
  %v7773 = vld [vmem:[%s3 + $0x72c] sm:$0xff]
  %v7774 = vld [vmem:[%s3 + $0x734] sm:$0xf]
  %v7775 = vld [vmem:[%s3 + $0x738] sm:$0xff]
  %v7776 = vld [vmem:[%s3 + $0x740] sm:$0xf]
  %v7777 = vld [vmem:[%s3 + $0x744] sm:$0xff]
  %v7778 = vld [vmem:[%s3 + $0x74c] sm:$0xf]
  %v7779 = vld [vmem:[%s3 + $0x750] sm:$0xff]
  %v7780 = vld [vmem:[%s3 + $0x758] sm:$0xf]
  %v7781 = vld [vmem:[%s3 + $0x75c] sm:$0xff]
  %v7782 = vld [vmem:[%s3 + $0x764] sm:$0xf]
  %v7783 = vld [vmem:[%s3 + $0x768] sm:$0xff]
  %v7784 = vld [vmem:[%s3 + $0x770] sm:$0xf]
  %v7785 = vld [vmem:[%s3 + $0x774] sm:$0xff]
  %v7786 = vld [vmem:[%s3 + $0x77c] sm:$0xf]
  %v7787 = vld [vmem:[%s3 + $0x780] sm:$0xff]
  %v7788 = vld [vmem:[%s3 + $0x788] sm:$0xf]
  %v7789 = vld [vmem:[%s3 + $0x78c] sm:$0xff]
  %v7790 = vld [vmem:[%s3 + $0x794] sm:$0xf]
  %v7791 = vld [vmem:[%s3 + $0x798] sm:$0xff]
  %v7792 = vld [vmem:[%s3 + $0x7a0] sm:$0xf]
  %v7793 = vld [vmem:[%s3 + $0x7a4] sm:$0xff]
  %v7794 = vld [vmem:[%s3 + $0x7ac] sm:$0xf]
  %v7795 = vld [vmem:[%s3 + $0x7b0] sm:$0xff]
  %v7796 = vld [vmem:[%s3 + $0x7b8] sm:$0xf]
  %v7797 = vld [vmem:[%s3 + $0x7bc] sm:$0xff]
  %v7798 = vld [vmem:[%s3 + $0x7c4] sm:$0xf]
  %v7799 = vld [vmem:[%s3 + $0x7c8] sm:$0xff]
  %v7800 = vld [vmem:[%s3 + $0x7d0] sm:$0xf]
  %v7801 = vld [vmem:[%s3 + $0x7d4] sm:$0xff]
  %v7802 = vld [vmem:[%s3 + $0x7dc] sm:$0xf]
  %v7803 = vld [vmem:[%s3 + $0x7e0] sm:$0xff]
  %v7804 = vld [vmem:[%s3 + $0x7e8] sm:$0xf]
  %v7805 = vld [vmem:[%s3 + $0x7ec] sm:$0xff]
  %v7806 = vld [vmem:[%s3 + $0x7f4] sm:$0xf]
  %v7807 = vld [vmem:[%s3 + $0x7f8] sm:$0xff]
  %v7808 = vld [vmem:[%s3 + $0x800] sm:$0xf]
  %v7809 = vld [vmem:[%s3 + $0x804] sm:$0xff]
  %v7810 = vld [vmem:[%s3 + $0x80c] sm:$0xf]
  %v7811 = vld [vmem:[%s3 + $0x810] sm:$0xff]
  %v7812 = vld [vmem:[%s3 + $0x818] sm:$0xf]
  %v7813 = vld [vmem:[%s3 + $0x81c] sm:$0xff]
  %v7814 = vld [vmem:[%s3 + $0x824] sm:$0xf]
  %v7815 = vld [vmem:[%s3 + $0x828] sm:$0xff]
  %v7816 = vld [vmem:[%s3 + $0x830] sm:$0xf]
  %v7817 = vld [vmem:[%s3 + $0x834] sm:$0xff]
  %v7818 = vld [vmem:[%s3 + $0x83c] sm:$0xf]
  %v7819 = vld [vmem:[%s3 + $0x840] sm:$0xff]
  %v7820 = vld [vmem:[%s3 + $0x848] sm:$0xf]
  %v7821 = vld [vmem:[%s3 + $0x84c] sm:$0xff]
  %v7822 = vld [vmem:[%s3 + $0x854] sm:$0xf]
  %v7823 = vld [vmem:[%s3 + $0x858] sm:$0xff]
  %v7824 = vld [vmem:[%s3 + $0x860] sm:$0xf]
  %v7825 = vld [vmem:[%s3 + $0x864] sm:$0xff]
  %v7826 = vld [vmem:[%s3 + $0x86c] sm:$0xf]
  %v7827 = vld [vmem:[%s3 + $0x870] sm:$0xff]
  %v7828 = vld [vmem:[%s3 + $0x878] sm:$0xf]
  %v7829 = vld [vmem:[%s3 + $0x87c] sm:$0xff]
  %v7830 = vld [vmem:[%s3 + $0x884] sm:$0xf]
  %v7831 = vld [vmem:[%s3 + $0x888] sm:$0xff]
  %v7832 = vld [vmem:[%s3 + $0x890] sm:$0xf]
  %v7833 = vld [vmem:[%s3 + $0x894] sm:$0xff]
  %v7834 = vld [vmem:[%s3 + $0x89c] sm:$0xf]
  %v7835 = vld [vmem:[%s3 + $0x8a0] sm:$0xff]
  %v7836 = vld [vmem:[%s3 + $0x8a8] sm:$0xf]
  %v7837 = vld [vmem:[%s3 + $0x8ac] sm:$0xff]
  %v7838 = vld [vmem:[%s3 + $0x8b4] sm:$0xf]
  %v7839 = vld [vmem:[%s3 + $0x8b8] sm:$0xff]
  %v7840 = vld [vmem:[%s3 + $0x8c0] sm:$0xf]
  %v7841 = vld [vmem:[%s3 + $0x8c4] sm:$0xff]
  %v7842 = vld [vmem:[%s3 + $0x8cc] sm:$0xf]
  %v7843 = vld [vmem:[%s3 + $0x8d0] sm:$0xff]
  %v7844 = vld [vmem:[%s3 + $0x8d8] sm:$0xf]
  %v7845 = vld [vmem:[%s3 + $0x8dc] sm:$0xff]
  %v7846 = vld [vmem:[%s3 + $0x8e4] sm:$0xf]
  %v7847 = vld [vmem:[%s3 + $0x8e8] sm:$0xff]
  %v7848 = vld [vmem:[%s3 + $0x8f0] sm:$0xf]
  %v7849 = vld [vmem:[%s3 + $0x8f4] sm:$0xff]
  %v7850 = vld [vmem:[%s3 + $0x8fc] sm:$0xf]
  %v7979 = vunpack.c.l.b16 %v7723
  %v7980 = vunpack.c.h.b16 %v7723
  %v7981 = vunpack.c.l.b16 %v7724
  %v7982 = vunpack.c.l.b16 %v7725
  %v7983 = vunpack.c.h.b16 %v7725
  %v7984 = vunpack.c.l.b16 %v7726
  %v7985 = vunpack.c.l.b16 %v7727
  %v7986 = vunpack.c.h.b16 %v7727
  %v7987 = vunpack.c.l.b16 %v7728
  %v7988 = vunpack.c.l.b16 %v7729
  %v7989 = vunpack.c.h.b16 %v7729
  %v7990 = vunpack.c.l.b16 %v7730
  %v7991 = vunpack.c.l.b16 %v7731
  %v7992 = vunpack.c.h.b16 %v7731
  %v7993 = vunpack.c.l.b16 %v7732
  %v7994 = vunpack.c.l.b16 %v7733
  %v7995 = vunpack.c.h.b16 %v7733
  %v7996 = vunpack.c.l.b16 %v7734
  %v7997 = vunpack.c.l.b16 %v7735
  %v7998 = vunpack.c.h.b16 %v7735
  %v7999 = vunpack.c.l.b16 %v7736
  %v8000 = vunpack.c.l.b16 %v7737
  %v8001 = vunpack.c.h.b16 %v7737
  %v8002 = vunpack.c.l.b16 %v7738
  %v8003 = vunpack.c.l.b16 %v7739
  %v8004 = vunpack.c.h.b16 %v7739
  %v8005 = vunpack.c.l.b16 %v7740
  %v8006 = vunpack.c.l.b16 %v7741
  %v8007 = vunpack.c.h.b16 %v7741
  %v8008 = vunpack.c.l.b16 %v7742
  %v8009 = vunpack.c.l.b16 %v7743
  %v8010 = vunpack.c.h.b16 %v7743
  %v8011 = vunpack.c.l.b16 %v7744
  %v8012 = vunpack.c.l.b16 %v7745
  %v8013 = vunpack.c.h.b16 %v7745
  %v8014 = vunpack.c.l.b16 %v7746
  %v8015 = vunpack.c.l.b16 %v7747
  %v8016 = vunpack.c.h.b16 %v7747
  %v8017 = vunpack.c.l.b16 %v7748
  %v8018 = vunpack.c.l.b16 %v7749
  %v8019 = vunpack.c.h.b16 %v7749
  %v8020 = vunpack.c.l.b16 %v7750
  %v8021 = vunpack.c.l.b16 %v7751
  %v8022 = vunpack.c.h.b16 %v7751
  %v8023 = vunpack.c.l.b16 %v7752
  %v8024 = vunpack.c.l.b16 %v7753
  %v8025 = vunpack.c.h.b16 %v7753
  %v8026 = vunpack.c.l.b16 %v7754
  %v8027 = vunpack.c.l.b16 %v7755
  %v8028 = vunpack.c.h.b16 %v7755
  %v8029 = vunpack.c.l.b16 %v7756
  %v8030 = vunpack.c.l.b16 %v7757
  %v8031 = vunpack.c.h.b16 %v7757
  %v8032 = vunpack.c.l.b16 %v7758
  %v8033 = vunpack.c.l.b16 %v7759
  %v8034 = vunpack.c.h.b16 %v7759
  %v8035 = vunpack.c.l.b16 %v7760
  %v8036 = vunpack.c.l.b16 %v7761
  %v8037 = vunpack.c.h.b16 %v7761
  %v8038 = vunpack.c.l.b16 %v7762
  %v8039 = vunpack.c.l.b16 %v7763
  %v8040 = vunpack.c.h.b16 %v7763
  %v8041 = vunpack.c.l.b16 %v7764
  %v8042 = vunpack.c.l.b16 %v7765
  %v8043 = vunpack.c.h.b16 %v7765
  %v8044 = vunpack.c.l.b16 %v7766
  %v8045 = vunpack.c.l.b16 %v7767
  %v8046 = vunpack.c.h.b16 %v7767
  %v8047 = vunpack.c.l.b16 %v7768
  %v8048 = vunpack.c.l.b16 %v7769
  %v8049 = vunpack.c.h.b16 %v7769
  %v8050 = vunpack.c.l.b16 %v7770
  %v8051 = vunpack.c.l.b16 %v7771
  %v8052 = vunpack.c.h.b16 %v7771
  %v8053 = vunpack.c.l.b16 %v7772
  %v8054 = vunpack.c.l.b16 %v7773
  %v8055 = vunpack.c.h.b16 %v7773
  %v8056 = vunpack.c.l.b16 %v7774
  %v8057 = vunpack.c.l.b16 %v7775
  %v8058 = vunpack.c.h.b16 %v7775
  %v8059 = vunpack.c.l.b16 %v7776
  %v8060 = vunpack.c.l.b16 %v7777
  %v8061 = vunpack.c.h.b16 %v7777
  %v8062 = vunpack.c.l.b16 %v7778
  %v8063 = vunpack.c.l.b16 %v7779
  %v8064 = vunpack.c.h.b16 %v7779
  %v8065 = vunpack.c.l.b16 %v7780
  %v8066 = vunpack.c.l.b16 %v7781
  %v8067 = vunpack.c.h.b16 %v7781
  %v8068 = vunpack.c.l.b16 %v7782
  %v8069 = vunpack.c.l.b16 %v7783
  %v8070 = vunpack.c.h.b16 %v7783
  %v8071 = vunpack.c.l.b16 %v7784
  %v8072 = vunpack.c.l.b16 %v7785
  %v8073 = vunpack.c.h.b16 %v7785
  %v8074 = vunpack.c.l.b16 %v7786
  %v8075 = vunpack.c.l.b16 %v7787
  %v8076 = vunpack.c.h.b16 %v7787
  %v8077 = vunpack.c.l.b16 %v7788
  %v8078 = vunpack.c.l.b16 %v7789
  %v8079 = vunpack.c.h.b16 %v7789
  %v8080 = vunpack.c.l.b16 %v7790
  %v8081 = vunpack.c.l.b16 %v7791
  %v8082 = vunpack.c.h.b16 %v7791
  %v8083 = vunpack.c.l.b16 %v7792
  %v8084 = vunpack.c.l.b16 %v7793
  %v8085 = vunpack.c.h.b16 %v7793
  %v8086 = vunpack.c.l.b16 %v7794
  %v8087 = vunpack.c.l.b16 %v7795
  %v8088 = vunpack.c.h.b16 %v7795
  %v8089 = vunpack.c.l.b16 %v7796
  %v8090 = vunpack.c.l.b16 %v7797
  %v8091 = vunpack.c.h.b16 %v7797
  %v8092 = vunpack.c.l.b16 %v7798
  %v8093 = vunpack.c.l.b16 %v7799
  %v8094 = vunpack.c.h.b16 %v7799
  %v8095 = vunpack.c.l.b16 %v7800
  %v8096 = vunpack.c.l.b16 %v7801
  %v8097 = vunpack.c.h.b16 %v7801
  %v8098 = vunpack.c.l.b16 %v7802
  %v8099 = vunpack.c.l.b16 %v7803
  %v8100 = vunpack.c.h.b16 %v7803
  %v8101 = vunpack.c.l.b16 %v7804
  %v8102 = vunpack.c.l.b16 %v7805
  %v8103 = vunpack.c.h.b16 %v7805
  %v8104 = vunpack.c.l.b16 %v7806
  %v8105 = vunpack.c.l.b16 %v7807
  %v8106 = vunpack.c.h.b16 %v7807
  %v8107 = vunpack.c.l.b16 %v7808
  %v8108 = vunpack.c.l.b16 %v7809
  %v8109 = vunpack.c.h.b16 %v7809
  %v8110 = vunpack.c.l.b16 %v7810
  %v8111 = vunpack.c.l.b16 %v7811
  %v8112 = vunpack.c.h.b16 %v7811
  %v8113 = vunpack.c.l.b16 %v7812
  %v8114 = vunpack.c.l.b16 %v7813
  %v8115 = vunpack.c.h.b16 %v7813
  %v8116 = vunpack.c.l.b16 %v7814
  %v8117 = vunpack.c.l.b16 %v7815
  %v8118 = vunpack.c.h.b16 %v7815
  %v8119 = vunpack.c.l.b16 %v7816
  %v8120 = vunpack.c.l.b16 %v7817
  %v8121 = vunpack.c.h.b16 %v7817
  %v8122 = vunpack.c.l.b16 %v7818
  %v8123 = vunpack.c.l.b16 %v7819
  %v8124 = vunpack.c.h.b16 %v7819
  %v8125 = vunpack.c.l.b16 %v7820
  %v8126 = vunpack.c.l.b16 %v7821
  %v8127 = vunpack.c.h.b16 %v7821
  %v8128 = vunpack.c.l.b16 %v7822
  %v8129 = vunpack.c.l.b16 %v7823
  %v8130 = vunpack.c.h.b16 %v7823
  %v8131 = vunpack.c.l.b16 %v7824
  %v8132 = vunpack.c.l.b16 %v7825
  %v8133 = vunpack.c.h.b16 %v7825
  %v8134 = vunpack.c.l.b16 %v7826
  %v8135 = vunpack.c.l.b16 %v7827
  %v8136 = vunpack.c.h.b16 %v7827
  %v8137 = vunpack.c.l.b16 %v7828
  %v8138 = vunpack.c.l.b16 %v7829
  %v8139 = vunpack.c.h.b16 %v7829
  %v8140 = vunpack.c.l.b16 %v7830
  %v8141 = vunpack.c.l.b16 %v7831
  %v8142 = vunpack.c.h.b16 %v7831
  %v8143 = vunpack.c.l.b16 %v7832
  %v8144 = vunpack.c.l.b16 %v7833
  %v8145 = vunpack.c.h.b16 %v7833
  %v8146 = vunpack.c.l.b16 %v7834
  %v8147 = vunpack.c.l.b16 %v7835
  %v8148 = vunpack.c.h.b16 %v7835
  %v8149 = vunpack.c.l.b16 %v7836
  %v8150 = vunpack.c.l.b16 %v7837
  %v8151 = vunpack.c.h.b16 %v7837
  %v8152 = vunpack.c.l.b16 %v7838
  %v8153 = vunpack.c.l.b16 %v7839
  %v8154 = vunpack.c.h.b16 %v7839
  %v8155 = vunpack.c.l.b16 %v7840
  %v8156 = vunpack.c.l.b16 %v7841
  %v8157 = vunpack.c.h.b16 %v7841
  %v8158 = vunpack.c.l.b16 %v7842
  %v8159 = vunpack.c.l.b16 %v7843
  %v8160 = vunpack.c.h.b16 %v7843
  %v8161 = vunpack.c.l.b16 %v7844
  %v8162 = vunpack.c.l.b16 %v7845
  %v8163 = vunpack.c.h.b16 %v7845
  %v8164 = vunpack.c.l.b16 %v7846
  %v8165 = vunpack.c.l.b16 %v7847
  %v8166 = vunpack.c.h.b16 %v7847
  %v8167 = vunpack.c.l.b16 %v7848
  %v8168 = vunpack.c.l.b16 %v7849
  %v8169 = vunpack.c.h.b16 %v7849
  %v8170 = vunpack.c.l.b16 %v7850
  %v8171 = vpack.c.b16 %v7982, %v7979
  %v8172 = vpack.c.b16 %v7983, %v7980
  %v8173 = vpack.c.b16 %v7984, %v7981
  %v8174 = vpack.c.b16 %v7988, %v7985
  %v8175 = vpack.c.b16 %v7989, %v7986
  %v8176 = vpack.c.b16 %v7990, %v7987
  %v8177 = vpack.c.b16 %v7994, %v7991
  %v8178 = vpack.c.b16 %v7995, %v7992
  %v8179 = vpack.c.b16 %v7996, %v7993
  %v8180 = vpack.c.b16 %v8000, %v7997
  %v8181 = vpack.c.b16 %v8001, %v7998
  %v8182 = vpack.c.b16 %v8002, %v7999
  %v8183 = vpack.c.b16 %v8006, %v8003
  %v8184 = vpack.c.b16 %v8007, %v8004
  %v8185 = vpack.c.b16 %v8008, %v8005
  %v8186 = vpack.c.b16 %v8012, %v8009
  %v8187 = vpack.c.b16 %v8013, %v8010
  %v8188 = vpack.c.b16 %v8014, %v8011
  %v8189 = vpack.c.b16 %v8018, %v8015
  %v8190 = vpack.c.b16 %v8019, %v8016
  %v8191 = vpack.c.b16 %v8020, %v8017
  %v8192 = vpack.c.b16 %v8024, %v8021
  %v8193 = vpack.c.b16 %v8025, %v8022
  %v8194 = vpack.c.b16 %v8026, %v8023
  %v8195 = vpack.c.b16 %v8030, %v8027
  %v8196 = vpack.c.b16 %v8031, %v8028
  %v8197 = vpack.c.b16 %v8032, %v8029
  %v8198 = vpack.c.b16 %v8036, %v8033
  %v8199 = vpack.c.b16 %v8037, %v8034
  %v8200 = vpack.c.b16 %v8038, %v8035
  %v8201 = vpack.c.b16 %v8042, %v8039
  %v8202 = vpack.c.b16 %v8043, %v8040
  %v8203 = vpack.c.b16 %v8044, %v8041
  %v8204 = vpack.c.b16 %v8048, %v8045
  %v8205 = vpack.c.b16 %v8049, %v8046
  %v8206 = vpack.c.b16 %v8050, %v8047
  %v8207 = vpack.c.b16 %v8054, %v8051
  %v8208 = vpack.c.b16 %v8055, %v8052
  %v8209 = vpack.c.b16 %v8056, %v8053
  %v8210 = vpack.c.b16 %v8060, %v8057
  %v8211 = vpack.c.b16 %v8061, %v8058
  %v8212 = vpack.c.b16 %v8062, %v8059
  %v8213 = vpack.c.b16 %v8066, %v8063
  %v8214 = vpack.c.b16 %v8067, %v8064
  %v8215 = vpack.c.b16 %v8068, %v8065
  %v8216 = vpack.c.b16 %v8072, %v8069
  %v8217 = vpack.c.b16 %v8073, %v8070
  %v8218 = vpack.c.b16 %v8074, %v8071
  %v8219 = vpack.c.b16 %v8078, %v8075
  %v8220 = vpack.c.b16 %v8079, %v8076
  %v8221 = vpack.c.b16 %v8080, %v8077
  %v8222 = vpack.c.b16 %v8084, %v8081
  %v8223 = vpack.c.b16 %v8085, %v8082
  %v8224 = vpack.c.b16 %v8086, %v8083
  %v8225 = vpack.c.b16 %v8090, %v8087
  %v8226 = vpack.c.b16 %v8091, %v8088
  %v8227 = vpack.c.b16 %v8092, %v8089
  %v8228 = vpack.c.b16 %v8096, %v8093
  %v8229 = vpack.c.b16 %v8097, %v8094
  %v8230 = vpack.c.b16 %v8098, %v8095
  %v8231 = vpack.c.b16 %v8102, %v8099
  %v8232 = vpack.c.b16 %v8103, %v8100
  %v8233 = vpack.c.b16 %v8104, %v8101
  %v8234 = vpack.c.b16 %v8108, %v8105
  %v8235 = vpack.c.b16 %v8109, %v8106
  %v8236 = vpack.c.b16 %v8110, %v8107
  %v8237 = vpack.c.b16 %v8114, %v8111
  %v8238 = vpack.c.b16 %v8115, %v8112
  %v8239 = vpack.c.b16 %v8116, %v8113
  %v8240 = vpack.c.b16 %v8120, %v8117
  %v8241 = vpack.c.b16 %v8121, %v8118
  %v8242 = vpack.c.b16 %v8122, %v8119
  %v8243 = vpack.c.b16 %v8126, %v8123
  %v8244 = vpack.c.b16 %v8127, %v8124
  %v8245 = vpack.c.b16 %v8128, %v8125
  %v8246 = vpack.c.b16 %v8132, %v8129
  %v8247 = vpack.c.b16 %v8133, %v8130
  %v8248 = vpack.c.b16 %v8134, %v8131
  %v8249 = vpack.c.b16 %v8138, %v8135
  %v8250 = vpack.c.b16 %v8139, %v8136
  %v8251 = vpack.c.b16 %v8140, %v8137
  %v8252 = vpack.c.b16 %v8144, %v8141
  %v8253 = vpack.c.b16 %v8145, %v8142
  %v8254 = vpack.c.b16 %v8146, %v8143
  %v8255 = vpack.c.b16 %v8150, %v8147
  %v8256 = vpack.c.b16 %v8151, %v8148
  %v8257 = vpack.c.b16 %v8152, %v8149
  %v8258 = vpack.c.b16 %v8156, %v8153
  %v8259 = vpack.c.b16 %v8157, %v8154
  %v8260 = vpack.c.b16 %v8158, %v8155
  %v8261 = vpack.c.b16 %v8162, %v8159
  %v8262 = vpack.c.b16 %v8163, %v8160
  %v8263 = vpack.c.b16 %v8164, %v8161
  %v8264 = vpack.c.b16 %v8168, %v8165
  %v8265 = vpack.c.b16 %v8169, %v8166
  %v8266 = vpack.c.b16 %v8170, %v8167
  %8363 = vmatprep.subr.bf16.mxu0 %v8193
  %8364 = vmatpush1.bf16.msra.mxu0 %v8192
  %8365 = vmatprep.subr.bf16.mxu0 %v8190
  %8366 = vmatpush1.bf16.msra.mxu0 %v8189
  %8367 = vmatprep.subr.bf16.mxu0 %v8187
  %8368 = vmatpush1.bf16.msra.mxu0 %v8186
  %8369 = vmatprep.subr.bf16.mxu0 %v8184
  %8370 = vmatpush1.bf16.msra.mxu0 %v8183
  %8371 = vmatprep.subr.bf16.mxu0 %v8181
  %8372 = vmatpush1.bf16.msra.mxu0 %v8180
  %8373 = vmatprep.subr.bf16.mxu0 %v8178
  %8374 = vmatpush1.bf16.msra.mxu0 %v8177
  %8375 = vmatprep.subr.bf16.mxu0 %v8175
  %8376 = vmatpush1.bf16.msra.mxu0 %v8174
  %8377 = vmatprep.subr.bf16.mxu0 %v8172
  %8378 = vmatpush1.bf16.msra.mxu0 %v8171
  %8379 = vmatprep.subr.bf16.mxu0 %v8217
  %8380 = vmatpush2.bf16.msra.mxu0 %v8216
  %8381 = vmatprep.subr.bf16.mxu0 %v8214
  %8382 = vmatpush2.bf16.msra.mxu0 %v8213
  %8383 = vmatprep.subr.bf16.mxu0 %v8211
  %8384 = vmatpush2.bf16.msra.mxu0 %v8210
  %8385 = vmatprep.subr.bf16.mxu0 %v8208
  %8386 = vmatpush2.bf16.msra.mxu0 %v8207
  %8387 = vmatprep.subr.bf16.mxu0 %v8205
  %8388 = vmatpush2.bf16.msra.mxu0 %v8204
  %8389 = vmatprep.subr.bf16.mxu0 %v8202
  %8390 = vmatpush2.bf16.msra.mxu0 %v8201
  %8391 = vmatprep.subr.bf16.mxu0 %v8199
  %8392 = vmatpush2.bf16.msra.mxu0 %v8198
  %8393 = vmatprep.subr.bf16.mxu0 %v8196
  %8394 = vmatpush2.bf16.msra.mxu0 %v8195
  %8395 = vmatprep.mubr.bf16.mxu0 %v7660
  %8396 = vmatmul.mubr.bf16.gmra.mxu0 %v7659
  %v8397 = vpop.f32.mrf.mxu0
  %v8398 = vadd.f32 0.0, %v8397
  %v8399 = vpop.f32.mrf.mxu0
  %v8400 = vadd.f32 0.0, %v8399
  %v8401 = vpop.f32.mrf.mxu0
  %v8402 = vadd.f32 0.0, %v8401
  %v8403 = vpop.f32.mrf.mxu0
  %v8404 = vadd.f32 0.0, %v8403
  %8405 = vmatprep.mubr.bf16.mxu0 %v7664
  %8406 = vmatmul.mubr.bf16.gmra.mxu0 %v7663
  %v8407 = vpop.f32.mrf.mxu0
  %v8408 = vadd.f32 0.0, %v8407
  %v8409 = vpop.f32.mrf.mxu0
  %v8410 = vadd.f32 0.0, %v8409
  %v8411 = vpop.f32.mrf.mxu0
  %v8412 = vadd.f32 0.0, %v8411
  %v8413 = vpop.f32.mrf.mxu0
  %v8414 = vadd.f32 0.0, %v8413
  %8415 = vmatprep.mubr.bf16.mxu0 %v7668
  %8416 = vmatmul.mubr.bf16.gmra.mxu0 %v7667
  %v8417 = vpop.f32.mrf.mxu0
  %v8418 = vadd.f32 0.0, %v8417
  %v8419 = vpop.f32.mrf.mxu0
  %v8420 = vadd.f32 0.0, %v8419
  %v8421 = vpop.f32.mrf.mxu0
  %v8422 = vadd.f32 0.0, %v8421
  %v8423 = vpop.f32.mrf.mxu0
  %v8424 = vadd.f32 0.0, %v8423
  %8425 = vmatprep.mubr.bf16.mxu0 %v7672
  %8426 = vmatmul.mubr.bf16.gmra.mxu0 %v7671
  %v8427 = vpop.f32.mrf.mxu0
  %v8428 = vadd.f32 0.0, %v8427
  %v8429 = vpop.f32.mrf.mxu0
  %v8430 = vadd.f32 0.0, %v8429
  %v8431 = vpop.f32.mrf.mxu0
  %v8432 = vadd.f32 0.0, %v8431
  %v8433 = vpop.f32.mrf.mxu0
  %v8434 = vadd.f32 0.0, %v8433
  %8435 = vmatprep.mubr.bf16.mxu0 %v7676
  %8436 = vmatmul.mubr.bf16.gmra.mxu0 %v7675
  %v8437 = vpop.f32.mrf.mxu0
  %v8438 = vadd.f32 0.0, %v8437
  %v8439 = vpop.f32.mrf.mxu0
  %v8440 = vadd.f32 0.0, %v8439
  %v8441 = vpop.f32.mrf.mxu0
  %v8442 = vadd.f32 0.0, %v8441
  %v8443 = vpop.f32.mrf.mxu0
  %v8444 = vadd.f32 0.0, %v8443
  %8445 = vmatprep.mubr.bf16.mxu0 %v7680
  %8446 = vmatmul.mubr.bf16.gmra.mxu0 %v7679
  %v8447 = vpop.f32.mrf.mxu0
  %v8448 = vadd.f32 0.0, %v8447
  %v8449 = vpop.f32.mrf.mxu0
  %v8450 = vadd.f32 0.0, %v8449
  %v8451 = vpop.f32.mrf.mxu0
  %v8452 = vadd.f32 0.0, %v8451
  %v8453 = vpop.f32.mrf.mxu0
  %v8454 = vadd.f32 0.0, %v8453
  %8455 = vmatprep.mubr.bf16.mxu0 %v7684
  %8456 = vmatmul.mubr.bf16.gmra.mxu0 %v7683
  %v8457 = vpop.f32.mrf.mxu0
  %v8458 = vadd.f32 0.0, %v8457
  %v8459 = vpop.f32.mrf.mxu0
  %v8460 = vadd.f32 0.0, %v8459
  %v8461 = vpop.f32.mrf.mxu0
  %v8462 = vadd.f32 0.0, %v8461
  %v8463 = vpop.f32.mrf.mxu0
  %v8464 = vadd.f32 0.0, %v8463
  %8465 = vmatprep.mubr.bf16.mxu0 %v7688
  %8466 = vmatmul.mubr.bf16.gmra.mxu0 %v7687
  %v8467 = vpop.f32.mrf.mxu0
  %v8468 = vadd.f32 0.0, %v8467
  %v8469 = vpop.f32.mrf.mxu0
  %v8470 = vadd.f32 0.0, %v8469
  %v8471 = vpop.f32.mrf.mxu0
  %v8472 = vadd.f32 0.0, %v8471
  %v8473 = vpop.f32.mrf.mxu0
  %v8474 = vadd.f32 0.0, %v8473
  %8475 = vmatprep.mubr.bf16.mxu0 %v7692
  %8476 = vmatmul.mubr.bf16.gmra.mxu0 %v7691
  %v8477 = vpop.f32.mrf.mxu0
  %v8478 = vadd.f32 0.0, %v8477
  %v8479 = vpop.f32.mrf.mxu0
  %v8480 = vadd.f32 0.0, %v8479
  %v8481 = vpop.f32.mrf.mxu0
  %v8482 = vadd.f32 0.0, %v8481
  %v8483 = vpop.f32.mrf.mxu0
  %v8484 = vadd.f32 0.0, %v8483
  %8485 = vmatprep.mubr.bf16.mxu0 %v7696
  %8486 = vmatmul.mubr.bf16.gmra.mxu0 %v7695
  %v8487 = vpop.f32.mrf.mxu0
  %v8488 = vadd.f32 0.0, %v8487
  %v8489 = vpop.f32.mrf.mxu0
  %v8490 = vadd.f32 0.0, %v8489
  %v8491 = vpop.f32.mrf.mxu0
  %v8492 = vadd.f32 0.0, %v8491
  %v8493 = vpop.f32.mrf.mxu0
  %v8494 = vadd.f32 0.0, %v8493
  %8495 = vmatprep.mubr.bf16.mxu0 %v7700
  %8496 = vmatmul.mubr.bf16.gmra.mxu0 %v7699
  %v8497 = vpop.f32.mrf.mxu0
  %v8498 = vadd.f32 0.0, %v8497
  %v8499 = vpop.f32.mrf.mxu0
  %v8500 = vadd.f32 0.0, %v8499
  %v8501 = vpop.f32.mrf.mxu0
  %v8502 = vadd.f32 0.0, %v8501
  %v8503 = vpop.f32.mrf.mxu0
  %v8504 = vadd.f32 0.0, %v8503
  %8505 = vmatprep.mubr.bf16.mxu0 %v7704
  %8506 = vmatmul.mubr.bf16.gmra.mxu0 %v7703
  %v8507 = vpop.f32.mrf.mxu0
  %v8508 = vadd.f32 0.0, %v8507
  %v8509 = vpop.f32.mrf.mxu0
  %v8510 = vadd.f32 0.0, %v8509
  %v8511 = vpop.f32.mrf.mxu0
  %v8512 = vadd.f32 0.0, %v8511
  %v8513 = vpop.f32.mrf.mxu0
  %v8514 = vadd.f32 0.0, %v8513
  %8515 = vmatprep.mubr.bf16.mxu0 %v7708
  %8516 = vmatmul.mubr.bf16.gmra.mxu0 %v7707
  %v8517 = vpop.f32.mrf.mxu0
  %v8518 = vadd.f32 0.0, %v8517
  %v8519 = vpop.f32.mrf.mxu0
  %v8520 = vadd.f32 0.0, %v8519
  %v8521 = vpop.f32.mrf.mxu0
  %v8522 = vadd.f32 0.0, %v8521
  %v8523 = vpop.f32.mrf.mxu0
  %v8524 = vadd.f32 0.0, %v8523
  %8525 = vmatprep.mubr.bf16.mxu0 %v7712
  %8526 = vmatmul.mubr.bf16.gmra.mxu0 %v7711
  %v8527 = vpop.f32.mrf.mxu0
  %v8528 = vadd.f32 0.0, %v8527
  %v8529 = vpop.f32.mrf.mxu0
  %v8530 = vadd.f32 0.0, %v8529
  %v8531 = vpop.f32.mrf.mxu0
  %v8532 = vadd.f32 0.0, %v8531
  %v8533 = vpop.f32.mrf.mxu0
  %v8534 = vadd.f32 0.0, %v8533
  %8535 = vmatprep.mubr.bf16.mxu0 %v7716
  %8536 = vmatmul.mubr.bf16.gmra.mxu0 %v7715
  %v8537 = vpop.f32.mrf.mxu0
  %v8538 = vadd.f32 0.0, %v8537
  %v8539 = vpop.f32.mrf.mxu0
  %v8540 = vadd.f32 0.0, %v8539
  %v8541 = vpop.f32.mrf.mxu0
  %v8542 = vadd.f32 0.0, %v8541
  %v8543 = vpop.f32.mrf.mxu0
  %v8544 = vadd.f32 0.0, %v8543
  %8545 = vmatprep.mubr.bf16.mxu0 %v7720
  %8546 = vmatmul.mubr.bf16.gmra.mxu0 %v7719
  %v8547 = vpop.f32.mrf.mxu0
  %v8548 = vadd.f32 0.0, %v8547
  %v8549 = vpop.f32.mrf.mxu0
  %v8550 = vadd.f32 0.0, %v8549
  %v8551 = vpop.f32.mrf.mxu0
  %v8552 = vadd.f32 0.0, %v8551
  %v8553 = vpop.f32.mrf.mxu0
  %v8554 = vadd.f32 0.0, %v8553
  %8555 = vdwg.mxu0
  %8556 = vmatprep.subr.bf16.mxu0 %v8241
  %8557 = vmatpush1.bf16.msra.mxu0 %v8240
  %8558 = vmatprep.subr.bf16.mxu0 %v8238
  %8559 = vmatpush1.bf16.msra.mxu0 %v8237
  %8560 = vmatprep.subr.bf16.mxu0 %v8235
  %8561 = vmatpush1.bf16.msra.mxu0 %v8234
  %8562 = vmatprep.subr.bf16.mxu0 %v8232
  %8563 = vmatpush1.bf16.msra.mxu0 %v8231
  %8564 = vmatprep.subr.bf16.mxu0 %v8229
  %8565 = vmatpush1.bf16.msra.mxu0 %v8228
  %8566 = vmatprep.subr.bf16.mxu0 %v8226
  %8567 = vmatpush1.bf16.msra.mxu0 %v8225
  %8568 = vmatprep.subr.bf16.mxu0 %v8223
  %8569 = vmatpush1.bf16.msra.mxu0 %v8222
  %8570 = vmatprep.subr.bf16.mxu0 %v8220
  %8571 = vmatpush1.bf16.msra.mxu0 %v8219
  %8572 = vmatprep.subr.bf16.mxu0 %v8265
  %8573 = vmatpush2.bf16.msra.mxu0 %v8264
  %8574 = vmatprep.subr.bf16.mxu0 %v8262
  %8575 = vmatpush2.bf16.msra.mxu0 %v8261
  %8576 = vmatprep.subr.bf16.mxu0 %v8259
  %8577 = vmatpush2.bf16.msra.mxu0 %v8258
  %8578 = vmatprep.subr.bf16.mxu0 %v8256
  %8579 = vmatpush2.bf16.msra.mxu0 %v8255
  %8580 = vmatprep.subr.bf16.mxu0 %v8253
  %8581 = vmatpush2.bf16.msra.mxu0 %v8252
  %8582 = vmatprep.subr.bf16.mxu0 %v8250
  %8583 = vmatpush2.bf16.msra.mxu0 %v8249
  %8584 = vmatprep.subr.bf16.mxu0 %v8247
  %8585 = vmatpush2.bf16.msra.mxu0 %v8246
  %8586 = vmatprep.subr.bf16.mxu0 %v8244
  %8587 = vmatpush2.bf16.msra.mxu0 %v8243
  %8588 = vmatprep.mubr.bf16.mxu0 %v7662
  %8589 = vmatmul.mubr.bf16.gmra.mxu0 %v7661
  %v8590 = vpop.f32.mrf.mxu0
  %v8591 = vadd.f32 %v8398, %v8590
  %v8592 = vpop.f32.mrf.mxu0
  %v8593 = vadd.f32 %v8400, %v8592
  %v8594 = vpop.f32.mrf.mxu0
  %v8595 = vadd.f32 %v8402, %v8594
  %v8596 = vpop.f32.mrf.mxu0
  %v8597 = vadd.f32 %v8404, %v8596
  %8598 = vmatprep.mubr.bf16.mxu0 %v7666
  %8599 = vmatmul.mubr.bf16.gmra.mxu0 %v7665
  %v8600 = vpop.f32.mrf.mxu0
  %v8601 = vadd.f32 %v8408, %v8600
  %v8602 = vpop.f32.mrf.mxu0
  %v8603 = vadd.f32 %v8410, %v8602
  %v8604 = vpop.f32.mrf.mxu0
  %v8605 = vadd.f32 %v8412, %v8604
  %v8606 = vpop.f32.mrf.mxu0
  %v8607 = vadd.f32 %v8414, %v8606
  %8608 = vmatprep.mubr.bf16.mxu0 %v7670
  %8609 = vmatmul.mubr.bf16.gmra.mxu0 %v7669
  %v8610 = vpop.f32.mrf.mxu0
  %v8611 = vadd.f32 %v8418, %v8610
  %v8612 = vpop.f32.mrf.mxu0
  %v8613 = vadd.f32 %v8420, %v8612
  %v8614 = vpop.f32.mrf.mxu0
  %v8615 = vadd.f32 %v8422, %v8614
  %v8616 = vpop.f32.mrf.mxu0
  %v8617 = vadd.f32 %v8424, %v8616
  %8618 = vmatprep.mubr.bf16.mxu0 %v7674
  %8619 = vmatmul.mubr.bf16.gmra.mxu0 %v7673
  %v8620 = vpop.f32.mrf.mxu0
  %v8621 = vadd.f32 %v8428, %v8620
  %v8622 = vpop.f32.mrf.mxu0
  %v8623 = vadd.f32 %v8430, %v8622
  %v8624 = vpop.f32.mrf.mxu0
  %v8625 = vadd.f32 %v8432, %v8624
  %v8626 = vpop.f32.mrf.mxu0
  %v8627 = vadd.f32 %v8434, %v8626
  %8628 = vmatprep.mubr.bf16.mxu0 %v7678
  %8629 = vmatmul.mubr.bf16.gmra.mxu0 %v7677
  %v8630 = vpop.f32.mrf.mxu0
  %v8631 = vadd.f32 %v8438, %v8630
  %v8632 = vpop.f32.mrf.mxu0
  %v8633 = vadd.f32 %v8440, %v8632
  %v8634 = vpop.f32.mrf.mxu0
  %v8635 = vadd.f32 %v8442, %v8634
  %v8636 = vpop.f32.mrf.mxu0
  %v8637 = vadd.f32 %v8444, %v8636
  %8638 = vmatprep.mubr.bf16.mxu0 %v7682
  %8639 = vmatmul.mubr.bf16.gmra.mxu0 %v7681
  %v8640 = vpop.f32.mrf.mxu0
  %v8641 = vadd.f32 %v8448, %v8640
  %v8642 = vpop.f32.mrf.mxu0
  %v8643 = vadd.f32 %v8450, %v8642
  %v8644 = vpop.f32.mrf.mxu0
  %v8645 = vadd.f32 %v8452, %v8644
  %v8646 = vpop.f32.mrf.mxu0
  %v8647 = vadd.f32 %v8454, %v8646
  %8648 = vmatprep.mubr.bf16.mxu0 %v7686
  %8649 = vmatmul.mubr.bf16.gmra.mxu0 %v7685
  %v8650 = vpop.f32.mrf.mxu0
  %v8651 = vadd.f32 %v8458, %v8650
  %v8652 = vpop.f32.mrf.mxu0
  %v8653 = vadd.f32 %v8460, %v8652
  %v8654 = vpop.f32.mrf.mxu0
  %v8655 = vadd.f32 %v8462, %v8654
  %v8656 = vpop.f32.mrf.mxu0
  %v8657 = vadd.f32 %v8464, %v8656
  %8658 = vmatprep.mubr.bf16.mxu0 %v7690
  %8659 = vmatmul.mubr.bf16.gmra.mxu0 %v7689
  %v8660 = vpop.f32.mrf.mxu0
  %v8661 = vadd.f32 %v8468, %v8660
  %v8662 = vpop.f32.mrf.mxu0
  %v8663 = vadd.f32 %v8470, %v8662
  %v8664 = vpop.f32.mrf.mxu0
  %v8665 = vadd.f32 %v8472, %v8664
  %v8666 = vpop.f32.mrf.mxu0
  %v8667 = vadd.f32 %v8474, %v8666
  %8668 = vmatprep.mubr.bf16.mxu0 %v7694
  %8669 = vmatmul.mubr.bf16.gmra.mxu0 %v7693
  %v8670 = vpop.f32.mrf.mxu0
  %v8671 = vadd.f32 %v8478, %v8670
  %v8672 = vpop.f32.mrf.mxu0
  %v8673 = vadd.f32 %v8480, %v8672
  %v8674 = vpop.f32.mrf.mxu0
  %v8675 = vadd.f32 %v8482, %v8674
  %v8676 = vpop.f32.mrf.mxu0
  %v8677 = vadd.f32 %v8484, %v8676
  %8678 = vmatprep.mubr.bf16.mxu0 %v7698
  %8679 = vmatmul.mubr.bf16.gmra.mxu0 %v7697
  %v8680 = vpop.f32.mrf.mxu0
  %v8681 = vadd.f32 %v8488, %v8680
  %v8682 = vpop.f32.mrf.mxu0
  %v8683 = vadd.f32 %v8490, %v8682
  %v8684 = vpop.f32.mrf.mxu0
  %v8685 = vadd.f32 %v8492, %v8684
  %v8686 = vpop.f32.mrf.mxu0
  %v8687 = vadd.f32 %v8494, %v8686
  %8688 = vmatprep.mubr.bf16.mxu0 %v7702
  %8689 = vmatmul.mubr.bf16.gmra.mxu0 %v7701
  %v8690 = vpop.f32.mrf.mxu0
  %v8691 = vadd.f32 %v8498, %v8690
  %v8692 = vpop.f32.mrf.mxu0
  %v8693 = vadd.f32 %v8500, %v8692
  %v8694 = vpop.f32.mrf.mxu0
  %v8695 = vadd.f32 %v8502, %v8694
  %v8696 = vpop.f32.mrf.mxu0
  %v8697 = vadd.f32 %v8504, %v8696
  %8698 = vmatprep.mubr.bf16.mxu0 %v7706
  %8699 = vmatmul.mubr.bf16.gmra.mxu0 %v7705
  %v8700 = vpop.f32.mrf.mxu0
  %v8701 = vadd.f32 %v8508, %v8700
  %v8702 = vpop.f32.mrf.mxu0
  %v8703 = vadd.f32 %v8510, %v8702
  %v8704 = vpop.f32.mrf.mxu0
  %v8705 = vadd.f32 %v8512, %v8704
  %v8706 = vpop.f32.mrf.mxu0
  %v8707 = vadd.f32 %v8514, %v8706
  %8708 = vmatprep.mubr.bf16.mxu0 %v7710
  %8709 = vmatmul.mubr.bf16.gmra.mxu0 %v7709
  %v8710 = vpop.f32.mrf.mxu0
  %v8711 = vadd.f32 %v8518, %v8710
  %v8712 = vpop.f32.mrf.mxu0
  %v8713 = vadd.f32 %v8520, %v8712
  %v8714 = vpop.f32.mrf.mxu0
  %v8715 = vadd.f32 %v8522, %v8714
  %v8716 = vpop.f32.mrf.mxu0
  %v8717 = vadd.f32 %v8524, %v8716
  %8718 = vmatprep.mubr.bf16.mxu0 %v7714
  %8719 = vmatmul.mubr.bf16.gmra.mxu0 %v7713
  %v8720 = vpop.f32.mrf.mxu0
  %v8721 = vadd.f32 %v8528, %v8720
  %v8722 = vpop.f32.mrf.mxu0
  %v8723 = vadd.f32 %v8530, %v8722
  %v8724 = vpop.f32.mrf.mxu0
  %v8725 = vadd.f32 %v8532, %v8724
  %v8726 = vpop.f32.mrf.mxu0
  %v8727 = vadd.f32 %v8534, %v8726
  %8728 = vmatprep.mubr.bf16.mxu0 %v7718
  %8729 = vmatmul.mubr.bf16.gmra.mxu0 %v7717
  %v8730 = vpop.f32.mrf.mxu0
  %v8731 = vadd.f32 %v8538, %v8730
  %v8732 = vpop.f32.mrf.mxu0
  %v8733 = vadd.f32 %v8540, %v8732
  %v8734 = vpop.f32.mrf.mxu0
  %v8735 = vadd.f32 %v8542, %v8734
  %v8736 = vpop.f32.mrf.mxu0
  %v8737 = vadd.f32 %v8544, %v8736
  %8738 = vmatprep.mubr.bf16.mxu0 %v7722
  %8739 = vmatmul.mubr.bf16.gmra.mxu0 %v7721
  %v8740 = vpop.f32.mrf.mxu0
  %v8741 = vadd.f32 %v8548, %v8740
  %v8742 = vpop.f32.mrf.mxu0
  %v8743 = vadd.f32 %v8550, %v8742
  %v8744 = vpop.f32.mrf.mxu0
  %v8745 = vadd.f32 %v8552, %v8744
  %v8746 = vpop.f32.mrf.mxu0
  %v8747 = vadd.f32 %v8554, %v8746
  %8748 = vdwg.mxu0
  %8749 = vmatprep.subr.bf16.mxu0 0
  %8750 = vmatpush1.bf16.msra.mxu0 %v8194
  %8751 = vmatprep.subr.bf16.mxu0 0
  %8752 = vmatpush1.bf16.msra.mxu0 %v8191
  %8753 = vmatprep.subr.bf16.mxu0 0
  %8754 = vmatpush1.bf16.msra.mxu0 %v8188
  %8755 = vmatprep.subr.bf16.mxu0 0
  %8756 = vmatpush1.bf16.msra.mxu0 %v8185
  %8757 = vmatprep.subr.bf16.mxu0 0
  %8758 = vmatpush1.bf16.msra.mxu0 %v8182
  %8759 = vmatprep.subr.bf16.mxu0 0
  %8760 = vmatpush1.bf16.msra.mxu0 %v8179
  %8761 = vmatprep.subr.bf16.mxu0 0
  %8762 = vmatpush1.bf16.msra.mxu0 %v8176
  %8763 = vmatprep.subr.bf16.mxu0 0
  %8764 = vmatpush1.bf16.msra.mxu0 %v8173
  %8765 = vmatprep.subr.bf16.mxu0 0
  %8766 = vmatpush2.bf16.msra.mxu0 %v8218
  %8767 = vmatprep.subr.bf16.mxu0 0
  %8768 = vmatpush2.bf16.msra.mxu0 %v8215
  %8769 = vmatprep.subr.bf16.mxu0 0
  %8770 = vmatpush2.bf16.msra.mxu0 %v8212
  %8771 = vmatprep.subr.bf16.mxu0 0
  %8772 = vmatpush2.bf16.msra.mxu0 %v8209
  %8773 = vmatprep.subr.bf16.mxu0 0
  %8774 = vmatpush2.bf16.msra.mxu0 %v8206
  %8775 = vmatprep.subr.bf16.mxu0 0
  %8776 = vmatpush2.bf16.msra.mxu0 %v8203
  %8777 = vmatprep.subr.bf16.mxu0 0
  %8778 = vmatpush2.bf16.msra.mxu0 %v8200
  %8779 = vmatprep.subr.bf16.mxu0 0
  %8780 = vmatpush2.bf16.msra.mxu0 %v8197
  %8781 = vmatprep.mubr.bf16.mxu0 %v7660
  %8782 = vmatmul.mubr.bf16.gmra.mxu0 %v7659
  %v8783 = vpop.f32.mrf.mxu0
  %v8784 = vadd.f32 0.0, %v8783
  %v8785 = vpop.f32.mrf.mxu0
  %v8786 = vpop.f32.mrf.mxu0
  %v8787 = vadd.f32 0.0, %v8786
  %v8788 = vpop.f32.mrf.mxu0
  %8789 = vmatprep.mubr.bf16.mxu0 %v7664
  %8790 = vmatmul.mubr.bf16.gmra.mxu0 %v7663
  %v8791 = vpop.f32.mrf.mxu0
  %v8792 = vadd.f32 0.0, %v8791
  %v8793 = vpop.f32.mrf.mxu0
  %v8794 = vpop.f32.mrf.mxu0
  %v8795 = vadd.f32 0.0, %v8794
  %v8796 = vpop.f32.mrf.mxu0
  %8797 = vmatprep.mubr.bf16.mxu0 %v7668
  %8798 = vmatmul.mubr.bf16.gmra.mxu0 %v7667
  %v8799 = vpop.f32.mrf.mxu0
  %v8800 = vadd.f32 0.0, %v8799
  %v8801 = vpop.f32.mrf.mxu0
  %v8802 = vpop.f32.mrf.mxu0
  %v8803 = vadd.f32 0.0, %v8802
  %v8804 = vpop.f32.mrf.mxu0
  %8805 = vmatprep.mubr.bf16.mxu0 %v7672
  %8806 = vmatmul.mubr.bf16.gmra.mxu0 %v7671
  %v8807 = vpop.f32.mrf.mxu0
  %v8808 = vadd.f32 0.0, %v8807
  %v8809 = vpop.f32.mrf.mxu0
  %v8810 = vpop.f32.mrf.mxu0
  %v8811 = vadd.f32 0.0, %v8810
  %v8812 = vpop.f32.mrf.mxu0
  %8813 = vmatprep.mubr.bf16.mxu0 %v7676
  %8814 = vmatmul.mubr.bf16.gmra.mxu0 %v7675
  %v8815 = vpop.f32.mrf.mxu0
  %v8816 = vadd.f32 0.0, %v8815
  %v8817 = vpop.f32.mrf.mxu0
  %v8818 = vpop.f32.mrf.mxu0
  %v8819 = vadd.f32 0.0, %v8818
  %v8820 = vpop.f32.mrf.mxu0
  %8821 = vmatprep.mubr.bf16.mxu0 %v7680
  %8822 = vmatmul.mubr.bf16.gmra.mxu0 %v7679
  %v8823 = vpop.f32.mrf.mxu0
  %v8824 = vadd.f32 0.0, %v8823
  %v8825 = vpop.f32.mrf.mxu0
  %v8826 = vpop.f32.mrf.mxu0
  %v8827 = vadd.f32 0.0, %v8826
  %v8828 = vpop.f32.mrf.mxu0
  %8829 = vmatprep.mubr.bf16.mxu0 %v7684
  %8830 = vmatmul.mubr.bf16.gmra.mxu0 %v7683
  %v8831 = vpop.f32.mrf.mxu0
  %v8832 = vadd.f32 0.0, %v8831
  %v8833 = vpop.f32.mrf.mxu0
  %v8834 = vpop.f32.mrf.mxu0
  %v8835 = vadd.f32 0.0, %v8834
  %v8836 = vpop.f32.mrf.mxu0
  %8837 = vmatprep.mubr.bf16.mxu0 %v7688
  %8838 = vmatmul.mubr.bf16.gmra.mxu0 %v7687
  %v8839 = vpop.f32.mrf.mxu0
  %v8840 = vadd.f32 0.0, %v8839
  %v8841 = vpop.f32.mrf.mxu0
  %v8842 = vpop.f32.mrf.mxu0
  %v8843 = vadd.f32 0.0, %v8842
  %v8844 = vpop.f32.mrf.mxu0
  %8845 = vmatprep.mubr.bf16.mxu0 %v7692
  %8846 = vmatmul.mubr.bf16.gmra.mxu0 %v7691
  %v8847 = vpop.f32.mrf.mxu0
  %v8848 = vadd.f32 0.0, %v8847
  %v8849 = vpop.f32.mrf.mxu0
  %v8850 = vpop.f32.mrf.mxu0
  %v8851 = vadd.f32 0.0, %v8850
  %v8852 = vpop.f32.mrf.mxu0
  %8853 = vmatprep.mubr.bf16.mxu0 %v7696
  %8854 = vmatmul.mubr.bf16.gmra.mxu0 %v7695
  %v8855 = vpop.f32.mrf.mxu0
  %v8856 = vadd.f32 0.0, %v8855
  %v8857 = vpop.f32.mrf.mxu0
  %v8858 = vpop.f32.mrf.mxu0
  %v8859 = vadd.f32 0.0, %v8858
  %v8860 = vpop.f32.mrf.mxu0
  %8861 = vmatprep.mubr.bf16.mxu0 %v7700
  %8862 = vmatmul.mubr.bf16.gmra.mxu0 %v7699
  %v8863 = vpop.f32.mrf.mxu0
  %v8864 = vadd.f32 0.0, %v8863
  %v8865 = vpop.f32.mrf.mxu0
  %v8866 = vpop.f32.mrf.mxu0
  %v8867 = vadd.f32 0.0, %v8866
  %v8868 = vpop.f32.mrf.mxu0
  %8869 = vmatprep.mubr.bf16.mxu0 %v7704
  %8870 = vmatmul.mubr.bf16.gmra.mxu0 %v7703
  %v8871 = vpop.f32.mrf.mxu0
  %v8872 = vadd.f32 0.0, %v8871
  %v8873 = vpop.f32.mrf.mxu0
  %v8874 = vpop.f32.mrf.mxu0
  %v8875 = vadd.f32 0.0, %v8874
  %v8876 = vpop.f32.mrf.mxu0
  %8877 = vmatprep.mubr.bf16.mxu0 %v7708
  %8878 = vmatmul.mubr.bf16.gmra.mxu0 %v7707
  %v8879 = vpop.f32.mrf.mxu0
  %v8880 = vadd.f32 0.0, %v8879
  %v8881 = vpop.f32.mrf.mxu0
  %v8882 = vpop.f32.mrf.mxu0
  %v8883 = vadd.f32 0.0, %v8882
  %v8884 = vpop.f32.mrf.mxu0
  %8885 = vmatprep.mubr.bf16.mxu0 %v7712
  %8886 = vmatmul.mubr.bf16.gmra.mxu0 %v7711
  %v8887 = vpop.f32.mrf.mxu0
  %v8888 = vadd.f32 0.0, %v8887
  %v8889 = vpop.f32.mrf.mxu0
  %v8890 = vpop.f32.mrf.mxu0
  %v8891 = vadd.f32 0.0, %v8890
  %v8892 = vpop.f32.mrf.mxu0
  %8893 = vmatprep.mubr.bf16.mxu0 %v7716
  %8894 = vmatmul.mubr.bf16.gmra.mxu0 %v7715
  %v8895 = vpop.f32.mrf.mxu0
  %v8896 = vadd.f32 0.0, %v8895
  %v8897 = vpop.f32.mrf.mxu0
  %v8898 = vpop.f32.mrf.mxu0
  %v8899 = vadd.f32 0.0, %v8898
  %v8900 = vpop.f32.mrf.mxu0
  %8901 = vmatprep.mubr.bf16.mxu0 %v7720
  %8902 = vmatmul.mubr.bf16.gmra.mxu0 %v7719
  %v8903 = vpop.f32.mrf.mxu0
  %v8904 = vadd.f32 0.0, %v8903
  %v8905 = vpop.f32.mrf.mxu0
  %v8906 = vpop.f32.mrf.mxu0
  %v8907 = vadd.f32 0.0, %v8906
  %v8908 = vpop.f32.mrf.mxu0
  %8909 = vdwg.mxu0
  %8910 = vmatprep.subr.bf16.mxu0 0
  %8911 = vmatpush1.bf16.msra.mxu0 %v8242
  %8912 = vmatprep.subr.bf16.mxu0 0
  %8913 = vmatpush1.bf16.msra.mxu0 %v8239
  %8914 = vmatprep.subr.bf16.mxu0 0
  %8915 = vmatpush1.bf16.msra.mxu0 %v8236
  %8916 = vmatprep.subr.bf16.mxu0 0
  %8917 = vmatpush1.bf16.msra.mxu0 %v8233
  %8918 = vmatprep.subr.bf16.mxu0 0
  %8919 = vmatpush1.bf16.msra.mxu0 %v8230
  %8920 = vmatprep.subr.bf16.mxu0 0
  %8921 = vmatpush1.bf16.msra.mxu0 %v8227
  %8922 = vmatprep.subr.bf16.mxu0 0
  %8923 = vmatpush1.bf16.msra.mxu0 %v8224
  %8924 = vmatprep.subr.bf16.mxu0 0
  %8925 = vmatpush1.bf16.msra.mxu0 %v8221
  %8926 = vmatprep.subr.bf16.mxu0 0
  %8927 = vmatpush2.bf16.msra.mxu0 %v8266
  %8928 = vmatprep.subr.bf16.mxu0 0
  %8929 = vmatpush2.bf16.msra.mxu0 %v8263
  %8930 = vmatprep.subr.bf16.mxu0 0
  %8931 = vmatpush2.bf16.msra.mxu0 %v8260
  %8932 = vmatprep.subr.bf16.mxu0 0
  %8933 = vmatpush2.bf16.msra.mxu0 %v8257
  %8934 = vmatprep.subr.bf16.mxu0 0
  %8935 = vmatpush2.bf16.msra.mxu0 %v8254
  %8936 = vmatprep.subr.bf16.mxu0 0
  %8937 = vmatpush2.bf16.msra.mxu0 %v8251
  %8938 = vmatprep.subr.bf16.mxu0 0
  %8939 = vmatpush2.bf16.msra.mxu0 %v8248
  %8940 = vmatprep.subr.bf16.mxu0 0
  %8941 = vmatpush2.bf16.msra.mxu0 %v8245
  %8942 = vmatprep.mubr.bf16.mxu0 %v7662
  %8943 = vmatmul.mubr.bf16.gmra.mxu0 %v7661
  %v8944 = vpop.f32.mrf.mxu0
  %v8945 = vadd.f32 %v8784, %v8944
  %v8946 = vpop.f32.mrf.mxu0
  %v8947 = vpop.f32.mrf.mxu0
  %v8948 = vadd.f32 %v8787, %v8947
  %v8949 = vpop.f32.mrf.mxu0
  %8950 = vmatprep.mubr.bf16.mxu0 %v7666
  %8951 = vmatmul.mubr.bf16.gmra.mxu0 %v7665
  %v8952 = vpop.f32.mrf.mxu0
  %v8953 = vadd.f32 %v8792, %v8952
  %v8954 = vpop.f32.mrf.mxu0
  %v8955 = vpop.f32.mrf.mxu0
  %v8956 = vadd.f32 %v8795, %v8955
  %v8957 = vpop.f32.mrf.mxu0
  %8958 = vmatprep.mubr.bf16.mxu0 %v7670
  %8959 = vmatmul.mubr.bf16.gmra.mxu0 %v7669
  %v8960 = vpop.f32.mrf.mxu0
  %v8961 = vadd.f32 %v8800, %v8960
  %v8962 = vpop.f32.mrf.mxu0
  %v8963 = vpop.f32.mrf.mxu0
  %v8964 = vadd.f32 %v8803, %v8963
  %v8965 = vpop.f32.mrf.mxu0
  %8966 = vmatprep.mubr.bf16.mxu0 %v7674
  %8967 = vmatmul.mubr.bf16.gmra.mxu0 %v7673
  %v8968 = vpop.f32.mrf.mxu0
  %v8969 = vadd.f32 %v8808, %v8968
  %v8970 = vpop.f32.mrf.mxu0
  %v8971 = vpop.f32.mrf.mxu0
  %v8972 = vadd.f32 %v8811, %v8971
  %v8973 = vpop.f32.mrf.mxu0
  %8974 = vmatprep.mubr.bf16.mxu0 %v7678
  %8975 = vmatmul.mubr.bf16.gmra.mxu0 %v7677
  %v8976 = vpop.f32.mrf.mxu0
  %v8977 = vadd.f32 %v8816, %v8976
  %v8978 = vpop.f32.mrf.mxu0
  %v8979 = vpop.f32.mrf.mxu0
  %v8980 = vadd.f32 %v8819, %v8979
  %v8981 = vpop.f32.mrf.mxu0
  %8982 = vmatprep.mubr.bf16.mxu0 %v7682
  %8983 = vmatmul.mubr.bf16.gmra.mxu0 %v7681
  %v8984 = vpop.f32.mrf.mxu0
  %v8985 = vadd.f32 %v8824, %v8984
  %v8986 = vpop.f32.mrf.mxu0
  %v8987 = vpop.f32.mrf.mxu0
  %v8988 = vadd.f32 %v8827, %v8987
  %v8989 = vpop.f32.mrf.mxu0
  %8990 = vmatprep.mubr.bf16.mxu0 %v7686
  %8991 = vmatmul.mubr.bf16.gmra.mxu0 %v7685
  %v8992 = vpop.f32.mrf.mxu0
  %v8993 = vadd.f32 %v8832, %v8992
  %v8994 = vpop.f32.mrf.mxu0
  %v8995 = vpop.f32.mrf.mxu0
  %v8996 = vadd.f32 %v8835, %v8995
  %v8997 = vpop.f32.mrf.mxu0
  %8998 = vmatprep.mubr.bf16.mxu0 %v7690
  %8999 = vmatmul.mubr.bf16.gmra.mxu0 %v7689
  %v9000 = vpop.f32.mrf.mxu0
  %v9001 = vadd.f32 %v8840, %v9000
  %v9002 = vpop.f32.mrf.mxu0
  %v9003 = vpop.f32.mrf.mxu0
  %v9004 = vadd.f32 %v8843, %v9003
  %v9005 = vpop.f32.mrf.mxu0
  %9006 = vmatprep.mubr.bf16.mxu0 %v7694
  %9007 = vmatmul.mubr.bf16.gmra.mxu0 %v7693
  %v9008 = vpop.f32.mrf.mxu0
  %v9009 = vadd.f32 %v8848, %v9008
  %v9010 = vpop.f32.mrf.mxu0
  %v9011 = vpop.f32.mrf.mxu0
  %v9012 = vadd.f32 %v8851, %v9011
  %v9013 = vpop.f32.mrf.mxu0
  %9014 = vmatprep.mubr.bf16.mxu0 %v7698
  %9015 = vmatmul.mubr.bf16.gmra.mxu0 %v7697
  %v9016 = vpop.f32.mrf.mxu0
  %v9017 = vadd.f32 %v8856, %v9016
  %v9018 = vpop.f32.mrf.mxu0
  %v9019 = vpop.f32.mrf.mxu0
  %v9020 = vadd.f32 %v8859, %v9019
  %v9021 = vpop.f32.mrf.mxu0
  %9022 = vmatprep.mubr.bf16.mxu0 %v7702
  %9023 = vmatmul.mubr.bf16.gmra.mxu0 %v7701
  %v9024 = vpop.f32.mrf.mxu0
  %v9025 = vadd.f32 %v8864, %v9024
  %v9026 = vpop.f32.mrf.mxu0
  %v9027 = vpop.f32.mrf.mxu0
  %v9028 = vadd.f32 %v8867, %v9027
  %v9029 = vpop.f32.mrf.mxu0
  %9030 = vmatprep.mubr.bf16.mxu0 %v7706
  %9031 = vmatmul.mubr.bf16.gmra.mxu0 %v7705
  %v9032 = vpop.f32.mrf.mxu0
  %v9033 = vadd.f32 %v8872, %v9032
  %v9034 = vpop.f32.mrf.mxu0
  %v9035 = vpop.f32.mrf.mxu0
  %v9036 = vadd.f32 %v8875, %v9035
  %v9037 = vpop.f32.mrf.mxu0
  %9038 = vmatprep.mubr.bf16.mxu0 %v7710
  %9039 = vmatmul.mubr.bf16.gmra.mxu0 %v7709
  %v9040 = vpop.f32.mrf.mxu0
  %v9041 = vadd.f32 %v8880, %v9040
  %v9042 = vpop.f32.mrf.mxu0
  %v9043 = vpop.f32.mrf.mxu0
  %v9044 = vadd.f32 %v8883, %v9043
  %v9045 = vpop.f32.mrf.mxu0
  %9046 = vmatprep.mubr.bf16.mxu0 %v7714
  %9047 = vmatmul.mubr.bf16.gmra.mxu0 %v7713
  %v9048 = vpop.f32.mrf.mxu0
  %v9049 = vadd.f32 %v8888, %v9048
  %v9050 = vpop.f32.mrf.mxu0
  %v9051 = vpop.f32.mrf.mxu0
  %v9052 = vadd.f32 %v8891, %v9051
  %v9053 = vpop.f32.mrf.mxu0
  %9054 = vmatprep.mubr.bf16.mxu0 %v7718
  %9055 = vmatmul.mubr.bf16.gmra.mxu0 %v7717
  %v9056 = vpop.f32.mrf.mxu0
  %v9057 = vadd.f32 %v8896, %v9056
  %v9058 = vpop.f32.mrf.mxu0
  %v9059 = vpop.f32.mrf.mxu0
  %v9060 = vadd.f32 %v8899, %v9059
  %v9061 = vpop.f32.mrf.mxu0
  %9062 = vmatprep.mubr.bf16.mxu0 %v7722
  %9063 = vmatmul.mubr.bf16.gmra.mxu0 %v7721
  %v9064 = vpop.f32.mrf.mxu0
  %v9065 = vadd.f32 %v8904, %v9064
  %v9066 = vpop.f32.mrf.mxu0
  %v9067 = vpop.f32.mrf.mxu0
  %v9068 = vadd.f32 %v8907, %v9067
  %v9069 = vpop.f32.mrf.mxu0
  %9070 = vdwg.mxu0
  %v9071 = vadd.f32 %v5681, %v8591
  %v9072 = vadd.f32 %v5683, %v8593
  %v9073 = vadd.f32 %v6035, %v8945
  %v9074 = vadd.f32 %v5685, %v8595
  %v9075 = vadd.f32 %v5687, %v8597
  %v9076 = vadd.f32 %v6038, %v8948
  %v9077 = vadd.f32 %v5691, %v8601
  %v9078 = vadd.f32 %v5693, %v8603
  %v9079 = vadd.f32 %v6043, %v8953
  %v9080 = vadd.f32 %v5695, %v8605
  %v9081 = vadd.f32 %v5697, %v8607
  %v9082 = vadd.f32 %v6046, %v8956
  %v9083 = vadd.f32 %v5701, %v8611
  %v9084 = vadd.f32 %v5703, %v8613
  %v9085 = vadd.f32 %v6051, %v8961
  %v9086 = vadd.f32 %v5705, %v8615
  %v9087 = vadd.f32 %v5707, %v8617
  %v9088 = vadd.f32 %v6054, %v8964
  %v9089 = vadd.f32 %v5711, %v8621
  %v9090 = vadd.f32 %v5713, %v8623
  %v9091 = vadd.f32 %v6059, %v8969
  %v9092 = vadd.f32 %v5715, %v8625
  %v9093 = vadd.f32 %v5717, %v8627
  %v9094 = vadd.f32 %v6062, %v8972
  %v9095 = vadd.f32 %v5721, %v8631
  %v9096 = vadd.f32 %v5723, %v8633
  %v9097 = vadd.f32 %v6067, %v8977
  %v9098 = vadd.f32 %v5725, %v8635
  %v9099 = vadd.f32 %v5727, %v8637
  %v9100 = vadd.f32 %v6070, %v8980
  %v9101 = vadd.f32 %v5731, %v8641
  %v9102 = vadd.f32 %v5733, %v8643
  %v9103 = vadd.f32 %v6075, %v8985
  %v9104 = vadd.f32 %v5735, %v8645
  %v9105 = vadd.f32 %v5737, %v8647
  %v9106 = vadd.f32 %v6078, %v8988
  %v9107 = vadd.f32 %v5741, %v8651
  %v9108 = vadd.f32 %v5743, %v8653
  %v9109 = vadd.f32 %v6083, %v8993
  %v9110 = vadd.f32 %v5745, %v8655
  %v9111 = vadd.f32 %v5747, %v8657
  %v9112 = vadd.f32 %v6086, %v8996
  %v9113 = vadd.f32 %v5751, %v8661
  %v9114 = vadd.f32 %v5753, %v8663
  %v9115 = vadd.f32 %v6091, %v9001
  %v9116 = vadd.f32 %v5755, %v8665
  %v9117 = vadd.f32 %v5757, %v8667
  %v9118 = vadd.f32 %v6094, %v9004
  %v9119 = vadd.f32 %v5761, %v8671
  %v9120 = vadd.f32 %v5763, %v8673
  %v9121 = vadd.f32 %v6099, %v9009
  %v9122 = vadd.f32 %v5765, %v8675
  %v9123 = vadd.f32 %v5767, %v8677
  %v9124 = vadd.f32 %v6102, %v9012
  %v9125 = vadd.f32 %v5771, %v8681
  %v9126 = vadd.f32 %v5773, %v8683
  %v9127 = vadd.f32 %v6107, %v9017
  %v9128 = vadd.f32 %v5775, %v8685
  %v9129 = vadd.f32 %v5777, %v8687
  %v9130 = vadd.f32 %v6110, %v9020
  %v9131 = vadd.f32 %v5781, %v8691
  %v9132 = vadd.f32 %v5783, %v8693
  %v9133 = vadd.f32 %v6115, %v9025
  %v9134 = vadd.f32 %v5785, %v8695
  %v9135 = vadd.f32 %v5787, %v8697
  %v9136 = vadd.f32 %v6118, %v9028
  %v9137 = vadd.f32 %v5791, %v8701
  %v9138 = vadd.f32 %v5793, %v8703
  %v9139 = vadd.f32 %v6123, %v9033
  %v9140 = vadd.f32 %v5795, %v8705
  %v9141 = vadd.f32 %v5797, %v8707
  %v9142 = vadd.f32 %v6126, %v9036
  %v9143 = vadd.f32 %v5801, %v8711
  %v9144 = vadd.f32 %v5803, %v8713
  %v9145 = vadd.f32 %v6131, %v9041
  %v9146 = vadd.f32 %v5805, %v8715
  %v9147 = vadd.f32 %v5807, %v8717
  %v9148 = vadd.f32 %v6134, %v9044
  %v9149 = vadd.f32 %v5811, %v8721
  %v9150 = vadd.f32 %v5813, %v8723
  %v9151 = vadd.f32 %v6139, %v9049
  %v9152 = vadd.f32 %v5815, %v8725
  %v9153 = vadd.f32 %v5817, %v8727
  %v9154 = vadd.f32 %v6142, %v9052
  %v9155 = vadd.f32 %v5821, %v8731
  %v9156 = vadd.f32 %v5823, %v8733
  %v9157 = vadd.f32 %v6147, %v9057
  %v9158 = vadd.f32 %v5825, %v8735
  %v9159 = vadd.f32 %v5827, %v8737
  %v9160 = vadd.f32 %v6150, %v9060
  %v9161 = vadd.f32 %v5831, %v8741
  %v9162 = vadd.f32 %v5833, %v8743
  %v9163 = vadd.f32 %v6155, %v9065
  %v9164 = vadd.f32 %v5835, %v8745
  %v9165 = vadd.f32 %v5837, %v8747
  %v9166 = vadd.f32 %v6158, %v9068
  %v9167 = vld [vmem:[%s4] sm:$0x7]
  %v9169 = vlaneseq
  %v9170 = vshrl.u32 %v9169, 7
  %v9171 = vsub.s32 0, %v9170
  %v9172 = vrot.slane %v9167, %v9171
  %v9173 = vlaneseq
  %v9174 = vshrl.u32 %v9173, 7
  %v9175 = vsub.s32 1, %v9174
  %v9176 = vrot.slane %v9167, %v9175
  %v9177 = vlaneseq
  %v9178 = vshrl.u32 %v9177, 7
  %v9179 = vsub.s32 2, %v9178
  %v9180 = vrot.slane %v9167, %v9179
  %v9184 = vadd.f32 %v9071, %v9172
  %v9185 = vadd.f32 %v9072, %v9176
  %v9186 = vadd.f32 %v9073, %v9180
  %v9187 = vadd.f32 %v9074, %v9172
  %v9188 = vadd.f32 %v9075, %v9176
  %v9189 = vadd.f32 %v9076, %v9180
  %v9190 = vadd.f32 %v9077, %v9172
  %v9191 = vadd.f32 %v9078, %v9176
  %v9192 = vadd.f32 %v9079, %v9180
  %v9193 = vadd.f32 %v9080, %v9172
  %v9194 = vadd.f32 %v9081, %v9176
  %v9195 = vadd.f32 %v9082, %v9180
  %v9196 = vadd.f32 %v9083, %v9172
  %v9197 = vadd.f32 %v9084, %v9176
  %v9198 = vadd.f32 %v9085, %v9180
  %v9199 = vadd.f32 %v9086, %v9172
  %v9200 = vadd.f32 %v9087, %v9176
  %v9201 = vadd.f32 %v9088, %v9180
  %v9202 = vadd.f32 %v9089, %v9172
  %v9203 = vadd.f32 %v9090, %v9176
  %v9204 = vadd.f32 %v9091, %v9180
  %v9205 = vadd.f32 %v9092, %v9172
  %v9206 = vadd.f32 %v9093, %v9176
  %v9207 = vadd.f32 %v9094, %v9180
  %v9208 = vadd.f32 %v9095, %v9172
  %v9209 = vadd.f32 %v9096, %v9176
  %v9210 = vadd.f32 %v9097, %v9180
  %v9211 = vadd.f32 %v9098, %v9172
  %v9212 = vadd.f32 %v9099, %v9176
  %v9213 = vadd.f32 %v9100, %v9180
  %v9214 = vadd.f32 %v9101, %v9172
  %v9215 = vadd.f32 %v9102, %v9176
  %v9216 = vadd.f32 %v9103, %v9180
  %v9217 = vadd.f32 %v9104, %v9172
  %v9218 = vadd.f32 %v9105, %v9176
  %v9219 = vadd.f32 %v9106, %v9180
  %v9220 = vadd.f32 %v9107, %v9172
  %v9221 = vadd.f32 %v9108, %v9176
  %v9222 = vadd.f32 %v9109, %v9180
  %v9223 = vadd.f32 %v9110, %v9172
  %v9224 = vadd.f32 %v9111, %v9176
  %v9225 = vadd.f32 %v9112, %v9180
  %v9226 = vadd.f32 %v9113, %v9172
  %v9227 = vadd.f32 %v9114, %v9176
  %v9228 = vadd.f32 %v9115, %v9180
  %v9229 = vadd.f32 %v9116, %v9172
  %v9230 = vadd.f32 %v9117, %v9176
  %v9231 = vadd.f32 %v9118, %v9180
  %v9232 = vadd.f32 %v9119, %v9172
  %v9233 = vadd.f32 %v9120, %v9176
  %v9234 = vadd.f32 %v9121, %v9180
  %v9235 = vadd.f32 %v9122, %v9172
  %v9236 = vadd.f32 %v9123, %v9176
  %v9237 = vadd.f32 %v9124, %v9180
  %v9238 = vadd.f32 %v9125, %v9172
  %v9239 = vadd.f32 %v9126, %v9176
  %v9240 = vadd.f32 %v9127, %v9180
  %v9241 = vadd.f32 %v9128, %v9172
  %v9242 = vadd.f32 %v9129, %v9176
  %v9243 = vadd.f32 %v9130, %v9180
  %v9244 = vadd.f32 %v9131, %v9172
  %v9245 = vadd.f32 %v9132, %v9176
  %v9246 = vadd.f32 %v9133, %v9180
  %v9247 = vadd.f32 %v9134, %v9172
  %v9248 = vadd.f32 %v9135, %v9176
  %v9249 = vadd.f32 %v9136, %v9180
  %v9250 = vadd.f32 %v9137, %v9172
  %v9251 = vadd.f32 %v9138, %v9176
  %v9252 = vadd.f32 %v9139, %v9180
  %v9253 = vadd.f32 %v9140, %v9172
  %v9254 = vadd.f32 %v9141, %v9176
  %v9255 = vadd.f32 %v9142, %v9180
  %v9256 = vadd.f32 %v9143, %v9172
  %v9257 = vadd.f32 %v9144, %v9176
  %v9258 = vadd.f32 %v9145, %v9180
  %v9259 = vadd.f32 %v9146, %v9172
  %v9260 = vadd.f32 %v9147, %v9176
  %v9261 = vadd.f32 %v9148, %v9180
  %v9262 = vadd.f32 %v9149, %v9172
  %v9263 = vadd.f32 %v9150, %v9176
  %v9264 = vadd.f32 %v9151, %v9180
  %v9265 = vadd.f32 %v9152, %v9172
  %v9266 = vadd.f32 %v9153, %v9176
  %v9267 = vadd.f32 %v9154, %v9180
  %v9268 = vadd.f32 %v9155, %v9172
  %v9269 = vadd.f32 %v9156, %v9176
  %v9270 = vadd.f32 %v9157, %v9180
  %v9271 = vadd.f32 %v9158, %v9172
  %v9272 = vadd.f32 %v9159, %v9176
  %v9273 = vadd.f32 %v9160, %v9180
  %v9274 = vadd.f32 %v9161, %v9172
  %v9275 = vadd.f32 %v9162, %v9176
  %v9276 = vadd.f32 %v9163, %v9180
  %v9277 = vadd.f32 %v9164, %v9172
  %v9278 = vadd.f32 %v9165, %v9176
  %v9279 = vadd.f32 %v9166, %v9180
  %9280 = vst [vmem:[%s5] sm:$0xff] %v9184
  %9281 = vst [vmem:[%s5 + $0x8] sm:$0xff] %v9185
  %9282 = vst [vmem:[%s5 + $0x10] sm:$0xff] %v9186
  %9283 = vst [vmem:[%s5 + $0x18] sm:$0xff] %v9187
  %9284 = vst [vmem:[%s5 + $0x20] sm:$0xff] %v9188
  %9285 = vst [vmem:[%s5 + $0x28] sm:$0xff] %v9189
  %9286 = vst [vmem:[%s5 + $0x30] sm:$0xff] %v9190
  %9287 = vst [vmem:[%s5 + $0x38] sm:$0xff] %v9191
  %9288 = vst [vmem:[%s5 + $0x40] sm:$0xff] %v9192
  %9289 = vst [vmem:[%s5 + $0x48] sm:$0xff] %v9193
  %9290 = vst [vmem:[%s5 + $0x50] sm:$0xff] %v9194
  %9291 = vst [vmem:[%s5 + $0x58] sm:$0xff] %v9195
  %9292 = vst [vmem:[%s5 + $0x60] sm:$0xff] %v9196
  %9293 = vst [vmem:[%s5 + $0x68] sm:$0xff] %v9197
  %9294 = vst [vmem:[%s5 + $0x70] sm:$0xff] %v9198
  %9295 = vst [vmem:[%s5 + $0x78] sm:$0xff] %v9199
  %9296 = vst [vmem:[%s5 + $0x80] sm:$0xff] %v9200
  %9297 = vst [vmem:[%s5 + $0x88] sm:$0xff] %v9201
  %9298 = vst [vmem:[%s5 + $0x90] sm:$0xff] %v9202
  %9299 = vst [vmem:[%s5 + $0x98] sm:$0xff] %v9203
  %9300 = vst [vmem:[%s5 + $0xa0] sm:$0xff] %v9204
  %9301 = vst [vmem:[%s5 + $0xa8] sm:$0xff] %v9205
  %9302 = vst [vmem:[%s5 + $0xb0] sm:$0xff] %v9206
  %9303 = vst [vmem:[%s5 + $0xb8] sm:$0xff] %v9207
  %9304 = vst [vmem:[%s5 + $0xc0] sm:$0xff] %v9208
  %9305 = vst [vmem:[%s5 + $0xc8] sm:$0xff] %v9209
  %9306 = vst [vmem:[%s5 + $0xd0] sm:$0xff] %v9210
  %9307 = vst [vmem:[%s5 + $0xd8] sm:$0xff] %v9211
  %9308 = vst [vmem:[%s5 + $0xe0] sm:$0xff] %v9212
  %9309 = vst [vmem:[%s5 + $0xe8] sm:$0xff] %v9213
  %9310 = vst [vmem:[%s5 + $0xf0] sm:$0xff] %v9214
  %9311 = vst [vmem:[%s5 + $0xf8] sm:$0xff] %v9215
  %9312 = vst [vmem:[%s5 + $0x100] sm:$0xff] %v9216
  %9313 = vst [vmem:[%s5 + $0x108] sm:$0xff] %v9217
  %9314 = vst [vmem:[%s5 + $0x110] sm:$0xff] %v9218
  %9315 = vst [vmem:[%s5 + $0x118] sm:$0xff] %v9219
  %9316 = vst [vmem:[%s5 + $0x120] sm:$0xff] %v9220
  %9317 = vst [vmem:[%s5 + $0x128] sm:$0xff] %v9221
  %9318 = vst [vmem:[%s5 + $0x130] sm:$0xff] %v9222
  %9319 = vst [vmem:[%s5 + $0x138] sm:$0xff] %v9223
  %9320 = vst [vmem:[%s5 + $0x140] sm:$0xff] %v9224
  %9321 = vst [vmem:[%s5 + $0x148] sm:$0xff] %v9225
  %9322 = vst [vmem:[%s5 + $0x150] sm:$0xff] %v9226
  %9323 = vst [vmem:[%s5 + $0x158] sm:$0xff] %v9227
  %9324 = vst [vmem:[%s5 + $0x160] sm:$0xff] %v9228
  %9325 = vst [vmem:[%s5 + $0x168] sm:$0xff] %v9229
  %9326 = vst [vmem:[%s5 + $0x170] sm:$0xff] %v9230
  %9327 = vst [vmem:[%s5 + $0x178] sm:$0xff] %v9231
  %9328 = vst [vmem:[%s5 + $0x180] sm:$0xff] %v9232
  %9329 = vst [vmem:[%s5 + $0x188] sm:$0xff] %v9233
  %9330 = vst [vmem:[%s5 + $0x190] sm:$0xff] %v9234
  %9331 = vst [vmem:[%s5 + $0x198] sm:$0xff] %v9235
  %9332 = vst [vmem:[%s5 + $0x1a0] sm:$0xff] %v9236
  %9333 = vst [vmem:[%s5 + $0x1a8] sm:$0xff] %v9237
  %9334 = vst [vmem:[%s5 + $0x1b0] sm:$0xff] %v9238
  %9335 = vst [vmem:[%s5 + $0x1b8] sm:$0xff] %v9239
  %9336 = vst [vmem:[%s5 + $0x1c0] sm:$0xff] %v9240
  %9337 = vst [vmem:[%s5 + $0x1c8] sm:$0xff] %v9241
  %9338 = vst [vmem:[%s5 + $0x1d0] sm:$0xff] %v9242
  %9339 = vst [vmem:[%s5 + $0x1d8] sm:$0xff] %v9243
  %9340 = vst [vmem:[%s5 + $0x1e0] sm:$0xff] %v9244
  %9341 = vst [vmem:[%s5 + $0x1e8] sm:$0xff] %v9245
  %9342 = vst [vmem:[%s5 + $0x1f0] sm:$0xff] %v9246
  %9343 = vst [vmem:[%s5 + $0x1f8] sm:$0xff] %v9247
  %9344 = vst [vmem:[%s5 + $0x200] sm:$0xff] %v9248
  %9345 = vst [vmem:[%s5 + $0x208] sm:$0xff] %v9249
  %9346 = vst [vmem:[%s5 + $0x210] sm:$0xff] %v9250
  %9347 = vst [vmem:[%s5 + $0x218] sm:$0xff] %v9251
  %9348 = vst [vmem:[%s5 + $0x220] sm:$0xff] %v9252
  %9349 = vst [vmem:[%s5 + $0x228] sm:$0xff] %v9253
  %9350 = vst [vmem:[%s5 + $0x230] sm:$0xff] %v9254
  %9351 = vst [vmem:[%s5 + $0x238] sm:$0xff] %v9255
  %9352 = vst [vmem:[%s5 + $0x240] sm:$0xff] %v9256
  %9353 = vst [vmem:[%s5 + $0x248] sm:$0xff] %v9257
  %9354 = vst [vmem:[%s5 + $0x250] sm:$0xff] %v9258
  %9355 = vst [vmem:[%s5 + $0x258] sm:$0xff] %v9259
  %9356 = vst [vmem:[%s5 + $0x260] sm:$0xff] %v9260
  %9357 = vst [vmem:[%s5 + $0x268] sm:$0xff] %v9261
  %9358 = vst [vmem:[%s5 + $0x270] sm:$0xff] %v9262
  %9359 = vst [vmem:[%s5 + $0x278] sm:$0xff] %v9263
  %9360 = vst [vmem:[%s5 + $0x280] sm:$0xff] %v9264
  %9361 = vst [vmem:[%s5 + $0x288] sm:$0xff] %v9265
  %9362 = vst [vmem:[%s5 + $0x290] sm:$0xff] %v9266
  %9363 = vst [vmem:[%s5 + $0x298] sm:$0xff] %v9267
  %9364 = vst [vmem:[%s5 + $0x2a0] sm:$0xff] %v9268
  %9365 = vst [vmem:[%s5 + $0x2a8] sm:$0xff] %v9269
  %9366 = vst [vmem:[%s5 + $0x2b0] sm:$0xff] %v9270
  %9367 = vst [vmem:[%s5 + $0x2b8] sm:$0xff] %v9271
  %9368 = vst [vmem:[%s5 + $0x2c0] sm:$0xff] %v9272
  %9369 = vst [vmem:[%s5 + $0x2c8] sm:$0xff] %v9273
  %9370 = vst [vmem:[%s5 + $0x2d0] sm:$0xff] %v9274
  %9371 = vst [vmem:[%s5 + $0x2d8] sm:$0xff] %v9275
  %9372 = vst [vmem:[%s5 + $0x2e0] sm:$0xff] %v9276
  %9373 = vst [vmem:[%s5 + $0x2e8] sm:$0xff] %v9277
  %9374 = vst [vmem:[%s5 + $0x2f0] sm:$0xff] %v9278
  %9375 = vst [vmem:[%s5 + $0x2f8] sm:$0xff] %v9279
  // Predicated region
  $region22: #{feed_forward.1} parent=0 // pred_check
    _
  $region23: #{feed_forward.1} parent=0 // pred_check_branch
    %9377 = sbr.rel (0) target = $region25
  $region24: #{feed_forward.1} parent=0 // pred_region
    _
  $region25: #{feed_forward.1} parent=0 // pred_fallthru
    _
  // Predicated region
  $region26: #{feed_forward.1} parent=0 // pred_check
    _
  $region27: #{feed_forward.1} parent=0 // pred_check_branch
    %9379 = sbr.rel (0) target = $region29
  $region28: #{feed_forward.1} parent=0 // pred_region
    _
  $region29: #{feed_forward.1} parent=0 // pred_fallthru
    _

</llo_original>
